<compile_context>
chip_gen: v5e
topology: v5e:2x2
jax: 0.10.0
libtpu: 0.0.40
codegen_flags: <defaults>
</compile_context>

<pallas_src>
import functools

import jax
import jax.numpy as jnp
import numpy as np
from jax import lax
from jax.experimental import pallas as pl
from jax.experimental.pallas import tpu as pltpu


# ---------------------------------------------------------------------------
# In-kernel helpers
# ---------------------------------------------------------------------------
def _shift_flat(x, s, hw_flat):
    """v[:, i] = x[:, (i + s) mod hw_flat]; wrapped entries are masked later."""
    k = s % hw_flat
    if k == 0:
        return x
    if hw_flat % 128 == 0:
        # Lane-aligned total size: XLU rotate (free slot, overlaps MXU/VPU).
        return pltpu.roll(x, shift=hw_flat - k, axis=1)
    # Small / unaligned levels: two lane slices + concat (still correct).
    return jnp.concatenate([x[:, k:], x[:, :k]], axis=1)


def _conv3x3_bn_relu(x, masks_ref, wmat, bias, hw):
    """3x3 'same' conv (+ folded BN) + ReLU on a (C, H*W) tile.

    x        : (C, H*W)   f32 activations, flattened spatial on lanes.
    masks_ref: (9, H*W)   f32 {0,1} border-validity masks, one row per tap.
    wmat     : (Cout, 9C) f32 folded conv+BN weight, tap-major columns.
    bias     : (Cout, 1)  f32 folded BN bias.
    """
    H, W = hw
    hw_flat = H * W
    taps = []
    for dy in (-1, 0, 1):
        for dx in (-1, 0, 1):
            t = (dy + 1) * 3 + (dx + 1)
            s = dy * W + dx                      # flattened spatial shift
            if s == 0:
                taps.append(x)                   # centre tap: no shift/mask
            else:
                v = _shift_flat(x, s, hw_flat)
                taps.append(v * masks_ref[t:t + 1, :])
    patches = jnp.concatenate(taps, axis=0)      # (9C, H*W) im2col tile
    acc = jnp.dot(wmat, patches, preferred_element_type=jnp.float32)
    return jnp.maximum(acc + bias, 0.0)          # fused bias + ReLU (once)


def _bcm_kernel(f1_ref, f2_ref, f3_ref, f4_ref,
                k43_ref, k32_ref, k21_ref,
                m3_ref, m2_ref, m1_ref,
                w4_ref, b4_ref, w3_ref, b3_ref,
                w2_ref, b2_ref, w1_ref, b1_ref,
                out_ref, *, hw3, hw2, hw1):
    # stage 4: bilinear up f4 -> f3 size (one matmul), then conv4
    g = jnp.dot(f4_ref[0], k43_ref[...], preferred_element_type=jnp.float32)
    g = _conv3x3_bn_relu(g, m3_ref, w4_ref[...], b4_ref[...], hw3)
    # stage 3: (g + f3) -> f2 size, conv3
    g = jnp.dot(g + f3_ref[0], k32_ref[...], preferred_element_type=jnp.float32)
    g = _conv3x3_bn_relu(g, m2_ref, w3_ref[...], b3_ref[...], hw2)
    # stage 2: (g + f2) -> f1 size, conv2
    g = jnp.dot(g + f2_ref[0], k21_ref[...], preferred_element_type=jnp.float32)
    g = _conv3x3_bn_relu(g, m1_ref, w2_ref[...], b2_ref[...], hw1)
    # stage 1: (g + f1), conv1  -> lane-dense (C, H1*W1) store
    out_ref[0] = _conv3x3_bn_relu(g + f1_ref[0], m1_ref,
                                  w1_ref[...], b1_ref[...], hw1)


# ---------------------------------------------------------------------------
# Host-side constant builders (interpolation matrices, masks, BN folding)
# ---------------------------------------------------------------------------
def _interp_matrix(n_out, n_in):
    """(n_out, n_in) bilinear align_corners=True interpolation matrix."""
    R = np.zeros((n_out, n_in), np.float32)
    if n_out == 1 or n_in == 1:
        R[:, 0] = 1.0
        return R
    src = np.arange(n_out, dtype=np.float64) * (n_in - 1) / (n_out - 1)
    i0 = np.clip(np.floor(src).astype(np.int64), 0, n_in - 1)
    i1 = np.minimum(i0 + 1, n_in - 1)
    f = (src - i0).astype(np.float32)
    R[np.arange(n_out), i0] += 1.0 - f
    R[np.arange(n_out), i1] += f
    return R


def _resize_matrix(src_hw, dst_hw):
    """(Hs*Ws, Ht*Wt) matrix M such that x_flat @ M == bilinear(align_corners=True)."""
    Rh = _interp_matrix(dst_hw[0], src_hw[0])
    Rw = _interp_matrix(dst_hw[1], src_hw[1])
    return jnp.asarray(np.kron(Rh, Rw).T)


def _border_masks(hw):
    """(9, H*W) {0,1} masks: tap (dy,dx) valid where (y+dy, x+dx) is in-bounds."""
    H, W = hw
    y, x = np.meshgrid(np.arange(H), np.arange(W), indexing="ij")
    y = y.reshape(-1)
    x = x.reshape(-1)
    m = np.zeros((9, H * W), np.float32)
    for dy in (-1, 0, 1):
        for dx in (-1, 0, 1):
            t = (dy + 1) * 3 + (dx + 1)
            ok = (y + dy >= 0) & (y + dy < H) & (x + dx >= 0) & (x + dx < W)
            m[t] = ok.astype(np.float32)
    return jnp.asarray(m)


def _fold_conv_bn(w, gamma, beta, mean, var, eps=1e-5):
    """Fold Conv3x3(no bias) + BatchNorm(eval) into (Cout, 9*Cin) W and (Cout, 1) b."""
    scale = gamma / jnp.sqrt(var + eps)
    w_f = w * scale[:, None, None, None]                      # (Cout, Cin, 3, 3)
    wmat = jnp.transpose(w_f, (0, 2, 3, 1)).reshape(w.shape[0], -1)
    bias = (beta - mean * scale).reshape(-1, 1)
    return wmat.astype(jnp.float32), bias.astype(jnp.float32)


# ---------------------------------------------------------------------------
# Pallas wrapper
# ---------------------------------------------------------------------------
def bcm_forward(f1, f2, f3, f4, params):
    """Fused BCM forward.  f_i: NCHW (B, C, H_i, W_i).  Returns (B, C, H1, W1)."""
    B, C, H1, W1 = f1.shape
    H2, W2 = f2.shape[2:]
    H3, W3 = f3.shape[2:]
    H4, W4 = f4.shape[2:]

    w1m, b1m = _fold_conv_bn(*params["conv1"])
    w2m, b2m = _fold_conv_bn(*params["conv2"])
    w3m, b3m = _fold_conv_bn(*params["conv3"])
    w4m, b4m = _fold_conv_bn(*params["conv4"])

    k43 = _resize_matrix((H4, W4), (H3, W3))
    k32 = _resize_matrix((H3, W3), (H2, W2))
    k21 = _resize_matrix((H2, W2), (H1, W1))
    m3 = _border_masks((H3, W3))
    m2 = _border_masks((H2, W2))
    m1 = _border_masks((H1, W1))

    # Free reshapes into the (B, C, H*W) lane-dense layout (no HBM transposes).
    flat = lambda t: t.reshape(t.shape[0], t.shape[1], -1).astype(jnp.float32)
    f1f, f2f, f3f, f4f = flat(f1), flat(f2), flat(f3), flat(f4)

    def batch_spec(hw_flat):
        return pl.BlockSpec((1, C, hw_flat), lambda b: (b, 0, 0))

    def full_spec(arr):
        nd = arr.ndim
        return pl.BlockSpec(arr.shape, lambda b, _nd=nd: (0,) * _nd)

    in_specs = [
        batch_spec(H1 * W1), batch_spec(H2 * W2),
        batch_spec(H3 * W3), batch_spec(H4 * W4),
        full_spec(k43), full_spec(k32), full_spec(k21),
        full_spec(m3), full_spec(m2), full_spec(m1),
        full_spec(w4m), full_spec(b4m), full_spec(w3m), full_spec(b3m),
        full_spec(w2m), full_spec(b2m), full_spec(w1m), full_spec(b1m),
    ]
    out_spec = pl.BlockSpec((1, C, H1 * W1), lambda b: (b, 0, 0))

    kernel = functools.partial(
        _bcm_kernel, hw3=(H3, W3), hw2=(H2, W2), hw1=(H1, W1))

    out_flat = pl.pallas_call(
        kernel,
        out_shape=jax.ShapeDtypeStruct((B, C, H1 * W1), jnp.float32),
        grid_spec=pltpu.PrefetchScalarGridSpec(
            num_scalar_prefetch=0,
            grid=(B,),
            in_specs=in_specs,
            out_specs=out_spec,
        ),
        compiler_params=pltpu.CompilerParams(
            dimension_semantics=("parallel",)),
    )(f1f, f2f, f3f, f4f, k43, k32, k21, m3, m2, m1,
      w4m, b4m, w3m, b3m, w2m, b2m, w1m, b1m)

    return out_flat.reshape(B, C, H1, W1)


# ---------------------------------------------------------------------------
# Pure-JAX reference (independent bilinear gather + lax conv + explicit BN)
# ---------------------------------------------------------------------------
def _resize_bilinear_align_corners(x, dst_hw):
    B, C, Hs, Ws = x.shape
    Ht, Wt = dst_hw

    def coords(n_out, n_in):
        if n_out == 1 or n_in == 1:
            return jnp.zeros((n_out,), jnp.float32)
        return jnp.arange(n_out, dtype=jnp.float32) * ((n_in - 1) / (n_out - 1))

    ty, tx = coords(Ht, Hs), coords(Wt, Ws)
    y0 = jnp.clip(jnp.floor(ty).astype(jnp.int32), 0, Hs - 1)
    y1 = jnp.minimum(y0 + 1, Hs - 1)
    x0 = jnp.clip(jnp.floor(tx).astype(jnp.int32), 0, Ws - 1)
    x1 = jnp.minimum(x0 + 1, Ws - 1)
    fy = (ty - y0.astype(jnp.float32))[None, None, :, None]
    fx = (tx - x0.astype(jnp.float32))[None, None, None, :]
    rows = x[:, :, y0, :] * (1.0 - fy) + x[:, :, y1, :] * fy
    return rows[:, :, :, x0] * (1.0 - fx) + rows[:, :, :, x1] * fx


def bcm_reference(f1, f2, f3, f4, params, eps=1e-5):
    def conv_bn_relu(x, p):
        w, gamma, beta, mean, var = p
        y = lax.conv_general_dilated(
            x, w, window_strides=(1, 1), padding=((1, 1), (1, 1)),
            dimension_numbers=("NCHW", "OIHW", "NCHW"),
            precision=lax.Precision.HIGHEST)
        scale = gamma / jnp.sqrt(var + eps)
        shift = beta - mean * scale
        return jnp.maximum(y * scale[None, :, None, None]
                           + shift[None, :, None, None], 0.0)

    g4 = conv_bn_relu(_resize_bilinear_align_corners(f4, f3.shape[2:]),
                      params["conv4"])
    g3 = conv_bn_relu(_resize_bilinear_align_corners(g4 + f3, f2.shape[2:]),
                      params["conv3"])
    g2 = conv_bn_relu(_resize_bilinear_align_corners(g3 + f2, f1.shape[2:]),
                      params["conv2"])
    return conv_bn_relu(g2 + f1, params["conv1"])


def init_params(key, channel):
    """Synthetic Conv3x3(no bias) + BatchNorm(eval) parameters per block."""
    params = {}
    for name, k in zip(("conv1", "conv2", "conv3", "conv4"),
                       jax.random.split(key, 4)):
        kw, kg, kb, km, kv = jax.random.split(k, 5)
        w = jax.random.normal(kw, (channel, channel, 3, 3), jnp.float32)
        w = w / jnp.sqrt(9.0 * channel)
        gamma = 1.0 + 0.1 * jax.random.normal(kg, (channel,), jnp.float32)
        beta = 0.1 * jax.random.normal(kb, (channel,), jnp.float32)
        mean = 0.1 * jax.random.normal(km, (channel,), jnp.float32)
        var = 0.5 + jax.random.uniform(kv, (channel,), jnp.float32)
        params[name] = (w, gamma, beta, mean, var)
    return params


if __name__ == "__main__":
    B, C = 2, 32
    H1 = W1 = 32
    H2 = W2 = 16
    H3 = W3 = 8
    H4 = W4 = 4

    key = jax.random.PRNGKey(0)
    k1, k2, k3, k4, kp = jax.random.split(key, 5)
    f1 = jax.random.normal(k1, (B, C, H1, W1), jnp.float32)
    f2 = jax.random.normal(k2, (B, C, H2, W2), jnp.float32)
    f3 = jax.random.normal(k3, (B, C, H3, W3), jnp.float32)
    f4 = jax.random.normal(k4, (B, C, H4, W4), jnp.float32)
    params = init_params(kp, C)

    out = jax.block_until_ready(bcm_forward(f1, f2, f3, f4, params))
    ref = jax.block_until_ready(bcm_reference(f1, f2, f3, f4, params))

    assert out.shape == (B, C, H1, W1), out.shape
    max_err = float(jnp.max(jnp.abs(out - ref)))
    assert jnp.allclose(out, ref, atol=1e-2, rtol=1e-2), max_err
    print("KERNEL_OK")
</pallas_src>

<mosaic_0001>
module attributes {stable_mosaic.version = 11 : i64} {
  func.func @_bcm_kernel(%arg0: i32, %arg1: memref<1x32x1024xf32, #tpu.memory_space<vmem>>, %arg2: memref<1x32x256xf32, #tpu.memory_space<vmem>>, %arg3: memref<1x32x64xf32, #tpu.memory_space<vmem>>, %arg4: memref<1x32x16xf32, #tpu.memory_space<vmem>>, %arg5: memref<16x64xf32, #tpu.memory_space<vmem>>, %arg6: memref<64x256xf32, #tpu.memory_space<vmem>>, %arg7: memref<256x1024xf32, #tpu.memory_space<vmem>>, %arg8: memref<9x64xf32, #tpu.memory_space<vmem>>, %arg9: memref<9x256xf32, #tpu.memory_space<vmem>>, %arg10: memref<9x1024xf32, #tpu.memory_space<vmem>>, %arg11: memref<32x288xf32, #tpu.memory_space<vmem>>, %arg12: memref<32x1xf32, #tpu.memory_space<vmem>>, %arg13: memref<32x288xf32, #tpu.memory_space<vmem>>, %arg14: memref<32x1xf32, #tpu.memory_space<vmem>>, %arg15: memref<32x288xf32, #tpu.memory_space<vmem>>, %arg16: memref<32x1xf32, #tpu.memory_space<vmem>>, %arg17: memref<32x288xf32, #tpu.memory_space<vmem>>, %arg18: memref<32x1xf32, #tpu.memory_space<vmem>>, %arg19: memref<1x32x1024xf32, #tpu.memory_space<vmem>>) attributes {dimension_semantics = [#tpu.dimension_semantics<parallel>], iteration_bounds = array<i64: 2>, scalar_prefetch = 0 : i64, scratch_operands = 0 : i64, tpu.core_type = #tpu.core_type<tc>, window_params = [{transform_indices = @transform_0, window_bounds = array<i64: 1, 32, 1024>}, {transform_indices = @transform_1, window_bounds = array<i64: 1, 32, 256>}, {transform_indices = @transform_2, window_bounds = array<i64: 1, 32, 64>}, {transform_indices = @transform_3, window_bounds = array<i64: 1, 32, 16>}, {pipeline_mode = #tpu.pipeline_mode<synchronous>, transform_indices = @transform_4, window_bounds = array<i64: 16, 64>}, {pipeline_mode = #tpu.pipeline_mode<synchronous>, transform_indices = @transform_5, window_bounds = array<i64: 64, 256>}, {pipeline_mode = #tpu.pipeline_mode<synchronous>, transform_indices = @transform_6, window_bounds = array<i64: 256, 1024>}, {pipeline_mode = #tpu.pipeline_mode<synchronous>, transform_indices = @transform_7, window_bounds = array<i64: 9, 64>}, {pipeline_mode = #tpu.pipeline_mode<synchronous>, transform_indices = @transform_8, window_bounds = array<i64: 9, 256>}, {pipeline_mode = #tpu.pipeline_mode<synchronous>, transform_indices = @transform_9, window_bounds = array<i64: 9, 1024>}, {pipeline_mode = #tpu.pipeline_mode<synchronous>, transform_indices = @transform_10, window_bounds = array<i64: 32, 288>}, {pipeline_mode = #tpu.pipeline_mode<synchronous>, transform_indices = @transform_11, window_bounds = array<i64: 32, 1>}, {pipeline_mode = #tpu.pipeline_mode<synchronous>, transform_indices = @transform_12, window_bounds = array<i64: 32, 288>}, {pipeline_mode = #tpu.pipeline_mode<synchronous>, transform_indices = @transform_13, window_bounds = array<i64: 32, 1>}, {pipeline_mode = #tpu.pipeline_mode<synchronous>, transform_indices = @transform_14, window_bounds = array<i64: 32, 288>}, {pipeline_mode = #tpu.pipeline_mode<synchronous>, transform_indices = @transform_15, window_bounds = array<i64: 32, 1>}, {pipeline_mode = #tpu.pipeline_mode<synchronous>, transform_indices = @transform_16, window_bounds = array<i64: 32, 288>}, {pipeline_mode = #tpu.pipeline_mode<synchronous>, transform_indices = @transform_17, window_bounds = array<i64: 32, 1>}, {transform_indices = @transform_18, window_bounds = array<i64: 1, 32, 1024>}]} {
    %c0 = arith.constant 0 : index
    %c0_0 = arith.constant 0 : index
    %c0_1 = arith.constant 0 : index
    %0 = vector.load %arg4[%c0, %c0_0, %c0_1] : memref<1x32x16xf32, #tpu.memory_space<vmem>>, vector<1x32x16xf32>
    %1 = vector.shape_cast %0 : vector<1x32x16xf32> to vector<32x16xf32>
    %c0_2 = arith.constant 0 : index
    %c0_3 = arith.constant 0 : index
    %2 = vector.load %arg5[%c0_2, %c0_3] : memref<16x64xf32, #tpu.memory_space<vmem>>, vector<16x64xf32>
    %cst = arith.constant dense<0.000000e+00> : vector<32x64xf32>
    %3 = tpu.matmul %1, %2, %cst {dimension_numbers = #tpu.dot_dimension_numbers<[1], [0], [0], [1], [0, 0, 1, 1], [], []>} : vector<32x16xf32>, vector<16x64xf32>, vector<32x64xf32> -> vector<32x64xf32>
    %c0_4 = arith.constant 0 : index
    %c0_5 = arith.constant 0 : index
    %4 = vector.load %arg11[%c0_4, %c0_5] : memref<32x288xf32, #tpu.memory_space<vmem>>, vector<32x288xf32>
    %c0_6 = arith.constant 0 : index
    %c0_7 = arith.constant 0 : index
    %5 = vector.load %arg12[%c0_6, %c0_7] : memref<32x1xf32, #tpu.memory_space<vmem>>, vector<32x1xf32>
    %6 = vector.extract_strided_slice %3 {offsets = [0, 55], sizes = [32, 9], strides = [1, 1]} : vector<32x64xf32> to vector<32x9xf32>
    %7 = vector.extract_strided_slice %3 {offsets = [0, 0], sizes = [32, 55], strides = [1, 1]} : vector<32x64xf32> to vector<32x55xf32>
    %8 = tpu.concatenate %6, %7 in 1 : vector<32x9xf32>, vector<32x55xf32> -> vector<32x64xf32>
    %c0_8 = arith.constant 0 : index
    %c0_9 = arith.constant 0 : index
    %9 = vector.load %arg8[%c0_8, %c0_9] : memref<9x64xf32, #tpu.memory_space<vmem>>, vector<1x64xf32>
    %10 = vector.broadcast %9 : vector<1x64xf32> to vector<32x64xf32>
    %11 = arith.mulf %8, %10 : vector<32x64xf32>
    %12 = vector.extract_strided_slice %3 {offsets = [0, 56], sizes = [32, 8], strides = [1, 1]} : vector<32x64xf32> to vector<32x8xf32>
    %13 = vector.extract_strided_slice %3 {offsets = [0, 0], sizes = [32, 56], strides = [1, 1]} : vector<32x64xf32> to vector<32x56xf32>
    %14 = tpu.concatenate %12, %13 in 1 : vector<32x8xf32>, vector<32x56xf32> -> vector<32x64xf32>
    %c1 = arith.constant 1 : index
    %c0_10 = arith.constant 0 : index
    %15 = vector.load %arg8[%c1, %c0_10] : memref<9x64xf32, #tpu.memory_space<vmem>>, vector<1x64xf32>
    %16 = vector.broadcast %15 : vector<1x64xf32> to vector<32x64xf32>
    %17 = arith.mulf %14, %16 : vector<32x64xf32>
    %18 = vector.extract_strided_slice %3 {offsets = [0, 57], sizes = [32, 7], strides = [1, 1]} : vector<32x64xf32> to vector<32x7xf32>
    %19 = vector.extract_strided_slice %3 {offsets = [0, 0], sizes = [32, 57], strides = [1, 1]} : vector<32x64xf32> to vector<32x57xf32>
    %20 = tpu.concatenate %18, %19 in 1 : vector<32x7xf32>, vector<32x57xf32> -> vector<32x64xf32>
    %c2 = arith.constant 2 : index
    %c0_11 = arith.constant 0 : index
    %21 = vector.load %arg8[%c2, %c0_11] : memref<9x64xf32, #tpu.memory_space<vmem>>, vector<1x64xf32>
    %22 = vector.broadcast %21 : vector<1x64xf32> to vector<32x64xf32>
    %23 = arith.mulf %20, %22 : vector<32x64xf32>
    %24 = vector.extract_strided_slice %3 {offsets = [0, 63], sizes = [32, 1], strides = [1, 1]} : vector<32x64xf32> to vector<32x1xf32>
    %25 = vector.extract_strided_slice %3 {offsets = [0, 0], sizes = [32, 63], strides = [1, 1]} : vector<32x64xf32> to vector<32x63xf32>
    %26 = tpu.concatenate %24, %25 in 1 : vector<32x1xf32>, vector<32x63xf32> -> vector<32x64xf32>
    %c3 = arith.constant 3 : index
    %c0_12 = arith.constant 0 : index
    %27 = vector.load %arg8[%c3, %c0_12] : memref<9x64xf32, #tpu.memory_space<vmem>>, vector<1x64xf32>
    %28 = vector.broadcast %27 : vector<1x64xf32> to vector<32x64xf32>
    %29 = arith.mulf %26, %28 : vector<32x64xf32>
    %30 = vector.extract_strided_slice %3 {offsets = [0, 1], sizes = [32, 63], strides = [1, 1]} : vector<32x64xf32> to vector<32x63xf32>
    %31 = vector.extract_strided_slice %3 {offsets = [0, 0], sizes = [32, 1], strides = [1, 1]} : vector<32x64xf32> to vector<32x1xf32>
    %32 = tpu.concatenate %30, %31 in 1 : vector<32x63xf32>, vector<32x1xf32> -> vector<32x64xf32>
    %c5 = arith.constant 5 : index
    %c0_13 = arith.constant 0 : index
    %33 = vector.load %arg8[%c5, %c0_13] : memref<9x64xf32, #tpu.memory_space<vmem>>, vector<1x64xf32>
    %34 = vector.broadcast %33 : vector<1x64xf32> to vector<32x64xf32>
    %35 = arith.mulf %32, %34 : vector<32x64xf32>
    %36 = vector.extract_strided_slice %3 {offsets = [0, 7], sizes = [32, 57], strides = [1, 1]} : vector<32x64xf32> to vector<32x57xf32>
    %37 = vector.extract_strided_slice %3 {offsets = [0, 0], sizes = [32, 7], strides = [1, 1]} : vector<32x64xf32> to vector<32x7xf32>
    %38 = tpu.concatenate %36, %37 in 1 : vector<32x57xf32>, vector<32x7xf32> -> vector<32x64xf32>
    %c6 = arith.constant 6 : index
    %c0_14 = arith.constant 0 : index
    %39 = vector.load %arg8[%c6, %c0_14] : memref<9x64xf32, #tpu.memory_space<vmem>>, vector<1x64xf32>
    %40 = vector.broadcast %39 : vector<1x64xf32> to vector<32x64xf32>
    %41 = arith.mulf %38, %40 : vector<32x64xf32>
    %42 = vector.extract_strided_slice %3 {offsets = [0, 8], sizes = [32, 56], strides = [1, 1]} : vector<32x64xf32> to vector<32x56xf32>
    %43 = vector.extract_strided_slice %3 {offsets = [0, 0], sizes = [32, 8], strides = [1, 1]} : vector<32x64xf32> to vector<32x8xf32>
    %44 = tpu.concatenate %42, %43 in 1 : vector<32x56xf32>, vector<32x8xf32> -> vector<32x64xf32>
    %c7 = arith.constant 7 : index
    %c0_15 = arith.constant 0 : index
    %45 = vector.load %arg8[%c7, %c0_15] : memref<9x64xf32, #tpu.memory_space<vmem>>, vector<1x64xf32>
    %46 = vector.broadcast %45 : vector<1x64xf32> to vector<32x64xf32>
    %47 = arith.mulf %44, %46 : vector<32x64xf32>
    %48 = vector.extract_strided_slice %3 {offsets = [0, 9], sizes = [32, 55], strides = [1, 1]} : vector<32x64xf32> to vector<32x55xf32>
    %49 = vector.extract_strided_slice %3 {offsets = [0, 0], sizes = [32, 9], strides = [1, 1]} : vector<32x64xf32> to vector<32x9xf32>
    %50 = tpu.concatenate %48, %49 in 1 : vector<32x55xf32>, vector<32x9xf32> -> vector<32x64xf32>
    %c8 = arith.constant 8 : index
    %c0_16 = arith.constant 0 : index
    %51 = vector.load %arg8[%c8, %c0_16] : memref<9x64xf32, #tpu.memory_space<vmem>>, vector<1x64xf32>
    %52 = vector.broadcast %51 : vector<1x64xf32> to vector<32x64xf32>
    %53 = arith.mulf %50, %52 : vector<32x64xf32>
    %54 = tpu.concatenate %11, %17, %23, %29, %3, %35, %41, %47, %53 in 0 : vector<32x64xf32>, vector<32x64xf32>, vector<32x64xf32>, vector<32x64xf32>, vector<32x64xf32>, vector<32x64xf32>, vector<32x64xf32>, vector<32x64xf32>, vector<32x64xf32> -> vector<288x64xf32>
    %cst_17 = arith.constant dense<0.000000e+00> : vector<32x64xf32>
    %55 = tpu.matmul %4, %54, %cst_17 {dimension_numbers = #tpu.dot_dimension_numbers<[1], [0], [0], [1], [0, 0, 1, 1], [], []>} : vector<32x288xf32>, vector<288x64xf32>, vector<32x64xf32> -> vector<32x64xf32>
    %56 = vector.broadcast %5 : vector<32x1xf32> to vector<32x64xf32>
    %57 = arith.addf %55, %56 : vector<32x64xf32>
    %cst_18 = arith.constant 0.000000e+00 : f32
    %58 = vector.broadcast %cst_18 : f32 to vector<32x64xf32>
    %59 = arith.maximumf %57, %58 : vector<32x64xf32>
    %c0_19 = arith.constant 0 : index
    %c0_20 = arith.constant 0 : index
    %c0_21 = arith.constant 0 : index
    %60 = vector.load %arg3[%c0_19, %c0_20, %c0_21] : memref<1x32x64xf32, #tpu.memory_space<vmem>>, vector<1x32x64xf32>
    %61 = vector.shape_cast %60 : vector<1x32x64xf32> to vector<32x64xf32>
    %62 = arith.addf %59, %61 : vector<32x64xf32>
    %c0_22 = arith.constant 0 : index
    %c0_23 = arith.constant 0 : index
    %63 = vector.load %arg6[%c0_22, %c0_23] : memref<64x256xf32, #tpu.memory_space<vmem>>, vector<64x256xf32>
    %cst_24 = arith.constant dense<0.000000e+00> : vector<32x256xf32>
    %64 = tpu.matmul %62, %63, %cst_24 {dimension_numbers = #tpu.dot_dimension_numbers<[1], [0], [0], [1], [0, 0, 1, 1], [], []>} : vector<32x64xf32>, vector<64x256xf32>, vector<32x256xf32> -> vector<32x256xf32>
    %c0_25 = arith.constant 0 : index
    %c0_26 = arith.constant 0 : index
    %65 = vector.load %arg13[%c0_25, %c0_26] : memref<32x288xf32, #tpu.memory_space<vmem>>, vector<32x288xf32>
    %c0_27 = arith.constant 0 : index
    %c0_28 = arith.constant 0 : index
    %66 = vector.load %arg14[%c0_27, %c0_28] : memref<32x1xf32, #tpu.memory_space<vmem>>, vector<32x1xf32>
    %c17_i32 = arith.constant 17 : i32
    %67 = tpu.dynamic_rotate %64 by %c17_i32 dim 1 : vector<32x256xf32>, i32 -> vector<32x256xf32>
    %c0_29 = arith.constant 0 : index
    %c0_30 = arith.constant 0 : index
    %68 = vector.load %arg9[%c0_29, %c0_30] : memref<9x256xf32, #tpu.memory_space<vmem>>, vector<1x256xf32>
    %69 = vector.broadcast %68 : vector<1x256xf32> to vector<32x256xf32>
    %70 = arith.mulf %67, %69 : vector<32x256xf32>
    %c16_i32 = arith.constant 16 : i32
    %71 = tpu.dynamic_rotate %64 by %c16_i32 dim 1 : vector<32x256xf32>, i32 -> vector<32x256xf32>
    %c1_31 = arith.constant 1 : index
    %c0_32 = arith.constant 0 : index
    %72 = vector.load %arg9[%c1_31, %c0_32] : memref<9x256xf32, #tpu.memory_space<vmem>>, vector<1x256xf32>
    %73 = vector.broadcast %72 : vector<1x256xf32> to vector<32x256xf32>
    %74 = arith.mulf %71, %73 : vector<32x256xf32>
    %c15_i32 = arith.constant 15 : i32
    %75 = tpu.dynamic_rotate %64 by %c15_i32 dim 1 : vector<32x256xf32>, i32 -> vector<32x256xf32>
    %c2_33 = arith.constant 2 : index
    %c0_34 = arith.constant 0 : index
    %76 = vector.load %arg9[%c2_33, %c0_34] : memref<9x256xf32, #tpu.memory_space<vmem>>, vector<1x256xf32>
    %77 = vector.broadcast %76 : vector<1x256xf32> to vector<32x256xf32>
    %78 = arith.mulf %75, %77 : vector<32x256xf32>
    %c1_i32 = arith.constant 1 : i32
    %79 = tpu.dynamic_rotate %64 by %c1_i32 dim 1 : vector<32x256xf32>, i32 -> vector<32x256xf32>
    %c3_35 = arith.constant 3 : index
    %c0_36 = arith.constant 0 : index
    %80 = vector.load %arg9[%c3_35, %c0_36] : memref<9x256xf32, #tpu.memory_space<vmem>>, vector<1x256xf32>
    %81 = vector.broadcast %80 : vector<1x256xf32> to vector<32x256xf32>
    %82 = arith.mulf %79, %81 : vector<32x256xf32>
    %c255_i32 = arith.constant 255 : i32
    %83 = tpu.dynamic_rotate %64 by %c255_i32 dim 1 : vector<32x256xf32>, i32 -> vector<32x256xf32>
    %c5_37 = arith.constant 5 : index
    %c0_38 = arith.constant 0 : index
    %84 = vector.load %arg9[%c5_37, %c0_38] : memref<9x256xf32, #tpu.memory_space<vmem>>, vector<1x256xf32>
    %85 = vector.broadcast %84 : vector<1x256xf32> to vector<32x256xf32>
    %86 = arith.mulf %83, %85 : vector<32x256xf32>
    %c241_i32 = arith.constant 241 : i32
    %87 = tpu.dynamic_rotate %64 by %c241_i32 dim 1 : vector<32x256xf32>, i32 -> vector<32x256xf32>
    %c6_39 = arith.constant 6 : index
    %c0_40 = arith.constant 0 : index
    %88 = vector.load %arg9[%c6_39, %c0_40] : memref<9x256xf32, #tpu.memory_space<vmem>>, vector<1x256xf32>
    %89 = vector.broadcast %88 : vector<1x256xf32> to vector<32x256xf32>
    %90 = arith.mulf %87, %89 : vector<32x256xf32>
    %c240_i32 = arith.constant 240 : i32
    %91 = tpu.dynamic_rotate %64 by %c240_i32 dim 1 : vector<32x256xf32>, i32 -> vector<32x256xf32>
    %c7_41 = arith.constant 7 : index
    %c0_42 = arith.constant 0 : index
    %92 = vector.load %arg9[%c7_41, %c0_42] : memref<9x256xf32, #tpu.memory_space<vmem>>, vector<1x256xf32>
    %93 = vector.broadcast %92 : vector<1x256xf32> to vector<32x256xf32>
    %94 = arith.mulf %91, %93 : vector<32x256xf32>
    %c239_i32 = arith.constant 239 : i32
    %95 = tpu.dynamic_rotate %64 by %c239_i32 dim 1 : vector<32x256xf32>, i32 -> vector<32x256xf32>
    %c8_43 = arith.constant 8 : index
    %c0_44 = arith.constant 0 : index
    %96 = vector.load %arg9[%c8_43, %c0_44] : memref<9x256xf32, #tpu.memory_space<vmem>>, vector<1x256xf32>
    %97 = vector.broadcast %96 : vector<1x256xf32> to vector<32x256xf32>
    %98 = arith.mulf %95, %97 : vector<32x256xf32>
    %99 = tpu.concatenate %70, %74, %78, %82, %64, %86, %90, %94, %98 in 0 : vector<32x256xf32>, vector<32x256xf32>, vector<32x256xf32>, vector<32x256xf32>, vector<32x256xf32>, vector<32x256xf32>, vector<32x256xf32>, vector<32x256xf32>, vector<32x256xf32> -> vector<288x256xf32>
    %cst_45 = arith.constant dense<0.000000e+00> : vector<32x256xf32>
    %100 = tpu.matmul %65, %99, %cst_45 {dimension_numbers = #tpu.dot_dimension_numbers<[1], [0], [0], [1], [0, 0, 1, 1], [], []>} : vector<32x288xf32>, vector<288x256xf32>, vector<32x256xf32> -> vector<32x256xf32>
    %101 = vector.broadcast %66 : vector<32x1xf32> to vector<32x256xf32>
    %102 = arith.addf %100, %101 : vector<32x256xf32>
    %cst_46 = arith.constant 0.000000e+00 : f32
    %103 = vector.broadcast %cst_46 : f32 to vector<32x256xf32>
    %104 = arith.maximumf %102, %103 : vector<32x256xf32>
    %c0_47 = arith.constant 0 : index
    %c0_48 = arith.constant 0 : index
    %c0_49 = arith.constant 0 : index
    %105 = vector.load %arg2[%c0_47, %c0_48, %c0_49] : memref<1x32x256xf32, #tpu.memory_space<vmem>>, vector<1x32x256xf32>
    %106 = vector.shape_cast %105 : vector<1x32x256xf32> to vector<32x256xf32>
    %107 = arith.addf %104, %106 : vector<32x256xf32>
    %c0_50 = arith.constant 0 : index
    %c0_51 = arith.constant 0 : index
    %108 = vector.load %arg7[%c0_50, %c0_51] : memref<256x1024xf32, #tpu.memory_space<vmem>>, vector<256x1024xf32>
    %cst_52 = arith.constant dense<0.000000e+00> : vector<32x1024xf32>
    %109 = tpu.matmul %107, %108, %cst_52 {dimension_numbers = #tpu.dot_dimension_numbers<[1], [0], [0], [1], [0, 0, 1, 1], [], []>} : vector<32x256xf32>, vector<256x1024xf32>, vector<32x1024xf32> -> vector<32x1024xf32>
    %c0_53 = arith.constant 0 : index
    %c0_54 = arith.constant 0 : index
    %110 = vector.load %arg15[%c0_53, %c0_54] : memref<32x288xf32, #tpu.memory_space<vmem>>, vector<32x288xf32>
    %c0_55 = arith.constant 0 : index
    %c0_56 = arith.constant 0 : index
    %111 = vector.load %arg16[%c0_55, %c0_56] : memref<32x1xf32, #tpu.memory_space<vmem>>, vector<32x1xf32>
    %c33_i32 = arith.constant 33 : i32
    %112 = tpu.dynamic_rotate %109 by %c33_i32 dim 1 : vector<32x1024xf32>, i32 -> vector<32x1024xf32>
    %c0_57 = arith.constant 0 : index
    %c0_58 = arith.constant 0 : index
    %113 = vector.load %arg10[%c0_57, %c0_58] : memref<9x1024xf32, #tpu.memory_space<vmem>>, vector<1x1024xf32>
    %114 = vector.broadcast %113 : vector<1x1024xf32> to vector<32x1024xf32>
    %115 = arith.mulf %112, %114 : vector<32x1024xf32>
    %c32_i32 = arith.constant 32 : i32
    %116 = tpu.dynamic_rotate %109 by %c32_i32 dim 1 : vector<32x1024xf32>, i32 -> vector<32x1024xf32>
    %c1_59 = arith.constant 1 : index
    %c0_60 = arith.constant 0 : index
    %117 = vector.load %arg10[%c1_59, %c0_60] : memref<9x1024xf32, #tpu.memory_space<vmem>>, vector<1x1024xf32>
    %118 = vector.broadcast %117 : vector<1x1024xf32> to vector<32x1024xf32>
    %119 = arith.mulf %116, %118 : vector<32x1024xf32>
    %c31_i32 = arith.constant 31 : i32
    %120 = tpu.dynamic_rotate %109 by %c31_i32 dim 1 : vector<32x1024xf32>, i32 -> vector<32x1024xf32>
    %c2_61 = arith.constant 2 : index
    %c0_62 = arith.constant 0 : index
    %121 = vector.load %arg10[%c2_61, %c0_62] : memref<9x1024xf32, #tpu.memory_space<vmem>>, vector<1x1024xf32>
    %122 = vector.broadcast %121 : vector<1x1024xf32> to vector<32x1024xf32>
    %123 = arith.mulf %120, %122 : vector<32x1024xf32>
    %c1_i32_63 = arith.constant 1 : i32
    %124 = tpu.dynamic_rotate %109 by %c1_i32_63 dim 1 : vector<32x1024xf32>, i32 -> vector<32x1024xf32>
    %c3_64 = arith.constant 3 : index
    %c0_65 = arith.constant 0 : index
    %125 = vector.load %arg10[%c3_64, %c0_65] : memref<9x1024xf32, #tpu.memory_space<vmem>>, vector<1x1024xf32>
    %126 = vector.broadcast %125 : vector<1x1024xf32> to vector<32x1024xf32>
    %127 = arith.mulf %124, %126 : vector<32x1024xf32>
    %c1023_i32 = arith.constant 1023 : i32
    %128 = tpu.dynamic_rotate %109 by %c1023_i32 dim 1 : vector<32x1024xf32>, i32 -> vector<32x1024xf32>
    %c5_66 = arith.constant 5 : index
    %c0_67 = arith.constant 0 : index
    %129 = vector.load %arg10[%c5_66, %c0_67] : memref<9x1024xf32, #tpu.memory_space<vmem>>, vector<1x1024xf32>
    %130 = vector.broadcast %129 : vector<1x1024xf32> to vector<32x1024xf32>
    %131 = arith.mulf %128, %130 : vector<32x1024xf32>
    %c993_i32 = arith.constant 993 : i32
    %132 = tpu.dynamic_rotate %109 by %c993_i32 dim 1 : vector<32x1024xf32>, i32 -> vector<32x1024xf32>
    %c6_68 = arith.constant 6 : index
    %c0_69 = arith.constant 0 : index
    %133 = vector.load %arg10[%c6_68, %c0_69] : memref<9x1024xf32, #tpu.memory_space<vmem>>, vector<1x1024xf32>
    %134 = vector.broadcast %133 : vector<1x1024xf32> to vector<32x1024xf32>
    %135 = arith.mulf %132, %134 : vector<32x1024xf32>
    %c992_i32 = arith.constant 992 : i32
    %136 = tpu.dynamic_rotate %109 by %c992_i32 dim 1 : vector<32x1024xf32>, i32 -> vector<32x1024xf32>
    %c7_70 = arith.constant 7 : index
    %c0_71 = arith.constant 0 : index
    %137 = vector.load %arg10[%c7_70, %c0_71] : memref<9x1024xf32, #tpu.memory_space<vmem>>, vector<1x1024xf32>
    %138 = vector.broadcast %137 : vector<1x1024xf32> to vector<32x1024xf32>
    %139 = arith.mulf %136, %138 : vector<32x1024xf32>
    %c991_i32 = arith.constant 991 : i32
    %140 = tpu.dynamic_rotate %109 by %c991_i32 dim 1 : vector<32x1024xf32>, i32 -> vector<32x1024xf32>
    %c8_72 = arith.constant 8 : index
    %c0_73 = arith.constant 0 : index
    %141 = vector.load %arg10[%c8_72, %c0_73] : memref<9x1024xf32, #tpu.memory_space<vmem>>, vector<1x1024xf32>
    %142 = vector.broadcast %141 : vector<1x1024xf32> to vector<32x1024xf32>
    %143 = arith.mulf %140, %142 : vector<32x1024xf32>
    %144 = tpu.concatenate %115, %119, %123, %127, %109, %131, %135, %139, %143 in 0 : vector<32x1024xf32>, vector<32x1024xf32>, vector<32x1024xf32>, vector<32x1024xf32>, vector<32x1024xf32>, vector<32x1024xf32>, vector<32x1024xf32>, vector<32x1024xf32>, vector<32x1024xf32> -> vector<288x1024xf32>
    %cst_74 = arith.constant dense<0.000000e+00> : vector<32x1024xf32>
    %145 = tpu.matmul %110, %144, %cst_74 {dimension_numbers = #tpu.dot_dimension_numbers<[1], [0], [0], [1], [0, 0, 1, 1], [], []>} : vector<32x288xf32>, vector<288x1024xf32>, vector<32x1024xf32> -> vector<32x1024xf32>
    %146 = vector.broadcast %111 : vector<32x1xf32> to vector<32x1024xf32>
    %147 = arith.addf %145, %146 : vector<32x1024xf32>
    %cst_75 = arith.constant 0.000000e+00 : f32
    %148 = vector.broadcast %cst_75 : f32 to vector<32x1024xf32>
    %149 = arith.maximumf %147, %148 : vector<32x1024xf32>
    %c0_76 = arith.constant 0 : index
    %c0_77 = arith.constant 0 : index
    %c0_78 = arith.constant 0 : index
    %150 = vector.load %arg1[%c0_76, %c0_77, %c0_78] : memref<1x32x1024xf32, #tpu.memory_space<vmem>>, vector<1x32x1024xf32>
    %151 = vector.shape_cast %150 : vector<1x32x1024xf32> to vector<32x1024xf32>
    %152 = arith.addf %149, %151 : vector<32x1024xf32>
    %c0_79 = arith.constant 0 : index
    %c0_80 = arith.constant 0 : index
    %153 = vector.load %arg17[%c0_79, %c0_80] : memref<32x288xf32, #tpu.memory_space<vmem>>, vector<32x288xf32>
    %c0_81 = arith.constant 0 : index
    %c0_82 = arith.constant 0 : index
    %154 = vector.load %arg18[%c0_81, %c0_82] : memref<32x1xf32, #tpu.memory_space<vmem>>, vector<32x1xf32>
    %c33_i32_83 = arith.constant 33 : i32
    %155 = tpu.dynamic_rotate %152 by %c33_i32_83 dim 1 : vector<32x1024xf32>, i32 -> vector<32x1024xf32>
    %c0_84 = arith.constant 0 : index
    %c0_85 = arith.constant 0 : index
    %156 = vector.load %arg10[%c0_84, %c0_85] : memref<9x1024xf32, #tpu.memory_space<vmem>>, vector<1x1024xf32>
    %157 = vector.broadcast %156 : vector<1x1024xf32> to vector<32x1024xf32>
    %158 = arith.mulf %155, %157 : vector<32x1024xf32>
    %c32_i32_86 = arith.constant 32 : i32
    %159 = tpu.dynamic_rotate %152 by %c32_i32_86 dim 1 : vector<32x1024xf32>, i32 -> vector<32x1024xf32>
    %c1_87 = arith.constant 1 : index
    %c0_88 = arith.constant 0 : index
    %160 = vector.load %arg10[%c1_87, %c0_88] : memref<9x1024xf32, #tpu.memory_space<vmem>>, vector<1x1024xf32>
    %161 = vector.broadcast %160 : vector<1x1024xf32> to vector<32x1024xf32>
    %162 = arith.mulf %159, %161 : vector<32x1024xf32>
    %c31_i32_89 = arith.constant 31 : i32
    %163 = tpu.dynamic_rotate %152 by %c31_i32_89 dim 1 : vector<32x1024xf32>, i32 -> vector<32x1024xf32>
    %c2_90 = arith.constant 2 : index
    %c0_91 = arith.constant 0 : index
    %164 = vector.load %arg10[%c2_90, %c0_91] : memref<9x1024xf32, #tpu.memory_space<vmem>>, vector<1x1024xf32>
    %165 = vector.broadcast %164 : vector<1x1024xf32> to vector<32x1024xf32>
    %166 = arith.mulf %163, %165 : vector<32x1024xf32>
    %c1_i32_92 = arith.constant 1 : i32
    %167 = tpu.dynamic_rotate %152 by %c1_i32_92 dim 1 : vector<32x1024xf32>, i32 -> vector<32x1024xf32>
    %c3_93 = arith.constant 3 : index
    %c0_94 = arith.constant 0 : index
    %168 = vector.load %arg10[%c3_93, %c0_94] : memref<9x1024xf32, #tpu.memory_space<vmem>>, vector<1x1024xf32>
    %169 = vector.broadcast %168 : vector<1x1024xf32> to vector<32x1024xf32>
    %170 = arith.mulf %167, %169 : vector<32x1024xf32>
    %c1023_i32_95 = arith.constant 1023 : i32
    %171 = tpu.dynamic_rotate %152 by %c1023_i32_95 dim 1 : vector<32x1024xf32>, i32 -> vector<32x1024xf32>
    %c5_96 = arith.constant 5 : index
    %c0_97 = arith.constant 0 : index
    %172 = vector.load %arg10[%c5_96, %c0_97] : memref<9x1024xf32, #tpu.memory_space<vmem>>, vector<1x1024xf32>
    %173 = vector.broadcast %172 : vector<1x1024xf32> to vector<32x1024xf32>
    %174 = arith.mulf %171, %173 : vector<32x1024xf32>
    %c993_i32_98 = arith.constant 993 : i32
    %175 = tpu.dynamic_rotate %152 by %c993_i32_98 dim 1 : vector<32x1024xf32>, i32 -> vector<32x1024xf32>
    %c6_99 = arith.constant 6 : index
    %c0_100 = arith.constant 0 : index
    %176 = vector.load %arg10[%c6_99, %c0_100] : memref<9x1024xf32, #tpu.memory_space<vmem>>, vector<1x1024xf32>
    %177 = vector.broadcast %176 : vector<1x1024xf32> to vector<32x1024xf32>
    %178 = arith.mulf %175, %177 : vector<32x1024xf32>
    %c992_i32_101 = arith.constant 992 : i32
    %179 = tpu.dynamic_rotate %152 by %c992_i32_101 dim 1 : vector<32x1024xf32>, i32 -> vector<32x1024xf32>
    %c7_102 = arith.constant 7 : index
    %c0_103 = arith.constant 0 : index
    %180 = vector.load %arg10[%c7_102, %c0_103] : memref<9x1024xf32, #tpu.memory_space<vmem>>, vector<1x1024xf32>
    %181 = vector.broadcast %180 : vector<1x1024xf32> to vector<32x1024xf32>
    %182 = arith.mulf %179, %181 : vector<32x1024xf32>
    %c991_i32_104 = arith.constant 991 : i32
    %183 = tpu.dynamic_rotate %152 by %c991_i32_104 dim 1 : vector<32x1024xf32>, i32 -> vector<32x1024xf32>
    %c8_105 = arith.constant 8 : index
    %c0_106 = arith.constant 0 : index
    %184 = vector.load %arg10[%c8_105, %c0_106] : memref<9x1024xf32, #tpu.memory_space<vmem>>, vector<1x1024xf32>
    %185 = vector.broadcast %184 : vector<1x1024xf32> to vector<32x1024xf32>
    %186 = arith.mulf %183, %185 : vector<32x1024xf32>
    %187 = tpu.concatenate %158, %162, %166, %170, %152, %174, %178, %182, %186 in 0 : vector<32x1024xf32>, vector<32x1024xf32>, vector<32x1024xf32>, vector<32x1024xf32>, vector<32x1024xf32>, vector<32x1024xf32>, vector<32x1024xf32>, vector<32x1024xf32>, vector<32x1024xf32> -> vector<288x1024xf32>
    %cst_107 = arith.constant dense<0.000000e+00> : vector<32x1024xf32>
    %188 = tpu.matmul %153, %187, %cst_107 {dimension_numbers = #tpu.dot_dimension_numbers<[1], [0], [0], [1], [0, 0, 1, 1], [], []>} : vector<32x288xf32>, vector<288x1024xf32>, vector<32x1024xf32> -> vector<32x1024xf32>
    %189 = vector.broadcast %154 : vector<32x1xf32> to vector<32x1024xf32>
    %190 = arith.addf %188, %189 : vector<32x1024xf32>
    %cst_108 = arith.constant 0.000000e+00 : f32
    %191 = vector.broadcast %cst_108 : f32 to vector<32x1024xf32>
    %192 = arith.maximumf %190, %191 : vector<32x1024xf32>
    %c0_109 = arith.constant 0 : index
    %c0_110 = arith.constant 0 : index
    %c0_111 = arith.constant 0 : index
    %193 = vector.load %arg19[%c0_109, %c0_110, %c0_111] : memref<1x32x1024xf32, #tpu.memory_space<vmem>>, vector<1x32x1024xf32>
    %194 = vector.shape_cast %193 : vector<1x32x1024xf32> to vector<32x1024xf32>
    %195 = vector.shape_cast %192 : vector<32x1024xf32> to vector<1x32x1024xf32>
    tpu.vector_store %arg19[%c0_109, %c0_110, %c0_111], %195 {strides = array<i32>} : memref<1x32x1024xf32, #tpu.memory_space<vmem>>, vector<1x32x1024xf32>,
    return
  }
  func.func @transform_0(%arg0: i32) -> (i32, i32, i32) {
    %c0_i32 = arith.constant 0 : i32
    %c0_i32_0 = arith.constant 0 : i32
    %c0_i32_1 = arith.constant 0 : i32
    return %arg0, %c0_i32, %c0_i32_0 : i32, i32, i32
  }
  func.func @transform_1(%arg0: i32) -> (i32, i32, i32) {
    %c0_i32 = arith.constant 0 : i32
    %c0_i32_0 = arith.constant 0 : i32
    %c0_i32_1 = arith.constant 0 : i32
    return %arg0, %c0_i32, %c0_i32_0 : i32, i32, i32
  }
  func.func @transform_2(%arg0: i32) -> (i32, i32, i32) {
    %c0_i32 = arith.constant 0 : i32
    %c0_i32_0 = arith.constant 0 : i32
    %c0_i32_1 = arith.constant 0 : i32
    return %arg0, %c0_i32, %c0_i32_0 : i32, i32, i32
  }
  func.func @transform_3(%arg0: i32) -> (i32, i32, i32) {
    %c0_i32 = arith.constant 0 : i32
    %c0_i32_0 = arith.constant 0 : i32
    %c0_i32_1 = arith.constant 0 : i32
    return %arg0, %c0_i32, %c0_i32_0 : i32, i32, i32
  }
  func.func @transform_4(%arg0: i32) -> (i32, i32) {
    %c0_i32 = arith.constant 0 : i32
    %c0_i32_0 = arith.constant 0 : i32
    %c0_i32_1 = arith.constant 0 : i32
    return %c0_i32, %c0_i32_0 : i32, i32
  }
  func.func @transform_5(%arg0: i32) -> (i32, i32) {
    %c0_i32 = arith.constant 0 : i32
    %c0_i32_0 = arith.constant 0 : i32
    %c0_i32_1 = arith.constant 0 : i32
    return %c0_i32, %c0_i32_0 : i32, i32
  }
  func.func @transform_6(%arg0: i32) -> (i32, i32) {
    %c0_i32 = arith.constant 0 : i32
    %c0_i32_0 = arith.constant 0 : i32
    %c0_i32_1 = arith.constant 0 : i32
    return %c0_i32, %c0_i32_0 : i32, i32
  }
  func.func @transform_7(%arg0: i32) -> (i32, i32) {
    %c0_i32 = arith.constant 0 : i32
    %c0_i32_0 = arith.constant 0 : i32
    %c0_i32_1 = arith.constant 0 : i32
    return %c0_i32, %c0_i32_0 : i32, i32
  }
  func.func @transform_8(%arg0: i32) -> (i32, i32) {
    %c0_i32 = arith.constant 0 : i32
    %c0_i32_0 = arith.constant 0 : i32
    %c0_i32_1 = arith.constant 0 : i32
    return %c0_i32, %c0_i32_0 : i32, i32
  }
  func.func @transform_9(%arg0: i32) -> (i32, i32) {
    %c0_i32 = arith.constant 0 : i32
    %c0_i32_0 = arith.constant 0 : i32
    %c0_i32_1 = arith.constant 0 : i32
    return %c0_i32, %c0_i32_0 : i32, i32
  }
  func.func @transform_10(%arg0: i32) -> (i32, i32) {
    %c0_i32 = arith.constant 0 : i32
    %c0_i32_0 = arith.constant 0 : i32
    %c0_i32_1 = arith.constant 0 : i32
    return %c0_i32, %c0_i32_0 : i32, i32
  }
  func.func @transform_11(%arg0: i32) -> (i32, i32) {
    %c0_i32 = arith.constant 0 : i32
    %c0_i32_0 = arith.constant 0 : i32
    %c0_i32_1 = arith.constant 0 : i32
    return %c0_i32, %c0_i32_0 : i32, i32
  }
  func.func @transform_12(%arg0: i32) -> (i32, i32) {
    %c0_i32 = arith.constant 0 : i32
    %c0_i32_0 = arith.constant 0 : i32
    %c0_i32_1 = arith.constant 0 : i32
    return %c0_i32, %c0_i32_0 : i32, i32
  }
  func.func @transform_13(%arg0: i32) -> (i32, i32) {
    %c0_i32 = arith.constant 0 : i32
    %c0_i32_0 = arith.constant 0 : i32
    %c0_i32_1 = arith.constant 0 : i32
    return %c0_i32, %c0_i32_0 : i32, i32
  }
  func.func @transform_14(%arg0: i32) -> (i32, i32) {
    %c0_i32 = arith.constant 0 : i32
    %c0_i32_0 = arith.constant 0 : i32
    %c0_i32_1 = arith.constant 0 : i32
    return %c0_i32, %c0_i32_0 : i32, i32
  }
  func.func @transform_15(%arg0: i32) -> (i32, i32) {
    %c0_i32 = arith.constant 0 : i32
    %c0_i32_0 = arith.constant 0 : i32
    %c0_i32_1 = arith.constant 0 : i32
    return %c0_i32, %c0_i32_0 : i32, i32
  }
  func.func @transform_16(%arg0: i32) -> (i32, i32) {
    %c0_i32 = arith.constant 0 : i32
    %c0_i32_0 = arith.constant 0 : i32
    %c0_i32_1 = arith.constant 0 : i32
    return %c0_i32, %c0_i32_0 : i32, i32
  }
  func.func @transform_17(%arg0: i32) -> (i32, i32) {
    %c0_i32 = arith.constant 0 : i32
    %c0_i32_0 = arith.constant 0 : i32
    %c0_i32_1 = arith.constant 0 : i32
    return %c0_i32, %c0_i32_0 : i32, i32
  }
  func.func @transform_18(%arg0: i32) -> (i32, i32, i32) {
    %c0_i32 = arith.constant 0 : i32
    %c0_i32_0 = arith.constant 0 : i32
    %c0_i32_1 = arith.constant 0 : i32
    return %arg0, %c0_i32, %c0_i32_0 : i32, i32, i32
  }
}

</mosaic_0001>

<llo_original>
// kernel: tpu_custom_call.1
$region0: #{tpu_custom_call.1}
  #allocation0 [shape = 'u32[]', space=smem, size = 0x4, offset = 0x4, fixed_abs, tag = 'smem constant byte address 0x4 - core index']
  #allocation1 [shape = 'u32[72,128]{1,0:T(1,128)}', space=vmem, size = 0x9000, scoped, tag = 'internal scratch']
  %s0 = inlined_call_operand.hbm [shape: f32[2,32,1024], index: 0, kind: input, shape index: {}]
  %s1 = inlined_call_operand.vmem [shape: f32[2,32,256], index: 1, kind: input, shape index: {}]
  %s2 = inlined_call_operand.vmem [shape: f32[2,32,64], index: 2, kind: input, shape index: {}]
  %s3 = inlined_call_operand.vmem [shape: f32[2,32,16], index: 3, kind: input, shape index: {}]
  %s4 = inlined_call_operand.hbm [shape: f32[16,64], index: 4, kind: input, shape index: {}]
  %s5 = inlined_call_operand.hbm [shape: f32[64,256], index: 5, kind: input, shape index: {}]
  %s6 = inlined_call_operand.hbm [shape: f32[256,1024], index: 6, kind: input, shape index: {}]
  %s7 = inlined_call_operand.hbm [shape: f32[9,64], index: 7, kind: input, shape index: {}]
  %s8 = inlined_call_operand.hbm [shape: f32[9,256], index: 8, kind: input, shape index: {}]
  %s9 = inlined_call_operand.hbm [shape: f32[9,1024], index: 9, kind: input, shape index: {}]
  %s10 = inlined_call_operand.hbm [shape: f32[32,288], index: 10, kind: input, shape index: {}]
  %s11 = inlined_call_operand.vmem [shape: f32[32,1], index: 11, kind: input, shape index: {}]
  %s12 = inlined_call_operand.hbm [shape: f32[32,288], index: 12, kind: input, shape index: {}]
  %s13 = inlined_call_operand.vmem [shape: f32[32,1], index: 13, kind: input, shape index: {}]
  %s14 = inlined_call_operand.hbm [shape: f32[32,288], index: 14, kind: input, shape index: {}]
  %s15 = inlined_call_operand.vmem [shape: f32[32,1], index: 15, kind: input, shape index: {}]
  %s16 = inlined_call_operand.hbm [shape: f32[32,288], index: 16, kind: input, shape index: {}]
  %s17 = inlined_call_operand.vmem [shape: f32[32,1], index: 17, kind: input, shape index: {}]
  %s18 = inlined_call_operand.hbm [shape: f32[2,32,1024], index: 18, kind: output, shape index: {}]
  %s19 = sld [smem:[#allocation0]]
  $region149: #{tpu_custom_call.1} parent=0
    _
  %s21 = ssub.s32 1, %s19
  %s22 = scalar_select 0, %s21, %s19
  $region1: #{tpu_custom_call.1} parent=0
    #allocation2 [shape = 'u8[262144]{0}', space=vmem, size = 0x40000, scoped, tag = 'input window, operand 0']
    #allocation3 [shape = 's32[2]{0}', space=sflag, size = 0x8, scoped, tag = 'scoped memory for tpu_custom_call.1']
    #allocation4 [shape = 's32[2]{0}', space=sflag, size = 0x8, scoped, tag = 'scoped memory for tpu_custom_call.1']
    #allocation5 [shape = 'u8[8192]{0}', space=vmem, size = 0x2000, scoped, tag = 'input window, operand 4, single buffered']
    #allocation6 [shape = 's32[1]{0}', space=sflag, size = 0x4, scoped, tag = 'scoped memory for tpu_custom_call.1']
    #allocation7 [shape = 'u8[65536]{0}', space=vmem, size = 0x10000, scoped, tag = 'input window, operand 5, single buffered']
    #allocation8 [shape = 'u8[1048576]{0}', space=vmem, size = 0x100000, scoped, tag = 'input window, operand 6, single buffered']
    #allocation9 [shape = 's32[1]{0}', space=sflag, size = 0x4, scoped, tag = 'scoped memory for tpu_custom_call.1']
    #allocation10 [shape = 'u8[8192]{0}', space=vmem, size = 0x2000, scoped, tag = 'input window, operand 7, single buffered']
    #allocation11 [shape = 'u8[16384]{0}', space=vmem, size = 0x4000, scoped, tag = 'input window, operand 8, single buffered']
    #allocation12 [shape = 's32[1]{0}', space=sflag, size = 0x4, scoped, tag = 'scoped memory for tpu_custom_call.1']
    #allocation13 [shape = 'u8[65536]{0}', space=vmem, size = 0x10000, scoped, tag = 'input window, operand 9, single buffered']
    #allocation14 [shape = 'u8[49152]{0}', space=vmem, size = 0xc000, scoped, tag = 'input window, operand 10, single buffered']
    #allocation15 [shape = 's32[1]{0}', space=sflag, size = 0x4, scoped, tag = 'scoped memory for tpu_custom_call.1']
    #allocation16 [shape = 'u8[49152]{0}', space=vmem, size = 0xc000, scoped, tag = 'input window, operand 12, single buffered']
    #allocation17 [shape = 'u8[49152]{0}', space=vmem, size = 0xc000, scoped, tag = 'input window, operand 14, single buffered']
    #allocation18 [shape = 's32[1]{0}', space=sflag, size = 0x4, scoped, tag = 'scoped memory for tpu_custom_call.1']
    #allocation19 [shape = 'u8[49152]{0}', space=vmem, size = 0xc000, scoped, tag = 'input window, operand 16, single buffered']
    #allocation20 [shape = 'u8[262144]{0}', space=vmem, size = 0x40000, scoped, tag = 'output window, operand 0']
    %23 = vsyncpa [#allocation3], 0
    %s24 = scalar_lea.sflag [#allocation3], 1
    %25 = vsyncpa %s24, 0
    %26 = vsyncpa [#allocation6], 0
    %27 = vsyncpa [#allocation9], 0
    %28 = vsyncpa [#allocation12], 0
    %29 = vsyncpa [#allocation15], 0
    %30 = vsyncpa [#allocation18], 0
    %31 = vsyncpa [#allocation4], 0
    %s32 = scalar_lea.sflag [#allocation4], 1
    %33 = vsyncpa %s32, 0
    loop: start=0, step=1, limit=4
    $region2: #{tpu_custom_call.1} parent=1 // loop_pre_header
      _
    $region3: #{tpu_custom_call.1} parent=1 // loop_header
      %s35 = sphi 0, %s39
      %p36 = scmp.ge.s32.totalorder %s35, 4
      %s45 = sphi 0, %s47
      %s48 = sphi 0, %s45
      %s49 = sphi 0, %s48
      %s65 = sphi 0, %s49
      %s71 = sphi 0, %s73
      %s74 = sphi 0, %s71
      %s75 = sphi 0, %s74
      %s91 = sphi 0, %s75
      %s97 = sphi 0, %s99
      %s100 = sphi 0, %s97
      %s101 = sphi 0, %s100
      %s117 = sphi 0, %s101
      %s123 = sphi 0, %s125
      %s126 = sphi 0, %s123
      %s127 = sphi 0, %s126
      %s143 = sphi 0, %s127
      %s147 = sphi 0, %s147
      %s149 = sphi 0, %s147
      %s150 = sphi 0, %s149
      %s164 = sphi 0, %s150
      %s168 = sphi 0, %s168
      %s170 = sphi 0, %s168
      %s171 = sphi 0, %s170
      %s185 = sphi 0, %s171
      %s189 = sphi 0, %s189
      %s191 = sphi 0, %s189
      %s192 = sphi 0, %s191
      %s206 = sphi 0, %s192
      %s210 = sphi 0, %s210
      %s212 = sphi 0, %s210
      %s213 = sphi 0, %s212
      %s227 = sphi 0, %s213
      %s231 = sphi 0, %s231
      %s233 = sphi 0, %s231
      %s234 = sphi 0, %s233
      %s248 = sphi 0, %s234
      %s252 = sphi 0, %s252
      %s254 = sphi 0, %s252
      %s255 = sphi 0, %s254
      %s269 = sphi 0, %s255
      %s273 = sphi 0, %s273
      %s275 = sphi 0, %s273
      %s276 = sphi 0, %s275
      %s290 = sphi 0, %s276
      %s294 = sphi 0, %s294
      %s296 = sphi 0, %s294
      %s297 = sphi 0, %s296
      %s311 = sphi 0, %s297
      %s315 = sphi 0, %s315
      %s317 = sphi 0, %s315
      %s318 = sphi 0, %s317
      %s332 = sphi 0, %s318
      %s336 = sphi 0, %s336
      %s338 = sphi 0, %s336
      %s339 = sphi 0, %s338
      %s353 = sphi 0, %s339
      %s357 = sphi 0, %s357
      %s359 = sphi 0, %s357
      %s360 = sphi 0, %s359
      %s374 = sphi 0, %s360
      %s378 = sphi 0, %s378
      %s380 = sphi 0, %s378
      %s381 = sphi 0, %s380
      %s395 = sphi 0, %s381
      %s399 = sphi 0, %s399
      %s401 = sphi 0, %s399
      %s402 = sphi 0, %s401
      %s416 = sphi 0, %s402
      %s420 = sphi 0, %s420
      %s422 = sphi 0, %s420
      %s423 = sphi 0, %s422
      %s437 = sphi 0, %s423
      %s443 = sphi 0, %s445
      %s446 = sphi 0, %s443
      %s447 = sphi 0, %s446
      %s463 = sphi 0, %s447
    $region4: #{tpu_custom_call.1} parent=1 // loop_header_branch
      %38 = sbr.rel (%p36) target = $region8
    $region5: #{tpu_custom_call.1} parent=1 // loop_body
      %s40 = ssub.s32 %s35, 1
      %s41 = ssub.s32 %s35, 2
      %s42 = sadd.s32 %s35, 1
      %s43 = ssub.s32 %s35, %s42
      %p44 = scmp.eq.s32.totalorder %s43, 0
      %s46 = sadd.s32 %s45, 1
      %s47 = scalar_select %p44, %s45, %s46
      %p50 = pneg %p44
      %p51 = scmp.eq.s32.totalorder %s35, 1
      %p52 = por %p50, %p51
      %p53 = scmp.ne.s32.totalorder %s45, %s48
      %p54 = scmp.eq.s32.totalorder %s35, 0
      %p55 = por %p53, %p54
      %p56 = scmp.ne.s32.totalorder %s45, %s48
      %p57 = scmp.eq.s32.totalorder %s40, 1
      %p58 = por %p56, %p57
      %p59 = scmp.ne.s32.totalorder %s48, %s49
      %p60 = scmp.eq.s32.totalorder %s40, 0
      %p61 = por %p59, %p60
      %p62 = scmp.ne.s32.totalorder %s48, %s49
      %p63 = scmp.eq.s32.totalorder %s41, 1
      %p64 = por %p62, %p63
      %p66 = scmp.ne.s32.totalorder %s49, %s65
      %p67 = scmp.eq.s32.totalorder %s41, 0
      %p68 = por %p66, %p67
      %s69 = ssub.s32 %s35, %s42
      %p70 = scmp.eq.s32.totalorder %s69, 0
      %s72 = sadd.s32 %s71, 1
      %s73 = scalar_select %p70, %s71, %s72
      %p76 = pneg %p70
      %p77 = scmp.eq.s32.totalorder %s35, 1
      %p78 = por %p76, %p77
      %p79 = scmp.ne.s32.totalorder %s71, %s74
      %p80 = scmp.eq.s32.totalorder %s35, 0
      %p81 = por %p79, %p80
      %p82 = scmp.ne.s32.totalorder %s71, %s74
      %p83 = scmp.eq.s32.totalorder %s40, 1
      %p84 = por %p82, %p83
      %p85 = scmp.ne.s32.totalorder %s74, %s75
      %p86 = scmp.eq.s32.totalorder %s40, 0
      %p87 = por %p85, %p86
      %p88 = scmp.ne.s32.totalorder %s74, %s75
      %p89 = scmp.eq.s32.totalorder %s41, 1
      %p90 = por %p88, %p89
      %p92 = scmp.ne.s32.totalorder %s75, %s91
      %p93 = scmp.eq.s32.totalorder %s41, 0
      %p94 = por %p92, %p93
      %s95 = ssub.s32 %s35, %s42
      %p96 = scmp.eq.s32.totalorder %s95, 0
      %s98 = sadd.s32 %s97, 1
      %s99 = scalar_select %p96, %s97, %s98
      %p102 = pneg %p96
      %p103 = scmp.eq.s32.totalorder %s35, 1
      %p104 = por %p102, %p103
      %p105 = scmp.ne.s32.totalorder %s97, %s100
      %p106 = scmp.eq.s32.totalorder %s35, 0
      %p107 = por %p105, %p106
      %p108 = scmp.ne.s32.totalorder %s97, %s100
      %p109 = scmp.eq.s32.totalorder %s40, 1
      %p110 = por %p108, %p109
      %p111 = scmp.ne.s32.totalorder %s100, %s101
      %p112 = scmp.eq.s32.totalorder %s40, 0
      %p113 = por %p111, %p112
      %p114 = scmp.ne.s32.totalorder %s100, %s101
      %p115 = scmp.eq.s32.totalorder %s41, 1
      %p116 = por %p114, %p115
      %p118 = scmp.ne.s32.totalorder %s101, %s117
      %p119 = scmp.eq.s32.totalorder %s41, 0
      %p120 = por %p118, %p119
      %s121 = ssub.s32 %s35, %s42
      %p122 = scmp.eq.s32.totalorder %s121, 0
      %s124 = sadd.s32 %s123, 1
      %s125 = scalar_select %p122, %s123, %s124
      %p128 = pneg %p122
      %p129 = scmp.eq.s32.totalorder %s35, 1
      %p130 = por %p128, %p129
      %p131 = scmp.ne.s32.totalorder %s123, %s126
      %p132 = scmp.eq.s32.totalorder %s35, 0
      %p133 = por %p131, %p132
      %p134 = scmp.ne.s32.totalorder %s123, %s126
      %p135 = scmp.eq.s32.totalorder %s40, 1
      %p136 = por %p134, %p135
      %p137 = scmp.ne.s32.totalorder %s126, %s127
      %p138 = scmp.eq.s32.totalorder %s40, 0
      %p139 = por %p137, %p138
      %p140 = scmp.ne.s32.totalorder %s126, %s127
      %p141 = scmp.eq.s32.totalorder %s41, 1
      %p142 = por %p140, %p141
      %p144 = scmp.ne.s32.totalorder %s127, %s143
      %p145 = scmp.eq.s32.totalorder %s41, 0
      %p146 = por %p144, %p145
      %s148 = sadd.s32 %s147, 1
      %p151 = scmp.eq.s32.totalorder %s35, 1
      %p152 = scmp.ne.s32.totalorder %s147, %s149
      %p153 = scmp.eq.s32.totalorder %s35, 0
      %p154 = por %p152, %p153
      %p155 = scmp.ne.s32.totalorder %s147, %s149
      %p156 = scmp.eq.s32.totalorder %s40, 1
      %p157 = por %p155, %p156
      %p158 = scmp.ne.s32.totalorder %s149, %s150
      %p159 = scmp.eq.s32.totalorder %s40, 0
      %p160 = por %p158, %p159
      %p161 = scmp.ne.s32.totalorder %s149, %s150
      %p162 = scmp.eq.s32.totalorder %s41, 1
      %p163 = por %p161, %p162
      %p165 = scmp.ne.s32.totalorder %s150, %s164
      %p166 = scmp.eq.s32.totalorder %s41, 0
      %p167 = por %p165, %p166
      %s169 = sadd.s32 %s168, 1
      %p172 = scmp.eq.s32.totalorder %s35, 1
      %p173 = scmp.ne.s32.totalorder %s168, %s170
      %p174 = scmp.eq.s32.totalorder %s35, 0
      %p175 = por %p173, %p174
      %p176 = scmp.ne.s32.totalorder %s168, %s170
      %p177 = scmp.eq.s32.totalorder %s40, 1
      %p178 = por %p176, %p177
      %p179 = scmp.ne.s32.totalorder %s170, %s171
      %p180 = scmp.eq.s32.totalorder %s40, 0
      %p181 = por %p179, %p180
      %p182 = scmp.ne.s32.totalorder %s170, %s171
      %p183 = scmp.eq.s32.totalorder %s41, 1
      %p184 = por %p182, %p183
      %p186 = scmp.ne.s32.totalorder %s171, %s185
      %p187 = scmp.eq.s32.totalorder %s41, 0
      %p188 = por %p186, %p187
      %s190 = sadd.s32 %s189, 1
      %p193 = scmp.eq.s32.totalorder %s35, 1
      %p194 = scmp.ne.s32.totalorder %s189, %s191
      %p195 = scmp.eq.s32.totalorder %s35, 0
      %p196 = por %p194, %p195
      %p197 = scmp.ne.s32.totalorder %s189, %s191
      %p198 = scmp.eq.s32.totalorder %s40, 1
      %p199 = por %p197, %p198
      %p200 = scmp.ne.s32.totalorder %s191, %s192
      %p201 = scmp.eq.s32.totalorder %s40, 0
      %p202 = por %p200, %p201
      %p203 = scmp.ne.s32.totalorder %s191, %s192
      %p204 = scmp.eq.s32.totalorder %s41, 1
      %p205 = por %p203, %p204
      %p207 = scmp.ne.s32.totalorder %s192, %s206
      %p208 = scmp.eq.s32.totalorder %s41, 0
      %p209 = por %p207, %p208
      %s211 = sadd.s32 %s210, 1
      %p214 = scmp.eq.s32.totalorder %s35, 1
      %p215 = scmp.ne.s32.totalorder %s210, %s212
      %p216 = scmp.eq.s32.totalorder %s35, 0
      %p217 = por %p215, %p216
      %p218 = scmp.ne.s32.totalorder %s210, %s212
      %p219 = scmp.eq.s32.totalorder %s40, 1
      %p220 = por %p218, %p219
      %p221 = scmp.ne.s32.totalorder %s212, %s213
      %p222 = scmp.eq.s32.totalorder %s40, 0
      %p223 = por %p221, %p222
      %p224 = scmp.ne.s32.totalorder %s212, %s213
      %p225 = scmp.eq.s32.totalorder %s41, 1
      %p226 = por %p224, %p225
      %p228 = scmp.ne.s32.totalorder %s213, %s227
      %p229 = scmp.eq.s32.totalorder %s41, 0
      %p230 = por %p228, %p229
      %s232 = sadd.s32 %s231, 1
      %p235 = scmp.eq.s32.totalorder %s35, 1
      %p236 = scmp.ne.s32.totalorder %s231, %s233
      %p237 = scmp.eq.s32.totalorder %s35, 0
      %p238 = por %p236, %p237
      %p239 = scmp.ne.s32.totalorder %s231, %s233
      %p240 = scmp.eq.s32.totalorder %s40, 1
      %p241 = por %p239, %p240
      %p242 = scmp.ne.s32.totalorder %s233, %s234
      %p243 = scmp.eq.s32.totalorder %s40, 0
      %p244 = por %p242, %p243
      %p245 = scmp.ne.s32.totalorder %s233, %s234
      %p246 = scmp.eq.s32.totalorder %s41, 1
      %p247 = por %p245, %p246
      %p249 = scmp.ne.s32.totalorder %s234, %s248
      %p250 = scmp.eq.s32.totalorder %s41, 0
      %p251 = por %p249, %p250
      %s253 = sadd.s32 %s252, 1
      %p256 = scmp.eq.s32.totalorder %s35, 1
      %p257 = scmp.ne.s32.totalorder %s252, %s254
      %p258 = scmp.eq.s32.totalorder %s35, 0
      %p259 = por %p257, %p258
      %p260 = scmp.ne.s32.totalorder %s252, %s254
      %p261 = scmp.eq.s32.totalorder %s40, 1
      %p262 = por %p260, %p261
      %p263 = scmp.ne.s32.totalorder %s254, %s255
      %p264 = scmp.eq.s32.totalorder %s40, 0
      %p265 = por %p263, %p264
      %p266 = scmp.ne.s32.totalorder %s254, %s255
      %p267 = scmp.eq.s32.totalorder %s41, 1
      %p268 = por %p266, %p267
      %p270 = scmp.ne.s32.totalorder %s255, %s269
      %p271 = scmp.eq.s32.totalorder %s41, 0
      %p272 = por %p270, %p271
      %s274 = sadd.s32 %s273, 1
      %p277 = scmp.eq.s32.totalorder %s35, 1
      %p278 = scmp.ne.s32.totalorder %s273, %s275
      %p279 = scmp.eq.s32.totalorder %s35, 0
      %p280 = por %p278, %p279
      %p281 = scmp.ne.s32.totalorder %s273, %s275
      %p282 = scmp.eq.s32.totalorder %s40, 1
      %p283 = por %p281, %p282
      %p284 = scmp.ne.s32.totalorder %s275, %s276
      %p285 = scmp.eq.s32.totalorder %s40, 0
      %p286 = por %p284, %p285
      %p287 = scmp.ne.s32.totalorder %s275, %s276
      %p288 = scmp.eq.s32.totalorder %s41, 1
      %p289 = por %p287, %p288
      %p291 = scmp.ne.s32.totalorder %s276, %s290
      %p292 = scmp.eq.s32.totalorder %s41, 0
      %p293 = por %p291, %p292
      %s295 = sadd.s32 %s294, 1
      %p298 = scmp.eq.s32.totalorder %s35, 1
      %p299 = scmp.ne.s32.totalorder %s294, %s296
      %p300 = scmp.eq.s32.totalorder %s35, 0
      %p301 = por %p299, %p300
      %p302 = scmp.ne.s32.totalorder %s294, %s296
      %p303 = scmp.eq.s32.totalorder %s40, 1
      %p304 = por %p302, %p303
      %p305 = scmp.ne.s32.totalorder %s296, %s297
      %p306 = scmp.eq.s32.totalorder %s40, 0
      %p307 = por %p305, %p306
      %p308 = scmp.ne.s32.totalorder %s296, %s297
      %p309 = scmp.eq.s32.totalorder %s41, 1
      %p310 = por %p308, %p309
      %p312 = scmp.ne.s32.totalorder %s297, %s311
      %p313 = scmp.eq.s32.totalorder %s41, 0
      %p314 = por %p312, %p313
      %s316 = sadd.s32 %s315, 1
      %p319 = scmp.eq.s32.totalorder %s35, 1
      %p320 = scmp.ne.s32.totalorder %s315, %s317
      %p321 = scmp.eq.s32.totalorder %s35, 0
      %p322 = por %p320, %p321
      %p323 = scmp.ne.s32.totalorder %s315, %s317
      %p324 = scmp.eq.s32.totalorder %s40, 1
      %p325 = por %p323, %p324
      %p326 = scmp.ne.s32.totalorder %s317, %s318
      %p327 = scmp.eq.s32.totalorder %s40, 0
      %p328 = por %p326, %p327
      %p329 = scmp.ne.s32.totalorder %s317, %s318
      %p330 = scmp.eq.s32.totalorder %s41, 1
      %p331 = por %p329, %p330
      %p333 = scmp.ne.s32.totalorder %s318, %s332
      %p334 = scmp.eq.s32.totalorder %s41, 0
      %p335 = por %p333, %p334
      %s337 = sadd.s32 %s336, 1
      %p340 = scmp.eq.s32.totalorder %s35, 1
      %p341 = scmp.ne.s32.totalorder %s336, %s338
      %p342 = scmp.eq.s32.totalorder %s35, 0
      %p343 = por %p341, %p342
      %p344 = scmp.ne.s32.totalorder %s336, %s338
      %p345 = scmp.eq.s32.totalorder %s40, 1
      %p346 = por %p344, %p345
      %p347 = scmp.ne.s32.totalorder %s338, %s339
      %p348 = scmp.eq.s32.totalorder %s40, 0
      %p349 = por %p347, %p348
      %p350 = scmp.ne.s32.totalorder %s338, %s339
      %p351 = scmp.eq.s32.totalorder %s41, 1
      %p352 = por %p350, %p351
      %p354 = scmp.ne.s32.totalorder %s339, %s353
      %p355 = scmp.eq.s32.totalorder %s41, 0
      %p356 = por %p354, %p355
      %s358 = sadd.s32 %s357, 1
      %p361 = scmp.eq.s32.totalorder %s35, 1
      %p362 = scmp.ne.s32.totalorder %s357, %s359
      %p363 = scmp.eq.s32.totalorder %s35, 0
      %p364 = por %p362, %p363
      %p365 = scmp.ne.s32.totalorder %s357, %s359
      %p366 = scmp.eq.s32.totalorder %s40, 1
      %p367 = por %p365, %p366
      %p368 = scmp.ne.s32.totalorder %s359, %s360
      %p369 = scmp.eq.s32.totalorder %s40, 0
      %p370 = por %p368, %p369
      %p371 = scmp.ne.s32.totalorder %s359, %s360
      %p372 = scmp.eq.s32.totalorder %s41, 1
      %p373 = por %p371, %p372
      %p375 = scmp.ne.s32.totalorder %s360, %s374
      %p376 = scmp.eq.s32.totalorder %s41, 0
      %p377 = por %p375, %p376
      %s379 = sadd.s32 %s378, 1
      %p382 = scmp.eq.s32.totalorder %s35, 1
      %p383 = scmp.ne.s32.totalorder %s378, %s380
      %p384 = scmp.eq.s32.totalorder %s35, 0
      %p385 = por %p383, %p384
      %p386 = scmp.ne.s32.totalorder %s378, %s380
      %p387 = scmp.eq.s32.totalorder %s40, 1
      %p388 = por %p386, %p387
      %p389 = scmp.ne.s32.totalorder %s380, %s381
      %p390 = scmp.eq.s32.totalorder %s40, 0
      %p391 = por %p389, %p390
      %p392 = scmp.ne.s32.totalorder %s380, %s381
      %p393 = scmp.eq.s32.totalorder %s41, 1
      %p394 = por %p392, %p393
      %p396 = scmp.ne.s32.totalorder %s381, %s395
      %p397 = scmp.eq.s32.totalorder %s41, 0
      %p398 = por %p396, %p397
      %s400 = sadd.s32 %s399, 1
      %p403 = scmp.eq.s32.totalorder %s35, 1
      %p404 = scmp.ne.s32.totalorder %s399, %s401
      %p405 = scmp.eq.s32.totalorder %s35, 0
      %p406 = por %p404, %p405
      %p407 = scmp.ne.s32.totalorder %s399, %s401
      %p408 = scmp.eq.s32.totalorder %s40, 1
      %p409 = por %p407, %p408
      %p410 = scmp.ne.s32.totalorder %s401, %s402
      %p411 = scmp.eq.s32.totalorder %s40, 0
      %p412 = por %p410, %p411
      %p413 = scmp.ne.s32.totalorder %s401, %s402
      %p414 = scmp.eq.s32.totalorder %s41, 1
      %p415 = por %p413, %p414
      %p417 = scmp.ne.s32.totalorder %s402, %s416
      %p418 = scmp.eq.s32.totalorder %s41, 0
      %p419 = por %p417, %p418
      %s421 = sadd.s32 %s420, 1
      %p424 = scmp.eq.s32.totalorder %s35, 1
      %p425 = scmp.ne.s32.totalorder %s420, %s422
      %p426 = scmp.eq.s32.totalorder %s35, 0
      %p427 = por %p425, %p426
      %p428 = scmp.ne.s32.totalorder %s420, %s422
      %p429 = scmp.eq.s32.totalorder %s40, 1
      %p430 = por %p428, %p429
      %p431 = scmp.ne.s32.totalorder %s422, %s423
      %p432 = scmp.eq.s32.totalorder %s40, 0
      %p433 = por %p431, %p432
      %p434 = scmp.ne.s32.totalorder %s422, %s423
      %p435 = scmp.eq.s32.totalorder %s41, 1
      %p436 = por %p434, %p435
      %p438 = scmp.ne.s32.totalorder %s423, %s437
      %p439 = scmp.eq.s32.totalorder %s41, 0
      %p440 = por %p438, %p439
      %s441 = ssub.s32 %s35, %s42
      %p442 = scmp.eq.s32.totalorder %s441, 0
      %s444 = sadd.s32 %s443, 1
      %s445 = scalar_select %p442, %s443, %s444
      %p448 = pneg %p442
      %p449 = scmp.eq.s32.totalorder %s35, 1
      %p450 = por %p448, %p449
      %p451 = scmp.ne.s32.totalorder %s443, %s446
      %p452 = scmp.eq.s32.totalorder %s35, 0
      %p453 = por %p451, %p452
      %p454 = scmp.ne.s32.totalorder %s443, %s446
      %p455 = scmp.eq.s32.totalorder %s40, 1
      %p456 = por %p454, %p455
      %p457 = scmp.ne.s32.totalorder %s446, %s447
      %p458 = scmp.eq.s32.totalorder %s40, 0
      %p459 = por %p457, %p458
      %p460 = scmp.ne.s32.totalorder %s446, %s447
      %p461 = scmp.eq.s32.totalorder %s41, 1
      %p462 = por %p460, %p461
      %p464 = scmp.ne.s32.totalorder %s447, %s463
      %p465 = scmp.eq.s32.totalorder %s41, 0
      %p466 = por %p464, %p465
      %p467 = scmp.le.s32.totalorder 1, %s35
      %p468 = scmp.lt.s32.totalorder %s35, 3
      %p469 = pnand %p467, %p468
      %p470 = pneg %p469
      // Predicated region
      $region9: #{tpu_custom_call.1} parent=5 // pred_check
        _
      $region10: #{tpu_custom_call.1} parent=5 // pred_check_branch
        %472 = sbr.rel (%p469) target = $region12
      $region11: #{tpu_custom_call.1} parent=5 // pred_region
        %s473 = ssub.s32 %s35, 1
        // Predicated region
        $region13: #{tpu_custom_call.1} parent=11 // pred_check
          %p474 = pneg %p160
        $region14: #{tpu_custom_call.1} parent=11 // pred_check_branch
          %476 = sbr.rel (%p474) target = $region16
        $region15: #{tpu_custom_call.1} parent=11 // pred_region
          %478 = vsyncadd [#allocation6], 0
          %s479 = sshll.u32 %s4, 4
          %s480 = int_to_ptr.hbm [resolvable:$true] %s479
          %s481 = sshll.u32 [#allocation5], 4
          %s482 = int_to_ptr.vmem [resolvable:$true] %s481
          %487 = dma.hbm_to_vmem [thread:$0]  %s480, 256, %s482, [#allocation6], 128, 128, 8
        $region16: #{tpu_custom_call.1} parent=11 // pred_fallthru
          _
        // Predicated region
        $region17: #{tpu_custom_call.1} parent=11 // pred_check
          %p488 = pneg %p181
        $region18: #{tpu_custom_call.1} parent=11 // pred_check_branch
          %490 = sbr.rel (%p488) target = $region20
        $region19: #{tpu_custom_call.1} parent=11 // pred_region
          %492 = vsyncadd [#allocation6], 0
          %s493 = sshll.u32 %s5, 4
          %s494 = int_to_ptr.hbm [resolvable:$true] %s493
          %s495 = sshll.u32 [#allocation7], 4
          %s496 = int_to_ptr.vmem [resolvable:$true] %s495
          %501 = dma.hbm_to_vmem [thread:$0]  %s494, 2048, %s496, [#allocation6], 256, 256, 16
        $region20: #{tpu_custom_call.1} parent=11 // pred_fallthru
          _
        // Predicated region
        $region21: #{tpu_custom_call.1} parent=11 // pred_check
          %p502 = pneg %p202
        $region22: #{tpu_custom_call.1} parent=11 // pred_check_branch
          %504 = sbr.rel (%p502) target = $region24
        $region23: #{tpu_custom_call.1} parent=11 // pred_region
          %506 = vsyncadd [#allocation9], 0
          %s507 = sshll.u32 %s6, 4
          %s508 = int_to_ptr.hbm [resolvable:$true] %s507
          %s509 = sshll.u32 [#allocation8], 4
          %s510 = int_to_ptr.vmem [resolvable:$true] %s509
          %515 = dma.hbm_to_vmem [thread:$0]  %s508, 32768, %s510, [#allocation9], 1024, 1024, 64
        $region24: #{tpu_custom_call.1} parent=11 // pred_fallthru
          _
        // Predicated region
        $region25: #{tpu_custom_call.1} parent=11 // pred_check
          %p516 = pneg %p223
        $region26: #{tpu_custom_call.1} parent=11 // pred_check_branch
          %518 = sbr.rel (%p516) target = $region28
        $region27: #{tpu_custom_call.1} parent=11 // pred_region
          %520 = vsyncadd [#allocation9], 0
          %s521 = sshll.u32 %s7, 4
          %s522 = int_to_ptr.hbm [resolvable:$true] %s521
          %s523 = sshll.u32 [#allocation10], 4
          %s524 = int_to_ptr.vmem [resolvable:$true] %s523
          %529 = dma.hbm_to_vmem [thread:$0]  %s522, 256, %s524, [#allocation9], 128, 128, 8
        $region28: #{tpu_custom_call.1} parent=11 // pred_fallthru
          _
        // Predicated region
        $region29: #{tpu_custom_call.1} parent=11 // pred_check
          %p530 = pneg %p244
        $region30: #{tpu_custom_call.1} parent=11 // pred_check_branch
          %532 = sbr.rel (%p530) target = $region32
        $region31: #{tpu_custom_call.1} parent=11 // pred_region
          %534 = vsyncadd [#allocation12], 0
          %s535 = sshll.u32 %s8, 4
          %s536 = int_to_ptr.hbm [resolvable:$true] %s535
          %s537 = sshll.u32 [#allocation11], 4
          %s538 = int_to_ptr.vmem [resolvable:$true] %s537
          %543 = dma.hbm_to_vmem [thread:$0]  %s536, 512, %s538, [#allocation12], 256, 256, 16
        $region32: #{tpu_custom_call.1} parent=11 // pred_fallthru
          _
        // Predicated region
        $region33: #{tpu_custom_call.1} parent=11 // pred_check
          %p544 = pneg %p265
        $region34: #{tpu_custom_call.1} parent=11 // pred_check_branch
          %546 = sbr.rel (%p544) target = $region36
        $region35: #{tpu_custom_call.1} parent=11 // pred_region
          %548 = vsyncadd [#allocation12], 0
          %s549 = sshll.u32 %s9, 4
          %s550 = int_to_ptr.hbm [resolvable:$true] %s549
          %s551 = sshll.u32 [#allocation13], 4
          %s552 = int_to_ptr.vmem [resolvable:$true] %s551
          %557 = dma.hbm_to_vmem [thread:$0]  %s550, 2048, %s552, [#allocation12], 1024, 1024, 64
        $region36: #{tpu_custom_call.1} parent=11 // pred_fallthru
          _
        // Predicated region
        $region37: #{tpu_custom_call.1} parent=11 // pred_check
          %p558 = pneg %p286
        $region38: #{tpu_custom_call.1} parent=11 // pred_check_branch
          %560 = sbr.rel (%p558) target = $region40
        $region39: #{tpu_custom_call.1} parent=11 // pred_region
          %562 = vsyncadd [#allocation15], 0
          %s563 = sshll.u32 %s10, 4
          %s564 = int_to_ptr.hbm [resolvable:$true] %s563
          %s565 = sshll.u32 [#allocation14], 4
          %s566 = int_to_ptr.vmem [resolvable:$true] %s565
          %571 = dma.hbm_to_vmem [thread:$0]  %s564, 1536, %s566, [#allocation15], 384, 384, 24
        $region40: #{tpu_custom_call.1} parent=11 // pred_fallthru
          _
        // Predicated region
        $region41: #{tpu_custom_call.1} parent=11 // pred_check
          %p572 = pneg %p307
        $region42: #{tpu_custom_call.1} parent=11 // pred_check_branch
          %574 = sbr.rel (%p572) target = $region44
        $region43: #{tpu_custom_call.1} parent=11 // pred_region
          _
        $region44: #{tpu_custom_call.1} parent=11 // pred_fallthru
          _
        // Predicated region
        $region45: #{tpu_custom_call.1} parent=11 // pred_check
          %p575 = pneg %p328
        $region46: #{tpu_custom_call.1} parent=11 // pred_check_branch
          %577 = sbr.rel (%p575) target = $region48
        $region47: #{tpu_custom_call.1} parent=11 // pred_region
          %579 = vsyncadd [#allocation15], 0
          %s580 = sshll.u32 %s12, 4
          %s581 = int_to_ptr.hbm [resolvable:$true] %s580
          %s582 = sshll.u32 [#allocation16], 4
          %s583 = int_to_ptr.vmem [resolvable:$true] %s582
          %588 = dma.hbm_to_vmem [thread:$0]  %s581, 1536, %s583, [#allocation15], 384, 384, 24
        $region48: #{tpu_custom_call.1} parent=11 // pred_fallthru
          _
        // Predicated region
        $region49: #{tpu_custom_call.1} parent=11 // pred_check
          %p589 = pneg %p349
        $region50: #{tpu_custom_call.1} parent=11 // pred_check_branch
          %591 = sbr.rel (%p589) target = $region52
        $region51: #{tpu_custom_call.1} parent=11 // pred_region
          _
        $region52: #{tpu_custom_call.1} parent=11 // pred_fallthru
          _
        // Predicated region
        $region53: #{tpu_custom_call.1} parent=11 // pred_check
          %p592 = pneg %p370
        $region54: #{tpu_custom_call.1} parent=11 // pred_check_branch
          %594 = sbr.rel (%p592) target = $region56
        $region55: #{tpu_custom_call.1} parent=11 // pred_region
          %596 = vsyncadd [#allocation18], 0
          %s597 = sshll.u32 %s14, 4
          %s598 = int_to_ptr.hbm [resolvable:$true] %s597
          %s599 = sshll.u32 [#allocation17], 4
          %s600 = int_to_ptr.vmem [resolvable:$true] %s599
          %605 = dma.hbm_to_vmem [thread:$0]  %s598, 1536, %s600, [#allocation18], 384, 384, 24
        $region56: #{tpu_custom_call.1} parent=11 // pred_fallthru
          _
        // Predicated region
        $region57: #{tpu_custom_call.1} parent=11 // pred_check
          %p606 = pneg %p391
        $region58: #{tpu_custom_call.1} parent=11 // pred_check_branch
          %608 = sbr.rel (%p606) target = $region60
        $region59: #{tpu_custom_call.1} parent=11 // pred_region
          _
        $region60: #{tpu_custom_call.1} parent=11 // pred_fallthru
          _
        // Predicated region
        $region61: #{tpu_custom_call.1} parent=11 // pred_check
          %p609 = pneg %p412
        $region62: #{tpu_custom_call.1} parent=11 // pred_check_branch
          %611 = sbr.rel (%p609) target = $region64
        $region63: #{tpu_custom_call.1} parent=11 // pred_region
          %613 = vsyncadd [#allocation18], 0
          %s614 = sshll.u32 %s16, 4
          %s615 = int_to_ptr.hbm [resolvable:$true] %s614
          %s616 = sshll.u32 [#allocation19], 4
          %s617 = int_to_ptr.vmem [resolvable:$true] %s616
          %622 = dma.hbm_to_vmem [thread:$0]  %s615, 1536, %s617, [#allocation18], 384, 384, 24
        $region64: #{tpu_custom_call.1} parent=11 // pred_fallthru
          _
        // Predicated region
        $region65: #{tpu_custom_call.1} parent=11 // pred_check
          %p623 = pneg %p433
        $region66: #{tpu_custom_call.1} parent=11 // pred_check_branch
          %625 = sbr.rel (%p623) target = $region68
        $region67: #{tpu_custom_call.1} parent=11 // pred_region
          _
        $region68: #{tpu_custom_call.1} parent=11 // pred_fallthru
          _
      $region12: #{tpu_custom_call.1} parent=5 // pred_fallthru
        _
      %p626 = scmp.lt.s32.totalorder %s35, 2
      // Predicated region
      $region69: #{tpu_custom_call.1} parent=5 // pred_check
        %p627 = pneg %p626
      $region70: #{tpu_custom_call.1} parent=5 // pred_check_branch
        %629 = sbr.rel (%p627) target = $region72
      $region71: #{tpu_custom_call.1} parent=5 // pred_region
        // Predicated region
        $region73: #{tpu_custom_call.1} parent=71 // pred_check
          %p630 = pneg %p55
        $region74: #{tpu_custom_call.1} parent=71 // pred_check_branch
          %632 = sbr.rel (%p630) target = $region76
        $region75: #{tpu_custom_call.1} parent=71 // pred_region
          %s633 = sand.u32 %s45, 1
          %s634 = scalar_lea.sflag [#allocation3], %s633
          %s635 = sand.u32 %s45, 1
          %s636 = smul.addr %s635, 256
          %s637 = scalar_lea.vmem [#allocation2], %s636
          %639 = vsyncadd %s634, 0
          %s640 = smul.addr %s35, 32
          %s641 = smul.addr %s640, 8
          %s642 = scalar_lea.hbm %s0, %s641
          %s643 = sshll.u32 %s642, 4
          %s644 = int_to_ptr.hbm [resolvable:$true] %s643
          %s645 = sshll.u32 %s637, 4
          %s646 = int_to_ptr.vmem [resolvable:$true] %s645
          %651 = dma.hbm_to_vmem [thread:$0]  %s644, 4096, %s646, %s634, 1024, 1024, 64
        $region76: #{tpu_custom_call.1} parent=71 // pred_fallthru
          _
        // Predicated region
        $region77: #{tpu_custom_call.1} parent=71 // pred_check
          %p652 = pneg %p81
        $region78: #{tpu_custom_call.1} parent=71 // pred_check_branch
          %654 = sbr.rel (%p652) target = $region80
        $region79: #{tpu_custom_call.1} parent=71 // pred_region
          %p655 = scmp.lt.s32.totalorder %s35, 1
          %s656 = scalar_select %p655, %s35, 1
          %s657 = smul.addr %s656, 8
          %s658 = smul.addr %s657, 8
          %s659 = scalar_lea.vmem %s1, %s658
        $region80: #{tpu_custom_call.1} parent=71 // pred_fallthru
          _
        // Predicated region
        $region81: #{tpu_custom_call.1} parent=71 // pred_check
          %p660 = pneg %p107
        $region82: #{tpu_custom_call.1} parent=71 // pred_check_branch
          %662 = sbr.rel (%p660) target = $region84
        $region83: #{tpu_custom_call.1} parent=71 // pred_region
          %p663 = scmp.lt.s32.totalorder %s35, 1
          %s664 = scalar_select %p663, %s35, 1
          %s665 = smul.addr %s664, 4
          %s666 = smul.addr %s665, 8
          %s667 = scalar_lea.vmem %s2, %s666
        $region84: #{tpu_custom_call.1} parent=71 // pred_fallthru
          _
        // Predicated region
        $region85: #{tpu_custom_call.1} parent=71 // pred_check
          %p668 = pneg %p133
        $region86: #{tpu_custom_call.1} parent=71 // pred_check_branch
          %670 = sbr.rel (%p668) target = $region88
        $region87: #{tpu_custom_call.1} parent=71 // pred_region
          %p671 = scmp.lt.s32.totalorder %s35, 1
          %s672 = scalar_select %p671, %s35, 1
          %s673 = smul.addr %s672, 4
          %s674 = smul.addr %s673, 8
          %s675 = scalar_lea.vmem %s3, %s674
        $region88: #{tpu_custom_call.1} parent=71 // pred_fallthru
          _
      $region72: #{tpu_custom_call.1} parent=5 // pred_fallthru
        _
      %p676 = scmp.le.s32.totalorder 1, %s35
      %p677 = scmp.lt.s32.totalorder %s35, 3
      %p678 = pnand %p676, %p677
      %p679 = pneg %p678
      // Predicated region
      $region89: #{tpu_custom_call.1} parent=5 // pred_check
        _
      $region90: #{tpu_custom_call.1} parent=5 // pred_check_branch
        %681 = sbr.rel (%p678) target = $region92
      $region91: #{tpu_custom_call.1} parent=5 // pred_region
        %s682 = ssub.s32 %s35, 1
        %s683 = sand.u32 %s48, 1
        %s684 = scalar_lea.sflag [#allocation3], %s683
        %s685 = sand.u32 %s48, 1
        %s686 = smul.addr %s685, 256
        %s687 = scalar_lea.vmem [#allocation2], %s686
        // Predicated region
        $region93: #{tpu_custom_call.1} parent=91 // pred_check
          %p688 = pneg %p61
        $region94: #{tpu_custom_call.1} parent=91 // pred_check_branch
          %690 = sbr.rel (%p688) target = $region96
        $region95: #{tpu_custom_call.1} parent=91 // pred_region
          %692 = dma.done %s684, 4096
        $region96: #{tpu_custom_call.1} parent=91 // pred_fallthru
          _
        // Predicated region
        $region97: #{tpu_custom_call.1} parent=91 // pred_check
          %p693 = pneg %p160
        $region98: #{tpu_custom_call.1} parent=91 // pred_check_branch
          %695 = sbr.rel (%p693) target = $region100
        $region99: #{tpu_custom_call.1} parent=91 // pred_region
          %697 = dma.done [#allocation6], 256
        $region100: #{tpu_custom_call.1} parent=91 // pred_fallthru
          _
        // Predicated region
        $region101: #{tpu_custom_call.1} parent=91 // pred_check
          %p698 = pneg %p181
        $region102: #{tpu_custom_call.1} parent=91 // pred_check_branch
          %700 = sbr.rel (%p698) target = $region104
        $region103: #{tpu_custom_call.1} parent=91 // pred_region
          %702 = dma.done [#allocation6], 2048
        $region104: #{tpu_custom_call.1} parent=91 // pred_fallthru
          _
        // Predicated region
        $region105: #{tpu_custom_call.1} parent=91 // pred_check
          %p703 = pneg %p202
        $region106: #{tpu_custom_call.1} parent=91 // pred_check_branch
          %705 = sbr.rel (%p703) target = $region108
        $region107: #{tpu_custom_call.1} parent=91 // pred_region
          %707 = dma.done [#allocation9], 32768
        $region108: #{tpu_custom_call.1} parent=91 // pred_fallthru
          _
        // Predicated region
        $region109: #{tpu_custom_call.1} parent=91 // pred_check
          %p708 = pneg %p223
        $region110: #{tpu_custom_call.1} parent=91 // pred_check_branch
          %710 = sbr.rel (%p708) target = $region112
        $region111: #{tpu_custom_call.1} parent=91 // pred_region
          %712 = dma.done [#allocation9], 256
        $region112: #{tpu_custom_call.1} parent=91 // pred_fallthru
          _
        // Predicated region
        $region113: #{tpu_custom_call.1} parent=91 // pred_check
          %p713 = pneg %p244
        $region114: #{tpu_custom_call.1} parent=91 // pred_check_branch
          %715 = sbr.rel (%p713) target = $region116
        $region115: #{tpu_custom_call.1} parent=91 // pred_region
          %717 = dma.done [#allocation12], 512
        $region116: #{tpu_custom_call.1} parent=91 // pred_fallthru
          _
        // Predicated region
        $region117: #{tpu_custom_call.1} parent=91 // pred_check
          %p718 = pneg %p265
        $region118: #{tpu_custom_call.1} parent=91 // pred_check_branch
          %720 = sbr.rel (%p718) target = $region120
        $region119: #{tpu_custom_call.1} parent=91 // pred_region
          %722 = dma.done [#allocation12], 2048
        $region120: #{tpu_custom_call.1} parent=91 // pred_fallthru
          _
        // Predicated region
        $region121: #{tpu_custom_call.1} parent=91 // pred_check
          %p723 = pneg %p286
        $region122: #{tpu_custom_call.1} parent=91 // pred_check_branch
          %725 = sbr.rel (%p723) target = $region124
        $region123: #{tpu_custom_call.1} parent=91 // pred_region
          %727 = dma.done [#allocation15], 1536
        $region124: #{tpu_custom_call.1} parent=91 // pred_fallthru
          _
        // Predicated region
        $region125: #{tpu_custom_call.1} parent=91 // pred_check
          %p728 = pneg %p328
        $region126: #{tpu_custom_call.1} parent=91 // pred_check_branch
          %730 = sbr.rel (%p728) target = $region128
        $region127: #{tpu_custom_call.1} parent=91 // pred_region
          %732 = dma.done [#allocation15], 1536
        $region128: #{tpu_custom_call.1} parent=91 // pred_fallthru
          _
        // Predicated region
        $region129: #{tpu_custom_call.1} parent=91 // pred_check
          %p733 = pneg %p370
        $region130: #{tpu_custom_call.1} parent=91 // pred_check_branch
          %735 = sbr.rel (%p733) target = $region132
        $region131: #{tpu_custom_call.1} parent=91 // pred_region
          %737 = dma.done [#allocation18], 1536
        $region132: #{tpu_custom_call.1} parent=91 // pred_fallthru
          _
        // Predicated region
        $region133: #{tpu_custom_call.1} parent=91 // pred_check
          %p738 = pneg %p412
        $region134: #{tpu_custom_call.1} parent=91 // pred_check_branch
          %740 = sbr.rel (%p738) target = $region136
        $region135: #{tpu_custom_call.1} parent=91 // pred_region
          %742 = dma.done [#allocation18], 1536
        $region136: #{tpu_custom_call.1} parent=91 // pred_fallthru
          _
        %s743 = sand.u32 %s48, 1
        %s744 = scalar_lea.sflag [#allocation3], %s743
        %s745 = sand.u32 %s48, 1
        %s746 = smul.addr %s745, 256
        %s747 = scalar_lea.vmem [#allocation2], %s746
        %p748 = pneg %p61
        %p749 = pneg %p58
        %p750 = scmp.lt.s32.totalorder %s40, 1
        %s751 = scalar_select %p750, %s40, 1
        %s752 = smul.addr %s751, 8
        %s753 = smul.addr %s752, 8
        %s754 = scalar_lea.vmem %s1, %s753
        %p755 = pneg %p87
        %p756 = pneg %p84
        %p757 = scmp.lt.s32.totalorder %s40, 1
        %s758 = scalar_select %p757, %s40, 1
        %s759 = smul.addr %s758, 4
        %s760 = smul.addr %s759, 8
        %s761 = scalar_lea.vmem %s2, %s760
        %p762 = pneg %p113
        %p763 = pneg %p110
        %p764 = scmp.lt.s32.totalorder %s40, 1
        %s765 = scalar_select %p764, %s40, 1
        %s766 = smul.addr %s765, 4
        %s767 = smul.addr %s766, 8
        %s768 = scalar_lea.vmem %s3, %s767
        %p769 = pneg %p139
        %p770 = pneg %p136
        %p771 = pneg %p160
        %p772 = pneg %p157
        %p773 = pneg %p181
        %p774 = pneg %p178
        %p775 = pneg %p202
        %p776 = pneg %p199
        %p777 = pneg %p223
        %p778 = pneg %p220
        %p779 = pneg %p244
        %p780 = pneg %p241
        %p781 = pneg %p265
        %p782 = pneg %p262
        %p783 = pneg %p286
        %p784 = pneg %p283
        %p785 = pneg %p307
        %p786 = pneg %p304
        %p787 = pneg %p328
        %p788 = pneg %p325
        %p789 = pneg %p349
        %p790 = pneg %p346
        %p791 = pneg %p370
        %p792 = pneg %p367
        %p793 = pneg %p391
        %p794 = pneg %p388
        %p795 = pneg %p412
        %p796 = pneg %p409
        %p797 = pneg %p433
        %p798 = pneg %p430
        %p799 = pneg %p459
        %p800 = pneg %p456
        %s801 = sand.u32 %s446, 1
        %s802 = scalar_lea.sflag [#allocation4], %s801
        %s803 = sand.u32 %s446, 1
        %s804 = smul.addr %s803, 256
        %s805 = scalar_lea.vmem [#allocation20], %s804
        %p806 = scmp.lt.s32.totalorder %s40, 1
        %s807 = scalar_select %p806, %s40, 1
        %s808 = smul.addr %s807, 8
        %s809 = smul.addr %s808, 8
        %s810 = scalar_lea.vmem %s1, %s809
        %p811 = scmp.lt.s32.totalorder %s40, 1
        %s812 = scalar_select %p811, %s40, 1
        %s813 = smul.addr %s812, 4
        %s814 = smul.addr %s813, 8
        %s815 = scalar_lea.vmem %s2, %s814
        %p816 = scmp.lt.s32.totalorder %s40, 1
        %s817 = scalar_select %p816, %s40, 1
        %s818 = smul.addr %s817, 4
        %s819 = smul.addr %s818, 8
        %s820 = scalar_lea.vmem %s3, %s819
        %v821 = vld [vmem:[%s820] sm:$0xff]
        %v822 = vld [vmem:[%s820 + $0x8] sm:$0xff]
        %v823 = vld [vmem:[%s820 + $0x10] sm:$0xff]
        %v824 = vld [vmem:[%s820 + $0x18] sm:$0xff]
        %v825 = vld [vmem:[#allocation5] sm:$0xff]
        %v826 = vld [vmem:[#allocation5 + $0x8] sm:$0xff]
        %vm827 = vcmask 130048
        %v829 = vsel %vm827, %v821, 0
        %v832 = vsel %vm827, %v822, 0
        %v835 = vsel %vm827, %v823, 0
        %v838 = vsel %vm827, %v824, 0
        %840 = vmatpush.msra.mxu0 0.0
        %841 = vmatpush.msra.mxu0 0.0
        %842 = vmatpush.msra.mxu0 0.0
        %843 = vmatpush.msra.mxu0 0.0
        %844 = vmatpush.msra.mxu0 0.0
        %845 = vmatpush.msra.mxu0 0.0
        %846 = vmatpush.msra.mxu0 0.0
        %847 = vmatpush.msra.mxu0 0.0
        %848 = vmatpush.msra.mxu0 0.0
        %849 = vmatpush.msra.mxu0 0.0
        %850 = vmatpush.msra.mxu0 0.0
        %851 = vmatpush.msra.mxu0 0.0
        %852 = vmatpush.msra.mxu0 0.0
        %853 = vmatpush.msra.mxu0 0.0
        %854 = vmatpush.msra.mxu0 %v826
        %855 = vmatpush.msra.mxu0 %v825
        %856 = vmatmul.f32.gmra.mxu0 %v829
        %v857 = vpop.f32.mrf.mxu0
        %v858 = vadd.f32 0.0, %v857
        %859 = vmatmul.f32.gmra.mxu0 %v832
        %v860 = vpop.f32.mrf.mxu0
        %v861 = vadd.f32 0.0, %v860
        %862 = vmatmul.f32.gmra.mxu0 %v835
        %v863 = vpop.f32.mrf.mxu0
        %v864 = vadd.f32 0.0, %v863
        %865 = vmatmul.f32.gmra.mxu0 %v838
        %v866 = vpop.f32.mrf.mxu0
        %v867 = vadd.f32 0.0, %v866
        %868 = vdwg.mxu0
        %v869 = vld [vmem:[#allocation14] sm:$0xff]
        %v870 = vld [vmem:[#allocation14 + $0x8] sm:$0xff]
        %v871 = vld [vmem:[#allocation14 + $0x10] sm:$0xff]
        %v872 = vld [vmem:[#allocation14 + $0x18] sm:$0xff]
        %v873 = vld [vmem:[#allocation14 + $0x20] sm:$0xff]
        %v874 = vld [vmem:[#allocation14 + $0x28] sm:$0xff]
        %v875 = vld [vmem:[#allocation14 + $0x30] sm:$0xff]
        %v876 = vld [vmem:[#allocation14 + $0x38] sm:$0xff]
        %v877 = vld [vmem:[#allocation14 + $0x40] sm:$0xff]
        %v878 = vld [vmem:[#allocation14 + $0x48] sm:$0xff]
        %v879 = vld [vmem:[#allocation14 + $0x50] sm:$0xff]
        %v880 = vld [vmem:[#allocation14 + $0x58] sm:$0xff]
        %v881 = vld [vmem:[%s11] sm:$0xff]
        %v882 = vld [vmem:[%s11 + $0x8] sm:$0xff]
        %v883 = vld [vmem:[%s11 + $0x10] sm:$0xff]
        %v884 = vld [vmem:[%s11 + $0x18] sm:$0xff]
        %889 = vrot.lane.b32.xlu0 %v858, 73
        %v890 = vpop.permute.xlu0 %889
        %891 = vrot.lane.b32.xlu0 %v861, 73
        %v892 = vpop.permute.xlu0 %891
        %893 = vrot.lane.b32.xlu0 %v864, 73
        %v894 = vpop.permute.xlu0 %893
        %895 = vrot.lane.b32.xlu0 %v867, 73
        %v896 = vpop.permute.xlu0 %895
        %901 = vrot.lane.b32.xlu0 %v858, 9
        %v902 = vpop.permute.xlu0 %901
        %903 = vrot.lane.b32.xlu0 %v861, 9
        %v904 = vpop.permute.xlu0 %903
        %905 = vrot.lane.b32.xlu0 %v864, 9
        %v906 = vpop.permute.xlu0 %905
        %907 = vrot.lane.b32.xlu0 %v867, 9
        %v908 = vpop.permute.xlu0 %907
        %vm913 = vcmask 72704
        %v914 = vsel %vm913, %v890, %v902
        %v915 = vsel %vm913, %v892, %v904
        %v916 = vsel %vm913, %v894, %v906
        %v917 = vsel %vm913, %v896, %v908
        %v918 = vld [vmem:[#allocation10] sm:$0x1]
        %v919 = vperm.slane %v918, 0
        %v920 = vmul.f32 %v914, %v919
        %v921 = vmul.f32 %v915, %v919
        %v922 = vmul.f32 %v916, %v919
        %v923 = vmul.f32 %v917, %v919
        %924 = vrot.lane.b32.xlu0 %v858, 72
        %v925 = vpop.permute.xlu0 %924
        %926 = vrot.lane.b32.xlu0 %v861, 72
        %v927 = vpop.permute.xlu0 %926
        %928 = vrot.lane.b32.xlu0 %v864, 72
        %v929 = vpop.permute.xlu0 %928
        %930 = vrot.lane.b32.xlu0 %v867, 72
        %v931 = vpop.permute.xlu0 %930
        %936 = vrot.lane.b32.xlu0 %v858, 8
        %v937 = vpop.permute.xlu0 %936
        %938 = vrot.lane.b32.xlu0 %v861, 8
        %v939 = vpop.permute.xlu0 %938
        %940 = vrot.lane.b32.xlu0 %v864, 8
        %v941 = vpop.permute.xlu0 %940
        %942 = vrot.lane.b32.xlu0 %v867, 8
        %v943 = vpop.permute.xlu0 %942
        %vm948 = vcmask 64512
        %v949 = vsel %vm948, %v925, %v937
        %v950 = vsel %vm948, %v927, %v939
        %v951 = vsel %vm948, %v929, %v941
        %v952 = vsel %vm948, %v931, %v943
        %v953 = vld [vmem:[#allocation10 + $0x1] sm:$0x1]
        %v954 = vperm.slane %v953, 0
        %v955 = vmul.f32 %v949, %v954
        %v956 = vmul.f32 %v950, %v954
        %v957 = vmul.f32 %v951, %v954
        %v958 = vmul.f32 %v952, %v954
        %959 = vrot.lane.b32.xlu0 %v858, 71
        %v960 = vpop.permute.xlu0 %959
        %961 = vrot.lane.b32.xlu0 %v861, 71
        %v962 = vpop.permute.xlu0 %961
        %963 = vrot.lane.b32.xlu0 %v864, 71
        %v964 = vpop.permute.xlu0 %963
        %965 = vrot.lane.b32.xlu0 %v867, 71
        %v966 = vpop.permute.xlu0 %965
        %971 = vrot.lane.b32.xlu0 %v858, 7
        %v972 = vpop.permute.xlu0 %971
        %973 = vrot.lane.b32.xlu0 %v861, 7
        %v974 = vpop.permute.xlu0 %973
        %975 = vrot.lane.b32.xlu0 %v864, 7
        %v976 = vpop.permute.xlu0 %975
        %977 = vrot.lane.b32.xlu0 %v867, 7
        %v978 = vpop.permute.xlu0 %977
        %vm983 = vcmask 56320
        %v984 = vsel %vm983, %v960, %v972
        %v985 = vsel %vm983, %v962, %v974
        %v986 = vsel %vm983, %v964, %v976
        %v987 = vsel %vm983, %v966, %v978
        %v988 = vld [vmem:[#allocation10 + $0x2] sm:$0x1]
        %v989 = vperm.slane %v988, 0
        %v990 = vmul.f32 %v984, %v989
        %v991 = vmul.f32 %v985, %v989
        %v992 = vmul.f32 %v986, %v989
        %v993 = vmul.f32 %v987, %v989
        %994 = vrot.lane.b32.xlu0 %v858, 65
        %v995 = vpop.permute.xlu0 %994
        %996 = vrot.lane.b32.xlu0 %v861, 65
        %v997 = vpop.permute.xlu0 %996
        %998 = vrot.lane.b32.xlu0 %v864, 65
        %v999 = vpop.permute.xlu0 %998
        %1000 = vrot.lane.b32.xlu0 %v867, 65
        %v1001 = vpop.permute.xlu0 %1000
        %1006 = vrot.lane.b32.xlu0 %v858, 1
        %v1007 = vpop.permute.xlu0 %1006
        %1008 = vrot.lane.b32.xlu0 %v861, 1
        %v1009 = vpop.permute.xlu0 %1008
        %1010 = vrot.lane.b32.xlu0 %v864, 1
        %v1011 = vpop.permute.xlu0 %1010
        %1012 = vrot.lane.b32.xlu0 %v867, 1
        %v1013 = vpop.permute.xlu0 %1012
        %vm1018 = vcmask 7168
        %v1019 = vsel %vm1018, %v995, %v1007
        %v1020 = vsel %vm1018, %v997, %v1009
        %v1021 = vsel %vm1018, %v999, %v1011
        %v1022 = vsel %vm1018, %v1001, %v1013
        %v1023 = vld [vmem:[#allocation10 + $0x3] sm:$0x1]
        %v1024 = vperm.slane %v1023, 0
        %v1025 = vmul.f32 %v1019, %v1024
        %v1026 = vmul.f32 %v1020, %v1024
        %v1027 = vmul.f32 %v1021, %v1024
        %v1028 = vmul.f32 %v1022, %v1024
        %1029 = vrot.lane.b32.xlu0 %v858, 127
        %v1030 = vpop.permute.xlu0 %1029
        %1031 = vrot.lane.b32.xlu0 %v861, 127
        %v1032 = vpop.permute.xlu0 %1031
        %1033 = vrot.lane.b32.xlu0 %v864, 127
        %v1034 = vpop.permute.xlu0 %1033
        %1035 = vrot.lane.b32.xlu0 %v867, 127
        %v1036 = vpop.permute.xlu0 %1035
        %1041 = vrot.lane.b32.xlu0 %v858, 63
        %v1042 = vpop.permute.xlu0 %1041
        %1043 = vrot.lane.b32.xlu0 %v861, 63
        %v1044 = vpop.permute.xlu0 %1043
        %1045 = vrot.lane.b32.xlu0 %v864, 63
        %v1046 = vpop.permute.xlu0 %1045
        %1047 = vrot.lane.b32.xlu0 %v867, 63
        %v1048 = vpop.permute.xlu0 %1047
        %vm1053 = vcmask 515072
        %v1054 = vsel %vm1053, %v1030, %v1042
        %v1055 = vsel %vm1053, %v1032, %v1044
        %v1056 = vsel %vm1053, %v1034, %v1046
        %v1057 = vsel %vm1053, %v1036, %v1048
        %v1058 = vld [vmem:[#allocation10 + $0x5] sm:$0x1]
        %v1059 = vperm.slane %v1058, 0
        %v1060 = vmul.f32 %v1054, %v1059
        %v1061 = vmul.f32 %v1055, %v1059
        %v1062 = vmul.f32 %v1056, %v1059
        %v1063 = vmul.f32 %v1057, %v1059
        %1064 = vrot.lane.b32.xlu0 %v858, 121
        %v1065 = vpop.permute.xlu0 %1064
        %1066 = vrot.lane.b32.xlu0 %v861, 121
        %v1067 = vpop.permute.xlu0 %1066
        %1068 = vrot.lane.b32.xlu0 %v864, 121
        %v1069 = vpop.permute.xlu0 %1068
        %1070 = vrot.lane.b32.xlu0 %v867, 121
        %v1071 = vpop.permute.xlu0 %1070
        %1076 = vrot.lane.b32.xlu0 %v858, 57
        %v1077 = vpop.permute.xlu0 %1076
        %1078 = vrot.lane.b32.xlu0 %v861, 57
        %v1079 = vpop.permute.xlu0 %1078
        %1080 = vrot.lane.b32.xlu0 %v864, 57
        %v1081 = vpop.permute.xlu0 %1080
        %1082 = vrot.lane.b32.xlu0 %v867, 57
        %v1083 = vpop.permute.xlu0 %1082
        %vm1088 = vcmask 465920
        %v1089 = vsel %vm1088, %v1065, %v1077
        %v1090 = vsel %vm1088, %v1067, %v1079
        %v1091 = vsel %vm1088, %v1069, %v1081
        %v1092 = vsel %vm1088, %v1071, %v1083
        %v1093 = vld [vmem:[#allocation10 + $0x6] sm:$0x1]
        %v1094 = vperm.slane %v1093, 0
        %v1095 = vmul.f32 %v1089, %v1094
        %v1096 = vmul.f32 %v1090, %v1094
        %v1097 = vmul.f32 %v1091, %v1094
        %v1098 = vmul.f32 %v1092, %v1094
        %1099 = vrot.lane.b32.xlu0 %v858, 120
        %v1100 = vpop.permute.xlu0 %1099
        %1101 = vrot.lane.b32.xlu0 %v861, 120
        %v1102 = vpop.permute.xlu0 %1101
        %1103 = vrot.lane.b32.xlu0 %v864, 120
        %v1104 = vpop.permute.xlu0 %1103
        %1105 = vrot.lane.b32.xlu0 %v867, 120
        %v1106 = vpop.permute.xlu0 %1105
        %1111 = vrot.lane.b32.xlu0 %v858, 56
        %v1112 = vpop.permute.xlu0 %1111
        %1113 = vrot.lane.b32.xlu0 %v861, 56
        %v1114 = vpop.permute.xlu0 %1113
        %1115 = vrot.lane.b32.xlu0 %v864, 56
        %v1116 = vpop.permute.xlu0 %1115
        %1117 = vrot.lane.b32.xlu0 %v867, 56
        %v1118 = vpop.permute.xlu0 %1117
        %vm1123 = vcmask 457728
        %v1124 = vsel %vm1123, %v1100, %v1112
        %v1125 = vsel %vm1123, %v1102, %v1114
        %v1126 = vsel %vm1123, %v1104, %v1116
        %v1127 = vsel %vm1123, %v1106, %v1118
        %v1128 = vld [vmem:[#allocation10 + $0x7] sm:$0x1]
        %v1129 = vperm.slane %v1128, 0
        %v1130 = vmul.f32 %v1124, %v1129
        %v1131 = vmul.f32 %v1125, %v1129
        %v1132 = vmul.f32 %v1126, %v1129
        %v1133 = vmul.f32 %v1127, %v1129
        %1134 = vrot.lane.b32.xlu0 %v858, 119
        %v1135 = vpop.permute.xlu0 %1134
        %1136 = vrot.lane.b32.xlu0 %v861, 119
        %v1137 = vpop.permute.xlu0 %1136
        %1138 = vrot.lane.b32.xlu0 %v864, 119
        %v1139 = vpop.permute.xlu0 %1138
        %1140 = vrot.lane.b32.xlu0 %v867, 119
        %v1141 = vpop.permute.xlu0 %1140
        %1146 = vrot.lane.b32.xlu0 %v858, 55
        %v1147 = vpop.permute.xlu0 %1146
        %1148 = vrot.lane.b32.xlu0 %v861, 55
        %v1149 = vpop.permute.xlu0 %1148
        %1150 = vrot.lane.b32.xlu0 %v864, 55
        %v1151 = vpop.permute.xlu0 %1150
        %1152 = vrot.lane.b32.xlu0 %v867, 55
        %v1153 = vpop.permute.xlu0 %1152
        %vm1158 = vcmask 449536
        %v1159 = vsel %vm1158, %v1135, %v1147
        %v1160 = vsel %vm1158, %v1137, %v1149
        %v1161 = vsel %vm1158, %v1139, %v1151
        %v1162 = vsel %vm1158, %v1141, %v1153
        %v1163 = vld [vmem:[#allocation10 + $0x8] sm:$0x1]
        %v1164 = vperm.slane %v1163, 0
        %v1165 = vmul.f32 %v1159, %v1164
        %v1166 = vmul.f32 %v1160, %v1164
        %v1167 = vmul.f32 %v1161, %v1164
        %v1168 = vmul.f32 %v1162, %v1164
        %1170 = vset.pattern.permute.xlu0 0
        %1171 = vperm.xlu0 %1170, %v881
        %v1172 = vpop.permute.xlu0 %1171
        %1175 = vset.pattern.permute.xlu0 0
        %1176 = vperm.xlu0 %1175, %v882
        %v1177 = vpop.permute.xlu0 %1176
        %1180 = vset.pattern.permute.xlu0 0
        %1181 = vperm.xlu0 %1180, %v883
        %v1182 = vpop.permute.xlu0 %1181
        %1185 = vset.pattern.permute.xlu0 0
        %1186 = vperm.xlu0 %1185, %v884
        %v1187 = vpop.permute.xlu0 %1186
        %vm1189 = vcmask 261120
        %v1191 = vsel %vm1189, %v871, 0
        %v1194 = vsel %vm1189, %v874, 0
        %v1197 = vsel %vm1189, %v877, 0
        %v1200 = vsel %vm1189, %v880, 0
        %1202 = vmatpush.msra.mxu0 %v1028
        %1203 = vmatpush.msra.mxu0 %v1027
        %1204 = vmatpush.msra.mxu0 %v1026
        %1205 = vmatpush.msra.mxu0 %v1025
        %1206 = vmatpush.msra.mxu0 %v993
        %1207 = vmatpush.msra.mxu0 %v992
        %1208 = vmatpush.msra.mxu0 %v991
        %1209 = vmatpush.msra.mxu0 %v990
        %1210 = vmatpush.msra.mxu0 %v958
        %1211 = vmatpush.msra.mxu0 %v957
        %1212 = vmatpush.msra.mxu0 %v956
        %1213 = vmatpush.msra.mxu0 %v955
        %1214 = vmatpush.msra.mxu0 %v923
        %1215 = vmatpush.msra.mxu0 %v922
        %1216 = vmatpush.msra.mxu0 %v921
        %1217 = vmatpush.msra.mxu0 %v920
        %1218 = vmatmul.f32.gmra.mxu0 %v869
        %v1219 = vpop.f32.mrf.mxu0
        %v1220 = vadd.f32 %v1172, %v1219
        %1221 = vmatmul.f32.gmra.mxu0 %v872
        %v1222 = vpop.f32.mrf.mxu0
        %v1223 = vadd.f32 %v1177, %v1222
        %1224 = vmatmul.f32.gmra.mxu0 %v875
        %v1225 = vpop.f32.mrf.mxu0
        %v1226 = vadd.f32 %v1182, %v1225
        %1227 = vmatmul.f32.gmra.mxu0 %v878
        %v1228 = vpop.f32.mrf.mxu0
        %v1229 = vadd.f32 %v1187, %v1228
        %1230 = vdwg.mxu0
        %1231 = vmatpush.msra.mxu0 %v1133
        %1232 = vmatpush.msra.mxu0 %v1132
        %1233 = vmatpush.msra.mxu0 %v1131
        %1234 = vmatpush.msra.mxu0 %v1130
        %1235 = vmatpush.msra.mxu0 %v1098
        %1236 = vmatpush.msra.mxu0 %v1097
        %1237 = vmatpush.msra.mxu0 %v1096
        %1238 = vmatpush.msra.mxu0 %v1095
        %1239 = vmatpush.msra.mxu0 %v1063
        %1240 = vmatpush.msra.mxu0 %v1062
        %1241 = vmatpush.msra.mxu0 %v1061
        %1242 = vmatpush.msra.mxu0 %v1060
        %1243 = vmatpush.msra.mxu0 %v867
        %1244 = vmatpush.msra.mxu0 %v864
        %1245 = vmatpush.msra.mxu0 %v861
        %1246 = vmatpush.msra.mxu0 %v858
        %1247 = vmatmul.f32.gmra.mxu0 %v870
        %v1248 = vpop.f32.mrf.mxu0
        %v1249 = vadd.f32 %v1220, %v1248
        %1250 = vmatmul.f32.gmra.mxu0 %v873
        %v1251 = vpop.f32.mrf.mxu0
        %v1252 = vadd.f32 %v1223, %v1251
        %1253 = vmatmul.f32.gmra.mxu0 %v876
        %v1254 = vpop.f32.mrf.mxu0
        %v1255 = vadd.f32 %v1226, %v1254
        %1256 = vmatmul.f32.gmra.mxu0 %v879
        %v1257 = vpop.f32.mrf.mxu0
        %v1258 = vadd.f32 %v1229, %v1257
        %1259 = vdwg.mxu0
        %1260 = vmatpush.msra.mxu0 0.0
        %1261 = vmatpush.msra.mxu0 0.0
        %1262 = vmatpush.msra.mxu0 0.0
        %1263 = vmatpush.msra.mxu0 0.0
        %1264 = vmatpush.msra.mxu0 0.0
        %1265 = vmatpush.msra.mxu0 0.0
        %1266 = vmatpush.msra.mxu0 0.0
        %1267 = vmatpush.msra.mxu0 0.0
        %1268 = vmatpush.msra.mxu0 0.0
        %1269 = vmatpush.msra.mxu0 0.0
        %1270 = vmatpush.msra.mxu0 0.0
        %1271 = vmatpush.msra.mxu0 0.0
        %1272 = vmatpush.msra.mxu0 %v1168
        %1273 = vmatpush.msra.mxu0 %v1167
        %1274 = vmatpush.msra.mxu0 %v1166
        %1275 = vmatpush.msra.mxu0 %v1165
        %1276 = vmatmul.f32.gmra.mxu0 %v1191
        %v1277 = vpop.f32.mrf.mxu0
        %v1278 = vadd.f32 %v1249, %v1277
        %1279 = vmatmul.f32.gmra.mxu0 %v1194
        %v1280 = vpop.f32.mrf.mxu0
        %v1281 = vadd.f32 %v1252, %v1280
        %1282 = vmatmul.f32.gmra.mxu0 %v1197
        %v1283 = vpop.f32.mrf.mxu0
        %v1284 = vadd.f32 %v1255, %v1283
        %1285 = vmatmul.f32.gmra.mxu0 %v1200
        %v1286 = vpop.f32.mrf.mxu0
        %v1287 = vadd.f32 %v1258, %v1286
        %1288 = vdwg.mxu0
        %v1289 = vmax.f32 %v1278, 0.0
        %v1290 = vmax.f32 %v1281, 0.0
        %v1291 = vmax.f32 %v1284, 0.0
        %v1292 = vmax.f32 %v1287, 0.0
        %v1293 = vld [vmem:[%s815] sm:$0xff]
        %v1294 = vld [vmem:[%s815 + $0x8] sm:$0xff]
        %v1295 = vld [vmem:[%s815 + $0x10] sm:$0xff]
        %v1296 = vld [vmem:[%s815 + $0x18] sm:$0xff]
        %v1297 = vadd.f32 %v1289, %v1293
        %v1298 = vadd.f32 %v1290, %v1294
        %v1299 = vadd.f32 %v1291, %v1295
        %v1300 = vadd.f32 %v1292, %v1296
        %v1301 = vld [vmem:[#allocation7] sm:$0xff]
        %v1302 = vld [vmem:[#allocation7 + $0x8] sm:$0xff]
        %v1303 = vld [vmem:[#allocation7 + $0x10] sm:$0xff]
        %v1304 = vld [vmem:[#allocation7 + $0x18] sm:$0xff]
        %v1305 = vld [vmem:[#allocation7 + $0x20] sm:$0xff]
        %v1306 = vld [vmem:[#allocation7 + $0x28] sm:$0xff]
        %v1307 = vld [vmem:[#allocation7 + $0x30] sm:$0xff]
        %v1308 = vld [vmem:[#allocation7 + $0x38] sm:$0xff]
        %v1309 = vld [vmem:[#allocation7 + $0x40] sm:$0xff]
        %v1310 = vld [vmem:[#allocation7 + $0x48] sm:$0xff]
        %v1311 = vld [vmem:[#allocation7 + $0x50] sm:$0xff]
        %v1312 = vld [vmem:[#allocation7 + $0x58] sm:$0xff]
        %v1313 = vld [vmem:[#allocation7 + $0x60] sm:$0xff]
        %v1314 = vld [vmem:[#allocation7 + $0x68] sm:$0xff]
        %v1315 = vld [vmem:[#allocation7 + $0x70] sm:$0xff]
        %v1316 = vld [vmem:[#allocation7 + $0x78] sm:$0xff]
        %vm1317 = vcmask 523264
        %v1319 = vsel %vm1317, %v1297, 0
        %v1322 = vsel %vm1317, %v1298, 0
        %v1325 = vsel %vm1317, %v1299, 0
        %v1328 = vsel %vm1317, %v1300, 0
        %1330 = vmatpush.msra.mxu0 0.0
        %1331 = vmatpush.msra.mxu0 0.0
        %1332 = vmatpush.msra.mxu0 0.0
        %1333 = vmatpush.msra.mxu0 0.0
        %1334 = vmatpush.msra.mxu0 0.0
        %1335 = vmatpush.msra.mxu0 0.0
        %1336 = vmatpush.msra.mxu0 0.0
        %1337 = vmatpush.msra.mxu0 0.0
        %1338 = vmatpush.msra.mxu0 %v1315
        %1339 = vmatpush.msra.mxu0 %v1313
        %1340 = vmatpush.msra.mxu0 %v1311
        %1341 = vmatpush.msra.mxu0 %v1309
        %1342 = vmatpush.msra.mxu0 %v1307
        %1343 = vmatpush.msra.mxu0 %v1305
        %1344 = vmatpush.msra.mxu0 %v1303
        %1345 = vmatpush.msra.mxu0 %v1301
        %1346 = vmatmul.f32.gmra.mxu0 %v1319
        %v1347 = vpop.f32.mrf.mxu0
        %v1348 = vadd.f32 0.0, %v1347
        %1349 = vmatmul.f32.gmra.mxu0 %v1322
        %v1350 = vpop.f32.mrf.mxu0
        %v1351 = vadd.f32 0.0, %v1350
        %1352 = vmatmul.f32.gmra.mxu0 %v1325
        %v1353 = vpop.f32.mrf.mxu0
        %v1354 = vadd.f32 0.0, %v1353
        %1355 = vmatmul.f32.gmra.mxu0 %v1328
        %v1356 = vpop.f32.mrf.mxu0
        %v1357 = vadd.f32 0.0, %v1356
        %1358 = vdwg.mxu0
        %1359 = vmatpush.msra.mxu0 0.0
        %1360 = vmatpush.msra.mxu0 0.0
        %1361 = vmatpush.msra.mxu0 0.0
        %1362 = vmatpush.msra.mxu0 0.0
        %1363 = vmatpush.msra.mxu0 0.0
        %1364 = vmatpush.msra.mxu0 0.0
        %1365 = vmatpush.msra.mxu0 0.0
        %1366 = vmatpush.msra.mxu0 0.0
        %1367 = vmatpush.msra.mxu0 %v1316
        %1368 = vmatpush.msra.mxu0 %v1314
        %1369 = vmatpush.msra.mxu0 %v1312
        %1370 = vmatpush.msra.mxu0 %v1310
        %1371 = vmatpush.msra.mxu0 %v1308
        %1372 = vmatpush.msra.mxu0 %v1306
        %1373 = vmatpush.msra.mxu0 %v1304
        %1374 = vmatpush.msra.mxu0 %v1302
        %1375 = vmatmul.f32.gmra.mxu0 %v1319
        %v1376 = vpop.f32.mrf.mxu0
        %v1377 = vadd.f32 0.0, %v1376
        %1378 = vmatmul.f32.gmra.mxu0 %v1322
        %v1379 = vpop.f32.mrf.mxu0
        %v1380 = vadd.f32 0.0, %v1379
        %1381 = vmatmul.f32.gmra.mxu0 %v1325
        %v1382 = vpop.f32.mrf.mxu0
        %v1383 = vadd.f32 0.0, %v1382
        %1384 = vmatmul.f32.gmra.mxu0 %v1328
        %v1385 = vpop.f32.mrf.mxu0
        %v1386 = vadd.f32 0.0, %v1385
        %1387 = vdwg.mxu0
        %v1388 = vld [vmem:[#allocation16] sm:$0xff]
        %v1389 = vld [vmem:[#allocation16 + $0x8] sm:$0xff]
        %v1390 = vld [vmem:[#allocation16 + $0x10] sm:$0xff]
        %v1391 = vld [vmem:[#allocation16 + $0x18] sm:$0xff]
        %v1392 = vld [vmem:[#allocation16 + $0x20] sm:$0xff]
        %v1393 = vld [vmem:[#allocation16 + $0x28] sm:$0xff]
        %v1394 = vld [vmem:[#allocation16 + $0x30] sm:$0xff]
        %v1395 = vld [vmem:[#allocation16 + $0x38] sm:$0xff]
        %v1396 = vld [vmem:[#allocation16 + $0x40] sm:$0xff]
        %v1397 = vld [vmem:[#allocation16 + $0x48] sm:$0xff]
        %v1398 = vld [vmem:[#allocation16 + $0x50] sm:$0xff]
        %v1399 = vld [vmem:[#allocation16 + $0x58] sm:$0xff]
        %v1400 = vld [vmem:[%s13] sm:$0xff]
        %v1401 = vld [vmem:[%s13 + $0x8] sm:$0xff]
        %v1402 = vld [vmem:[%s13 + $0x10] sm:$0xff]
        %v1403 = vld [vmem:[%s13 + $0x18] sm:$0xff]
        %1404 = vrot.lane.b32.xlu0 %v1348, 17
        %v1405 = vpop.permute.xlu0 %1404
        %1406 = vrot.lane.b32.xlu0 %v1351, 17
        %v1407 = vpop.permute.xlu0 %1406
        %1408 = vrot.lane.b32.xlu0 %v1354, 17
        %v1409 = vpop.permute.xlu0 %1408
        %1410 = vrot.lane.b32.xlu0 %v1357, 17
        %v1411 = vpop.permute.xlu0 %1410
        %1412 = vrot.lane.b32.xlu0 %v1377, 17
        %v1413 = vpop.permute.xlu0 %1412
        %1414 = vrot.lane.b32.xlu0 %v1380, 17
        %v1415 = vpop.permute.xlu0 %1414
        %1416 = vrot.lane.b32.xlu0 %v1383, 17
        %v1417 = vpop.permute.xlu0 %1416
        %1418 = vrot.lane.b32.xlu0 %v1386, 17
        %v1419 = vpop.permute.xlu0 %1418
        %v1420 = vlaneseq
        %v1421 = vand.u32 %v1420, 127
        %vm1422 = vcmp.lt.s32.totalorder %v1421, 17
        %v1423 = vsel %vm1422, %v1405, %v1413
        %v1424 = vsel %vm1422, %v1407, %v1415
        %v1425 = vsel %vm1422, %v1409, %v1417
        %v1426 = vsel %vm1422, %v1411, %v1419
        %v1427 = vsel %vm1422, %v1413, %v1405
        %v1428 = vsel %vm1422, %v1415, %v1407
        %v1429 = vsel %vm1422, %v1417, %v1409
        %v1430 = vsel %vm1422, %v1419, %v1411
        %v1431 = vld [vmem:[#allocation11] ss:$8 sm:$0x3]
        %v1433 = vperm.slane %v1431, 0
        %v1434 = vperm.slane %v1431, 1
        %v1437 = vmul.f32 %v1427, %v1433
        %v1438 = vmul.f32 %v1423, %v1434
        %v1439 = vmul.f32 %v1428, %v1433
        %v1440 = vmul.f32 %v1424, %v1434
        %v1441 = vmul.f32 %v1429, %v1433
        %v1442 = vmul.f32 %v1425, %v1434
        %v1443 = vmul.f32 %v1430, %v1433
        %v1444 = vmul.f32 %v1426, %v1434
        %1445 = vrot.lane.b32.xlu0 %v1348, 16
        %v1446 = vpop.permute.xlu0 %1445
        %1447 = vrot.lane.b32.xlu0 %v1351, 16
        %v1448 = vpop.permute.xlu0 %1447
        %1449 = vrot.lane.b32.xlu0 %v1354, 16
        %v1450 = vpop.permute.xlu0 %1449
        %1451 = vrot.lane.b32.xlu0 %v1357, 16
        %v1452 = vpop.permute.xlu0 %1451
        %1453 = vrot.lane.b32.xlu0 %v1377, 16
        %v1454 = vpop.permute.xlu0 %1453
        %1455 = vrot.lane.b32.xlu0 %v1380, 16
        %v1456 = vpop.permute.xlu0 %1455
        %1457 = vrot.lane.b32.xlu0 %v1383, 16
        %v1458 = vpop.permute.xlu0 %1457
        %1459 = vrot.lane.b32.xlu0 %v1386, 16
        %v1460 = vpop.permute.xlu0 %1459
        %vm1461 = vcmp.lt.s32.totalorder %v1421, 16
        %v1462 = vsel %vm1461, %v1446, %v1454
        %v1463 = vsel %vm1461, %v1448, %v1456
        %v1464 = vsel %vm1461, %v1450, %v1458
        %v1465 = vsel %vm1461, %v1452, %v1460
        %v1466 = vsel %vm1461, %v1454, %v1446
        %v1467 = vsel %vm1461, %v1456, %v1448
        %v1468 = vsel %vm1461, %v1458, %v1450
        %v1469 = vsel %vm1461, %v1460, %v1452
        %s1470 = scalar_lea.vmem [#allocation11], 1
        %v1471 = vld [vmem:[%s1470] ss:$8 sm:$0x3]
        %v1473 = vperm.slane %v1471, 0
        %v1474 = vperm.slane %v1471, 1
        %v1477 = vmul.f32 %v1466, %v1473
        %v1478 = vmul.f32 %v1462, %v1474
        %v1479 = vmul.f32 %v1467, %v1473
        %v1480 = vmul.f32 %v1463, %v1474
        %v1481 = vmul.f32 %v1468, %v1473
        %v1482 = vmul.f32 %v1464, %v1474
        %v1483 = vmul.f32 %v1469, %v1473
        %v1484 = vmul.f32 %v1465, %v1474
        %1485 = vrot.lane.b32.xlu0 %v1348, 15
        %v1486 = vpop.permute.xlu0 %1485
        %1487 = vrot.lane.b32.xlu0 %v1351, 15
        %v1488 = vpop.permute.xlu0 %1487
        %1489 = vrot.lane.b32.xlu0 %v1354, 15
        %v1490 = vpop.permute.xlu0 %1489
        %1491 = vrot.lane.b32.xlu0 %v1357, 15
        %v1492 = vpop.permute.xlu0 %1491
        %1493 = vrot.lane.b32.xlu0 %v1377, 15
        %v1494 = vpop.permute.xlu0 %1493
        %1495 = vrot.lane.b32.xlu0 %v1380, 15
        %v1496 = vpop.permute.xlu0 %1495
        %1497 = vrot.lane.b32.xlu0 %v1383, 15
        %v1498 = vpop.permute.xlu0 %1497
        %1499 = vrot.lane.b32.xlu0 %v1386, 15
        %v1500 = vpop.permute.xlu0 %1499
        %vm1501 = vcmp.lt.s32.totalorder %v1421, 15
        %v1502 = vsel %vm1501, %v1486, %v1494
        %v1503 = vsel %vm1501, %v1488, %v1496
        %v1504 = vsel %vm1501, %v1490, %v1498
        %v1505 = vsel %vm1501, %v1492, %v1500
        %v1506 = vsel %vm1501, %v1494, %v1486
        %v1507 = vsel %vm1501, %v1496, %v1488
        %v1508 = vsel %vm1501, %v1498, %v1490
        %v1509 = vsel %vm1501, %v1500, %v1492
        %s1510 = scalar_lea.vmem [#allocation11], 2
        %v1511 = vld [vmem:[%s1510] ss:$8 sm:$0x3]
        %v1513 = vperm.slane %v1511, 0
        %v1514 = vperm.slane %v1511, 1
        %v1517 = vmul.f32 %v1506, %v1513
        %v1518 = vmul.f32 %v1502, %v1514
        %v1519 = vmul.f32 %v1507, %v1513
        %v1520 = vmul.f32 %v1503, %v1514
        %v1521 = vmul.f32 %v1508, %v1513
        %v1522 = vmul.f32 %v1504, %v1514
        %v1523 = vmul.f32 %v1509, %v1513
        %v1524 = vmul.f32 %v1505, %v1514
        %1525 = vrot.lane.b32.xlu0 %v1348, 1
        %v1526 = vpop.permute.xlu0 %1525
        %1527 = vrot.lane.b32.xlu0 %v1351, 1
        %v1528 = vpop.permute.xlu0 %1527
        %1529 = vrot.lane.b32.xlu0 %v1354, 1
        %v1530 = vpop.permute.xlu0 %1529
        %1531 = vrot.lane.b32.xlu0 %v1357, 1
        %v1532 = vpop.permute.xlu0 %1531
        %1533 = vrot.lane.b32.xlu0 %v1377, 1
        %v1534 = vpop.permute.xlu0 %1533
        %1535 = vrot.lane.b32.xlu0 %v1380, 1
        %v1536 = vpop.permute.xlu0 %1535
        %1537 = vrot.lane.b32.xlu0 %v1383, 1
        %v1538 = vpop.permute.xlu0 %1537
        %1539 = vrot.lane.b32.xlu0 %v1386, 1
        %v1540 = vpop.permute.xlu0 %1539
        %vm1541 = vcmp.lt.s32.totalorder %v1421, 1
        %v1542 = vsel %vm1541, %v1526, %v1534
        %v1543 = vsel %vm1541, %v1528, %v1536
        %v1544 = vsel %vm1541, %v1530, %v1538
        %v1545 = vsel %vm1541, %v1532, %v1540
        %v1546 = vsel %vm1541, %v1534, %v1526
        %v1547 = vsel %vm1541, %v1536, %v1528
        %v1548 = vsel %vm1541, %v1538, %v1530
        %v1549 = vsel %vm1541, %v1540, %v1532
        %s1550 = scalar_lea.vmem [#allocation11], 3
        %v1551 = vld [vmem:[%s1550] ss:$8 sm:$0x3]
        %v1553 = vperm.slane %v1551, 0
        %v1554 = vperm.slane %v1551, 1
        %v1557 = vmul.f32 %v1546, %v1553
        %v1558 = vmul.f32 %v1542, %v1554
        %v1559 = vmul.f32 %v1547, %v1553
        %v1560 = vmul.f32 %v1543, %v1554
        %v1561 = vmul.f32 %v1548, %v1553
        %v1562 = vmul.f32 %v1544, %v1554
        %v1563 = vmul.f32 %v1549, %v1553
        %v1564 = vmul.f32 %v1545, %v1554
        %1565 = vrot.lane.b32.xlu0 %v1348, 127
        %v1566 = vpop.permute.xlu0 %1565
        %1567 = vrot.lane.b32.xlu0 %v1351, 127
        %v1568 = vpop.permute.xlu0 %1567
        %1569 = vrot.lane.b32.xlu0 %v1354, 127
        %v1570 = vpop.permute.xlu0 %1569
        %1571 = vrot.lane.b32.xlu0 %v1357, 127
        %v1572 = vpop.permute.xlu0 %1571
        %1573 = vrot.lane.b32.xlu0 %v1377, 127
        %v1574 = vpop.permute.xlu0 %1573
        %1575 = vrot.lane.b32.xlu0 %v1380, 127
        %v1576 = vpop.permute.xlu0 %1575
        %1577 = vrot.lane.b32.xlu0 %v1383, 127
        %v1578 = vpop.permute.xlu0 %1577
        %1579 = vrot.lane.b32.xlu0 %v1386, 127
        %v1580 = vpop.permute.xlu0 %1579
        %vm1581 = vcmp.lt.s32.totalorder %v1421, 127
        %v1582 = vsel %vm1581, %v1566, %v1574
        %v1583 = vsel %vm1581, %v1568, %v1576
        %v1584 = vsel %vm1581, %v1570, %v1578
        %v1585 = vsel %vm1581, %v1572, %v1580
        %v1586 = vsel %vm1581, %v1574, %v1566
        %v1587 = vsel %vm1581, %v1576, %v1568
        %v1588 = vsel %vm1581, %v1578, %v1570
        %v1589 = vsel %vm1581, %v1580, %v1572
        %s1590 = scalar_lea.vmem [#allocation11], 5
        %v1591 = vld [vmem:[%s1590] ss:$8 sm:$0x3]
        %v1593 = vperm.slane %v1591, 0
        %v1594 = vperm.slane %v1591, 1
        %v1597 = vmul.f32 %v1582, %v1593
        %v1598 = vmul.f32 %v1586, %v1594
        %v1599 = vmul.f32 %v1583, %v1593
        %v1600 = vmul.f32 %v1587, %v1594
        %v1601 = vmul.f32 %v1584, %v1593
        %v1602 = vmul.f32 %v1588, %v1594
        %v1603 = vmul.f32 %v1585, %v1593
        %v1604 = vmul.f32 %v1589, %v1594
        %1605 = vrot.lane.b32.xlu0 %v1348, 113
        %v1606 = vpop.permute.xlu0 %1605
        %1607 = vrot.lane.b32.xlu0 %v1351, 113
        %v1608 = vpop.permute.xlu0 %1607
        %1609 = vrot.lane.b32.xlu0 %v1354, 113
        %v1610 = vpop.permute.xlu0 %1609
        %1611 = vrot.lane.b32.xlu0 %v1357, 113
        %v1612 = vpop.permute.xlu0 %1611
        %1613 = vrot.lane.b32.xlu0 %v1377, 113
        %v1614 = vpop.permute.xlu0 %1613
        %1615 = vrot.lane.b32.xlu0 %v1380, 113
        %v1616 = vpop.permute.xlu0 %1615
        %1617 = vrot.lane.b32.xlu0 %v1383, 113
        %v1618 = vpop.permute.xlu0 %1617
        %1619 = vrot.lane.b32.xlu0 %v1386, 113
        %v1620 = vpop.permute.xlu0 %1619
        %vm1621 = vcmp.lt.s32.totalorder %v1421, 113
        %v1622 = vsel %vm1621, %v1606, %v1614
        %v1623 = vsel %vm1621, %v1608, %v1616
        %v1624 = vsel %vm1621, %v1610, %v1618
        %v1625 = vsel %vm1621, %v1612, %v1620
        %v1626 = vsel %vm1621, %v1614, %v1606
        %v1627 = vsel %vm1621, %v1616, %v1608
        %v1628 = vsel %vm1621, %v1618, %v1610
        %v1629 = vsel %vm1621, %v1620, %v1612
        %s1630 = scalar_lea.vmem [#allocation11], 6
        %v1631 = vld [vmem:[%s1630] ss:$8 sm:$0x3]
        %v1633 = vperm.slane %v1631, 0
        %v1634 = vperm.slane %v1631, 1
        %v1637 = vmul.f32 %v1622, %v1633
        %v1638 = vmul.f32 %v1626, %v1634
        %v1639 = vmul.f32 %v1623, %v1633
        %v1640 = vmul.f32 %v1627, %v1634
        %v1641 = vmul.f32 %v1624, %v1633
        %v1642 = vmul.f32 %v1628, %v1634
        %v1643 = vmul.f32 %v1625, %v1633
        %v1644 = vmul.f32 %v1629, %v1634
        %1645 = vrot.lane.b32.xlu0 %v1348, 112
        %v1646 = vpop.permute.xlu0 %1645
        %1647 = vrot.lane.b32.xlu0 %v1351, 112
        %v1648 = vpop.permute.xlu0 %1647
        %1649 = vrot.lane.b32.xlu0 %v1354, 112
        %v1650 = vpop.permute.xlu0 %1649
        %1651 = vrot.lane.b32.xlu0 %v1357, 112
        %v1652 = vpop.permute.xlu0 %1651
        %1653 = vrot.lane.b32.xlu0 %v1377, 112
        %v1654 = vpop.permute.xlu0 %1653
        %1655 = vrot.lane.b32.xlu0 %v1380, 112
        %v1656 = vpop.permute.xlu0 %1655
        %1657 = vrot.lane.b32.xlu0 %v1383, 112
        %v1658 = vpop.permute.xlu0 %1657
        %1659 = vrot.lane.b32.xlu0 %v1386, 112
        %v1660 = vpop.permute.xlu0 %1659
        %vm1661 = vcmp.lt.s32.totalorder %v1421, 112
        %v1662 = vsel %vm1661, %v1646, %v1654
        %v1663 = vsel %vm1661, %v1648, %v1656
        %v1664 = vsel %vm1661, %v1650, %v1658
        %v1665 = vsel %vm1661, %v1652, %v1660
        %v1666 = vsel %vm1661, %v1654, %v1646
        %v1667 = vsel %vm1661, %v1656, %v1648
        %v1668 = vsel %vm1661, %v1658, %v1650
        %v1669 = vsel %vm1661, %v1660, %v1652
        %s1670 = scalar_lea.vmem [#allocation11], 7
        %v1671 = vld [vmem:[%s1670] ss:$8 sm:$0x3]
        %v1673 = vperm.slane %v1671, 0
        %v1674 = vperm.slane %v1671, 1
        %v1677 = vmul.f32 %v1662, %v1673
        %v1678 = vmul.f32 %v1666, %v1674
        %v1679 = vmul.f32 %v1663, %v1673
        %v1680 = vmul.f32 %v1667, %v1674
        %v1681 = vmul.f32 %v1664, %v1673
        %v1682 = vmul.f32 %v1668, %v1674
        %v1683 = vmul.f32 %v1665, %v1673
        %v1684 = vmul.f32 %v1669, %v1674
        %1685 = vrot.lane.b32.xlu0 %v1348, 111
        %v1686 = vpop.permute.xlu0 %1685
        %1687 = vrot.lane.b32.xlu0 %v1351, 111
        %v1688 = vpop.permute.xlu0 %1687
        %1689 = vrot.lane.b32.xlu0 %v1354, 111
        %v1690 = vpop.permute.xlu0 %1689
        %1691 = vrot.lane.b32.xlu0 %v1357, 111
        %v1692 = vpop.permute.xlu0 %1691
        %1693 = vrot.lane.b32.xlu0 %v1377, 111
        %v1694 = vpop.permute.xlu0 %1693
        %1695 = vrot.lane.b32.xlu0 %v1380, 111
        %v1696 = vpop.permute.xlu0 %1695
        %1697 = vrot.lane.b32.xlu0 %v1383, 111
        %v1698 = vpop.permute.xlu0 %1697
        %1699 = vrot.lane.b32.xlu0 %v1386, 111
        %v1700 = vpop.permute.xlu0 %1699
        %vm1701 = vcmp.lt.s32.totalorder %v1421, 111
        %v1702 = vsel %vm1701, %v1686, %v1694
        %v1703 = vsel %vm1701, %v1688, %v1696
        %v1704 = vsel %vm1701, %v1690, %v1698
        %v1705 = vsel %vm1701, %v1692, %v1700
        %v1706 = vsel %vm1701, %v1694, %v1686
        %v1707 = vsel %vm1701, %v1696, %v1688
        %v1708 = vsel %vm1701, %v1698, %v1690
        %v1709 = vsel %vm1701, %v1700, %v1692
        %s1710 = scalar_lea.vmem [#allocation11], 16
        %v1711 = vld [vmem:[%s1710] ss:$8 sm:$0x3]
        %v1713 = vperm.slane %v1711, 0
        %v1714 = vperm.slane %v1711, 1
        %v1717 = vmul.f32 %v1702, %v1713
        %v1718 = vmul.f32 %v1706, %v1714
        %v1719 = vmul.f32 %v1703, %v1713
        %v1720 = vmul.f32 %v1707, %v1714
        %v1721 = vmul.f32 %v1704, %v1713
        %v1722 = vmul.f32 %v1708, %v1714
        %v1723 = vmul.f32 %v1705, %v1713
        %v1724 = vmul.f32 %v1709, %v1714
        %1726 = vset.pattern.permute.xlu0 0
        %1727 = vperm.xlu0 %1726, %v1400
        %v1728 = vpop.permute.xlu0 %1727
        %1731 = vset.pattern.permute.xlu0 0
        %1732 = vperm.xlu0 %1731, %v1401
        %v1733 = vpop.permute.xlu0 %1732
        %1736 = vset.pattern.permute.xlu0 0
        %1737 = vperm.xlu0 %1736, %v1402
        %v1738 = vpop.permute.xlu0 %1737
        %1741 = vset.pattern.permute.xlu0 0
        %1742 = vperm.xlu0 %1741, %v1403
        %v1743 = vpop.permute.xlu0 %1742
        %v1746 = vsel %vm1189, %v1390, 0
        %v1749 = vsel %vm1189, %v1393, 0
        %v1752 = vsel %vm1189, %v1396, 0
        %v1755 = vsel %vm1189, %v1399, 0
        %1757 = vmatpush.msra.mxu0 %v1563
        %1758 = vmatpush.msra.mxu0 %v1561
        %1759 = vmatpush.msra.mxu0 %v1559
        %1760 = vmatpush.msra.mxu0 %v1557
        %1761 = vmatpush.msra.mxu0 %v1523
        %1762 = vmatpush.msra.mxu0 %v1521
        %1763 = vmatpush.msra.mxu0 %v1519
        %1764 = vmatpush.msra.mxu0 %v1517
        %1765 = vmatpush.msra.mxu0 %v1483
        %1766 = vmatpush.msra.mxu0 %v1481
        %1767 = vmatpush.msra.mxu0 %v1479
        %1768 = vmatpush.msra.mxu0 %v1477
        %1769 = vmatpush.msra.mxu0 %v1443
        %1770 = vmatpush.msra.mxu0 %v1441
        %1771 = vmatpush.msra.mxu0 %v1439
        %1772 = vmatpush.msra.mxu0 %v1437
        %1773 = vmatmul.f32.gmra.mxu0 %v1388
        %v1774 = vpop.f32.mrf.mxu0
        %v1775 = vadd.f32 %v1728, %v1774
        %1776 = vmatmul.f32.gmra.mxu0 %v1391
        %v1777 = vpop.f32.mrf.mxu0
        %v1778 = vadd.f32 %v1733, %v1777
        %1779 = vmatmul.f32.gmra.mxu0 %v1394
        %v1780 = vpop.f32.mrf.mxu0
        %v1781 = vadd.f32 %v1738, %v1780
        %1782 = vmatmul.f32.gmra.mxu0 %v1397
        %v1783 = vpop.f32.mrf.mxu0
        %v1784 = vadd.f32 %v1743, %v1783
        %1785 = vdwg.mxu0
        %1786 = vmatpush.msra.mxu0 %v1683
        %1787 = vmatpush.msra.mxu0 %v1681
        %1788 = vmatpush.msra.mxu0 %v1679
        %1789 = vmatpush.msra.mxu0 %v1677
        %1790 = vmatpush.msra.mxu0 %v1643
        %1791 = vmatpush.msra.mxu0 %v1641
        %1792 = vmatpush.msra.mxu0 %v1639
        %1793 = vmatpush.msra.mxu0 %v1637
        %1794 = vmatpush.msra.mxu0 %v1603
        %1795 = vmatpush.msra.mxu0 %v1601
        %1796 = vmatpush.msra.mxu0 %v1599
        %1797 = vmatpush.msra.mxu0 %v1597
        %1798 = vmatpush.msra.mxu0 %v1357
        %1799 = vmatpush.msra.mxu0 %v1354
        %1800 = vmatpush.msra.mxu0 %v1351
        %1801 = vmatpush.msra.mxu0 %v1348
        %1802 = vmatmul.f32.gmra.mxu0 %v1389
        %v1803 = vpop.f32.mrf.mxu0
        %v1804 = vadd.f32 %v1775, %v1803
        %1805 = vmatmul.f32.gmra.mxu0 %v1392
        %v1806 = vpop.f32.mrf.mxu0
        %v1807 = vadd.f32 %v1778, %v1806
        %1808 = vmatmul.f32.gmra.mxu0 %v1395
        %v1809 = vpop.f32.mrf.mxu0
        %v1810 = vadd.f32 %v1781, %v1809
        %1811 = vmatmul.f32.gmra.mxu0 %v1398
        %v1812 = vpop.f32.mrf.mxu0
        %v1813 = vadd.f32 %v1784, %v1812
        %1814 = vdwg.mxu0
        %1815 = vmatpush.msra.mxu0 0.0
        %1816 = vmatpush.msra.mxu0 0.0
        %1817 = vmatpush.msra.mxu0 0.0
        %1818 = vmatpush.msra.mxu0 0.0
        %1819 = vmatpush.msra.mxu0 0.0
        %1820 = vmatpush.msra.mxu0 0.0
        %1821 = vmatpush.msra.mxu0 0.0
        %1822 = vmatpush.msra.mxu0 0.0
        %1823 = vmatpush.msra.mxu0 0.0
        %1824 = vmatpush.msra.mxu0 0.0
        %1825 = vmatpush.msra.mxu0 0.0
        %1826 = vmatpush.msra.mxu0 0.0
        %1827 = vmatpush.msra.mxu0 %v1723
        %1828 = vmatpush.msra.mxu0 %v1721
        %1829 = vmatpush.msra.mxu0 %v1719
        %1830 = vmatpush.msra.mxu0 %v1717
        %1831 = vmatmul.f32.gmra.mxu0 %v1746
        %v1832 = vpop.f32.mrf.mxu0
        %v1833 = vadd.f32 %v1804, %v1832
        %1834 = vmatmul.f32.gmra.mxu0 %v1749
        %v1835 = vpop.f32.mrf.mxu0
        %v1836 = vadd.f32 %v1807, %v1835
        %1837 = vmatmul.f32.gmra.mxu0 %v1752
        %v1838 = vpop.f32.mrf.mxu0
        %v1839 = vadd.f32 %v1810, %v1838
        %1840 = vmatmul.f32.gmra.mxu0 %v1755
        %v1841 = vpop.f32.mrf.mxu0
        %v1842 = vadd.f32 %v1813, %v1841
        %1843 = vdwg.mxu0
        %1844 = vmatpush.msra.mxu0 %v1564
        %1845 = vmatpush.msra.mxu0 %v1562
        %1846 = vmatpush.msra.mxu0 %v1560
        %1847 = vmatpush.msra.mxu0 %v1558
        %1848 = vmatpush.msra.mxu0 %v1524
        %1849 = vmatpush.msra.mxu0 %v1522
        %1850 = vmatpush.msra.mxu0 %v1520
        %1851 = vmatpush.msra.mxu0 %v1518
        %1852 = vmatpush.msra.mxu0 %v1484
        %1853 = vmatpush.msra.mxu0 %v1482
        %1854 = vmatpush.msra.mxu0 %v1480
        %1855 = vmatpush.msra.mxu0 %v1478
        %1856 = vmatpush.msra.mxu0 %v1444
        %1857 = vmatpush.msra.mxu0 %v1442
        %1858 = vmatpush.msra.mxu0 %v1440
        %1859 = vmatpush.msra.mxu0 %v1438
        %1860 = vmatmul.f32.gmra.mxu0 %v1388
        %v1861 = vpop.f32.mrf.mxu0
        %v1862 = vadd.f32 %v1728, %v1861
        %1863 = vmatmul.f32.gmra.mxu0 %v1391
        %v1864 = vpop.f32.mrf.mxu0
        %v1865 = vadd.f32 %v1733, %v1864
        %1866 = vmatmul.f32.gmra.mxu0 %v1394
        %v1867 = vpop.f32.mrf.mxu0
        %v1868 = vadd.f32 %v1738, %v1867
        %1869 = vmatmul.f32.gmra.mxu0 %v1397
        %v1870 = vpop.f32.mrf.mxu0
        %v1871 = vadd.f32 %v1743, %v1870
        %1872 = vdwg.mxu0
        %1873 = vmatpush.msra.mxu0 %v1684
        %1874 = vmatpush.msra.mxu0 %v1682
        %1875 = vmatpush.msra.mxu0 %v1680
        %1876 = vmatpush.msra.mxu0 %v1678
        %1877 = vmatpush.msra.mxu0 %v1644
        %1878 = vmatpush.msra.mxu0 %v1642
        %1879 = vmatpush.msra.mxu0 %v1640
        %1880 = vmatpush.msra.mxu0 %v1638
        %1881 = vmatpush.msra.mxu0 %v1604
        %1882 = vmatpush.msra.mxu0 %v1602
        %1883 = vmatpush.msra.mxu0 %v1600
        %1884 = vmatpush.msra.mxu0 %v1598
        %1885 = vmatpush.msra.mxu0 %v1386
        %1886 = vmatpush.msra.mxu0 %v1383
        %1887 = vmatpush.msra.mxu0 %v1380
        %1888 = vmatpush.msra.mxu0 %v1377
        %1889 = vmatmul.f32.gmra.mxu0 %v1389
        %v1890 = vpop.f32.mrf.mxu0
        %v1891 = vadd.f32 %v1862, %v1890
        %1892 = vmatmul.f32.gmra.mxu0 %v1392
        %v1893 = vpop.f32.mrf.mxu0
        %v1894 = vadd.f32 %v1865, %v1893
        %1895 = vmatmul.f32.gmra.mxu0 %v1395
        %v1896 = vpop.f32.mrf.mxu0
        %v1897 = vadd.f32 %v1868, %v1896
        %1898 = vmatmul.f32.gmra.mxu0 %v1398
        %v1899 = vpop.f32.mrf.mxu0
        %v1900 = vadd.f32 %v1871, %v1899
        %1901 = vdwg.mxu0
        %1902 = vmatpush.msra.mxu0 0.0
        %1903 = vmatpush.msra.mxu0 0.0
        %1904 = vmatpush.msra.mxu0 0.0
        %1905 = vmatpush.msra.mxu0 0.0
        %1906 = vmatpush.msra.mxu0 0.0
        %1907 = vmatpush.msra.mxu0 0.0
        %1908 = vmatpush.msra.mxu0 0.0
        %1909 = vmatpush.msra.mxu0 0.0
        %1910 = vmatpush.msra.mxu0 0.0
        %1911 = vmatpush.msra.mxu0 0.0
        %1912 = vmatpush.msra.mxu0 0.0
        %1913 = vmatpush.msra.mxu0 0.0
        %1914 = vmatpush.msra.mxu0 %v1724
        %1915 = vmatpush.msra.mxu0 %v1722
        %1916 = vmatpush.msra.mxu0 %v1720
        %1917 = vmatpush.msra.mxu0 %v1718
        %1918 = vmatmul.f32.gmra.mxu0 %v1746
        %v1919 = vpop.f32.mrf.mxu0
        %v1920 = vadd.f32 %v1891, %v1919
        %1921 = vmatmul.f32.gmra.mxu0 %v1749
        %v1922 = vpop.f32.mrf.mxu0
        %v1923 = vadd.f32 %v1894, %v1922
        %1924 = vmatmul.f32.gmra.mxu0 %v1752
        %v1925 = vpop.f32.mrf.mxu0
        %v1926 = vadd.f32 %v1897, %v1925
        %1927 = vmatmul.f32.gmra.mxu0 %v1755
        %v1928 = vpop.f32.mrf.mxu0
        %v1929 = vadd.f32 %v1900, %v1928
        %1930 = vdwg.mxu0
        %v1931 = vmax.f32 %v1833, 0.0
        %v1932 = vmax.f32 %v1920, 0.0
        %v1933 = vmax.f32 %v1836, 0.0
        %v1934 = vmax.f32 %v1923, 0.0
        %v1935 = vmax.f32 %v1839, 0.0
        %v1936 = vmax.f32 %v1926, 0.0
        %v1937 = vmax.f32 %v1842, 0.0
        %v1938 = vmax.f32 %v1929, 0.0
        %v1939 = vld [vmem:[%s810] sm:$0xff]
        %v1940 = vld [vmem:[%s810 + $0x8] sm:$0xff]
        %v1941 = vld [vmem:[%s810 + $0x10] sm:$0xff]
        %v1942 = vld [vmem:[%s810 + $0x18] sm:$0xff]
        %v1943 = vld [vmem:[%s810 + $0x20] sm:$0xff]
        %v1944 = vld [vmem:[%s810 + $0x28] sm:$0xff]
        %v1945 = vld [vmem:[%s810 + $0x30] sm:$0xff]
        %v1946 = vld [vmem:[%s810 + $0x38] sm:$0xff]
        %v1947 = vadd.f32 %v1931, %v1939
        %v1948 = vadd.f32 %v1932, %v1940
        %v1949 = vadd.f32 %v1933, %v1941
        %v1950 = vadd.f32 %v1934, %v1942
        %v1951 = vadd.f32 %v1935, %v1943
        %v1952 = vadd.f32 %v1936, %v1944
        %v1953 = vadd.f32 %v1937, %v1945
        %v1954 = vadd.f32 %v1938, %v1946
        %v1955 = vld [vmem:[#allocation8] sm:$0xff]
        %v1956 = vld [vmem:[#allocation8 + $0x8] sm:$0xff]
        %v1957 = vld [vmem:[#allocation8 + $0x10] sm:$0xff]
        %v1958 = vld [vmem:[#allocation8 + $0x18] sm:$0xff]
        %v1959 = vld [vmem:[#allocation8 + $0x20] sm:$0xff]
        %v1960 = vld [vmem:[#allocation8 + $0x28] sm:$0xff]
        %v1961 = vld [vmem:[#allocation8 + $0x30] sm:$0xff]
        %v1962 = vld [vmem:[#allocation8 + $0x38] sm:$0xff]
        %v1963 = vld [vmem:[#allocation8 + $0x40] sm:$0xff]
        %v1964 = vld [vmem:[#allocation8 + $0x48] sm:$0xff]
        %v1965 = vld [vmem:[#allocation8 + $0x50] sm:$0xff]
        %v1966 = vld [vmem:[#allocation8 + $0x58] sm:$0xff]
        %v1967 = vld [vmem:[#allocation8 + $0x60] sm:$0xff]
        %v1968 = vld [vmem:[#allocation8 + $0x68] sm:$0xff]
        %v1969 = vld [vmem:[#allocation8 + $0x70] sm:$0xff]
        %v1970 = vld [vmem:[#allocation8 + $0x78] sm:$0xff]
        %v1971 = vld [vmem:[#allocation8 + $0x80] sm:$0xff]
        %v1972 = vld [vmem:[#allocation8 + $0x88] sm:$0xff]
        %v1973 = vld [vmem:[#allocation8 + $0x90] sm:$0xff]
        %v1974 = vld [vmem:[#allocation8 + $0x98] sm:$0xff]
        %v1975 = vld [vmem:[#allocation8 + $0xa0] sm:$0xff]
        %v1976 = vld [vmem:[#allocation8 + $0xa8] sm:$0xff]
        %v1977 = vld [vmem:[#allocation8 + $0xb0] sm:$0xff]
        %v1978 = vld [vmem:[#allocation8 + $0xb8] sm:$0xff]
        %v1979 = vld [vmem:[#allocation8 + $0xc0] sm:$0xff]
        %v1980 = vld [vmem:[#allocation8 + $0xc8] sm:$0xff]
        %v1981 = vld [vmem:[#allocation8 + $0xd0] sm:$0xff]
        %v1982 = vld [vmem:[#allocation8 + $0xd8] sm:$0xff]
        %v1983 = vld [vmem:[#allocation8 + $0xe0] sm:$0xff]
        %v1984 = vld [vmem:[#allocation8 + $0xe8] sm:$0xff]
        %v1985 = vld [vmem:[#allocation8 + $0xf0] sm:$0xff]
        %v1986 = vld [vmem:[#allocation8 + $0xf8] sm:$0xff]
        %v1987 = vld [vmem:[#allocation8 + $0x100] sm:$0xff]
        %v1988 = vld [vmem:[#allocation8 + $0x108] sm:$0xff]
        %v1989 = vld [vmem:[#allocation8 + $0x110] sm:$0xff]
        %v1990 = vld [vmem:[#allocation8 + $0x118] sm:$0xff]
        %v1991 = vld [vmem:[#allocation8 + $0x120] sm:$0xff]
        %v1992 = vld [vmem:[#allocation8 + $0x128] sm:$0xff]
        %v1993 = vld [vmem:[#allocation8 + $0x130] sm:$0xff]
        %v1994 = vld [vmem:[#allocation8 + $0x138] sm:$0xff]
        %v1995 = vld [vmem:[#allocation8 + $0x140] sm:$0xff]
        %v1996 = vld [vmem:[#allocation8 + $0x148] sm:$0xff]
        %v1997 = vld [vmem:[#allocation8 + $0x150] sm:$0xff]
        %v1998 = vld [vmem:[#allocation8 + $0x158] sm:$0xff]
        %v1999 = vld [vmem:[#allocation8 + $0x160] sm:$0xff]
        %v2000 = vld [vmem:[#allocation8 + $0x168] sm:$0xff]
        %v2001 = vld [vmem:[#allocation8 + $0x170] sm:$0xff]
        %v2002 = vld [vmem:[#allocation8 + $0x178] sm:$0xff]
        %v2003 = vld [vmem:[#allocation8 + $0x180] sm:$0xff]
        %v2004 = vld [vmem:[#allocation8 + $0x188] sm:$0xff]
        %v2005 = vld [vmem:[#allocation8 + $0x190] sm:$0xff]
        %v2006 = vld [vmem:[#allocation8 + $0x198] sm:$0xff]
        %v2007 = vld [vmem:[#allocation8 + $0x1a0] sm:$0xff]
        %v2008 = vld [vmem:[#allocation8 + $0x1a8] sm:$0xff]
        %v2009 = vld [vmem:[#allocation8 + $0x1b0] sm:$0xff]
        %v2010 = vld [vmem:[#allocation8 + $0x1b8] sm:$0xff]
        %v2011 = vld [vmem:[#allocation8 + $0x1c0] sm:$0xff]
        %v2012 = vld [vmem:[#allocation8 + $0x1c8] sm:$0xff]
        %v2013 = vld [vmem:[#allocation8 + $0x1d0] sm:$0xff]
        %v2014 = vld [vmem:[#allocation8 + $0x1d8] sm:$0xff]
        %v2015 = vld [vmem:[#allocation8 + $0x1e0] sm:$0xff]
        %v2016 = vld [vmem:[#allocation8 + $0x1e8] sm:$0xff]
        %v2017 = vld [vmem:[#allocation8 + $0x1f0] sm:$0xff]
        %v2018 = vld [vmem:[#allocation8 + $0x1f8] sm:$0xff]
        %v2019 = vld [vmem:[#allocation8 + $0x200] sm:$0xff]
        %v2020 = vld [vmem:[#allocation8 + $0x208] sm:$0xff]
        %v2021 = vld [vmem:[#allocation8 + $0x210] sm:$0xff]
        %v2022 = vld [vmem:[#allocation8 + $0x218] sm:$0xff]
        %v2023 = vld [vmem:[#allocation8 + $0x220] sm:$0xff]
        %v2024 = vld [vmem:[#allocation8 + $0x228] sm:$0xff]
        %v2025 = vld [vmem:[#allocation8 + $0x230] sm:$0xff]
        %v2026 = vld [vmem:[#allocation8 + $0x238] sm:$0xff]
        %v2027 = vld [vmem:[#allocation8 + $0x240] sm:$0xff]
        %v2028 = vld [vmem:[#allocation8 + $0x248] sm:$0xff]
        %v2029 = vld [vmem:[#allocation8 + $0x250] sm:$0xff]
        %v2030 = vld [vmem:[#allocation8 + $0x258] sm:$0xff]
        %v2031 = vld [vmem:[#allocation8 + $0x260] sm:$0xff]
        %v2032 = vld [vmem:[#allocation8 + $0x268] sm:$0xff]
        %v2033 = vld [vmem:[#allocation8 + $0x270] sm:$0xff]
        %v2034 = vld [vmem:[#allocation8 + $0x278] sm:$0xff]
        %v2035 = vld [vmem:[#allocation8 + $0x280] sm:$0xff]
        %v2036 = vld [vmem:[#allocation8 + $0x288] sm:$0xff]
        %v2037 = vld [vmem:[#allocation8 + $0x290] sm:$0xff]
        %v2038 = vld [vmem:[#allocation8 + $0x298] sm:$0xff]
        %v2039 = vld [vmem:[#allocation8 + $0x2a0] sm:$0xff]
        %v2040 = vld [vmem:[#allocation8 + $0x2a8] sm:$0xff]
        %v2041 = vld [vmem:[#allocation8 + $0x2b0] sm:$0xff]
        %v2042 = vld [vmem:[#allocation8 + $0x2b8] sm:$0xff]
        %v2043 = vld [vmem:[#allocation8 + $0x2c0] sm:$0xff]
        %v2044 = vld [vmem:[#allocation8 + $0x2c8] sm:$0xff]
        %v2045 = vld [vmem:[#allocation8 + $0x2d0] sm:$0xff]
        %v2046 = vld [vmem:[#allocation8 + $0x2d8] sm:$0xff]
        %v2047 = vld [vmem:[#allocation8 + $0x2e0] sm:$0xff]
        %v2048 = vld [vmem:[#allocation8 + $0x2e8] sm:$0xff]
        %v2049 = vld [vmem:[#allocation8 + $0x2f0] sm:$0xff]
        %v2050 = vld [vmem:[#allocation8 + $0x2f8] sm:$0xff]
        %v2051 = vld [vmem:[#allocation8 + $0x300] sm:$0xff]
        %v2052 = vld [vmem:[#allocation8 + $0x308] sm:$0xff]
        %v2053 = vld [vmem:[#allocation8 + $0x310] sm:$0xff]
        %v2054 = vld [vmem:[#allocation8 + $0x318] sm:$0xff]
        %v2055 = vld [vmem:[#allocation8 + $0x320] sm:$0xff]
        %v2056 = vld [vmem:[#allocation8 + $0x328] sm:$0xff]
        %v2057 = vld [vmem:[#allocation8 + $0x330] sm:$0xff]
        %v2058 = vld [vmem:[#allocation8 + $0x338] sm:$0xff]
        %v2059 = vld [vmem:[#allocation8 + $0x340] sm:$0xff]
        %v2060 = vld [vmem:[#allocation8 + $0x348] sm:$0xff]
        %v2061 = vld [vmem:[#allocation8 + $0x350] sm:$0xff]
        %v2062 = vld [vmem:[#allocation8 + $0x358] sm:$0xff]
        %v2063 = vld [vmem:[#allocation8 + $0x360] sm:$0xff]
        %v2064 = vld [vmem:[#allocation8 + $0x368] sm:$0xff]
        %v2065 = vld [vmem:[#allocation8 + $0x370] sm:$0xff]
        %v2066 = vld [vmem:[#allocation8 + $0x378] sm:$0xff]
        %v2067 = vld [vmem:[#allocation8 + $0x380] sm:$0xff]
        %v2068 = vld [vmem:[#allocation8 + $0x388] sm:$0xff]
        %v2069 = vld [vmem:[#allocation8 + $0x390] sm:$0xff]
        %v2070 = vld [vmem:[#allocation8 + $0x398] sm:$0xff]
        %v2071 = vld [vmem:[#allocation8 + $0x3a0] sm:$0xff]
        %v2072 = vld [vmem:[#allocation8 + $0x3a8] sm:$0xff]
        %v2073 = vld [vmem:[#allocation8 + $0x3b0] sm:$0xff]
        %v2074 = vld [vmem:[#allocation8 + $0x3b8] sm:$0xff]
        %v2075 = vld [vmem:[#allocation8 + $0x3c0] sm:$0xff]
        %v2076 = vld [vmem:[#allocation8 + $0x3c8] sm:$0xff]
        %v2077 = vld [vmem:[#allocation8 + $0x3d0] sm:$0xff]
        %v2078 = vld [vmem:[#allocation8 + $0x3d8] sm:$0xff]
        %v2079 = vld [vmem:[#allocation8 + $0x3e0] sm:$0xff]
        %v2080 = vld [vmem:[#allocation8 + $0x3e8] sm:$0xff]
        %v2081 = vld [vmem:[#allocation8 + $0x3f0] sm:$0xff]
        %v2082 = vld [vmem:[#allocation8 + $0x3f8] sm:$0xff]
        %v2083 = vld [vmem:[#allocation8 + $0x400] sm:$0xff]
        %v2084 = vld [vmem:[#allocation8 + $0x408] sm:$0xff]
        %v2085 = vld [vmem:[#allocation8 + $0x410] sm:$0xff]
        %v2086 = vld [vmem:[#allocation8 + $0x418] sm:$0xff]
        %v2087 = vld [vmem:[#allocation8 + $0x420] sm:$0xff]
        %v2088 = vld [vmem:[#allocation8 + $0x428] sm:$0xff]
        %v2089 = vld [vmem:[#allocation8 + $0x430] sm:$0xff]
        %v2090 = vld [vmem:[#allocation8 + $0x438] sm:$0xff]
        %v2091 = vld [vmem:[#allocation8 + $0x440] sm:$0xff]
        %v2092 = vld [vmem:[#allocation8 + $0x448] sm:$0xff]
        %v2093 = vld [vmem:[#allocation8 + $0x450] sm:$0xff]
        %v2094 = vld [vmem:[#allocation8 + $0x458] sm:$0xff]
        %v2095 = vld [vmem:[#allocation8 + $0x460] sm:$0xff]
        %v2096 = vld [vmem:[#allocation8 + $0x468] sm:$0xff]
        %v2097 = vld [vmem:[#allocation8 + $0x470] sm:$0xff]
        %v2098 = vld [vmem:[#allocation8 + $0x478] sm:$0xff]
        %v2099 = vld [vmem:[#allocation8 + $0x480] sm:$0xff]
        %v2100 = vld [vmem:[#allocation8 + $0x488] sm:$0xff]
        %v2101 = vld [vmem:[#allocation8 + $0x490] sm:$0xff]
        %v2102 = vld [vmem:[#allocation8 + $0x498] sm:$0xff]
        %v2103 = vld [vmem:[#allocation8 + $0x4a0] sm:$0xff]
        %v2104 = vld [vmem:[#allocation8 + $0x4a8] sm:$0xff]
        %v2105 = vld [vmem:[#allocation8 + $0x4b0] sm:$0xff]
        %v2106 = vld [vmem:[#allocation8 + $0x4b8] sm:$0xff]
        %v2107 = vld [vmem:[#allocation8 + $0x4c0] sm:$0xff]
        %v2108 = vld [vmem:[#allocation8 + $0x4c8] sm:$0xff]
        %v2109 = vld [vmem:[#allocation8 + $0x4d0] sm:$0xff]
        %v2110 = vld [vmem:[#allocation8 + $0x4d8] sm:$0xff]
        %v2111 = vld [vmem:[#allocation8 + $0x4e0] sm:$0xff]
        %v2112 = vld [vmem:[#allocation8 + $0x4e8] sm:$0xff]
        %v2113 = vld [vmem:[#allocation8 + $0x4f0] sm:$0xff]
        %v2114 = vld [vmem:[#allocation8 + $0x4f8] sm:$0xff]
        %v2115 = vld [vmem:[#allocation8 + $0x500] sm:$0xff]
        %v2116 = vld [vmem:[#allocation8 + $0x508] sm:$0xff]
        %v2117 = vld [vmem:[#allocation8 + $0x510] sm:$0xff]
        %v2118 = vld [vmem:[#allocation8 + $0x518] sm:$0xff]
        %v2119 = vld [vmem:[#allocation8 + $0x520] sm:$0xff]
        %v2120 = vld [vmem:[#allocation8 + $0x528] sm:$0xff]
        %v2121 = vld [vmem:[#allocation8 + $0x530] sm:$0xff]
        %v2122 = vld [vmem:[#allocation8 + $0x538] sm:$0xff]
        %v2123 = vld [vmem:[#allocation8 + $0x540] sm:$0xff]
        %v2124 = vld [vmem:[#allocation8 + $0x548] sm:$0xff]
        %v2125 = vld [vmem:[#allocation8 + $0x550] sm:$0xff]
        %v2126 = vld [vmem:[#allocation8 + $0x558] sm:$0xff]
        %v2127 = vld [vmem:[#allocation8 + $0x560] sm:$0xff]
        %v2128 = vld [vmem:[#allocation8 + $0x568] sm:$0xff]
        %v2129 = vld [vmem:[#allocation8 + $0x570] sm:$0xff]
        %v2130 = vld [vmem:[#allocation8 + $0x578] sm:$0xff]
        %v2131 = vld [vmem:[#allocation8 + $0x580] sm:$0xff]
        %v2132 = vld [vmem:[#allocation8 + $0x588] sm:$0xff]
        %v2133 = vld [vmem:[#allocation8 + $0x590] sm:$0xff]
        %v2134 = vld [vmem:[#allocation8 + $0x598] sm:$0xff]
        %v2135 = vld [vmem:[#allocation8 + $0x5a0] sm:$0xff]
        %v2136 = vld [vmem:[#allocation8 + $0x5a8] sm:$0xff]
        %v2137 = vld [vmem:[#allocation8 + $0x5b0] sm:$0xff]
        %v2138 = vld [vmem:[#allocation8 + $0x5b8] sm:$0xff]
        %v2139 = vld [vmem:[#allocation8 + $0x5c0] sm:$0xff]
        %v2140 = vld [vmem:[#allocation8 + $0x5c8] sm:$0xff]
        %v2141 = vld [vmem:[#allocation8 + $0x5d0] sm:$0xff]
        %v2142 = vld [vmem:[#allocation8 + $0x5d8] sm:$0xff]
        %v2143 = vld [vmem:[#allocation8 + $0x5e0] sm:$0xff]
        %v2144 = vld [vmem:[#allocation8 + $0x5e8] sm:$0xff]
        %v2145 = vld [vmem:[#allocation8 + $0x5f0] sm:$0xff]
        %v2146 = vld [vmem:[#allocation8 + $0x5f8] sm:$0xff]
        %v2147 = vld [vmem:[#allocation8 + $0x600] sm:$0xff]
        %v2148 = vld [vmem:[#allocation8 + $0x608] sm:$0xff]
        %v2149 = vld [vmem:[#allocation8 + $0x610] sm:$0xff]
        %v2150 = vld [vmem:[#allocation8 + $0x618] sm:$0xff]
        %v2151 = vld [vmem:[#allocation8 + $0x620] sm:$0xff]
        %v2152 = vld [vmem:[#allocation8 + $0x628] sm:$0xff]
        %v2153 = vld [vmem:[#allocation8 + $0x630] sm:$0xff]
        %v2154 = vld [vmem:[#allocation8 + $0x638] sm:$0xff]
        %v2155 = vld [vmem:[#allocation8 + $0x640] sm:$0xff]
        %v2156 = vld [vmem:[#allocation8 + $0x648] sm:$0xff]
        %v2157 = vld [vmem:[#allocation8 + $0x650] sm:$0xff]
        %v2158 = vld [vmem:[#allocation8 + $0x658] sm:$0xff]
        %v2159 = vld [vmem:[#allocation8 + $0x660] sm:$0xff]
        %v2160 = vld [vmem:[#allocation8 + $0x668] sm:$0xff]
        %v2161 = vld [vmem:[#allocation8 + $0x670] sm:$0xff]
        %v2162 = vld [vmem:[#allocation8 + $0x678] sm:$0xff]
        %v2163 = vld [vmem:[#allocation8 + $0x680] sm:$0xff]
        %v2164 = vld [vmem:[#allocation8 + $0x688] sm:$0xff]
        %v2165 = vld [vmem:[#allocation8 + $0x690] sm:$0xff]
        %v2166 = vld [vmem:[#allocation8 + $0x698] sm:$0xff]
        %v2167 = vld [vmem:[#allocation8 + $0x6a0] sm:$0xff]
        %v2168 = vld [vmem:[#allocation8 + $0x6a8] sm:$0xff]
        %v2169 = vld [vmem:[#allocation8 + $0x6b0] sm:$0xff]
        %v2170 = vld [vmem:[#allocation8 + $0x6b8] sm:$0xff]
        %v2171 = vld [vmem:[#allocation8 + $0x6c0] sm:$0xff]
        %v2172 = vld [vmem:[#allocation8 + $0x6c8] sm:$0xff]
        %v2173 = vld [vmem:[#allocation8 + $0x6d0] sm:$0xff]
        %v2174 = vld [vmem:[#allocation8 + $0x6d8] sm:$0xff]
        %v2175 = vld [vmem:[#allocation8 + $0x6e0] sm:$0xff]
        %v2176 = vld [vmem:[#allocation8 + $0x6e8] sm:$0xff]
        %v2177 = vld [vmem:[#allocation8 + $0x6f0] sm:$0xff]
        %v2178 = vld [vmem:[#allocation8 + $0x6f8] sm:$0xff]
        %v2179 = vld [vmem:[#allocation8 + $0x700] sm:$0xff]
        %v2180 = vld [vmem:[#allocation8 + $0x708] sm:$0xff]
        %v2181 = vld [vmem:[#allocation8 + $0x710] sm:$0xff]
        %v2182 = vld [vmem:[#allocation8 + $0x718] sm:$0xff]
        %v2183 = vld [vmem:[#allocation8 + $0x720] sm:$0xff]
        %v2184 = vld [vmem:[#allocation8 + $0x728] sm:$0xff]
        %v2185 = vld [vmem:[#allocation8 + $0x730] sm:$0xff]
        %v2186 = vld [vmem:[#allocation8 + $0x738] sm:$0xff]
        %v2187 = vld [vmem:[#allocation8 + $0x740] sm:$0xff]
        %v2188 = vld [vmem:[#allocation8 + $0x748] sm:$0xff]
        %v2189 = vld [vmem:[#allocation8 + $0x750] sm:$0xff]
        %v2190 = vld [vmem:[#allocation8 + $0x758] sm:$0xff]
        %v2191 = vld [vmem:[#allocation8 + $0x760] sm:$0xff]
        %v2192 = vld [vmem:[#allocation8 + $0x768] sm:$0xff]
        %v2193 = vld [vmem:[#allocation8 + $0x770] sm:$0xff]
        %v2194 = vld [vmem:[#allocation8 + $0x778] sm:$0xff]
        %v2195 = vld [vmem:[#allocation8 + $0x780] sm:$0xff]
        %v2196 = vld [vmem:[#allocation8 + $0x788] sm:$0xff]
        %v2197 = vld [vmem:[#allocation8 + $0x790] sm:$0xff]
        %v2198 = vld [vmem:[#allocation8 + $0x798] sm:$0xff]
        %v2199 = vld [vmem:[#allocation8 + $0x7a0] sm:$0xff]
        %v2200 = vld [vmem:[#allocation8 + $0x7a8] sm:$0xff]
        %v2201 = vld [vmem:[#allocation8 + $0x7b0] sm:$0xff]
        %v2202 = vld [vmem:[#allocation8 + $0x7b8] sm:$0xff]
        %v2203 = vld [vmem:[#allocation8 + $0x7c0] sm:$0xff]
        %v2204 = vld [vmem:[#allocation8 + $0x7c8] sm:$0xff]
        %v2205 = vld [vmem:[#allocation8 + $0x7d0] sm:$0xff]
        %v2206 = vld [vmem:[#allocation8 + $0x7d8] sm:$0xff]
        %v2207 = vld [vmem:[#allocation8 + $0x7e0] sm:$0xff]
        %v2208 = vld [vmem:[#allocation8 + $0x7e8] sm:$0xff]
        %v2209 = vld [vmem:[#allocation8 + $0x7f0] sm:$0xff]
        %v2210 = vld [vmem:[#allocation8 + $0x7f8] sm:$0xff]
        %2211 = vmatpush.msra.mxu0 %v2075
        %2212 = vmatpush.msra.mxu0 %v2067
        %2213 = vmatpush.msra.mxu0 %v2059
        %2214 = vmatpush.msra.mxu0 %v2051
        %2215 = vmatpush.msra.mxu0 %v2043
        %2216 = vmatpush.msra.mxu0 %v2035
        %2217 = vmatpush.msra.mxu0 %v2027
        %2218 = vmatpush.msra.mxu0 %v2019
        %2219 = vmatpush.msra.mxu0 %v2011
        %2220 = vmatpush.msra.mxu0 %v2003
        %2221 = vmatpush.msra.mxu0 %v1995
        %2222 = vmatpush.msra.mxu0 %v1987
        %2223 = vmatpush.msra.mxu0 %v1979
        %2224 = vmatpush.msra.mxu0 %v1971
        %2225 = vmatpush.msra.mxu0 %v1963
        %2226 = vmatpush.msra.mxu0 %v1955
        %2227 = vmatmul.f32.gmra.mxu0 %v1947
        %v2228 = vpop.f32.mrf.mxu0
        %v2229 = vadd.f32 0.0, %v2228
        %2230 = vmatmul.f32.gmra.mxu0 %v1949
        %v2231 = vpop.f32.mrf.mxu0
        %v2232 = vadd.f32 0.0, %v2231
        %2233 = vmatmul.f32.gmra.mxu0 %v1951
        %v2234 = vpop.f32.mrf.mxu0
        %v2235 = vadd.f32 0.0, %v2234
        %2236 = vmatmul.f32.gmra.mxu0 %v1953
        %v2237 = vpop.f32.mrf.mxu0
        %v2238 = vadd.f32 0.0, %v2237
        %2239 = vdwg.mxu0
        %2240 = vmatpush.msra.mxu0 %v2203
        %2241 = vmatpush.msra.mxu0 %v2195
        %2242 = vmatpush.msra.mxu0 %v2187
        %2243 = vmatpush.msra.mxu0 %v2179
        %2244 = vmatpush.msra.mxu0 %v2171
        %2245 = vmatpush.msra.mxu0 %v2163
        %2246 = vmatpush.msra.mxu0 %v2155
        %2247 = vmatpush.msra.mxu0 %v2147
        %2248 = vmatpush.msra.mxu0 %v2139
        %2249 = vmatpush.msra.mxu0 %v2131
        %2250 = vmatpush.msra.mxu0 %v2123
        %2251 = vmatpush.msra.mxu0 %v2115
        %2252 = vmatpush.msra.mxu0 %v2107
        %2253 = vmatpush.msra.mxu0 %v2099
        %2254 = vmatpush.msra.mxu0 %v2091
        %2255 = vmatpush.msra.mxu0 %v2083
        %2256 = vmatmul.f32.gmra.mxu0 %v1948
        %v2257 = vpop.f32.mrf.mxu0
        %v2258 = vadd.f32 %v2229, %v2257
        %2259 = vmatmul.f32.gmra.mxu0 %v1950
        %v2260 = vpop.f32.mrf.mxu0
        %v2261 = vadd.f32 %v2232, %v2260
        %2262 = vmatmul.f32.gmra.mxu0 %v1952
        %v2263 = vpop.f32.mrf.mxu0
        %v2264 = vadd.f32 %v2235, %v2263
        %2265 = vmatmul.f32.gmra.mxu0 %v1954
        %v2266 = vpop.f32.mrf.mxu0
        %v2267 = vadd.f32 %v2238, %v2266
        %2268 = vdwg.mxu0
        %2269 = vmatpush.msra.mxu0 %v2076
        %2270 = vmatpush.msra.mxu0 %v2068
        %2271 = vmatpush.msra.mxu0 %v2060
        %2272 = vmatpush.msra.mxu0 %v2052
        %2273 = vmatpush.msra.mxu0 %v2044
        %2274 = vmatpush.msra.mxu0 %v2036
        %2275 = vmatpush.msra.mxu0 %v2028
        %2276 = vmatpush.msra.mxu0 %v2020
        %2277 = vmatpush.msra.mxu0 %v2012
        %2278 = vmatpush.msra.mxu0 %v2004
        %2279 = vmatpush.msra.mxu0 %v1996
        %2280 = vmatpush.msra.mxu0 %v1988
        %2281 = vmatpush.msra.mxu0 %v1980
        %2282 = vmatpush.msra.mxu0 %v1972
        %2283 = vmatpush.msra.mxu0 %v1964
        %2284 = vmatpush.msra.mxu0 %v1956
        %2285 = vmatmul.f32.gmra.mxu0 %v1947
        %v2286 = vpop.f32.mrf.mxu0
        %v2287 = vadd.f32 0.0, %v2286
        %2288 = vmatmul.f32.gmra.mxu0 %v1949
        %v2289 = vpop.f32.mrf.mxu0
        %v2290 = vadd.f32 0.0, %v2289
        %2291 = vmatmul.f32.gmra.mxu0 %v1951
        %v2292 = vpop.f32.mrf.mxu0
        %v2293 = vadd.f32 0.0, %v2292
        %2294 = vmatmul.f32.gmra.mxu0 %v1953
        %v2295 = vpop.f32.mrf.mxu0
        %v2296 = vadd.f32 0.0, %v2295
        %2297 = vdwg.mxu0
        %2298 = vmatpush.msra.mxu0 %v2204
        %2299 = vmatpush.msra.mxu0 %v2196
        %2300 = vmatpush.msra.mxu0 %v2188
        %2301 = vmatpush.msra.mxu0 %v2180
        %2302 = vmatpush.msra.mxu0 %v2172
        %2303 = vmatpush.msra.mxu0 %v2164
        %2304 = vmatpush.msra.mxu0 %v2156
        %2305 = vmatpush.msra.mxu0 %v2148
        %2306 = vmatpush.msra.mxu0 %v2140
        %2307 = vmatpush.msra.mxu0 %v2132
        %2308 = vmatpush.msra.mxu0 %v2124
        %2309 = vmatpush.msra.mxu0 %v2116
        %2310 = vmatpush.msra.mxu0 %v2108
        %2311 = vmatpush.msra.mxu0 %v2100
        %2312 = vmatpush.msra.mxu0 %v2092
        %2313 = vmatpush.msra.mxu0 %v2084
        %2314 = vmatmul.f32.gmra.mxu0 %v1948
        %v2315 = vpop.f32.mrf.mxu0
        %v2316 = vadd.f32 %v2287, %v2315
        %2317 = vmatmul.f32.gmra.mxu0 %v1950
        %v2318 = vpop.f32.mrf.mxu0
        %v2319 = vadd.f32 %v2290, %v2318
        %2320 = vmatmul.f32.gmra.mxu0 %v1952
        %v2321 = vpop.f32.mrf.mxu0
        %v2322 = vadd.f32 %v2293, %v2321
        %2323 = vmatmul.f32.gmra.mxu0 %v1954
        %v2324 = vpop.f32.mrf.mxu0
        %v2325 = vadd.f32 %v2296, %v2324
        %2326 = vdwg.mxu0
        %2327 = vmatpush.msra.mxu0 %v2077
        %2328 = vmatpush.msra.mxu0 %v2069
        %2329 = vmatpush.msra.mxu0 %v2061
        %2330 = vmatpush.msra.mxu0 %v2053
        %2331 = vmatpush.msra.mxu0 %v2045
        %2332 = vmatpush.msra.mxu0 %v2037
        %2333 = vmatpush.msra.mxu0 %v2029
        %2334 = vmatpush.msra.mxu0 %v2021
        %2335 = vmatpush.msra.mxu0 %v2013
        %2336 = vmatpush.msra.mxu0 %v2005
        %2337 = vmatpush.msra.mxu0 %v1997
        %2338 = vmatpush.msra.mxu0 %v1989
        %2339 = vmatpush.msra.mxu0 %v1981
        %2340 = vmatpush.msra.mxu0 %v1973
        %2341 = vmatpush.msra.mxu0 %v1965
        %2342 = vmatpush.msra.mxu0 %v1957
        %2343 = vmatmul.f32.gmra.mxu0 %v1947
        %v2344 = vpop.f32.mrf.mxu0
        %v2345 = vadd.f32 0.0, %v2344
        %2346 = vmatmul.f32.gmra.mxu0 %v1949
        %v2347 = vpop.f32.mrf.mxu0
        %v2348 = vadd.f32 0.0, %v2347
        %2349 = vmatmul.f32.gmra.mxu0 %v1951
        %v2350 = vpop.f32.mrf.mxu0
        %v2351 = vadd.f32 0.0, %v2350
        %2352 = vmatmul.f32.gmra.mxu0 %v1953
        %v2353 = vpop.f32.mrf.mxu0
        %v2354 = vadd.f32 0.0, %v2353
        %2355 = vdwg.mxu0
        %2356 = vmatpush.msra.mxu0 %v2205
        %2357 = vmatpush.msra.mxu0 %v2197
        %2358 = vmatpush.msra.mxu0 %v2189
        %2359 = vmatpush.msra.mxu0 %v2181
        %2360 = vmatpush.msra.mxu0 %v2173
        %2361 = vmatpush.msra.mxu0 %v2165
        %2362 = vmatpush.msra.mxu0 %v2157
        %2363 = vmatpush.msra.mxu0 %v2149
        %2364 = vmatpush.msra.mxu0 %v2141
        %2365 = vmatpush.msra.mxu0 %v2133
        %2366 = vmatpush.msra.mxu0 %v2125
        %2367 = vmatpush.msra.mxu0 %v2117
        %2368 = vmatpush.msra.mxu0 %v2109
        %2369 = vmatpush.msra.mxu0 %v2101
        %2370 = vmatpush.msra.mxu0 %v2093
        %2371 = vmatpush.msra.mxu0 %v2085
        %2372 = vmatmul.f32.gmra.mxu0 %v1948
        %v2373 = vpop.f32.mrf.mxu0
        %v2374 = vadd.f32 %v2345, %v2373
        %2375 = vmatmul.f32.gmra.mxu0 %v1950
        %v2376 = vpop.f32.mrf.mxu0
        %v2377 = vadd.f32 %v2348, %v2376
        %2378 = vmatmul.f32.gmra.mxu0 %v1952
        %v2379 = vpop.f32.mrf.mxu0
        %v2380 = vadd.f32 %v2351, %v2379
        %2381 = vmatmul.f32.gmra.mxu0 %v1954
        %v2382 = vpop.f32.mrf.mxu0
        %v2383 = vadd.f32 %v2354, %v2382
        %2384 = vdwg.mxu0
        %2385 = vmatpush.msra.mxu0 %v2078
        %2386 = vmatpush.msra.mxu0 %v2070
        %2387 = vmatpush.msra.mxu0 %v2062
        %2388 = vmatpush.msra.mxu0 %v2054
        %2389 = vmatpush.msra.mxu0 %v2046
        %2390 = vmatpush.msra.mxu0 %v2038
        %2391 = vmatpush.msra.mxu0 %v2030
        %2392 = vmatpush.msra.mxu0 %v2022
        %2393 = vmatpush.msra.mxu0 %v2014
        %2394 = vmatpush.msra.mxu0 %v2006
        %2395 = vmatpush.msra.mxu0 %v1998
        %2396 = vmatpush.msra.mxu0 %v1990
        %2397 = vmatpush.msra.mxu0 %v1982
        %2398 = vmatpush.msra.mxu0 %v1974
        %2399 = vmatpush.msra.mxu0 %v1966
        %2400 = vmatpush.msra.mxu0 %v1958
        %2401 = vmatmul.f32.gmra.mxu0 %v1947
        %v2402 = vpop.f32.mrf.mxu0
        %v2403 = vadd.f32 0.0, %v2402
        %2404 = vmatmul.f32.gmra.mxu0 %v1949
        %v2405 = vpop.f32.mrf.mxu0
        %v2406 = vadd.f32 0.0, %v2405
        %2407 = vmatmul.f32.gmra.mxu0 %v1951
        %v2408 = vpop.f32.mrf.mxu0
        %v2409 = vadd.f32 0.0, %v2408
        %2410 = vmatmul.f32.gmra.mxu0 %v1953
        %v2411 = vpop.f32.mrf.mxu0
        %v2412 = vadd.f32 0.0, %v2411
        %2413 = vdwg.mxu0
        %2414 = vmatpush.msra.mxu0 %v2206
        %2415 = vmatpush.msra.mxu0 %v2198
        %2416 = vmatpush.msra.mxu0 %v2190
        %2417 = vmatpush.msra.mxu0 %v2182
        %2418 = vmatpush.msra.mxu0 %v2174
        %2419 = vmatpush.msra.mxu0 %v2166
        %2420 = vmatpush.msra.mxu0 %v2158
        %2421 = vmatpush.msra.mxu0 %v2150
        %2422 = vmatpush.msra.mxu0 %v2142
        %2423 = vmatpush.msra.mxu0 %v2134
        %2424 = vmatpush.msra.mxu0 %v2126
        %2425 = vmatpush.msra.mxu0 %v2118
        %2426 = vmatpush.msra.mxu0 %v2110
        %2427 = vmatpush.msra.mxu0 %v2102
        %2428 = vmatpush.msra.mxu0 %v2094
        %2429 = vmatpush.msra.mxu0 %v2086
        %2430 = vmatmul.f32.gmra.mxu0 %v1948
        %v2431 = vpop.f32.mrf.mxu0
        %v2432 = vadd.f32 %v2403, %v2431
        %2433 = vmatmul.f32.gmra.mxu0 %v1950
        %v2434 = vpop.f32.mrf.mxu0
        %v2435 = vadd.f32 %v2406, %v2434
        %2436 = vmatmul.f32.gmra.mxu0 %v1952
        %v2437 = vpop.f32.mrf.mxu0
        %v2438 = vadd.f32 %v2409, %v2437
        %2439 = vmatmul.f32.gmra.mxu0 %v1954
        %v2440 = vpop.f32.mrf.mxu0
        %v2441 = vadd.f32 %v2412, %v2440
        %2442 = vdwg.mxu0
        %2443 = vmatpush.msra.mxu0 %v2079
        %2444 = vmatpush.msra.mxu0 %v2071
        %2445 = vmatpush.msra.mxu0 %v2063
        %2446 = vmatpush.msra.mxu0 %v2055
        %2447 = vmatpush.msra.mxu0 %v2047
        %2448 = vmatpush.msra.mxu0 %v2039
        %2449 = vmatpush.msra.mxu0 %v2031
        %2450 = vmatpush.msra.mxu0 %v2023
        %2451 = vmatpush.msra.mxu0 %v2015
        %2452 = vmatpush.msra.mxu0 %v2007
        %2453 = vmatpush.msra.mxu0 %v1999
        %2454 = vmatpush.msra.mxu0 %v1991
        %2455 = vmatpush.msra.mxu0 %v1983
        %2456 = vmatpush.msra.mxu0 %v1975
        %2457 = vmatpush.msra.mxu0 %v1967
        %2458 = vmatpush.msra.mxu0 %v1959
        %2459 = vmatmul.f32.gmra.mxu0 %v1947
        %v2460 = vpop.f32.mrf.mxu0
        %v2461 = vadd.f32 0.0, %v2460
        %2462 = vmatmul.f32.gmra.mxu0 %v1949
        %v2463 = vpop.f32.mrf.mxu0
        %v2464 = vadd.f32 0.0, %v2463
        %2465 = vmatmul.f32.gmra.mxu0 %v1951
        %v2466 = vpop.f32.mrf.mxu0
        %v2467 = vadd.f32 0.0, %v2466
        %2468 = vmatmul.f32.gmra.mxu0 %v1953
        %v2469 = vpop.f32.mrf.mxu0
        %v2470 = vadd.f32 0.0, %v2469
        %2471 = vdwg.mxu0
        %2472 = vmatpush.msra.mxu0 %v2207
        %2473 = vmatpush.msra.mxu0 %v2199
        %2474 = vmatpush.msra.mxu0 %v2191
        %2475 = vmatpush.msra.mxu0 %v2183
        %2476 = vmatpush.msra.mxu0 %v2175
        %2477 = vmatpush.msra.mxu0 %v2167
        %2478 = vmatpush.msra.mxu0 %v2159
        %2479 = vmatpush.msra.mxu0 %v2151
        %2480 = vmatpush.msra.mxu0 %v2143
        %2481 = vmatpush.msra.mxu0 %v2135
        %2482 = vmatpush.msra.mxu0 %v2127
        %2483 = vmatpush.msra.mxu0 %v2119
        %2484 = vmatpush.msra.mxu0 %v2111
        %2485 = vmatpush.msra.mxu0 %v2103
        %2486 = vmatpush.msra.mxu0 %v2095
        %2487 = vmatpush.msra.mxu0 %v2087
        %2488 = vmatmul.f32.gmra.mxu0 %v1948
        %v2489 = vpop.f32.mrf.mxu0
        %v2490 = vadd.f32 %v2461, %v2489
        %2491 = vmatmul.f32.gmra.mxu0 %v1950
        %v2492 = vpop.f32.mrf.mxu0
        %v2493 = vadd.f32 %v2464, %v2492
        %2494 = vmatmul.f32.gmra.mxu0 %v1952
        %v2495 = vpop.f32.mrf.mxu0
        %v2496 = vadd.f32 %v2467, %v2495
        %2497 = vmatmul.f32.gmra.mxu0 %v1954
        %v2498 = vpop.f32.mrf.mxu0
        %v2499 = vadd.f32 %v2470, %v2498
        %2500 = vdwg.mxu0
        %2501 = vmatpush.msra.mxu0 %v2080
        %2502 = vmatpush.msra.mxu0 %v2072
        %2503 = vmatpush.msra.mxu0 %v2064
        %2504 = vmatpush.msra.mxu0 %v2056
        %2505 = vmatpush.msra.mxu0 %v2048
        %2506 = vmatpush.msra.mxu0 %v2040
        %2507 = vmatpush.msra.mxu0 %v2032
        %2508 = vmatpush.msra.mxu0 %v2024
        %2509 = vmatpush.msra.mxu0 %v2016
        %2510 = vmatpush.msra.mxu0 %v2008
        %2511 = vmatpush.msra.mxu0 %v2000
        %2512 = vmatpush.msra.mxu0 %v1992
        %2513 = vmatpush.msra.mxu0 %v1984
        %2514 = vmatpush.msra.mxu0 %v1976
        %2515 = vmatpush.msra.mxu0 %v1968
        %2516 = vmatpush.msra.mxu0 %v1960
        %2517 = vmatmul.f32.gmra.mxu0 %v1947
        %v2518 = vpop.f32.mrf.mxu0
        %v2519 = vadd.f32 0.0, %v2518
        %2520 = vmatmul.f32.gmra.mxu0 %v1949
        %v2521 = vpop.f32.mrf.mxu0
        %v2522 = vadd.f32 0.0, %v2521
        %2523 = vmatmul.f32.gmra.mxu0 %v1951
        %v2524 = vpop.f32.mrf.mxu0
        %v2525 = vadd.f32 0.0, %v2524
        %2526 = vmatmul.f32.gmra.mxu0 %v1953
        %v2527 = vpop.f32.mrf.mxu0
        %v2528 = vadd.f32 0.0, %v2527
        %2529 = vdwg.mxu0
        %2530 = vmatpush.msra.mxu0 %v2208
        %2531 = vmatpush.msra.mxu0 %v2200
        %2532 = vmatpush.msra.mxu0 %v2192
        %2533 = vmatpush.msra.mxu0 %v2184
        %2534 = vmatpush.msra.mxu0 %v2176
        %2535 = vmatpush.msra.mxu0 %v2168
        %2536 = vmatpush.msra.mxu0 %v2160
        %2537 = vmatpush.msra.mxu0 %v2152
        %2538 = vmatpush.msra.mxu0 %v2144
        %2539 = vmatpush.msra.mxu0 %v2136
        %2540 = vmatpush.msra.mxu0 %v2128
        %2541 = vmatpush.msra.mxu0 %v2120
        %2542 = vmatpush.msra.mxu0 %v2112
        %2543 = vmatpush.msra.mxu0 %v2104
        %2544 = vmatpush.msra.mxu0 %v2096
        %2545 = vmatpush.msra.mxu0 %v2088
        %2546 = vmatmul.f32.gmra.mxu0 %v1948
        %v2547 = vpop.f32.mrf.mxu0
        %v2548 = vadd.f32 %v2519, %v2547
        %2549 = vmatmul.f32.gmra.mxu0 %v1950
        %v2550 = vpop.f32.mrf.mxu0
        %v2551 = vadd.f32 %v2522, %v2550
        %2552 = vmatmul.f32.gmra.mxu0 %v1952
        %v2553 = vpop.f32.mrf.mxu0
        %v2554 = vadd.f32 %v2525, %v2553
        %2555 = vmatmul.f32.gmra.mxu0 %v1954
        %v2556 = vpop.f32.mrf.mxu0
        %v2557 = vadd.f32 %v2528, %v2556
        %2558 = vdwg.mxu0
        %2559 = vmatpush.msra.mxu0 %v2081
        %2560 = vmatpush.msra.mxu0 %v2073
        %2561 = vmatpush.msra.mxu0 %v2065
        %2562 = vmatpush.msra.mxu0 %v2057
        %2563 = vmatpush.msra.mxu0 %v2049
        %2564 = vmatpush.msra.mxu0 %v2041
        %2565 = vmatpush.msra.mxu0 %v2033
        %2566 = vmatpush.msra.mxu0 %v2025
        %2567 = vmatpush.msra.mxu0 %v2017
        %2568 = vmatpush.msra.mxu0 %v2009
        %2569 = vmatpush.msra.mxu0 %v2001
        %2570 = vmatpush.msra.mxu0 %v1993
        %2571 = vmatpush.msra.mxu0 %v1985
        %2572 = vmatpush.msra.mxu0 %v1977
        %2573 = vmatpush.msra.mxu0 %v1969
        %2574 = vmatpush.msra.mxu0 %v1961
        %2575 = vmatmul.f32.gmra.mxu0 %v1947
        %v2576 = vpop.f32.mrf.mxu0
        %v2577 = vadd.f32 0.0, %v2576
        %2578 = vmatmul.f32.gmra.mxu0 %v1949
        %v2579 = vpop.f32.mrf.mxu0
        %v2580 = vadd.f32 0.0, %v2579
        %2581 = vmatmul.f32.gmra.mxu0 %v1951
        %v2582 = vpop.f32.mrf.mxu0
        %v2583 = vadd.f32 0.0, %v2582
        %2584 = vmatmul.f32.gmra.mxu0 %v1953
        %v2585 = vpop.f32.mrf.mxu0
        %v2586 = vadd.f32 0.0, %v2585
        %2587 = vdwg.mxu0
        %2588 = vmatpush.msra.mxu0 %v2209
        %2589 = vmatpush.msra.mxu0 %v2201
        %2590 = vmatpush.msra.mxu0 %v2193
        %2591 = vmatpush.msra.mxu0 %v2185
        %2592 = vmatpush.msra.mxu0 %v2177
        %2593 = vmatpush.msra.mxu0 %v2169
        %2594 = vmatpush.msra.mxu0 %v2161
        %2595 = vmatpush.msra.mxu0 %v2153
        %2596 = vmatpush.msra.mxu0 %v2145
        %2597 = vmatpush.msra.mxu0 %v2137
        %2598 = vmatpush.msra.mxu0 %v2129
        %2599 = vmatpush.msra.mxu0 %v2121
        %2600 = vmatpush.msra.mxu0 %v2113
        %2601 = vmatpush.msra.mxu0 %v2105
        %2602 = vmatpush.msra.mxu0 %v2097
        %2603 = vmatpush.msra.mxu0 %v2089
        %2604 = vmatmul.f32.gmra.mxu0 %v1948
        %v2605 = vpop.f32.mrf.mxu0
        %v2606 = vadd.f32 %v2577, %v2605
        %2607 = vmatmul.f32.gmra.mxu0 %v1950
        %v2608 = vpop.f32.mrf.mxu0
        %v2609 = vadd.f32 %v2580, %v2608
        %2610 = vmatmul.f32.gmra.mxu0 %v1952
        %v2611 = vpop.f32.mrf.mxu0
        %v2612 = vadd.f32 %v2583, %v2611
        %2613 = vmatmul.f32.gmra.mxu0 %v1954
        %v2614 = vpop.f32.mrf.mxu0
        %v2615 = vadd.f32 %v2586, %v2614
        %2616 = vdwg.mxu0
        %2617 = vmatpush.msra.mxu0 %v2082
        %2618 = vmatpush.msra.mxu0 %v2074
        %2619 = vmatpush.msra.mxu0 %v2066
        %2620 = vmatpush.msra.mxu0 %v2058
        %2621 = vmatpush.msra.mxu0 %v2050
        %2622 = vmatpush.msra.mxu0 %v2042
        %2623 = vmatpush.msra.mxu0 %v2034
        %2624 = vmatpush.msra.mxu0 %v2026
        %2625 = vmatpush.msra.mxu0 %v2018
        %2626 = vmatpush.msra.mxu0 %v2010
        %2627 = vmatpush.msra.mxu0 %v2002
        %2628 = vmatpush.msra.mxu0 %v1994
        %2629 = vmatpush.msra.mxu0 %v1986
        %2630 = vmatpush.msra.mxu0 %v1978
        %2631 = vmatpush.msra.mxu0 %v1970
        %2632 = vmatpush.msra.mxu0 %v1962
        %2633 = vmatmul.f32.gmra.mxu0 %v1947
        %v2634 = vpop.f32.mrf.mxu0
        %v2635 = vadd.f32 0.0, %v2634
        %2636 = vmatmul.f32.gmra.mxu0 %v1949
        %v2637 = vpop.f32.mrf.mxu0
        %v2638 = vadd.f32 0.0, %v2637
        %2639 = vmatmul.f32.gmra.mxu0 %v1951
        %v2640 = vpop.f32.mrf.mxu0
        %v2641 = vadd.f32 0.0, %v2640
        %2642 = vmatmul.f32.gmra.mxu0 %v1953
        %v2643 = vpop.f32.mrf.mxu0
        %v2644 = vadd.f32 0.0, %v2643
        %2645 = vdwg.mxu0
        %2646 = vmatpush.msra.mxu0 %v2210
        %2647 = vmatpush.msra.mxu0 %v2202
        %2648 = vmatpush.msra.mxu0 %v2194
        %2649 = vmatpush.msra.mxu0 %v2186
        %2650 = vmatpush.msra.mxu0 %v2178
        %2651 = vmatpush.msra.mxu0 %v2170
        %2652 = vmatpush.msra.mxu0 %v2162
        %2653 = vmatpush.msra.mxu0 %v2154
        %2654 = vmatpush.msra.mxu0 %v2146
        %2655 = vmatpush.msra.mxu0 %v2138
        %2656 = vmatpush.msra.mxu0 %v2130
        %2657 = vmatpush.msra.mxu0 %v2122
        %2658 = vmatpush.msra.mxu0 %v2114
        %2659 = vmatpush.msra.mxu0 %v2106
        %2660 = vmatpush.msra.mxu0 %v2098
        %2661 = vmatpush.msra.mxu0 %v2090
        %2662 = vmatmul.f32.gmra.mxu0 %v1948
        %v2663 = vpop.f32.mrf.mxu0
        %v2664 = vadd.f32 %v2635, %v2663
        %2665 = vmatmul.f32.gmra.mxu0 %v1950
        %v2666 = vpop.f32.mrf.mxu0
        %v2667 = vadd.f32 %v2638, %v2666
        %2668 = vmatmul.f32.gmra.mxu0 %v1952
        %v2669 = vpop.f32.mrf.mxu0
        %v2670 = vadd.f32 %v2641, %v2669
        %2671 = vmatmul.f32.gmra.mxu0 %v1954
        %v2672 = vpop.f32.mrf.mxu0
        %v2673 = vadd.f32 %v2644, %v2672
        %2674 = vdwg.mxu0
        %v2675 = vld [vmem:[#allocation17] sm:$0xff]
        %v2676 = vld [vmem:[#allocation17 + $0x8] sm:$0xff]
        %v2677 = vld [vmem:[#allocation17 + $0x10] sm:$0xff]
        %v2678 = vld [vmem:[#allocation17 + $0x18] sm:$0xff]
        %v2679 = vld [vmem:[#allocation17 + $0x20] sm:$0xff]
        %v2680 = vld [vmem:[#allocation17 + $0x28] sm:$0xff]
        %v2681 = vld [vmem:[#allocation17 + $0x30] sm:$0xff]
        %v2682 = vld [vmem:[#allocation17 + $0x38] sm:$0xff]
        %v2683 = vld [vmem:[#allocation17 + $0x40] sm:$0xff]
        %v2684 = vld [vmem:[#allocation17 + $0x48] sm:$0xff]
        %v2685 = vld [vmem:[#allocation17 + $0x50] sm:$0xff]
        %v2686 = vld [vmem:[#allocation17 + $0x58] sm:$0xff]
        %v2687 = vld [vmem:[%s15] sm:$0xff]
        %v2688 = vld [vmem:[%s15 + $0x8] sm:$0xff]
        %v2689 = vld [vmem:[%s15 + $0x10] sm:$0xff]
        %v2690 = vld [vmem:[%s15 + $0x18] sm:$0xff]
        %2691 = vrot.lane.b32.xlu0 %v2258, 33
        %v2692 = vpop.permute.xlu0 %2691
        %2693 = vrot.lane.b32.xlu0 %v2261, 33
        %v2694 = vpop.permute.xlu0 %2693
        %2695 = vrot.lane.b32.xlu0 %v2264, 33
        %v2696 = vpop.permute.xlu0 %2695
        %2697 = vrot.lane.b32.xlu0 %v2267, 33
        %v2698 = vpop.permute.xlu0 %2697
        %2699 = vrot.lane.b32.xlu0 %v2316, 33
        %v2700 = vpop.permute.xlu0 %2699
        %2701 = vrot.lane.b32.xlu0 %v2319, 33
        %v2702 = vpop.permute.xlu0 %2701
        %2703 = vrot.lane.b32.xlu0 %v2322, 33
        %v2704 = vpop.permute.xlu0 %2703
        %2705 = vrot.lane.b32.xlu0 %v2325, 33
        %v2706 = vpop.permute.xlu0 %2705
        %2707 = vrot.lane.b32.xlu0 %v2374, 33
        %v2708 = vpop.permute.xlu0 %2707
        %2709 = vrot.lane.b32.xlu0 %v2377, 33
        %v2710 = vpop.permute.xlu0 %2709
        %2711 = vrot.lane.b32.xlu0 %v2380, 33
        %v2712 = vpop.permute.xlu0 %2711
        %2713 = vrot.lane.b32.xlu0 %v2383, 33
        %v2714 = vpop.permute.xlu0 %2713
        %2715 = vrot.lane.b32.xlu0 %v2432, 33
        %v2716 = vpop.permute.xlu0 %2715
        %2717 = vrot.lane.b32.xlu0 %v2435, 33
        %v2718 = vpop.permute.xlu0 %2717
        %2719 = vrot.lane.b32.xlu0 %v2438, 33
        %v2720 = vpop.permute.xlu0 %2719
        %2721 = vrot.lane.b32.xlu0 %v2441, 33
        %v2722 = vpop.permute.xlu0 %2721
        %2723 = vrot.lane.b32.xlu0 %v2490, 33
        %v2724 = vpop.permute.xlu0 %2723
        %2725 = vrot.lane.b32.xlu0 %v2493, 33
        %v2726 = vpop.permute.xlu0 %2725
        %2727 = vrot.lane.b32.xlu0 %v2496, 33
        %v2728 = vpop.permute.xlu0 %2727
        %2729 = vrot.lane.b32.xlu0 %v2499, 33
        %v2730 = vpop.permute.xlu0 %2729
        %2731 = vrot.lane.b32.xlu0 %v2548, 33
        %v2732 = vpop.permute.xlu0 %2731
        %2733 = vrot.lane.b32.xlu0 %v2551, 33
        %v2734 = vpop.permute.xlu0 %2733
        %2735 = vrot.lane.b32.xlu0 %v2554, 33
        %v2736 = vpop.permute.xlu0 %2735
        %2737 = vrot.lane.b32.xlu0 %v2557, 33
        %v2738 = vpop.permute.xlu0 %2737
        %2739 = vrot.lane.b32.xlu0 %v2606, 33
        %v2740 = vpop.permute.xlu0 %2739
        %2741 = vrot.lane.b32.xlu0 %v2609, 33
        %v2742 = vpop.permute.xlu0 %2741
        %2743 = vrot.lane.b32.xlu0 %v2612, 33
        %v2744 = vpop.permute.xlu0 %2743
        %2745 = vrot.lane.b32.xlu0 %v2615, 33
        %v2746 = vpop.permute.xlu0 %2745
        %2747 = vrot.lane.b32.xlu0 %v2664, 33
        %v2748 = vpop.permute.xlu0 %2747
        %2749 = vrot.lane.b32.xlu0 %v2667, 33
        %v2750 = vpop.permute.xlu0 %2749
        %2751 = vrot.lane.b32.xlu0 %v2670, 33
        %v2752 = vpop.permute.xlu0 %2751
        %2753 = vrot.lane.b32.xlu0 %v2673, 33
        %v2754 = vpop.permute.xlu0 %2753
        %vm2755 = vcmp.lt.s32.totalorder %v1421, 33
        %v2756 = vsel %vm2755, %v2740, %v2748
        %v2757 = vsel %vm2755, %v2742, %v2750
        %v2758 = vsel %vm2755, %v2744, %v2752
        %v2759 = vsel %vm2755, %v2746, %v2754
        %v2760 = vsel %vm2755, %v2732, %v2740
        %v2761 = vsel %vm2755, %v2734, %v2742
        %v2762 = vsel %vm2755, %v2736, %v2744
        %v2763 = vsel %vm2755, %v2738, %v2746
        %v2764 = vsel %vm2755, %v2724, %v2732
        %v2765 = vsel %vm2755, %v2726, %v2734
        %v2766 = vsel %vm2755, %v2728, %v2736
        %v2767 = vsel %vm2755, %v2730, %v2738
        %v2768 = vsel %vm2755, %v2716, %v2724
        %v2769 = vsel %vm2755, %v2718, %v2726
        %v2770 = vsel %vm2755, %v2720, %v2728
        %v2771 = vsel %vm2755, %v2722, %v2730
        %v2772 = vsel %vm2755, %v2708, %v2716
        %v2773 = vsel %vm2755, %v2710, %v2718
        %v2774 = vsel %vm2755, %v2712, %v2720
        %v2775 = vsel %vm2755, %v2714, %v2722
        %v2776 = vsel %vm2755, %v2700, %v2708
        %v2777 = vsel %vm2755, %v2702, %v2710
        %v2778 = vsel %vm2755, %v2704, %v2712
        %v2779 = vsel %vm2755, %v2706, %v2714
        %v2780 = vsel %vm2755, %v2692, %v2700
        %v2781 = vsel %vm2755, %v2694, %v2702
        %v2782 = vsel %vm2755, %v2696, %v2704
        %v2783 = vsel %vm2755, %v2698, %v2706
        %v2784 = vsel %vm2755, %v2748, %v2692
        %v2785 = vsel %vm2755, %v2750, %v2694
        %v2786 = vsel %vm2755, %v2752, %v2696
        %v2787 = vsel %vm2755, %v2754, %v2698
        %v2788 = vld [vmem:[#allocation13] ss:$8 sm:$0xf]
        %v2789 = vld [vmem:[#allocation13] ss:$8 sm:$0xf0]
        %v2790 = vor.u32 %v2788, %v2789
        %v2792 = vperm.slane %v2790, 0
        %v2793 = vperm.slane %v2790, 1
        %v2794 = vperm.slane %v2790, 2
        %v2795 = vperm.slane %v2790, 3
        %v2796 = vperm.slane %v2790, 4
        %v2797 = vperm.slane %v2790, 5
        %v2798 = vperm.slane %v2790, 6
        %v2799 = vperm.slane %v2790, 7
        %v2808 = vmul.f32 %v2784, %v2792
        %v2809 = vmul.f32 %v2780, %v2793
        %v2810 = vmul.f32 %v2776, %v2794
        %v2811 = vmul.f32 %v2772, %v2795
        %v2812 = vmul.f32 %v2768, %v2796
        %v2813 = vmul.f32 %v2764, %v2797
        %v2814 = vmul.f32 %v2760, %v2798
        %v2815 = vmul.f32 %v2756, %v2799
        %v2816 = vmul.f32 %v2785, %v2792
        %v2817 = vmul.f32 %v2781, %v2793
        %v2818 = vmul.f32 %v2777, %v2794
        %v2819 = vmul.f32 %v2773, %v2795
        %v2820 = vmul.f32 %v2769, %v2796
        %v2821 = vmul.f32 %v2765, %v2797
        %v2822 = vmul.f32 %v2761, %v2798
        %v2823 = vmul.f32 %v2757, %v2799
        %v2824 = vmul.f32 %v2786, %v2792
        %v2825 = vmul.f32 %v2782, %v2793
        %v2826 = vmul.f32 %v2778, %v2794
        %v2827 = vmul.f32 %v2774, %v2795
        %v2828 = vmul.f32 %v2770, %v2796
        %v2829 = vmul.f32 %v2766, %v2797
        %v2830 = vmul.f32 %v2762, %v2798
        %v2831 = vmul.f32 %v2758, %v2799
        %v2832 = vmul.f32 %v2787, %v2792
        %v2833 = vmul.f32 %v2783, %v2793
        %v2834 = vmul.f32 %v2779, %v2794
        %v2835 = vmul.f32 %v2775, %v2795
        %v2836 = vmul.f32 %v2771, %v2796
        %v2837 = vmul.f32 %v2767, %v2797
        %v2838 = vmul.f32 %v2763, %v2798
        %v2839 = vmul.f32 %v2759, %v2799
        %2840 = vrot.lane.b32.xlu0 %v2258, 32
        %v2841 = vpop.permute.xlu0 %2840
        %2842 = vrot.lane.b32.xlu0 %v2261, 32
        %v2843 = vpop.permute.xlu0 %2842
        %2844 = vrot.lane.b32.xlu0 %v2264, 32
        %v2845 = vpop.permute.xlu0 %2844
        %2846 = vrot.lane.b32.xlu0 %v2267, 32
        %v2847 = vpop.permute.xlu0 %2846
        %2848 = vrot.lane.b32.xlu0 %v2316, 32
        %v2849 = vpop.permute.xlu0 %2848
        %2850 = vrot.lane.b32.xlu0 %v2319, 32
        %v2851 = vpop.permute.xlu0 %2850
        %2852 = vrot.lane.b32.xlu0 %v2322, 32
        %v2853 = vpop.permute.xlu0 %2852
        %2854 = vrot.lane.b32.xlu0 %v2325, 32
        %v2855 = vpop.permute.xlu0 %2854
        %2856 = vrot.lane.b32.xlu0 %v2374, 32
        %v2857 = vpop.permute.xlu0 %2856
        %2858 = vrot.lane.b32.xlu0 %v2377, 32
        %v2859 = vpop.permute.xlu0 %2858
        %2860 = vrot.lane.b32.xlu0 %v2380, 32
        %v2861 = vpop.permute.xlu0 %2860
        %2862 = vrot.lane.b32.xlu0 %v2383, 32
        %v2863 = vpop.permute.xlu0 %2862
        %2864 = vrot.lane.b32.xlu0 %v2432, 32
        %v2865 = vpop.permute.xlu0 %2864
        %2866 = vrot.lane.b32.xlu0 %v2435, 32
        %v2867 = vpop.permute.xlu0 %2866
        %2868 = vrot.lane.b32.xlu0 %v2438, 32
        %v2869 = vpop.permute.xlu0 %2868
        %2870 = vrot.lane.b32.xlu0 %v2441, 32
        %v2871 = vpop.permute.xlu0 %2870
        %2872 = vrot.lane.b32.xlu0 %v2490, 32
        %v2873 = vpop.permute.xlu0 %2872
        %2874 = vrot.lane.b32.xlu0 %v2493, 32
        %v2875 = vpop.permute.xlu0 %2874
        %2876 = vrot.lane.b32.xlu0 %v2496, 32
        %v2877 = vpop.permute.xlu0 %2876
        %2878 = vrot.lane.b32.xlu0 %v2499, 32
        %v2879 = vpop.permute.xlu0 %2878
        %2880 = vrot.lane.b32.xlu0 %v2548, 32
        %v2881 = vpop.permute.xlu0 %2880
        %2882 = vrot.lane.b32.xlu0 %v2551, 32
        %v2883 = vpop.permute.xlu0 %2882
        %2884 = vrot.lane.b32.xlu0 %v2554, 32
        %v2885 = vpop.permute.xlu0 %2884
        %2886 = vrot.lane.b32.xlu0 %v2557, 32
        %v2887 = vpop.permute.xlu0 %2886
        %2888 = vrot.lane.b32.xlu0 %v2606, 32
        %v2889 = vpop.permute.xlu0 %2888
        %2890 = vrot.lane.b32.xlu0 %v2609, 32
        %v2891 = vpop.permute.xlu0 %2890
        %2892 = vrot.lane.b32.xlu0 %v2612, 32
        %v2893 = vpop.permute.xlu0 %2892
        %2894 = vrot.lane.b32.xlu0 %v2615, 32
        %v2895 = vpop.permute.xlu0 %2894
        %2896 = vrot.lane.b32.xlu0 %v2664, 32
        %v2897 = vpop.permute.xlu0 %2896
        %2898 = vrot.lane.b32.xlu0 %v2667, 32
        %v2899 = vpop.permute.xlu0 %2898
        %2900 = vrot.lane.b32.xlu0 %v2670, 32
        %v2901 = vpop.permute.xlu0 %2900
        %2902 = vrot.lane.b32.xlu0 %v2673, 32
        %v2903 = vpop.permute.xlu0 %2902
        %vm2904 = vcmp.lt.s32.totalorder %v1421, 32
        %v2905 = vsel %vm2904, %v2889, %v2897
        %v2906 = vsel %vm2904, %v2891, %v2899
        %v2907 = vsel %vm2904, %v2893, %v2901
        %v2908 = vsel %vm2904, %v2895, %v2903
        %v2909 = vsel %vm2904, %v2881, %v2889
        %v2910 = vsel %vm2904, %v2883, %v2891
        %v2911 = vsel %vm2904, %v2885, %v2893
        %v2912 = vsel %vm2904, %v2887, %v2895
        %v2913 = vsel %vm2904, %v2873, %v2881
        %v2914 = vsel %vm2904, %v2875, %v2883
        %v2915 = vsel %vm2904, %v2877, %v2885
        %v2916 = vsel %vm2904, %v2879, %v2887
        %v2917 = vsel %vm2904, %v2865, %v2873
        %v2918 = vsel %vm2904, %v2867, %v2875
        %v2919 = vsel %vm2904, %v2869, %v2877
        %v2920 = vsel %vm2904, %v2871, %v2879
        %v2921 = vsel %vm2904, %v2857, %v2865
        %v2922 = vsel %vm2904, %v2859, %v2867
        %v2923 = vsel %vm2904, %v2861, %v2869
        %v2924 = vsel %vm2904, %v2863, %v2871
        %v2925 = vsel %vm2904, %v2849, %v2857
        %v2926 = vsel %vm2904, %v2851, %v2859
        %v2927 = vsel %vm2904, %v2853, %v2861
        %v2928 = vsel %vm2904, %v2855, %v2863
        %v2929 = vsel %vm2904, %v2841, %v2849
        %v2930 = vsel %vm2904, %v2843, %v2851
        %v2931 = vsel %vm2904, %v2845, %v2853
        %v2932 = vsel %vm2904, %v2847, %v2855
        %v2933 = vsel %vm2904, %v2897, %v2841
        %v2934 = vsel %vm2904, %v2899, %v2843
        %v2935 = vsel %vm2904, %v2901, %v2845
        %v2936 = vsel %vm2904, %v2903, %v2847
        %s2937 = scalar_lea.vmem [#allocation13], 1
        %v2938 = vld [vmem:[%s2937] ss:$8 sm:$0xf]
        %v2939 = vld [vmem:[%s2937] ss:$8 sm:$0xf0]
        %v2940 = vor.u32 %v2938, %v2939
        %v2942 = vperm.slane %v2940, 0
        %v2943 = vperm.slane %v2940, 1
        %v2944 = vperm.slane %v2940, 2
        %v2945 = vperm.slane %v2940, 3
        %v2946 = vperm.slane %v2940, 4
        %v2947 = vperm.slane %v2940, 5
        %v2948 = vperm.slane %v2940, 6
        %v2949 = vperm.slane %v2940, 7
        %v2958 = vmul.f32 %v2933, %v2942
        %v2959 = vmul.f32 %v2929, %v2943
        %v2960 = vmul.f32 %v2925, %v2944
        %v2961 = vmul.f32 %v2921, %v2945
        %v2962 = vmul.f32 %v2917, %v2946
        %v2963 = vmul.f32 %v2913, %v2947
        %v2964 = vmul.f32 %v2909, %v2948
        %v2965 = vmul.f32 %v2905, %v2949
        %v2966 = vmul.f32 %v2934, %v2942
        %v2967 = vmul.f32 %v2930, %v2943
        %v2968 = vmul.f32 %v2926, %v2944
        %v2969 = vmul.f32 %v2922, %v2945
        %v2970 = vmul.f32 %v2918, %v2946
        %v2971 = vmul.f32 %v2914, %v2947
        %v2972 = vmul.f32 %v2910, %v2948
        %v2973 = vmul.f32 %v2906, %v2949
        %v2974 = vmul.f32 %v2935, %v2942
        %v2975 = vmul.f32 %v2931, %v2943
        %v2976 = vmul.f32 %v2927, %v2944
        %v2977 = vmul.f32 %v2923, %v2945
        %v2978 = vmul.f32 %v2919, %v2946
        %v2979 = vmul.f32 %v2915, %v2947
        %v2980 = vmul.f32 %v2911, %v2948
        %v2981 = vmul.f32 %v2907, %v2949
        %v2982 = vmul.f32 %v2936, %v2942
        %v2983 = vmul.f32 %v2932, %v2943
        %v2984 = vmul.f32 %v2928, %v2944
        %v2985 = vmul.f32 %v2924, %v2945
        %v2986 = vmul.f32 %v2920, %v2946
        %v2987 = vmul.f32 %v2916, %v2947
        %v2988 = vmul.f32 %v2912, %v2948
        %v2989 = vmul.f32 %v2908, %v2949
        %2990 = vrot.lane.b32.xlu0 %v2258, 31
        %v2991 = vpop.permute.xlu0 %2990
        %2992 = vrot.lane.b32.xlu0 %v2261, 31
        %v2993 = vpop.permute.xlu0 %2992
        %2994 = vrot.lane.b32.xlu0 %v2264, 31
        %v2995 = vpop.permute.xlu0 %2994
        %2996 = vrot.lane.b32.xlu0 %v2267, 31
        %v2997 = vpop.permute.xlu0 %2996
        %2998 = vrot.lane.b32.xlu0 %v2316, 31
        %v2999 = vpop.permute.xlu0 %2998
        %3000 = vrot.lane.b32.xlu0 %v2319, 31
        %v3001 = vpop.permute.xlu0 %3000
        %3002 = vrot.lane.b32.xlu0 %v2322, 31
        %v3003 = vpop.permute.xlu0 %3002
        %3004 = vrot.lane.b32.xlu0 %v2325, 31
        %v3005 = vpop.permute.xlu0 %3004
        %3006 = vrot.lane.b32.xlu0 %v2374, 31
        %v3007 = vpop.permute.xlu0 %3006
        %3008 = vrot.lane.b32.xlu0 %v2377, 31
        %v3009 = vpop.permute.xlu0 %3008
        %3010 = vrot.lane.b32.xlu0 %v2380, 31
        %v3011 = vpop.permute.xlu0 %3010
        %3012 = vrot.lane.b32.xlu0 %v2383, 31
        %v3013 = vpop.permute.xlu0 %3012
        %3014 = vrot.lane.b32.xlu0 %v2432, 31
        %v3015 = vpop.permute.xlu0 %3014
        %3016 = vrot.lane.b32.xlu0 %v2435, 31
        %v3017 = vpop.permute.xlu0 %3016
        %3018 = vrot.lane.b32.xlu0 %v2438, 31
        %v3019 = vpop.permute.xlu0 %3018
        %3020 = vrot.lane.b32.xlu0 %v2441, 31
        %v3021 = vpop.permute.xlu0 %3020
        %3022 = vrot.lane.b32.xlu0 %v2490, 31
        %v3023 = vpop.permute.xlu0 %3022
        %3024 = vrot.lane.b32.xlu0 %v2493, 31
        %v3025 = vpop.permute.xlu0 %3024
        %3026 = vrot.lane.b32.xlu0 %v2496, 31
        %v3027 = vpop.permute.xlu0 %3026
        %3028 = vrot.lane.b32.xlu0 %v2499, 31
        %v3029 = vpop.permute.xlu0 %3028
        %3030 = vrot.lane.b32.xlu0 %v2548, 31
        %v3031 = vpop.permute.xlu0 %3030
        %3032 = vrot.lane.b32.xlu0 %v2551, 31
        %v3033 = vpop.permute.xlu0 %3032
        %3034 = vrot.lane.b32.xlu0 %v2554, 31
        %v3035 = vpop.permute.xlu0 %3034
        %3036 = vrot.lane.b32.xlu0 %v2557, 31
        %v3037 = vpop.permute.xlu0 %3036
        %3038 = vrot.lane.b32.xlu0 %v2606, 31
        %v3039 = vpop.permute.xlu0 %3038
        %3040 = vrot.lane.b32.xlu0 %v2609, 31
        %v3041 = vpop.permute.xlu0 %3040
        %3042 = vrot.lane.b32.xlu0 %v2612, 31
        %v3043 = vpop.permute.xlu0 %3042
        %3044 = vrot.lane.b32.xlu0 %v2615, 31
        %v3045 = vpop.permute.xlu0 %3044
        %3046 = vrot.lane.b32.xlu0 %v2664, 31
        %v3047 = vpop.permute.xlu0 %3046
        %3048 = vrot.lane.b32.xlu0 %v2667, 31
        %v3049 = vpop.permute.xlu0 %3048
        %3050 = vrot.lane.b32.xlu0 %v2670, 31
        %v3051 = vpop.permute.xlu0 %3050
        %3052 = vrot.lane.b32.xlu0 %v2673, 31
        %v3053 = vpop.permute.xlu0 %3052
        %vm3054 = vcmp.lt.s32.totalorder %v1421, 31
        %v3055 = vsel %vm3054, %v3039, %v3047
        %v3056 = vsel %vm3054, %v3041, %v3049
        %v3057 = vsel %vm3054, %v3043, %v3051
        %v3058 = vsel %vm3054, %v3045, %v3053
        %v3059 = vsel %vm3054, %v3031, %v3039
        %v3060 = vsel %vm3054, %v3033, %v3041
        %v3061 = vsel %vm3054, %v3035, %v3043
        %v3062 = vsel %vm3054, %v3037, %v3045
        %v3063 = vsel %vm3054, %v3023, %v3031
        %v3064 = vsel %vm3054, %v3025, %v3033
        %v3065 = vsel %vm3054, %v3027, %v3035
        %v3066 = vsel %vm3054, %v3029, %v3037
        %v3067 = vsel %vm3054, %v3015, %v3023
        %v3068 = vsel %vm3054, %v3017, %v3025
        %v3069 = vsel %vm3054, %v3019, %v3027
        %v3070 = vsel %vm3054, %v3021, %v3029
        %v3071 = vsel %vm3054, %v3007, %v3015
        %v3072 = vsel %vm3054, %v3009, %v3017
        %v3073 = vsel %vm3054, %v3011, %v3019
        %v3074 = vsel %vm3054, %v3013, %v3021
        %v3075 = vsel %vm3054, %v2999, %v3007
        %v3076 = vsel %vm3054, %v3001, %v3009
        %v3077 = vsel %vm3054, %v3003, %v3011
        %v3078 = vsel %vm3054, %v3005, %v3013
        %v3079 = vsel %vm3054, %v2991, %v2999
        %v3080 = vsel %vm3054, %v2993, %v3001
        %v3081 = vsel %vm3054, %v2995, %v3003
        %v3082 = vsel %vm3054, %v2997, %v3005
        %v3083 = vsel %vm3054, %v3047, %v2991
        %v3084 = vsel %vm3054, %v3049, %v2993
        %v3085 = vsel %vm3054, %v3051, %v2995
        %v3086 = vsel %vm3054, %v3053, %v2997
        %s3087 = scalar_lea.vmem [#allocation13], 2
        %v3088 = vld [vmem:[%s3087] ss:$8 sm:$0xf]
        %v3089 = vld [vmem:[%s3087] ss:$8 sm:$0xf0]
        %v3090 = vor.u32 %v3088, %v3089
        %v3092 = vperm.slane %v3090, 0
        %v3093 = vperm.slane %v3090, 1
        %v3094 = vperm.slane %v3090, 2
        %v3095 = vperm.slane %v3090, 3
        %v3096 = vperm.slane %v3090, 4
        %v3097 = vperm.slane %v3090, 5
        %v3098 = vperm.slane %v3090, 6
        %v3099 = vperm.slane %v3090, 7
        %v3108 = vmul.f32 %v3083, %v3092
        %v3109 = vmul.f32 %v3079, %v3093
        %v3110 = vmul.f32 %v3075, %v3094
        %v3111 = vmul.f32 %v3071, %v3095
        %v3112 = vmul.f32 %v3067, %v3096
        %v3113 = vmul.f32 %v3063, %v3097
        %v3114 = vmul.f32 %v3059, %v3098
        %v3115 = vmul.f32 %v3055, %v3099
        %v3116 = vmul.f32 %v3084, %v3092
        %v3117 = vmul.f32 %v3080, %v3093
        %v3118 = vmul.f32 %v3076, %v3094
        %v3119 = vmul.f32 %v3072, %v3095
        %v3120 = vmul.f32 %v3068, %v3096
        %v3121 = vmul.f32 %v3064, %v3097
        %v3122 = vmul.f32 %v3060, %v3098
        %v3123 = vmul.f32 %v3056, %v3099
        %v3124 = vmul.f32 %v3085, %v3092
        %v3125 = vmul.f32 %v3081, %v3093
        %v3126 = vmul.f32 %v3077, %v3094
        %v3127 = vmul.f32 %v3073, %v3095
        %v3128 = vmul.f32 %v3069, %v3096
        %v3129 = vmul.f32 %v3065, %v3097
        %v3130 = vmul.f32 %v3061, %v3098
        %v3131 = vmul.f32 %v3057, %v3099
        %v3132 = vmul.f32 %v3086, %v3092
        %v3133 = vmul.f32 %v3082, %v3093
        %v3134 = vmul.f32 %v3078, %v3094
        %v3135 = vmul.f32 %v3074, %v3095
        %v3136 = vmul.f32 %v3070, %v3096
        %v3137 = vmul.f32 %v3066, %v3097
        %v3138 = vmul.f32 %v3062, %v3098
        %v3139 = vmul.f32 %v3058, %v3099
        %3140 = vrot.lane.b32.xlu0 %v2258, 1
        %v3141 = vpop.permute.xlu0 %3140
        %3142 = vrot.lane.b32.xlu0 %v2261, 1
        %v3143 = vpop.permute.xlu0 %3142
        %3144 = vrot.lane.b32.xlu0 %v2264, 1
        %v3145 = vpop.permute.xlu0 %3144
        %3146 = vrot.lane.b32.xlu0 %v2267, 1
        %v3147 = vpop.permute.xlu0 %3146
        %3148 = vrot.lane.b32.xlu0 %v2316, 1
        %v3149 = vpop.permute.xlu0 %3148
        %3150 = vrot.lane.b32.xlu0 %v2319, 1
        %v3151 = vpop.permute.xlu0 %3150
        %3152 = vrot.lane.b32.xlu0 %v2322, 1
        %v3153 = vpop.permute.xlu0 %3152
        %3154 = vrot.lane.b32.xlu0 %v2325, 1
        %v3155 = vpop.permute.xlu0 %3154
        %3156 = vrot.lane.b32.xlu0 %v2374, 1
        %v3157 = vpop.permute.xlu0 %3156
        %3158 = vrot.lane.b32.xlu0 %v2377, 1
        %v3159 = vpop.permute.xlu0 %3158
        %3160 = vrot.lane.b32.xlu0 %v2380, 1
        %v3161 = vpop.permute.xlu0 %3160
        %3162 = vrot.lane.b32.xlu0 %v2383, 1
        %v3163 = vpop.permute.xlu0 %3162
        %3164 = vrot.lane.b32.xlu0 %v2432, 1
        %v3165 = vpop.permute.xlu0 %3164
        %3166 = vrot.lane.b32.xlu0 %v2435, 1
        %v3167 = vpop.permute.xlu0 %3166
        %3168 = vrot.lane.b32.xlu0 %v2438, 1
        %v3169 = vpop.permute.xlu0 %3168
        %3170 = vrot.lane.b32.xlu0 %v2441, 1
        %v3171 = vpop.permute.xlu0 %3170
        %3172 = vrot.lane.b32.xlu0 %v2490, 1
        %v3173 = vpop.permute.xlu0 %3172
        %3174 = vrot.lane.b32.xlu0 %v2493, 1
        %v3175 = vpop.permute.xlu0 %3174
        %3176 = vrot.lane.b32.xlu0 %v2496, 1
        %v3177 = vpop.permute.xlu0 %3176
        %3178 = vrot.lane.b32.xlu0 %v2499, 1
        %v3179 = vpop.permute.xlu0 %3178
        %3180 = vrot.lane.b32.xlu0 %v2548, 1
        %v3181 = vpop.permute.xlu0 %3180
        %3182 = vrot.lane.b32.xlu0 %v2551, 1
        %v3183 = vpop.permute.xlu0 %3182
        %3184 = vrot.lane.b32.xlu0 %v2554, 1
        %v3185 = vpop.permute.xlu0 %3184
        %3186 = vrot.lane.b32.xlu0 %v2557, 1
        %v3187 = vpop.permute.xlu0 %3186
        %3188 = vrot.lane.b32.xlu0 %v2606, 1
        %v3189 = vpop.permute.xlu0 %3188
        %3190 = vrot.lane.b32.xlu0 %v2609, 1
        %v3191 = vpop.permute.xlu0 %3190
        %3192 = vrot.lane.b32.xlu0 %v2612, 1
        %v3193 = vpop.permute.xlu0 %3192
        %3194 = vrot.lane.b32.xlu0 %v2615, 1
        %v3195 = vpop.permute.xlu0 %3194
        %3196 = vrot.lane.b32.xlu0 %v2664, 1
        %v3197 = vpop.permute.xlu0 %3196
        %3198 = vrot.lane.b32.xlu0 %v2667, 1
        %v3199 = vpop.permute.xlu0 %3198
        %3200 = vrot.lane.b32.xlu0 %v2670, 1
        %v3201 = vpop.permute.xlu0 %3200
        %3202 = vrot.lane.b32.xlu0 %v2673, 1
        %v3203 = vpop.permute.xlu0 %3202
        %v3204 = vsel %vm1541, %v3189, %v3197
        %v3205 = vsel %vm1541, %v3191, %v3199
        %v3206 = vsel %vm1541, %v3193, %v3201
        %v3207 = vsel %vm1541, %v3195, %v3203
        %v3208 = vsel %vm1541, %v3181, %v3189
        %v3209 = vsel %vm1541, %v3183, %v3191
        %v3210 = vsel %vm1541, %v3185, %v3193
        %v3211 = vsel %vm1541, %v3187, %v3195
        %v3212 = vsel %vm1541, %v3173, %v3181
        %v3213 = vsel %vm1541, %v3175, %v3183
        %v3214 = vsel %vm1541, %v3177, %v3185
        %v3215 = vsel %vm1541, %v3179, %v3187
        %v3216 = vsel %vm1541, %v3165, %v3173
        %v3217 = vsel %vm1541, %v3167, %v3175
        %v3218 = vsel %vm1541, %v3169, %v3177
        %v3219 = vsel %vm1541, %v3171, %v3179
        %v3220 = vsel %vm1541, %v3157, %v3165
        %v3221 = vsel %vm1541, %v3159, %v3167
        %v3222 = vsel %vm1541, %v3161, %v3169
        %v3223 = vsel %vm1541, %v3163, %v3171
        %v3224 = vsel %vm1541, %v3149, %v3157
        %v3225 = vsel %vm1541, %v3151, %v3159
        %v3226 = vsel %vm1541, %v3153, %v3161
        %v3227 = vsel %vm1541, %v3155, %v3163
        %v3228 = vsel %vm1541, %v3141, %v3149
        %v3229 = vsel %vm1541, %v3143, %v3151
        %v3230 = vsel %vm1541, %v3145, %v3153
        %v3231 = vsel %vm1541, %v3147, %v3155
        %v3232 = vsel %vm1541, %v3197, %v3141
        %v3233 = vsel %vm1541, %v3199, %v3143
        %v3234 = vsel %vm1541, %v3201, %v3145
        %v3235 = vsel %vm1541, %v3203, %v3147
        %s3236 = scalar_lea.vmem [#allocation13], 3
        %v3237 = vld [vmem:[%s3236] ss:$8 sm:$0xf]
        %v3238 = vld [vmem:[%s3236] ss:$8 sm:$0xf0]
        %v3239 = vor.u32 %v3237, %v3238
        %v3241 = vperm.slane %v3239, 0
        %v3242 = vperm.slane %v3239, 1
        %v3243 = vperm.slane %v3239, 2
        %v3244 = vperm.slane %v3239, 3
        %v3245 = vperm.slane %v3239, 4
        %v3246 = vperm.slane %v3239, 5
        %v3247 = vperm.slane %v3239, 6
        %v3248 = vperm.slane %v3239, 7
        %v3257 = vmul.f32 %v3232, %v3241
        %v3258 = vmul.f32 %v3228, %v3242
        %v3259 = vmul.f32 %v3224, %v3243
        %v3260 = vmul.f32 %v3220, %v3244
        %v3261 = vmul.f32 %v3216, %v3245
        %v3262 = vmul.f32 %v3212, %v3246
        %v3263 = vmul.f32 %v3208, %v3247
        %v3264 = vmul.f32 %v3204, %v3248
        %v3265 = vmul.f32 %v3233, %v3241
        %v3266 = vmul.f32 %v3229, %v3242
        %v3267 = vmul.f32 %v3225, %v3243
        %v3268 = vmul.f32 %v3221, %v3244
        %v3269 = vmul.f32 %v3217, %v3245
        %v3270 = vmul.f32 %v3213, %v3246
        %v3271 = vmul.f32 %v3209, %v3247
        %v3272 = vmul.f32 %v3205, %v3248
        %v3273 = vmul.f32 %v3234, %v3241
        %v3274 = vmul.f32 %v3230, %v3242
        %v3275 = vmul.f32 %v3226, %v3243
        %v3276 = vmul.f32 %v3222, %v3244
        %v3277 = vmul.f32 %v3218, %v3245
        %v3278 = vmul.f32 %v3214, %v3246
        %v3279 = vmul.f32 %v3210, %v3247
        %v3280 = vmul.f32 %v3206, %v3248
        %v3281 = vmul.f32 %v3235, %v3241
        %v3282 = vmul.f32 %v3231, %v3242
        %v3283 = vmul.f32 %v3227, %v3243
        %v3284 = vmul.f32 %v3223, %v3244
        %v3285 = vmul.f32 %v3219, %v3245
        %v3286 = vmul.f32 %v3215, %v3246
        %v3287 = vmul.f32 %v3211, %v3247
        %v3288 = vmul.f32 %v3207, %v3248
        %3289 = vrot.lane.b32.xlu0 %v2258, 127
        %v3290 = vpop.permute.xlu0 %3289
        %3291 = vrot.lane.b32.xlu0 %v2261, 127
        %v3292 = vpop.permute.xlu0 %3291
        %3293 = vrot.lane.b32.xlu0 %v2264, 127
        %v3294 = vpop.permute.xlu0 %3293
        %3295 = vrot.lane.b32.xlu0 %v2267, 127
        %v3296 = vpop.permute.xlu0 %3295
        %3297 = vrot.lane.b32.xlu0 %v2316, 127
        %v3298 = vpop.permute.xlu0 %3297
        %3299 = vrot.lane.b32.xlu0 %v2319, 127
        %v3300 = vpop.permute.xlu0 %3299
        %3301 = vrot.lane.b32.xlu0 %v2322, 127
        %v3302 = vpop.permute.xlu0 %3301
        %3303 = vrot.lane.b32.xlu0 %v2325, 127
        %v3304 = vpop.permute.xlu0 %3303
        %3305 = vrot.lane.b32.xlu0 %v2374, 127
        %v3306 = vpop.permute.xlu0 %3305
        %3307 = vrot.lane.b32.xlu0 %v2377, 127
        %v3308 = vpop.permute.xlu0 %3307
        %3309 = vrot.lane.b32.xlu0 %v2380, 127
        %v3310 = vpop.permute.xlu0 %3309
        %3311 = vrot.lane.b32.xlu0 %v2383, 127
        %v3312 = vpop.permute.xlu0 %3311
        %3313 = vrot.lane.b32.xlu0 %v2432, 127
        %v3314 = vpop.permute.xlu0 %3313
        %3315 = vrot.lane.b32.xlu0 %v2435, 127
        %v3316 = vpop.permute.xlu0 %3315
        %3317 = vrot.lane.b32.xlu0 %v2438, 127
        %v3318 = vpop.permute.xlu0 %3317
        %3319 = vrot.lane.b32.xlu0 %v2441, 127
        %v3320 = vpop.permute.xlu0 %3319
        %3321 = vrot.lane.b32.xlu0 %v2490, 127
        %v3322 = vpop.permute.xlu0 %3321
        %3323 = vrot.lane.b32.xlu0 %v2493, 127
        %v3324 = vpop.permute.xlu0 %3323
        %3325 = vrot.lane.b32.xlu0 %v2496, 127
        %v3326 = vpop.permute.xlu0 %3325
        %3327 = vrot.lane.b32.xlu0 %v2499, 127
        %v3328 = vpop.permute.xlu0 %3327
        %3329 = vrot.lane.b32.xlu0 %v2548, 127
        %v3330 = vpop.permute.xlu0 %3329
        %3331 = vrot.lane.b32.xlu0 %v2551, 127
        %v3332 = vpop.permute.xlu0 %3331
        %3333 = vrot.lane.b32.xlu0 %v2554, 127
        %v3334 = vpop.permute.xlu0 %3333
        %3335 = vrot.lane.b32.xlu0 %v2557, 127
        %v3336 = vpop.permute.xlu0 %3335
        %3337 = vrot.lane.b32.xlu0 %v2606, 127
        %v3338 = vpop.permute.xlu0 %3337
        %3339 = vrot.lane.b32.xlu0 %v2609, 127
        %v3340 = vpop.permute.xlu0 %3339
        %3341 = vrot.lane.b32.xlu0 %v2612, 127
        %v3342 = vpop.permute.xlu0 %3341
        %3343 = vrot.lane.b32.xlu0 %v2615, 127
        %v3344 = vpop.permute.xlu0 %3343
        %3345 = vrot.lane.b32.xlu0 %v2664, 127
        %v3346 = vpop.permute.xlu0 %3345
        %3347 = vrot.lane.b32.xlu0 %v2667, 127
        %v3348 = vpop.permute.xlu0 %3347
        %3349 = vrot.lane.b32.xlu0 %v2670, 127
        %v3350 = vpop.permute.xlu0 %3349
        %3351 = vrot.lane.b32.xlu0 %v2673, 127
        %v3352 = vpop.permute.xlu0 %3351
        %v3353 = vsel %vm1581, %v3338, %v3346
        %v3354 = vsel %vm1581, %v3340, %v3348
        %v3355 = vsel %vm1581, %v3342, %v3350
        %v3356 = vsel %vm1581, %v3344, %v3352
        %v3357 = vsel %vm1581, %v3330, %v3338
        %v3358 = vsel %vm1581, %v3332, %v3340
        %v3359 = vsel %vm1581, %v3334, %v3342
        %v3360 = vsel %vm1581, %v3336, %v3344
        %v3361 = vsel %vm1581, %v3322, %v3330
        %v3362 = vsel %vm1581, %v3324, %v3332
        %v3363 = vsel %vm1581, %v3326, %v3334
        %v3364 = vsel %vm1581, %v3328, %v3336
        %v3365 = vsel %vm1581, %v3314, %v3322
        %v3366 = vsel %vm1581, %v3316, %v3324
        %v3367 = vsel %vm1581, %v3318, %v3326
        %v3368 = vsel %vm1581, %v3320, %v3328
        %v3369 = vsel %vm1581, %v3306, %v3314
        %v3370 = vsel %vm1581, %v3308, %v3316
        %v3371 = vsel %vm1581, %v3310, %v3318
        %v3372 = vsel %vm1581, %v3312, %v3320
        %v3373 = vsel %vm1581, %v3298, %v3306
        %v3374 = vsel %vm1581, %v3300, %v3308
        %v3375 = vsel %vm1581, %v3302, %v3310
        %v3376 = vsel %vm1581, %v3304, %v3312
        %v3377 = vsel %vm1581, %v3290, %v3298
        %v3378 = vsel %vm1581, %v3292, %v3300
        %v3379 = vsel %vm1581, %v3294, %v3302
        %v3380 = vsel %vm1581, %v3296, %v3304
        %v3381 = vsel %vm1581, %v3346, %v3290
        %v3382 = vsel %vm1581, %v3348, %v3292
        %v3383 = vsel %vm1581, %v3350, %v3294
        %v3384 = vsel %vm1581, %v3352, %v3296
        %s3385 = scalar_lea.vmem [#allocation13], 5
        %v3386 = vld [vmem:[%s3385] ss:$8 sm:$0xf]
        %v3387 = vld [vmem:[%s3385] ss:$8 sm:$0xf0]
        %v3388 = vor.u32 %v3386, %v3387
        %v3390 = vperm.slane %v3388, 0
        %v3391 = vperm.slane %v3388, 1
        %v3392 = vperm.slane %v3388, 2
        %v3393 = vperm.slane %v3388, 3
        %v3394 = vperm.slane %v3388, 4
        %v3395 = vperm.slane %v3388, 5
        %v3396 = vperm.slane %v3388, 6
        %v3397 = vperm.slane %v3388, 7
        %v3406 = vmul.f32 %v3377, %v3390
        %v3407 = vmul.f32 %v3373, %v3391
        %v3408 = vmul.f32 %v3369, %v3392
        %v3409 = vmul.f32 %v3365, %v3393
        %v3410 = vmul.f32 %v3361, %v3394
        %v3411 = vmul.f32 %v3357, %v3395
        %v3412 = vmul.f32 %v3353, %v3396
        %v3413 = vmul.f32 %v3381, %v3397
        %v3414 = vmul.f32 %v3378, %v3390
        %v3415 = vmul.f32 %v3374, %v3391
        %v3416 = vmul.f32 %v3370, %v3392
        %v3417 = vmul.f32 %v3366, %v3393
        %v3418 = vmul.f32 %v3362, %v3394
        %v3419 = vmul.f32 %v3358, %v3395
        %v3420 = vmul.f32 %v3354, %v3396
        %v3421 = vmul.f32 %v3382, %v3397
        %v3422 = vmul.f32 %v3379, %v3390
        %v3423 = vmul.f32 %v3375, %v3391
        %v3424 = vmul.f32 %v3371, %v3392
        %v3425 = vmul.f32 %v3367, %v3393
        %v3426 = vmul.f32 %v3363, %v3394
        %v3427 = vmul.f32 %v3359, %v3395
        %v3428 = vmul.f32 %v3355, %v3396
        %v3429 = vmul.f32 %v3383, %v3397
        %v3430 = vmul.f32 %v3380, %v3390
        %v3431 = vmul.f32 %v3376, %v3391
        %v3432 = vmul.f32 %v3372, %v3392
        %v3433 = vmul.f32 %v3368, %v3393
        %v3434 = vmul.f32 %v3364, %v3394
        %v3435 = vmul.f32 %v3360, %v3395
        %v3436 = vmul.f32 %v3356, %v3396
        %v3437 = vmul.f32 %v3384, %v3397
        %3438 = vrot.lane.b32.xlu0 %v2258, 97
        %v3439 = vpop.permute.xlu0 %3438
        %3440 = vrot.lane.b32.xlu0 %v2261, 97
        %v3441 = vpop.permute.xlu0 %3440
        %3442 = vrot.lane.b32.xlu0 %v2264, 97
        %v3443 = vpop.permute.xlu0 %3442
        %3444 = vrot.lane.b32.xlu0 %v2267, 97
        %v3445 = vpop.permute.xlu0 %3444
        %3446 = vrot.lane.b32.xlu0 %v2316, 97
        %v3447 = vpop.permute.xlu0 %3446
        %3448 = vrot.lane.b32.xlu0 %v2319, 97
        %v3449 = vpop.permute.xlu0 %3448
        %3450 = vrot.lane.b32.xlu0 %v2322, 97
        %v3451 = vpop.permute.xlu0 %3450
        %3452 = vrot.lane.b32.xlu0 %v2325, 97
        %v3453 = vpop.permute.xlu0 %3452
        %3454 = vrot.lane.b32.xlu0 %v2374, 97
        %v3455 = vpop.permute.xlu0 %3454
        %3456 = vrot.lane.b32.xlu0 %v2377, 97
        %v3457 = vpop.permute.xlu0 %3456
        %3458 = vrot.lane.b32.xlu0 %v2380, 97
        %v3459 = vpop.permute.xlu0 %3458
        %3460 = vrot.lane.b32.xlu0 %v2383, 97
        %v3461 = vpop.permute.xlu0 %3460
        %3462 = vrot.lane.b32.xlu0 %v2432, 97
        %v3463 = vpop.permute.xlu0 %3462
        %3464 = vrot.lane.b32.xlu0 %v2435, 97
        %v3465 = vpop.permute.xlu0 %3464
        %3466 = vrot.lane.b32.xlu0 %v2438, 97
        %v3467 = vpop.permute.xlu0 %3466
        %3468 = vrot.lane.b32.xlu0 %v2441, 97
        %v3469 = vpop.permute.xlu0 %3468
        %3470 = vrot.lane.b32.xlu0 %v2490, 97
        %v3471 = vpop.permute.xlu0 %3470
        %3472 = vrot.lane.b32.xlu0 %v2493, 97
        %v3473 = vpop.permute.xlu0 %3472
        %3474 = vrot.lane.b32.xlu0 %v2496, 97
        %v3475 = vpop.permute.xlu0 %3474
        %3476 = vrot.lane.b32.xlu0 %v2499, 97
        %v3477 = vpop.permute.xlu0 %3476
        %3478 = vrot.lane.b32.xlu0 %v2548, 97
        %v3479 = vpop.permute.xlu0 %3478
        %3480 = vrot.lane.b32.xlu0 %v2551, 97
        %v3481 = vpop.permute.xlu0 %3480
        %3482 = vrot.lane.b32.xlu0 %v2554, 97
        %v3483 = vpop.permute.xlu0 %3482
        %3484 = vrot.lane.b32.xlu0 %v2557, 97
        %v3485 = vpop.permute.xlu0 %3484
        %3486 = vrot.lane.b32.xlu0 %v2606, 97
        %v3487 = vpop.permute.xlu0 %3486
        %3488 = vrot.lane.b32.xlu0 %v2609, 97
        %v3489 = vpop.permute.xlu0 %3488
        %3490 = vrot.lane.b32.xlu0 %v2612, 97
        %v3491 = vpop.permute.xlu0 %3490
        %3492 = vrot.lane.b32.xlu0 %v2615, 97
        %v3493 = vpop.permute.xlu0 %3492
        %3494 = vrot.lane.b32.xlu0 %v2664, 97
        %v3495 = vpop.permute.xlu0 %3494
        %3496 = vrot.lane.b32.xlu0 %v2667, 97
        %v3497 = vpop.permute.xlu0 %3496
        %3498 = vrot.lane.b32.xlu0 %v2670, 97
        %v3499 = vpop.permute.xlu0 %3498
        %3500 = vrot.lane.b32.xlu0 %v2673, 97
        %v3501 = vpop.permute.xlu0 %3500
        %vm3502 = vcmp.lt.s32.totalorder %v1421, 97
        %v3503 = vsel %vm3502, %v3487, %v3495
        %v3504 = vsel %vm3502, %v3489, %v3497
        %v3505 = vsel %vm3502, %v3491, %v3499
        %v3506 = vsel %vm3502, %v3493, %v3501
        %v3507 = vsel %vm3502, %v3479, %v3487
        %v3508 = vsel %vm3502, %v3481, %v3489
        %v3509 = vsel %vm3502, %v3483, %v3491
        %v3510 = vsel %vm3502, %v3485, %v3493
        %v3511 = vsel %vm3502, %v3471, %v3479
        %v3512 = vsel %vm3502, %v3473, %v3481
        %v3513 = vsel %vm3502, %v3475, %v3483
        %v3514 = vsel %vm3502, %v3477, %v3485
        %v3515 = vsel %vm3502, %v3463, %v3471
        %v3516 = vsel %vm3502, %v3465, %v3473
        %v3517 = vsel %vm3502, %v3467, %v3475
        %v3518 = vsel %vm3502, %v3469, %v3477
        %v3519 = vsel %vm3502, %v3455, %v3463
        %v3520 = vsel %vm3502, %v3457, %v3465
        %v3521 = vsel %vm3502, %v3459, %v3467
        %v3522 = vsel %vm3502, %v3461, %v3469
        %v3523 = vsel %vm3502, %v3447, %v3455
        %v3524 = vsel %vm3502, %v3449, %v3457
        %v3525 = vsel %vm3502, %v3451, %v3459
        %v3526 = vsel %vm3502, %v3453, %v3461
        %v3527 = vsel %vm3502, %v3439, %v3447
        %v3528 = vsel %vm3502, %v3441, %v3449
        %v3529 = vsel %vm3502, %v3443, %v3451
        %v3530 = vsel %vm3502, %v3445, %v3453
        %v3531 = vsel %vm3502, %v3495, %v3439
        %v3532 = vsel %vm3502, %v3497, %v3441
        %v3533 = vsel %vm3502, %v3499, %v3443
        %v3534 = vsel %vm3502, %v3501, %v3445
        %s3535 = scalar_lea.vmem [#allocation13], 6
        %v3536 = vld [vmem:[%s3535] ss:$8 sm:$0xf]
        %v3537 = vld [vmem:[%s3535] ss:$8 sm:$0xf0]
        %v3538 = vor.u32 %v3536, %v3537
        %v3540 = vperm.slane %v3538, 0
        %v3541 = vperm.slane %v3538, 1
        %v3542 = vperm.slane %v3538, 2
        %v3543 = vperm.slane %v3538, 3
        %v3544 = vperm.slane %v3538, 4
        %v3545 = vperm.slane %v3538, 5
        %v3546 = vperm.slane %v3538, 6
        %v3547 = vperm.slane %v3538, 7
        %v3556 = vmul.f32 %v3527, %v3540
        %v3557 = vmul.f32 %v3523, %v3541
        %v3558 = vmul.f32 %v3519, %v3542
        %v3559 = vmul.f32 %v3515, %v3543
        %v3560 = vmul.f32 %v3511, %v3544
        %v3561 = vmul.f32 %v3507, %v3545
        %v3562 = vmul.f32 %v3503, %v3546
        %v3563 = vmul.f32 %v3531, %v3547
        %v3564 = vmul.f32 %v3528, %v3540
        %v3565 = vmul.f32 %v3524, %v3541
        %v3566 = vmul.f32 %v3520, %v3542
        %v3567 = vmul.f32 %v3516, %v3543
        %v3568 = vmul.f32 %v3512, %v3544
        %v3569 = vmul.f32 %v3508, %v3545
        %v3570 = vmul.f32 %v3504, %v3546
        %v3571 = vmul.f32 %v3532, %v3547
        %v3572 = vmul.f32 %v3529, %v3540
        %v3573 = vmul.f32 %v3525, %v3541
        %v3574 = vmul.f32 %v3521, %v3542
        %v3575 = vmul.f32 %v3517, %v3543
        %v3576 = vmul.f32 %v3513, %v3544
        %v3577 = vmul.f32 %v3509, %v3545
        %v3578 = vmul.f32 %v3505, %v3546
        %v3579 = vmul.f32 %v3533, %v3547
        %v3580 = vmul.f32 %v3530, %v3540
        %v3581 = vmul.f32 %v3526, %v3541
        %v3582 = vmul.f32 %v3522, %v3542
        %v3583 = vmul.f32 %v3518, %v3543
        %v3584 = vmul.f32 %v3514, %v3544
        %v3585 = vmul.f32 %v3510, %v3545
        %v3586 = vmul.f32 %v3506, %v3546
        %v3587 = vmul.f32 %v3534, %v3547
        %3588 = vrot.lane.b32.xlu0 %v2258, 96
        %v3589 = vpop.permute.xlu0 %3588
        %3590 = vrot.lane.b32.xlu0 %v2261, 96
        %v3591 = vpop.permute.xlu0 %3590
        %3592 = vrot.lane.b32.xlu0 %v2264, 96
        %v3593 = vpop.permute.xlu0 %3592
        %3594 = vrot.lane.b32.xlu0 %v2267, 96
        %v3595 = vpop.permute.xlu0 %3594
        %3596 = vrot.lane.b32.xlu0 %v2316, 96
        %v3597 = vpop.permute.xlu0 %3596
        %3598 = vrot.lane.b32.xlu0 %v2319, 96
        %v3599 = vpop.permute.xlu0 %3598
        %3600 = vrot.lane.b32.xlu0 %v2322, 96
        %v3601 = vpop.permute.xlu0 %3600
        %3602 = vrot.lane.b32.xlu0 %v2325, 96
        %v3603 = vpop.permute.xlu0 %3602
        %3604 = vrot.lane.b32.xlu0 %v2374, 96
        %v3605 = vpop.permute.xlu0 %3604
        %3606 = vrot.lane.b32.xlu0 %v2377, 96
        %v3607 = vpop.permute.xlu0 %3606
        %3608 = vrot.lane.b32.xlu0 %v2380, 96
        %v3609 = vpop.permute.xlu0 %3608
        %3610 = vrot.lane.b32.xlu0 %v2383, 96
        %v3611 = vpop.permute.xlu0 %3610
        %3612 = vrot.lane.b32.xlu0 %v2432, 96
        %v3613 = vpop.permute.xlu0 %3612
        %3614 = vrot.lane.b32.xlu0 %v2435, 96
        %v3615 = vpop.permute.xlu0 %3614
        %3616 = vrot.lane.b32.xlu0 %v2438, 96
        %v3617 = vpop.permute.xlu0 %3616
        %3618 = vrot.lane.b32.xlu0 %v2441, 96
        %v3619 = vpop.permute.xlu0 %3618
        %3620 = vrot.lane.b32.xlu0 %v2490, 96
        %v3621 = vpop.permute.xlu0 %3620
        %3622 = vrot.lane.b32.xlu0 %v2493, 96
        %v3623 = vpop.permute.xlu0 %3622
        %3624 = vrot.lane.b32.xlu0 %v2496, 96
        %v3625 = vpop.permute.xlu0 %3624
        %3626 = vrot.lane.b32.xlu0 %v2499, 96
        %v3627 = vpop.permute.xlu0 %3626
        %3628 = vrot.lane.b32.xlu0 %v2548, 96
        %v3629 = vpop.permute.xlu0 %3628
        %3630 = vrot.lane.b32.xlu0 %v2551, 96
        %v3631 = vpop.permute.xlu0 %3630
        %3632 = vrot.lane.b32.xlu0 %v2554, 96
        %v3633 = vpop.permute.xlu0 %3632
        %3634 = vrot.lane.b32.xlu0 %v2557, 96
        %v3635 = vpop.permute.xlu0 %3634
        %3636 = vrot.lane.b32.xlu0 %v2606, 96
        %v3637 = vpop.permute.xlu0 %3636
        %3638 = vrot.lane.b32.xlu0 %v2609, 96
        %v3639 = vpop.permute.xlu0 %3638
        %3640 = vrot.lane.b32.xlu0 %v2612, 96
        %v3641 = vpop.permute.xlu0 %3640
        %3642 = vrot.lane.b32.xlu0 %v2615, 96
        %v3643 = vpop.permute.xlu0 %3642
        %3644 = vrot.lane.b32.xlu0 %v2664, 96
        %v3645 = vpop.permute.xlu0 %3644
        %3646 = vrot.lane.b32.xlu0 %v2667, 96
        %v3647 = vpop.permute.xlu0 %3646
        %3648 = vrot.lane.b32.xlu0 %v2670, 96
        %v3649 = vpop.permute.xlu0 %3648
        %3650 = vrot.lane.b32.xlu0 %v2673, 96
        %v3651 = vpop.permute.xlu0 %3650
        %vm3652 = vcmp.lt.s32.totalorder %v1421, 96
        %v3653 = vsel %vm3652, %v3637, %v3645
        %v3654 = vsel %vm3652, %v3639, %v3647
        %v3655 = vsel %vm3652, %v3641, %v3649
        %v3656 = vsel %vm3652, %v3643, %v3651
        %v3657 = vsel %vm3652, %v3629, %v3637
        %v3658 = vsel %vm3652, %v3631, %v3639
        %v3659 = vsel %vm3652, %v3633, %v3641
        %v3660 = vsel %vm3652, %v3635, %v3643
        %v3661 = vsel %vm3652, %v3621, %v3629
        %v3662 = vsel %vm3652, %v3623, %v3631
        %v3663 = vsel %vm3652, %v3625, %v3633
        %v3664 = vsel %vm3652, %v3627, %v3635
        %v3665 = vsel %vm3652, %v3613, %v3621
        %v3666 = vsel %vm3652, %v3615, %v3623
        %v3667 = vsel %vm3652, %v3617, %v3625
        %v3668 = vsel %vm3652, %v3619, %v3627
        %v3669 = vsel %vm3652, %v3605, %v3613
        %v3670 = vsel %vm3652, %v3607, %v3615
        %v3671 = vsel %vm3652, %v3609, %v3617
        %v3672 = vsel %vm3652, %v3611, %v3619
        %v3673 = vsel %vm3652, %v3597, %v3605
        %v3674 = vsel %vm3652, %v3599, %v3607
        %v3675 = vsel %vm3652, %v3601, %v3609
        %v3676 = vsel %vm3652, %v3603, %v3611
        %v3677 = vsel %vm3652, %v3589, %v3597
        %v3678 = vsel %vm3652, %v3591, %v3599
        %v3679 = vsel %vm3652, %v3593, %v3601
        %v3680 = vsel %vm3652, %v3595, %v3603
        %v3681 = vsel %vm3652, %v3645, %v3589
        %v3682 = vsel %vm3652, %v3647, %v3591
        %v3683 = vsel %vm3652, %v3649, %v3593
        %v3684 = vsel %vm3652, %v3651, %v3595
        %s3685 = scalar_lea.vmem [#allocation13], 7
        %v3686 = vld [vmem:[%s3685] ss:$8 sm:$0xf]
        %v3687 = vld [vmem:[%s3685] ss:$8 sm:$0xf0]
        %v3688 = vor.u32 %v3686, %v3687
        %v3690 = vperm.slane %v3688, 0
        %v3691 = vperm.slane %v3688, 1
        %v3692 = vperm.slane %v3688, 2
        %v3693 = vperm.slane %v3688, 3
        %v3694 = vperm.slane %v3688, 4
        %v3695 = vperm.slane %v3688, 5
        %v3696 = vperm.slane %v3688, 6
        %v3697 = vperm.slane %v3688, 7
        %v3706 = vmul.f32 %v3677, %v3690
        %v3707 = vmul.f32 %v3673, %v3691
        %v3708 = vmul.f32 %v3669, %v3692
        %v3709 = vmul.f32 %v3665, %v3693
        %v3710 = vmul.f32 %v3661, %v3694
        %v3711 = vmul.f32 %v3657, %v3695
        %v3712 = vmul.f32 %v3653, %v3696
        %v3713 = vmul.f32 %v3681, %v3697
        %v3714 = vmul.f32 %v3678, %v3690
        %v3715 = vmul.f32 %v3674, %v3691
        %v3716 = vmul.f32 %v3670, %v3692
        %v3717 = vmul.f32 %v3666, %v3693
        %v3718 = vmul.f32 %v3662, %v3694
        %v3719 = vmul.f32 %v3658, %v3695
        %v3720 = vmul.f32 %v3654, %v3696
        %v3721 = vmul.f32 %v3682, %v3697
        %v3722 = vmul.f32 %v3679, %v3690
        %v3723 = vmul.f32 %v3675, %v3691
        %v3724 = vmul.f32 %v3671, %v3692
        %v3725 = vmul.f32 %v3667, %v3693
        %v3726 = vmul.f32 %v3663, %v3694
        %v3727 = vmul.f32 %v3659, %v3695
        %v3728 = vmul.f32 %v3655, %v3696
        %v3729 = vmul.f32 %v3683, %v3697
        %v3730 = vmul.f32 %v3680, %v3690
        %v3731 = vmul.f32 %v3676, %v3691
        %v3732 = vmul.f32 %v3672, %v3692
        %v3733 = vmul.f32 %v3668, %v3693
        %v3734 = vmul.f32 %v3664, %v3694
        %v3735 = vmul.f32 %v3660, %v3695
        %v3736 = vmul.f32 %v3656, %v3696
        %v3737 = vmul.f32 %v3684, %v3697
        %3738 = vrot.lane.b32.xlu0 %v2258, 95
        %v3739 = vpop.permute.xlu0 %3738
        %3740 = vrot.lane.b32.xlu0 %v2261, 95
        %v3741 = vpop.permute.xlu0 %3740
        %3742 = vrot.lane.b32.xlu0 %v2264, 95
        %v3743 = vpop.permute.xlu0 %3742
        %3744 = vrot.lane.b32.xlu0 %v2267, 95
        %v3745 = vpop.permute.xlu0 %3744
        %3746 = vrot.lane.b32.xlu0 %v2316, 95
        %v3747 = vpop.permute.xlu0 %3746
        %3748 = vrot.lane.b32.xlu0 %v2319, 95
        %v3749 = vpop.permute.xlu0 %3748
        %3750 = vrot.lane.b32.xlu0 %v2322, 95
        %v3751 = vpop.permute.xlu0 %3750
        %3752 = vrot.lane.b32.xlu0 %v2325, 95
        %v3753 = vpop.permute.xlu0 %3752
        %3754 = vrot.lane.b32.xlu0 %v2374, 95
        %v3755 = vpop.permute.xlu0 %3754
        %3756 = vrot.lane.b32.xlu0 %v2377, 95
        %v3757 = vpop.permute.xlu0 %3756
        %3758 = vrot.lane.b32.xlu0 %v2380, 95
        %v3759 = vpop.permute.xlu0 %3758
        %3760 = vrot.lane.b32.xlu0 %v2383, 95
        %v3761 = vpop.permute.xlu0 %3760
        %3762 = vrot.lane.b32.xlu0 %v2432, 95
        %v3763 = vpop.permute.xlu0 %3762
        %3764 = vrot.lane.b32.xlu0 %v2435, 95
        %v3765 = vpop.permute.xlu0 %3764
        %3766 = vrot.lane.b32.xlu0 %v2438, 95
        %v3767 = vpop.permute.xlu0 %3766
        %3768 = vrot.lane.b32.xlu0 %v2441, 95
        %v3769 = vpop.permute.xlu0 %3768
        %3770 = vrot.lane.b32.xlu0 %v2490, 95
        %v3771 = vpop.permute.xlu0 %3770
        %3772 = vrot.lane.b32.xlu0 %v2493, 95
        %v3773 = vpop.permute.xlu0 %3772
        %3774 = vrot.lane.b32.xlu0 %v2496, 95
        %v3775 = vpop.permute.xlu0 %3774
        %3776 = vrot.lane.b32.xlu0 %v2499, 95
        %v3777 = vpop.permute.xlu0 %3776
        %3778 = vrot.lane.b32.xlu0 %v2548, 95
        %v3779 = vpop.permute.xlu0 %3778
        %3780 = vrot.lane.b32.xlu0 %v2551, 95
        %v3781 = vpop.permute.xlu0 %3780
        %3782 = vrot.lane.b32.xlu0 %v2554, 95
        %v3783 = vpop.permute.xlu0 %3782
        %3784 = vrot.lane.b32.xlu0 %v2557, 95
        %v3785 = vpop.permute.xlu0 %3784
        %3786 = vrot.lane.b32.xlu0 %v2606, 95
        %v3787 = vpop.permute.xlu0 %3786
        %3788 = vrot.lane.b32.xlu0 %v2609, 95
        %v3789 = vpop.permute.xlu0 %3788
        %3790 = vrot.lane.b32.xlu0 %v2612, 95
        %v3791 = vpop.permute.xlu0 %3790
        %3792 = vrot.lane.b32.xlu0 %v2615, 95
        %v3793 = vpop.permute.xlu0 %3792
        %3794 = vrot.lane.b32.xlu0 %v2664, 95
        %v3795 = vpop.permute.xlu0 %3794
        %3796 = vrot.lane.b32.xlu0 %v2667, 95
        %v3797 = vpop.permute.xlu0 %3796
        %3798 = vrot.lane.b32.xlu0 %v2670, 95
        %v3799 = vpop.permute.xlu0 %3798
        %3800 = vrot.lane.b32.xlu0 %v2673, 95
        %v3801 = vpop.permute.xlu0 %3800
        %vm3802 = vcmp.lt.s32.totalorder %v1421, 95
        %v3803 = vsel %vm3802, %v3787, %v3795
        %v3804 = vsel %vm3802, %v3789, %v3797
        %v3805 = vsel %vm3802, %v3791, %v3799
        %v3806 = vsel %vm3802, %v3793, %v3801
        %v3807 = vsel %vm3802, %v3779, %v3787
        %v3808 = vsel %vm3802, %v3781, %v3789
        %v3809 = vsel %vm3802, %v3783, %v3791
        %v3810 = vsel %vm3802, %v3785, %v3793
        %v3811 = vsel %vm3802, %v3771, %v3779
        %v3812 = vsel %vm3802, %v3773, %v3781
        %v3813 = vsel %vm3802, %v3775, %v3783
        %v3814 = vsel %vm3802, %v3777, %v3785
        %v3815 = vsel %vm3802, %v3763, %v3771
        %v3816 = vsel %vm3802, %v3765, %v3773
        %v3817 = vsel %vm3802, %v3767, %v3775
        %v3818 = vsel %vm3802, %v3769, %v3777
        %v3819 = vsel %vm3802, %v3755, %v3763
        %v3820 = vsel %vm3802, %v3757, %v3765
        %v3821 = vsel %vm3802, %v3759, %v3767
        %v3822 = vsel %vm3802, %v3761, %v3769
        %v3823 = vsel %vm3802, %v3747, %v3755
        %v3824 = vsel %vm3802, %v3749, %v3757
        %v3825 = vsel %vm3802, %v3751, %v3759
        %v3826 = vsel %vm3802, %v3753, %v3761
        %v3827 = vsel %vm3802, %v3739, %v3747
        %v3828 = vsel %vm3802, %v3741, %v3749
        %v3829 = vsel %vm3802, %v3743, %v3751
        %v3830 = vsel %vm3802, %v3745, %v3753
        %v3831 = vsel %vm3802, %v3795, %v3739
        %v3832 = vsel %vm3802, %v3797, %v3741
        %v3833 = vsel %vm3802, %v3799, %v3743
        %v3834 = vsel %vm3802, %v3801, %v3745
        %s3835 = scalar_lea.vmem [#allocation13], 64
        %v3836 = vld [vmem:[%s3835] ss:$8 sm:$0xf]
        %v3837 = vld [vmem:[%s3835] ss:$8 sm:$0xf0]
        %v3838 = vor.u32 %v3836, %v3837
        %v3840 = vperm.slane %v3838, 0
        %v3841 = vperm.slane %v3838, 1
        %v3842 = vperm.slane %v3838, 2
        %v3843 = vperm.slane %v3838, 3
        %v3844 = vperm.slane %v3838, 4
        %v3845 = vperm.slane %v3838, 5
        %v3846 = vperm.slane %v3838, 6
        %v3847 = vperm.slane %v3838, 7
        %v3856 = vmul.f32 %v3827, %v3840
        %v3857 = vmul.f32 %v3823, %v3841
        %v3858 = vmul.f32 %v3819, %v3842
        %v3859 = vmul.f32 %v3815, %v3843
        %v3860 = vmul.f32 %v3811, %v3844
        %v3861 = vmul.f32 %v3807, %v3845
        %v3862 = vmul.f32 %v3803, %v3846
        %v3863 = vmul.f32 %v3831, %v3847
        %v3864 = vmul.f32 %v3828, %v3840
        %v3865 = vmul.f32 %v3824, %v3841
        %v3866 = vmul.f32 %v3820, %v3842
        %v3867 = vmul.f32 %v3816, %v3843
        %v3868 = vmul.f32 %v3812, %v3844
        %v3869 = vmul.f32 %v3808, %v3845
        %v3870 = vmul.f32 %v3804, %v3846
        %v3871 = vmul.f32 %v3832, %v3847
        %v3872 = vmul.f32 %v3829, %v3840
        %v3873 = vmul.f32 %v3825, %v3841
        %v3874 = vmul.f32 %v3821, %v3842
        %v3875 = vmul.f32 %v3817, %v3843
        %v3876 = vmul.f32 %v3813, %v3844
        %v3877 = vmul.f32 %v3809, %v3845
        %v3878 = vmul.f32 %v3805, %v3846
        %v3879 = vmul.f32 %v3833, %v3847
        %v3880 = vmul.f32 %v3830, %v3840
        %v3881 = vmul.f32 %v3826, %v3841
        %v3882 = vmul.f32 %v3822, %v3842
        %v3883 = vmul.f32 %v3818, %v3843
        %v3884 = vmul.f32 %v3814, %v3844
        %v3885 = vmul.f32 %v3810, %v3845
        %v3886 = vmul.f32 %v3806, %v3846
        %v3887 = vmul.f32 %v3834, %v3847
        %3889 = vset.pattern.permute.xlu0 0
        %3890 = vperm.xlu0 %3889, %v2687
        %v3891 = vpop.permute.xlu0 %3890
        %3894 = vset.pattern.permute.xlu0 0
        %3895 = vperm.xlu0 %3894, %v2688
        %v3896 = vpop.permute.xlu0 %3895
        %3899 = vset.pattern.permute.xlu0 0
        %3900 = vperm.xlu0 %3899, %v2689
        %v3901 = vpop.permute.xlu0 %3900
        %3904 = vset.pattern.permute.xlu0 0
        %3905 = vperm.xlu0 %3904, %v2690
        %v3906 = vpop.permute.xlu0 %3905
        %v3909 = vsel %vm1189, %v2677, 0
        %v3912 = vsel %vm1189, %v2680, 0
        %v3915 = vsel %vm1189, %v2683, 0
        %v3918 = vsel %vm1189, %v2686, 0
        %3920 = vmatpush.msra.mxu0 %v3281
        %3921 = vmatpush.msra.mxu0 %v3273
        %3922 = vmatpush.msra.mxu0 %v3265
        %3923 = vmatpush.msra.mxu0 %v3257
        %3924 = vmatpush.msra.mxu0 %v3132
        %3925 = vmatpush.msra.mxu0 %v3124
        %3926 = vmatpush.msra.mxu0 %v3116
        %3927 = vmatpush.msra.mxu0 %v3108
        %3928 = vmatpush.msra.mxu0 %v2982
        %3929 = vmatpush.msra.mxu0 %v2974
        %3930 = vmatpush.msra.mxu0 %v2966
        %3931 = vmatpush.msra.mxu0 %v2958
        %3932 = vmatpush.msra.mxu0 %v2832
        %3933 = vmatpush.msra.mxu0 %v2824
        %3934 = vmatpush.msra.mxu0 %v2816
        %3935 = vmatpush.msra.mxu0 %v2808
        %3936 = vmatmul.f32.gmra.mxu0 %v2675
        %v3937 = vpop.f32.mrf.mxu0
        %v3938 = vadd.f32 %v3891, %v3937
        %3939 = vmatmul.f32.gmra.mxu0 %v2678
        %v3940 = vpop.f32.mrf.mxu0
        %v3941 = vadd.f32 %v3896, %v3940
        %3942 = vmatmul.f32.gmra.mxu0 %v2681
        %v3943 = vpop.f32.mrf.mxu0
        %v3944 = vadd.f32 %v3901, %v3943
        %3945 = vmatmul.f32.gmra.mxu0 %v2684
        %v3946 = vpop.f32.mrf.mxu0
        %v3947 = vadd.f32 %v3906, %v3946
        %3948 = vdwg.mxu0
        %3949 = vmatpush.msra.mxu0 %v3730
        %3950 = vmatpush.msra.mxu0 %v3722
        %3951 = vmatpush.msra.mxu0 %v3714
        %3952 = vmatpush.msra.mxu0 %v3706
        %3953 = vmatpush.msra.mxu0 %v3580
        %3954 = vmatpush.msra.mxu0 %v3572
        %3955 = vmatpush.msra.mxu0 %v3564
        %3956 = vmatpush.msra.mxu0 %v3556
        %3957 = vmatpush.msra.mxu0 %v3430
        %3958 = vmatpush.msra.mxu0 %v3422
        %3959 = vmatpush.msra.mxu0 %v3414
        %3960 = vmatpush.msra.mxu0 %v3406
        %3961 = vmatpush.msra.mxu0 %v2267
        %3962 = vmatpush.msra.mxu0 %v2264
        %3963 = vmatpush.msra.mxu0 %v2261
        %3964 = vmatpush.msra.mxu0 %v2258
        %3965 = vmatmul.f32.gmra.mxu0 %v2676
        %v3966 = vpop.f32.mrf.mxu0
        %v3967 = vadd.f32 %v3938, %v3966
        %3968 = vmatmul.f32.gmra.mxu0 %v2679
        %v3969 = vpop.f32.mrf.mxu0
        %v3970 = vadd.f32 %v3941, %v3969
        %3971 = vmatmul.f32.gmra.mxu0 %v2682
        %v3972 = vpop.f32.mrf.mxu0
        %v3973 = vadd.f32 %v3944, %v3972
        %3974 = vmatmul.f32.gmra.mxu0 %v2685
        %v3975 = vpop.f32.mrf.mxu0
        %v3976 = vadd.f32 %v3947, %v3975
        %3977 = vdwg.mxu0
        %3978 = vmatpush.msra.mxu0 0.0
        %3979 = vmatpush.msra.mxu0 0.0
        %3980 = vmatpush.msra.mxu0 0.0
        %3981 = vmatpush.msra.mxu0 0.0
        %3982 = vmatpush.msra.mxu0 0.0
        %3983 = vmatpush.msra.mxu0 0.0
        %3984 = vmatpush.msra.mxu0 0.0
        %3985 = vmatpush.msra.mxu0 0.0
        %3986 = vmatpush.msra.mxu0 0.0
        %3987 = vmatpush.msra.mxu0 0.0
        %3988 = vmatpush.msra.mxu0 0.0
        %3989 = vmatpush.msra.mxu0 0.0
        %3990 = vmatpush.msra.mxu0 %v3880
        %3991 = vmatpush.msra.mxu0 %v3872
        %3992 = vmatpush.msra.mxu0 %v3864
        %3993 = vmatpush.msra.mxu0 %v3856
        %3994 = vmatmul.f32.gmra.mxu0 %v3909
        %v3995 = vpop.f32.mrf.mxu0
        %v3996 = vadd.f32 %v3967, %v3995
        %3997 = vmatmul.f32.gmra.mxu0 %v3912
        %v3998 = vpop.f32.mrf.mxu0
        %v3999 = vadd.f32 %v3970, %v3998
        %4000 = vmatmul.f32.gmra.mxu0 %v3915
        %v4001 = vpop.f32.mrf.mxu0
        %v4002 = vadd.f32 %v3973, %v4001
        %4003 = vmatmul.f32.gmra.mxu0 %v3918
        %v4004 = vpop.f32.mrf.mxu0
        %v4005 = vadd.f32 %v3976, %v4004
        %4006 = vdwg.mxu0
        %4007 = vmatpush.msra.mxu0 %v3282
        %4008 = vmatpush.msra.mxu0 %v3274
        %4009 = vmatpush.msra.mxu0 %v3266
        %4010 = vmatpush.msra.mxu0 %v3258
        %4011 = vmatpush.msra.mxu0 %v3133
        %4012 = vmatpush.msra.mxu0 %v3125
        %4013 = vmatpush.msra.mxu0 %v3117
        %4014 = vmatpush.msra.mxu0 %v3109
        %4015 = vmatpush.msra.mxu0 %v2983
        %4016 = vmatpush.msra.mxu0 %v2975
        %4017 = vmatpush.msra.mxu0 %v2967
        %4018 = vmatpush.msra.mxu0 %v2959
        %4019 = vmatpush.msra.mxu0 %v2833
        %4020 = vmatpush.msra.mxu0 %v2825
        %4021 = vmatpush.msra.mxu0 %v2817
        %4022 = vmatpush.msra.mxu0 %v2809
        %4023 = vmatmul.f32.gmra.mxu0 %v2675
        %v4024 = vpop.f32.mrf.mxu0
        %v4025 = vadd.f32 %v3891, %v4024
        %4026 = vmatmul.f32.gmra.mxu0 %v2678
        %v4027 = vpop.f32.mrf.mxu0
        %v4028 = vadd.f32 %v3896, %v4027
        %4029 = vmatmul.f32.gmra.mxu0 %v2681
        %v4030 = vpop.f32.mrf.mxu0
        %v4031 = vadd.f32 %v3901, %v4030
        %4032 = vmatmul.f32.gmra.mxu0 %v2684
        %v4033 = vpop.f32.mrf.mxu0
        %v4034 = vadd.f32 %v3906, %v4033
        %4035 = vdwg.mxu0
        %4036 = vmatpush.msra.mxu0 %v3731
        %4037 = vmatpush.msra.mxu0 %v3723
        %4038 = vmatpush.msra.mxu0 %v3715
        %4039 = vmatpush.msra.mxu0 %v3707
        %4040 = vmatpush.msra.mxu0 %v3581
        %4041 = vmatpush.msra.mxu0 %v3573
        %4042 = vmatpush.msra.mxu0 %v3565
        %4043 = vmatpush.msra.mxu0 %v3557
        %4044 = vmatpush.msra.mxu0 %v3431
        %4045 = vmatpush.msra.mxu0 %v3423
        %4046 = vmatpush.msra.mxu0 %v3415
        %4047 = vmatpush.msra.mxu0 %v3407
        %4048 = vmatpush.msra.mxu0 %v2325
        %4049 = vmatpush.msra.mxu0 %v2322
        %4050 = vmatpush.msra.mxu0 %v2319
        %4051 = vmatpush.msra.mxu0 %v2316
        %4052 = vmatmul.f32.gmra.mxu0 %v2676
        %v4053 = vpop.f32.mrf.mxu0
        %v4054 = vadd.f32 %v4025, %v4053
        %4055 = vmatmul.f32.gmra.mxu0 %v2679
        %v4056 = vpop.f32.mrf.mxu0
        %v4057 = vadd.f32 %v4028, %v4056
        %4058 = vmatmul.f32.gmra.mxu0 %v2682
        %v4059 = vpop.f32.mrf.mxu0
        %v4060 = vadd.f32 %v4031, %v4059
        %4061 = vmatmul.f32.gmra.mxu0 %v2685
        %v4062 = vpop.f32.mrf.mxu0
        %v4063 = vadd.f32 %v4034, %v4062
        %4064 = vdwg.mxu0
        %4065 = vmatpush.msra.mxu0 0.0
        %4066 = vmatpush.msra.mxu0 0.0
        %4067 = vmatpush.msra.mxu0 0.0
        %4068 = vmatpush.msra.mxu0 0.0
        %4069 = vmatpush.msra.mxu0 0.0
        %4070 = vmatpush.msra.mxu0 0.0
        %4071 = vmatpush.msra.mxu0 0.0
        %4072 = vmatpush.msra.mxu0 0.0
        %4073 = vmatpush.msra.mxu0 0.0
        %4074 = vmatpush.msra.mxu0 0.0
        %4075 = vmatpush.msra.mxu0 0.0
        %4076 = vmatpush.msra.mxu0 0.0
        %4077 = vmatpush.msra.mxu0 %v3881
        %4078 = vmatpush.msra.mxu0 %v3873
        %4079 = vmatpush.msra.mxu0 %v3865
        %4080 = vmatpush.msra.mxu0 %v3857
        %4081 = vmatmul.f32.gmra.mxu0 %v3909
        %v4082 = vpop.f32.mrf.mxu0
        %v4083 = vadd.f32 %v4054, %v4082
        %4084 = vmatmul.f32.gmra.mxu0 %v3912
        %v4085 = vpop.f32.mrf.mxu0
        %v4086 = vadd.f32 %v4057, %v4085
        %4087 = vmatmul.f32.gmra.mxu0 %v3915
        %v4088 = vpop.f32.mrf.mxu0
        %v4089 = vadd.f32 %v4060, %v4088
        %4090 = vmatmul.f32.gmra.mxu0 %v3918
        %v4091 = vpop.f32.mrf.mxu0
        %v4092 = vadd.f32 %v4063, %v4091
        %4093 = vdwg.mxu0
        %4094 = vmatpush.msra.mxu0 %v3283
        %4095 = vmatpush.msra.mxu0 %v3275
        %4096 = vmatpush.msra.mxu0 %v3267
        %4097 = vmatpush.msra.mxu0 %v3259
        %4098 = vmatpush.msra.mxu0 %v3134
        %4099 = vmatpush.msra.mxu0 %v3126
        %4100 = vmatpush.msra.mxu0 %v3118
        %4101 = vmatpush.msra.mxu0 %v3110
        %4102 = vmatpush.msra.mxu0 %v2984
        %4103 = vmatpush.msra.mxu0 %v2976
        %4104 = vmatpush.msra.mxu0 %v2968
        %4105 = vmatpush.msra.mxu0 %v2960
        %4106 = vmatpush.msra.mxu0 %v2834
        %4107 = vmatpush.msra.mxu0 %v2826
        %4108 = vmatpush.msra.mxu0 %v2818
        %4109 = vmatpush.msra.mxu0 %v2810
        %4110 = vmatmul.f32.gmra.mxu0 %v2675
        %v4111 = vpop.f32.mrf.mxu0
        %v4112 = vadd.f32 %v3891, %v4111
        %4113 = vmatmul.f32.gmra.mxu0 %v2678
        %v4114 = vpop.f32.mrf.mxu0
        %v4115 = vadd.f32 %v3896, %v4114
        %4116 = vmatmul.f32.gmra.mxu0 %v2681
        %v4117 = vpop.f32.mrf.mxu0
        %v4118 = vadd.f32 %v3901, %v4117
        %4119 = vmatmul.f32.gmra.mxu0 %v2684
        %v4120 = vpop.f32.mrf.mxu0
        %v4121 = vadd.f32 %v3906, %v4120
        %4122 = vdwg.mxu0
        %4123 = vmatpush.msra.mxu0 %v3732
        %4124 = vmatpush.msra.mxu0 %v3724
        %4125 = vmatpush.msra.mxu0 %v3716
        %4126 = vmatpush.msra.mxu0 %v3708
        %4127 = vmatpush.msra.mxu0 %v3582
        %4128 = vmatpush.msra.mxu0 %v3574
        %4129 = vmatpush.msra.mxu0 %v3566
        %4130 = vmatpush.msra.mxu0 %v3558
        %4131 = vmatpush.msra.mxu0 %v3432
        %4132 = vmatpush.msra.mxu0 %v3424
        %4133 = vmatpush.msra.mxu0 %v3416
        %4134 = vmatpush.msra.mxu0 %v3408
        %4135 = vmatpush.msra.mxu0 %v2383
        %4136 = vmatpush.msra.mxu0 %v2380
        %4137 = vmatpush.msra.mxu0 %v2377
        %4138 = vmatpush.msra.mxu0 %v2374
        %4139 = vmatmul.f32.gmra.mxu0 %v2676
        %v4140 = vpop.f32.mrf.mxu0
        %v4141 = vadd.f32 %v4112, %v4140
        %4142 = vmatmul.f32.gmra.mxu0 %v2679
        %v4143 = vpop.f32.mrf.mxu0
        %v4144 = vadd.f32 %v4115, %v4143
        %4145 = vmatmul.f32.gmra.mxu0 %v2682
        %v4146 = vpop.f32.mrf.mxu0
        %v4147 = vadd.f32 %v4118, %v4146
        %4148 = vmatmul.f32.gmra.mxu0 %v2685
        %v4149 = vpop.f32.mrf.mxu0
        %v4150 = vadd.f32 %v4121, %v4149
        %4151 = vdwg.mxu0
        %4152 = vmatpush.msra.mxu0 0.0
        %4153 = vmatpush.msra.mxu0 0.0
        %4154 = vmatpush.msra.mxu0 0.0
        %4155 = vmatpush.msra.mxu0 0.0
        %4156 = vmatpush.msra.mxu0 0.0
        %4157 = vmatpush.msra.mxu0 0.0
        %4158 = vmatpush.msra.mxu0 0.0
        %4159 = vmatpush.msra.mxu0 0.0
        %4160 = vmatpush.msra.mxu0 0.0
        %4161 = vmatpush.msra.mxu0 0.0
        %4162 = vmatpush.msra.mxu0 0.0
        %4163 = vmatpush.msra.mxu0 0.0
        %4164 = vmatpush.msra.mxu0 %v3882
        %4165 = vmatpush.msra.mxu0 %v3874
        %4166 = vmatpush.msra.mxu0 %v3866
        %4167 = vmatpush.msra.mxu0 %v3858
        %4168 = vmatmul.f32.gmra.mxu0 %v3909
        %v4169 = vpop.f32.mrf.mxu0
        %v4170 = vadd.f32 %v4141, %v4169
        %4171 = vmatmul.f32.gmra.mxu0 %v3912
        %v4172 = vpop.f32.mrf.mxu0
        %v4173 = vadd.f32 %v4144, %v4172
        %4174 = vmatmul.f32.gmra.mxu0 %v3915
        %v4175 = vpop.f32.mrf.mxu0
        %v4176 = vadd.f32 %v4147, %v4175
        %4177 = vmatmul.f32.gmra.mxu0 %v3918
        %v4178 = vpop.f32.mrf.mxu0
        %v4179 = vadd.f32 %v4150, %v4178
        %4180 = vdwg.mxu0
        %4181 = vmatpush.msra.mxu0 %v3284
        %4182 = vmatpush.msra.mxu0 %v3276
        %4183 = vmatpush.msra.mxu0 %v3268
        %4184 = vmatpush.msra.mxu0 %v3260
        %4185 = vmatpush.msra.mxu0 %v3135
        %4186 = vmatpush.msra.mxu0 %v3127
        %4187 = vmatpush.msra.mxu0 %v3119
        %4188 = vmatpush.msra.mxu0 %v3111
        %4189 = vmatpush.msra.mxu0 %v2985
        %4190 = vmatpush.msra.mxu0 %v2977
        %4191 = vmatpush.msra.mxu0 %v2969
        %4192 = vmatpush.msra.mxu0 %v2961
        %4193 = vmatpush.msra.mxu0 %v2835
        %4194 = vmatpush.msra.mxu0 %v2827
        %4195 = vmatpush.msra.mxu0 %v2819
        %4196 = vmatpush.msra.mxu0 %v2811
        %4197 = vmatmul.f32.gmra.mxu0 %v2675
        %v4198 = vpop.f32.mrf.mxu0
        %v4199 = vadd.f32 %v3891, %v4198
        %4200 = vmatmul.f32.gmra.mxu0 %v2678
        %v4201 = vpop.f32.mrf.mxu0
        %v4202 = vadd.f32 %v3896, %v4201
        %4203 = vmatmul.f32.gmra.mxu0 %v2681
        %v4204 = vpop.f32.mrf.mxu0
        %v4205 = vadd.f32 %v3901, %v4204
        %4206 = vmatmul.f32.gmra.mxu0 %v2684
        %v4207 = vpop.f32.mrf.mxu0
        %v4208 = vadd.f32 %v3906, %v4207
        %4209 = vdwg.mxu0
        %4210 = vmatpush.msra.mxu0 %v3733
        %4211 = vmatpush.msra.mxu0 %v3725
        %4212 = vmatpush.msra.mxu0 %v3717
        %4213 = vmatpush.msra.mxu0 %v3709
        %4214 = vmatpush.msra.mxu0 %v3583
        %4215 = vmatpush.msra.mxu0 %v3575
        %4216 = vmatpush.msra.mxu0 %v3567
        %4217 = vmatpush.msra.mxu0 %v3559
        %4218 = vmatpush.msra.mxu0 %v3433
        %4219 = vmatpush.msra.mxu0 %v3425
        %4220 = vmatpush.msra.mxu0 %v3417
        %4221 = vmatpush.msra.mxu0 %v3409
        %4222 = vmatpush.msra.mxu0 %v2441
        %4223 = vmatpush.msra.mxu0 %v2438
        %4224 = vmatpush.msra.mxu0 %v2435
        %4225 = vmatpush.msra.mxu0 %v2432
        %4226 = vmatmul.f32.gmra.mxu0 %v2676
        %v4227 = vpop.f32.mrf.mxu0
        %v4228 = vadd.f32 %v4199, %v4227
        %4229 = vmatmul.f32.gmra.mxu0 %v2679
        %v4230 = vpop.f32.mrf.mxu0
        %v4231 = vadd.f32 %v4202, %v4230
        %4232 = vmatmul.f32.gmra.mxu0 %v2682
        %v4233 = vpop.f32.mrf.mxu0
        %v4234 = vadd.f32 %v4205, %v4233
        %4235 = vmatmul.f32.gmra.mxu0 %v2685
        %v4236 = vpop.f32.mrf.mxu0
        %v4237 = vadd.f32 %v4208, %v4236
        %4238 = vdwg.mxu0
        %4239 = vmatpush.msra.mxu0 0.0
        %4240 = vmatpush.msra.mxu0 0.0
        %4241 = vmatpush.msra.mxu0 0.0
        %4242 = vmatpush.msra.mxu0 0.0
        %4243 = vmatpush.msra.mxu0 0.0
        %4244 = vmatpush.msra.mxu0 0.0
        %4245 = vmatpush.msra.mxu0 0.0
        %4246 = vmatpush.msra.mxu0 0.0
        %4247 = vmatpush.msra.mxu0 0.0
        %4248 = vmatpush.msra.mxu0 0.0
        %4249 = vmatpush.msra.mxu0 0.0
        %4250 = vmatpush.msra.mxu0 0.0
        %4251 = vmatpush.msra.mxu0 %v3883
        %4252 = vmatpush.msra.mxu0 %v3875
        %4253 = vmatpush.msra.mxu0 %v3867
        %4254 = vmatpush.msra.mxu0 %v3859
        %4255 = vmatmul.f32.gmra.mxu0 %v3909
        %v4256 = vpop.f32.mrf.mxu0
        %v4257 = vadd.f32 %v4228, %v4256
        %4258 = vmatmul.f32.gmra.mxu0 %v3912
        %v4259 = vpop.f32.mrf.mxu0
        %v4260 = vadd.f32 %v4231, %v4259
        %4261 = vmatmul.f32.gmra.mxu0 %v3915
        %v4262 = vpop.f32.mrf.mxu0
        %v4263 = vadd.f32 %v4234, %v4262
        %4264 = vmatmul.f32.gmra.mxu0 %v3918
        %v4265 = vpop.f32.mrf.mxu0
        %v4266 = vadd.f32 %v4237, %v4265
        %4267 = vdwg.mxu0
        %4268 = vmatpush.msra.mxu0 %v3285
        %4269 = vmatpush.msra.mxu0 %v3277
        %4270 = vmatpush.msra.mxu0 %v3269
        %4271 = vmatpush.msra.mxu0 %v3261
        %4272 = vmatpush.msra.mxu0 %v3136
        %4273 = vmatpush.msra.mxu0 %v3128
        %4274 = vmatpush.msra.mxu0 %v3120
        %4275 = vmatpush.msra.mxu0 %v3112
        %4276 = vmatpush.msra.mxu0 %v2986
        %4277 = vmatpush.msra.mxu0 %v2978
        %4278 = vmatpush.msra.mxu0 %v2970
        %4279 = vmatpush.msra.mxu0 %v2962
        %4280 = vmatpush.msra.mxu0 %v2836
        %4281 = vmatpush.msra.mxu0 %v2828
        %4282 = vmatpush.msra.mxu0 %v2820
        %4283 = vmatpush.msra.mxu0 %v2812
        %4284 = vmatmul.f32.gmra.mxu0 %v2675
        %v4285 = vpop.f32.mrf.mxu0
        %v4286 = vadd.f32 %v3891, %v4285
        %4287 = vmatmul.f32.gmra.mxu0 %v2678
        %v4288 = vpop.f32.mrf.mxu0
        %v4289 = vadd.f32 %v3896, %v4288
        %4290 = vmatmul.f32.gmra.mxu0 %v2681
        %v4291 = vpop.f32.mrf.mxu0
        %v4292 = vadd.f32 %v3901, %v4291
        %4293 = vmatmul.f32.gmra.mxu0 %v2684
        %v4294 = vpop.f32.mrf.mxu0
        %v4295 = vadd.f32 %v3906, %v4294
        %4296 = vdwg.mxu0
        %4297 = vmatpush.msra.mxu0 %v3734
        %4298 = vmatpush.msra.mxu0 %v3726
        %4299 = vmatpush.msra.mxu0 %v3718
        %4300 = vmatpush.msra.mxu0 %v3710
        %4301 = vmatpush.msra.mxu0 %v3584
        %4302 = vmatpush.msra.mxu0 %v3576
        %4303 = vmatpush.msra.mxu0 %v3568
        %4304 = vmatpush.msra.mxu0 %v3560
        %4305 = vmatpush.msra.mxu0 %v3434
        %4306 = vmatpush.msra.mxu0 %v3426
        %4307 = vmatpush.msra.mxu0 %v3418
        %4308 = vmatpush.msra.mxu0 %v3410
        %4309 = vmatpush.msra.mxu0 %v2499
        %4310 = vmatpush.msra.mxu0 %v2496
        %4311 = vmatpush.msra.mxu0 %v2493
        %4312 = vmatpush.msra.mxu0 %v2490
        %4313 = vmatmul.f32.gmra.mxu0 %v2676
        %v4314 = vpop.f32.mrf.mxu0
        %v4315 = vadd.f32 %v4286, %v4314
        %4316 = vmatmul.f32.gmra.mxu0 %v2679
        %v4317 = vpop.f32.mrf.mxu0
        %v4318 = vadd.f32 %v4289, %v4317
        %4319 = vmatmul.f32.gmra.mxu0 %v2682
        %v4320 = vpop.f32.mrf.mxu0
        %v4321 = vadd.f32 %v4292, %v4320
        %4322 = vmatmul.f32.gmra.mxu0 %v2685
        %v4323 = vpop.f32.mrf.mxu0
        %v4324 = vadd.f32 %v4295, %v4323
        %4325 = vdwg.mxu0
        %4326 = vmatpush.msra.mxu0 0.0
        %4327 = vmatpush.msra.mxu0 0.0
        %4328 = vmatpush.msra.mxu0 0.0
        %4329 = vmatpush.msra.mxu0 0.0
        %4330 = vmatpush.msra.mxu0 0.0
        %4331 = vmatpush.msra.mxu0 0.0
        %4332 = vmatpush.msra.mxu0 0.0
        %4333 = vmatpush.msra.mxu0 0.0
        %4334 = vmatpush.msra.mxu0 0.0
        %4335 = vmatpush.msra.mxu0 0.0
        %4336 = vmatpush.msra.mxu0 0.0
        %4337 = vmatpush.msra.mxu0 0.0
        %4338 = vmatpush.msra.mxu0 %v3884
        %4339 = vmatpush.msra.mxu0 %v3876
        %4340 = vmatpush.msra.mxu0 %v3868
        %4341 = vmatpush.msra.mxu0 %v3860
        %4342 = vmatmul.f32.gmra.mxu0 %v3909
        %v4343 = vpop.f32.mrf.mxu0
        %v4344 = vadd.f32 %v4315, %v4343
        %4345 = vmatmul.f32.gmra.mxu0 %v3912
        %v4346 = vpop.f32.mrf.mxu0
        %v4347 = vadd.f32 %v4318, %v4346
        %4348 = vmatmul.f32.gmra.mxu0 %v3915
        %v4349 = vpop.f32.mrf.mxu0
        %v4350 = vadd.f32 %v4321, %v4349
        %4351 = vmatmul.f32.gmra.mxu0 %v3918
        %v4352 = vpop.f32.mrf.mxu0
        %v4353 = vadd.f32 %v4324, %v4352
        %4354 = vdwg.mxu0
        %4355 = vmatpush.msra.mxu0 %v3286
        %4356 = vmatpush.msra.mxu0 %v3278
        %4357 = vmatpush.msra.mxu0 %v3270
        %4358 = vmatpush.msra.mxu0 %v3262
        %4359 = vmatpush.msra.mxu0 %v3137
        %4360 = vmatpush.msra.mxu0 %v3129
        %4361 = vmatpush.msra.mxu0 %v3121
        %4362 = vmatpush.msra.mxu0 %v3113
        %4363 = vmatpush.msra.mxu0 %v2987
        %4364 = vmatpush.msra.mxu0 %v2979
        %4365 = vmatpush.msra.mxu0 %v2971
        %4366 = vmatpush.msra.mxu0 %v2963
        %4367 = vmatpush.msra.mxu0 %v2837
        %4368 = vmatpush.msra.mxu0 %v2829
        %4369 = vmatpush.msra.mxu0 %v2821
        %4370 = vmatpush.msra.mxu0 %v2813
        %4371 = vmatmul.f32.gmra.mxu0 %v2675
        %v4372 = vpop.f32.mrf.mxu0
        %v4373 = vadd.f32 %v3891, %v4372
        %4374 = vmatmul.f32.gmra.mxu0 %v2678
        %v4375 = vpop.f32.mrf.mxu0
        %v4376 = vadd.f32 %v3896, %v4375
        %4377 = vmatmul.f32.gmra.mxu0 %v2681
        %v4378 = vpop.f32.mrf.mxu0
        %v4379 = vadd.f32 %v3901, %v4378
        %4380 = vmatmul.f32.gmra.mxu0 %v2684
        %v4381 = vpop.f32.mrf.mxu0
        %v4382 = vadd.f32 %v3906, %v4381
        %4383 = vdwg.mxu0
        %4384 = vmatpush.msra.mxu0 %v3735
        %4385 = vmatpush.msra.mxu0 %v3727
        %4386 = vmatpush.msra.mxu0 %v3719
        %4387 = vmatpush.msra.mxu0 %v3711
        %4388 = vmatpush.msra.mxu0 %v3585
        %4389 = vmatpush.msra.mxu0 %v3577
        %4390 = vmatpush.msra.mxu0 %v3569
        %4391 = vmatpush.msra.mxu0 %v3561
        %4392 = vmatpush.msra.mxu0 %v3435
        %4393 = vmatpush.msra.mxu0 %v3427
        %4394 = vmatpush.msra.mxu0 %v3419
        %4395 = vmatpush.msra.mxu0 %v3411
        %4396 = vmatpush.msra.mxu0 %v2557
        %4397 = vmatpush.msra.mxu0 %v2554
        %4398 = vmatpush.msra.mxu0 %v2551
        %4399 = vmatpush.msra.mxu0 %v2548
        %4400 = vmatmul.f32.gmra.mxu0 %v2676
        %v4401 = vpop.f32.mrf.mxu0
        %v4402 = vadd.f32 %v4373, %v4401
        %4403 = vmatmul.f32.gmra.mxu0 %v2679
        %v4404 = vpop.f32.mrf.mxu0
        %v4405 = vadd.f32 %v4376, %v4404
        %4406 = vmatmul.f32.gmra.mxu0 %v2682
        %v4407 = vpop.f32.mrf.mxu0
        %v4408 = vadd.f32 %v4379, %v4407
        %4409 = vmatmul.f32.gmra.mxu0 %v2685
        %v4410 = vpop.f32.mrf.mxu0
        %v4411 = vadd.f32 %v4382, %v4410
        %4412 = vdwg.mxu0
        %4413 = vmatpush.msra.mxu0 0.0
        %4414 = vmatpush.msra.mxu0 0.0
        %4415 = vmatpush.msra.mxu0 0.0
        %4416 = vmatpush.msra.mxu0 0.0
        %4417 = vmatpush.msra.mxu0 0.0
        %4418 = vmatpush.msra.mxu0 0.0
        %4419 = vmatpush.msra.mxu0 0.0
        %4420 = vmatpush.msra.mxu0 0.0
        %4421 = vmatpush.msra.mxu0 0.0
        %4422 = vmatpush.msra.mxu0 0.0
        %4423 = vmatpush.msra.mxu0 0.0
        %4424 = vmatpush.msra.mxu0 0.0
        %4425 = vmatpush.msra.mxu0 %v3885
        %4426 = vmatpush.msra.mxu0 %v3877
        %4427 = vmatpush.msra.mxu0 %v3869
        %4428 = vmatpush.msra.mxu0 %v3861
        %4429 = vmatmul.f32.gmra.mxu0 %v3909
        %v4430 = vpop.f32.mrf.mxu0
        %v4431 = vadd.f32 %v4402, %v4430
        %4432 = vmatmul.f32.gmra.mxu0 %v3912
        %v4433 = vpop.f32.mrf.mxu0
        %v4434 = vadd.f32 %v4405, %v4433
        %4435 = vmatmul.f32.gmra.mxu0 %v3915
        %v4436 = vpop.f32.mrf.mxu0
        %v4437 = vadd.f32 %v4408, %v4436
        %4438 = vmatmul.f32.gmra.mxu0 %v3918
        %v4439 = vpop.f32.mrf.mxu0
        %v4440 = vadd.f32 %v4411, %v4439
        %4441 = vdwg.mxu0
        %4442 = vmatpush.msra.mxu0 %v3287
        %4443 = vmatpush.msra.mxu0 %v3279
        %4444 = vmatpush.msra.mxu0 %v3271
        %4445 = vmatpush.msra.mxu0 %v3263
        %4446 = vmatpush.msra.mxu0 %v3138
        %4447 = vmatpush.msra.mxu0 %v3130
        %4448 = vmatpush.msra.mxu0 %v3122
        %4449 = vmatpush.msra.mxu0 %v3114
        %4450 = vmatpush.msra.mxu0 %v2988
        %4451 = vmatpush.msra.mxu0 %v2980
        %4452 = vmatpush.msra.mxu0 %v2972
        %4453 = vmatpush.msra.mxu0 %v2964
        %4454 = vmatpush.msra.mxu0 %v2838
        %4455 = vmatpush.msra.mxu0 %v2830
        %4456 = vmatpush.msra.mxu0 %v2822
        %4457 = vmatpush.msra.mxu0 %v2814
        %4458 = vmatmul.f32.gmra.mxu0 %v2675
        %v4459 = vpop.f32.mrf.mxu0
        %v4460 = vadd.f32 %v3891, %v4459
        %4461 = vmatmul.f32.gmra.mxu0 %v2678
        %v4462 = vpop.f32.mrf.mxu0
        %v4463 = vadd.f32 %v3896, %v4462
        %4464 = vmatmul.f32.gmra.mxu0 %v2681
        %v4465 = vpop.f32.mrf.mxu0
        %v4466 = vadd.f32 %v3901, %v4465
        %4467 = vmatmul.f32.gmra.mxu0 %v2684
        %v4468 = vpop.f32.mrf.mxu0
        %v4469 = vadd.f32 %v3906, %v4468
        %4470 = vdwg.mxu0
        %4471 = vmatpush.msra.mxu0 %v3736
        %4472 = vmatpush.msra.mxu0 %v3728
        %4473 = vmatpush.msra.mxu0 %v3720
        %4474 = vmatpush.msra.mxu0 %v3712
        %4475 = vmatpush.msra.mxu0 %v3586
        %4476 = vmatpush.msra.mxu0 %v3578
        %4477 = vmatpush.msra.mxu0 %v3570
        %4478 = vmatpush.msra.mxu0 %v3562
        %4479 = vmatpush.msra.mxu0 %v3436
        %4480 = vmatpush.msra.mxu0 %v3428
        %4481 = vmatpush.msra.mxu0 %v3420
        %4482 = vmatpush.msra.mxu0 %v3412
        %4483 = vmatpush.msra.mxu0 %v2615
        %4484 = vmatpush.msra.mxu0 %v2612
        %4485 = vmatpush.msra.mxu0 %v2609
        %4486 = vmatpush.msra.mxu0 %v2606
        %4487 = vmatmul.f32.gmra.mxu0 %v2676
        %v4488 = vpop.f32.mrf.mxu0
        %v4489 = vadd.f32 %v4460, %v4488
        %4490 = vmatmul.f32.gmra.mxu0 %v2679
        %v4491 = vpop.f32.mrf.mxu0
        %v4492 = vadd.f32 %v4463, %v4491
        %4493 = vmatmul.f32.gmra.mxu0 %v2682
        %v4494 = vpop.f32.mrf.mxu0
        %v4495 = vadd.f32 %v4466, %v4494
        %4496 = vmatmul.f32.gmra.mxu0 %v2685
        %v4497 = vpop.f32.mrf.mxu0
        %v4498 = vadd.f32 %v4469, %v4497
        %4499 = vdwg.mxu0
        %4500 = vmatpush.msra.mxu0 0.0
        %4501 = vmatpush.msra.mxu0 0.0
        %4502 = vmatpush.msra.mxu0 0.0
        %4503 = vmatpush.msra.mxu0 0.0
        %4504 = vmatpush.msra.mxu0 0.0
        %4505 = vmatpush.msra.mxu0 0.0
        %4506 = vmatpush.msra.mxu0 0.0
        %4507 = vmatpush.msra.mxu0 0.0
        %4508 = vmatpush.msra.mxu0 0.0
        %4509 = vmatpush.msra.mxu0 0.0
        %4510 = vmatpush.msra.mxu0 0.0
        %4511 = vmatpush.msra.mxu0 0.0
        %4512 = vmatpush.msra.mxu0 %v3886
        %4513 = vmatpush.msra.mxu0 %v3878
        %4514 = vmatpush.msra.mxu0 %v3870
        %4515 = vmatpush.msra.mxu0 %v3862
        %4516 = vmatmul.f32.gmra.mxu0 %v3909
        %v4517 = vpop.f32.mrf.mxu0
        %v4518 = vadd.f32 %v4489, %v4517
        %4519 = vmatmul.f32.gmra.mxu0 %v3912
        %v4520 = vpop.f32.mrf.mxu0
        %v4521 = vadd.f32 %v4492, %v4520
        %4522 = vmatmul.f32.gmra.mxu0 %v3915
        %v4523 = vpop.f32.mrf.mxu0
        %v4524 = vadd.f32 %v4495, %v4523
        %4525 = vmatmul.f32.gmra.mxu0 %v3918
        %v4526 = vpop.f32.mrf.mxu0
        %v4527 = vadd.f32 %v4498, %v4526
        %4528 = vdwg.mxu0
        %4529 = vmatpush.msra.mxu0 %v3288
        %4530 = vmatpush.msra.mxu0 %v3280
        %4531 = vmatpush.msra.mxu0 %v3272
        %4532 = vmatpush.msra.mxu0 %v3264
        %4533 = vmatpush.msra.mxu0 %v3139
        %4534 = vmatpush.msra.mxu0 %v3131
        %4535 = vmatpush.msra.mxu0 %v3123
        %4536 = vmatpush.msra.mxu0 %v3115
        %4537 = vmatpush.msra.mxu0 %v2989
        %4538 = vmatpush.msra.mxu0 %v2981
        %4539 = vmatpush.msra.mxu0 %v2973
        %4540 = vmatpush.msra.mxu0 %v2965
        %4541 = vmatpush.msra.mxu0 %v2839
        %4542 = vmatpush.msra.mxu0 %v2831
        %4543 = vmatpush.msra.mxu0 %v2823
        %4544 = vmatpush.msra.mxu0 %v2815
        %4545 = vmatmul.f32.gmra.mxu0 %v2675
        %v4546 = vpop.f32.mrf.mxu0
        %v4547 = vadd.f32 %v3891, %v4546
        %4548 = vmatmul.f32.gmra.mxu0 %v2678
        %v4549 = vpop.f32.mrf.mxu0
        %v4550 = vadd.f32 %v3896, %v4549
        %4551 = vmatmul.f32.gmra.mxu0 %v2681
        %v4552 = vpop.f32.mrf.mxu0
        %v4553 = vadd.f32 %v3901, %v4552
        %4554 = vmatmul.f32.gmra.mxu0 %v2684
        %v4555 = vpop.f32.mrf.mxu0
        %v4556 = vadd.f32 %v3906, %v4555
        %4557 = vdwg.mxu0
        %4558 = vmatpush.msra.mxu0 %v3737
        %4559 = vmatpush.msra.mxu0 %v3729
        %4560 = vmatpush.msra.mxu0 %v3721
        %4561 = vmatpush.msra.mxu0 %v3713
        %4562 = vmatpush.msra.mxu0 %v3587
        %4563 = vmatpush.msra.mxu0 %v3579
        %4564 = vmatpush.msra.mxu0 %v3571
        %4565 = vmatpush.msra.mxu0 %v3563
        %4566 = vmatpush.msra.mxu0 %v3437
        %4567 = vmatpush.msra.mxu0 %v3429
        %4568 = vmatpush.msra.mxu0 %v3421
        %4569 = vmatpush.msra.mxu0 %v3413
        %4570 = vmatpush.msra.mxu0 %v2673
        %4571 = vmatpush.msra.mxu0 %v2670
        %4572 = vmatpush.msra.mxu0 %v2667
        %4573 = vmatpush.msra.mxu0 %v2664
        %4574 = vmatmul.f32.gmra.mxu0 %v2676
        %v4575 = vpop.f32.mrf.mxu0
        %v4576 = vadd.f32 %v4547, %v4575
        %4577 = vmatmul.f32.gmra.mxu0 %v2679
        %v4578 = vpop.f32.mrf.mxu0
        %v4579 = vadd.f32 %v4550, %v4578
        %4580 = vmatmul.f32.gmra.mxu0 %v2682
        %v4581 = vpop.f32.mrf.mxu0
        %v4582 = vadd.f32 %v4553, %v4581
        %4583 = vmatmul.f32.gmra.mxu0 %v2685
        %v4584 = vpop.f32.mrf.mxu0
        %v4585 = vadd.f32 %v4556, %v4584
        %4586 = vdwg.mxu0
        %4587 = vmatpush.msra.mxu0 0.0
        %4588 = vmatpush.msra.mxu0 0.0
        %4589 = vmatpush.msra.mxu0 0.0
        %4590 = vmatpush.msra.mxu0 0.0
        %4591 = vmatpush.msra.mxu0 0.0
        %4592 = vmatpush.msra.mxu0 0.0
        %4593 = vmatpush.msra.mxu0 0.0
        %4594 = vmatpush.msra.mxu0 0.0
        %4595 = vmatpush.msra.mxu0 0.0
        %4596 = vmatpush.msra.mxu0 0.0
        %4597 = vmatpush.msra.mxu0 0.0
        %4598 = vmatpush.msra.mxu0 0.0
        %4599 = vmatpush.msra.mxu0 %v3887
        %4600 = vmatpush.msra.mxu0 %v3879
        %4601 = vmatpush.msra.mxu0 %v3871
        %4602 = vmatpush.msra.mxu0 %v3863
        %4603 = vmatmul.f32.gmra.mxu0 %v3909
        %v4604 = vpop.f32.mrf.mxu0
        %v4605 = vadd.f32 %v4576, %v4604
        %4606 = vmatmul.f32.gmra.mxu0 %v3912
        %v4607 = vpop.f32.mrf.mxu0
        %v4608 = vadd.f32 %v4579, %v4607
        %4609 = vmatmul.f32.gmra.mxu0 %v3915
        %v4610 = vpop.f32.mrf.mxu0
        %v4611 = vadd.f32 %v4582, %v4610
        %4612 = vmatmul.f32.gmra.mxu0 %v3918
        %v4613 = vpop.f32.mrf.mxu0
        %v4614 = vadd.f32 %v4585, %v4613
        %4615 = vdwg.mxu0
        %v4616 = vmax.f32 %v3996, 0.0
        %v4617 = vmax.f32 %v4083, 0.0
        %v4618 = vmax.f32 %v4170, 0.0
        %v4619 = vmax.f32 %v4257, 0.0
        %v4620 = vmax.f32 %v4344, 0.0
        %v4621 = vmax.f32 %v4431, 0.0
        %v4622 = vmax.f32 %v4518, 0.0
        %v4623 = vmax.f32 %v4605, 0.0
        %v4624 = vmax.f32 %v3999, 0.0
        %v4625 = vmax.f32 %v4086, 0.0
        %v4626 = vmax.f32 %v4173, 0.0
        %v4627 = vmax.f32 %v4260, 0.0
        %v4628 = vmax.f32 %v4347, 0.0
        %v4629 = vmax.f32 %v4434, 0.0
        %v4630 = vmax.f32 %v4521, 0.0
        %v4631 = vmax.f32 %v4608, 0.0
        %v4632 = vmax.f32 %v4002, 0.0
        %v4633 = vmax.f32 %v4089, 0.0
        %v4634 = vmax.f32 %v4176, 0.0
        %v4635 = vmax.f32 %v4263, 0.0
        %v4636 = vmax.f32 %v4350, 0.0
        %v4637 = vmax.f32 %v4437, 0.0
        %v4638 = vmax.f32 %v4524, 0.0
        %v4639 = vmax.f32 %v4611, 0.0
        %v4640 = vmax.f32 %v4005, 0.0
        %v4641 = vmax.f32 %v4092, 0.0
        %v4642 = vmax.f32 %v4179, 0.0
        %v4643 = vmax.f32 %v4266, 0.0
        %v4644 = vmax.f32 %v4353, 0.0
        %v4645 = vmax.f32 %v4440, 0.0
        %v4646 = vmax.f32 %v4527, 0.0
        %v4647 = vmax.f32 %v4614, 0.0
        %v4648 = vld [vmem:[%s687] sm:$0xff]
        %v4649 = vld [vmem:[%s687 + $0x8] sm:$0xff]
        %v4650 = vld [vmem:[%s687 + $0x10] sm:$0xff]
        %v4651 = vld [vmem:[%s687 + $0x18] sm:$0xff]
        %v4652 = vld [vmem:[%s687 + $0x20] sm:$0xff]
        %v4653 = vld [vmem:[%s687 + $0x28] sm:$0xff]
        %v4654 = vld [vmem:[%s687 + $0x30] sm:$0xff]
        %v4655 = vld [vmem:[%s687 + $0x38] sm:$0xff]
        %v4656 = vld [vmem:[%s687 + $0x40] sm:$0xff]
        %v4657 = vld [vmem:[%s687 + $0x48] sm:$0xff]
        %v4658 = vld [vmem:[%s687 + $0x50] sm:$0xff]
        %v4659 = vld [vmem:[%s687 + $0x58] sm:$0xff]
        %v4660 = vld [vmem:[%s687 + $0x60] sm:$0xff]
        %v4661 = vld [vmem:[%s687 + $0x68] sm:$0xff]
        %v4662 = vld [vmem:[%s687 + $0x70] sm:$0xff]
        %v4663 = vld [vmem:[%s687 + $0x78] sm:$0xff]
        %v4664 = vld [vmem:[%s687 + $0x80] sm:$0xff]
        %v4665 = vld [vmem:[%s687 + $0x88] sm:$0xff]
        %v4666 = vld [vmem:[%s687 + $0x90] sm:$0xff]
        %v4667 = vld [vmem:[%s687 + $0x98] sm:$0xff]
        %v4668 = vld [vmem:[%s687 + $0xa0] sm:$0xff]
        %v4669 = vld [vmem:[%s687 + $0xa8] sm:$0xff]
        %v4670 = vld [vmem:[%s687 + $0xb0] sm:$0xff]
        %v4671 = vld [vmem:[%s687 + $0xb8] sm:$0xff]
        %v4672 = vld [vmem:[%s687 + $0xc0] sm:$0xff]
        %v4673 = vld [vmem:[%s687 + $0xc8] sm:$0xff]
        %v4674 = vld [vmem:[%s687 + $0xd0] sm:$0xff]
        %v4675 = vld [vmem:[%s687 + $0xd8] sm:$0xff]
        %v4676 = vld [vmem:[%s687 + $0xe0] sm:$0xff]
        %v4677 = vld [vmem:[%s687 + $0xe8] sm:$0xff]
        %v4678 = vld [vmem:[%s687 + $0xf0] sm:$0xff]
        %v4679 = vld [vmem:[%s687 + $0xf8] sm:$0xff]
        %v4680 = vadd.f32 %v4616, %v4648
        %v4681 = vadd.f32 %v4617, %v4649
        %v4682 = vadd.f32 %v4618, %v4650
        %v4683 = vadd.f32 %v4619, %v4651
        %v4684 = vadd.f32 %v4620, %v4652
        %v4685 = vadd.f32 %v4621, %v4653
        %v4686 = vadd.f32 %v4622, %v4654
        %v4687 = vadd.f32 %v4623, %v4655
        %v4688 = vadd.f32 %v4624, %v4656
        %v4689 = vadd.f32 %v4625, %v4657
        %v4690 = vadd.f32 %v4626, %v4658
        %v4691 = vadd.f32 %v4627, %v4659
        %v4692 = vadd.f32 %v4628, %v4660
        %v4693 = vadd.f32 %v4629, %v4661
        %v4694 = vadd.f32 %v4630, %v4662
        %v4695 = vadd.f32 %v4631, %v4663
        %v4696 = vadd.f32 %v4632, %v4664
        %v4697 = vadd.f32 %v4633, %v4665
        %v4698 = vadd.f32 %v4634, %v4666
        %v4699 = vadd.f32 %v4635, %v4667
        %v4700 = vadd.f32 %v4636, %v4668
        %v4701 = vadd.f32 %v4637, %v4669
        %v4702 = vadd.f32 %v4638, %v4670
        %v4703 = vadd.f32 %v4639, %v4671
        %v4704 = vadd.f32 %v4640, %v4672
        %v4705 = vadd.f32 %v4641, %v4673
        %v4706 = vadd.f32 %v4642, %v4674
        %v4707 = vadd.f32 %v4643, %v4675
        %v4708 = vadd.f32 %v4644, %v4676
        %v4709 = vadd.f32 %v4645, %v4677
        %v4710 = vadd.f32 %v4646, %v4678
        %v4711 = vadd.f32 %v4647, %v4679
        %v4712 = vld [vmem:[#allocation19] sm:$0xff]
        %v4713 = vld [vmem:[#allocation19 + $0x8] sm:$0xff]
        %v4714 = vld [vmem:[#allocation19 + $0x10] sm:$0xff]
        %v4715 = vld [vmem:[#allocation19 + $0x18] sm:$0xff]
        %v4716 = vld [vmem:[#allocation19 + $0x20] sm:$0xff]
        %v4717 = vld [vmem:[#allocation19 + $0x28] sm:$0xff]
        %v4718 = vld [vmem:[#allocation19 + $0x30] sm:$0xff]
        %v4719 = vld [vmem:[#allocation19 + $0x38] sm:$0xff]
        %v4720 = vld [vmem:[#allocation19 + $0x40] sm:$0xff]
        %v4721 = vld [vmem:[#allocation19 + $0x48] sm:$0xff]
        %v4722 = vld [vmem:[#allocation19 + $0x50] sm:$0xff]
        %v4723 = vld [vmem:[#allocation19 + $0x58] sm:$0xff]
        %v4724 = vld [vmem:[%s17] sm:$0xff]
        %v4725 = vld [vmem:[%s17 + $0x8] sm:$0xff]
        %v4726 = vld [vmem:[%s17 + $0x10] sm:$0xff]
        %v4727 = vld [vmem:[%s17 + $0x18] sm:$0xff]
        %4728 = vrot.lane.b32.xlu0 %v4680, 33
        %v4729 = vpop.permute.xlu0 %4728
        %4730 = vrot.lane.b32.xlu0 %v4688, 33
        %v4731 = vpop.permute.xlu0 %4730
        %4732 = vrot.lane.b32.xlu0 %v4696, 33
        %v4733 = vpop.permute.xlu0 %4732
        %4734 = vrot.lane.b32.xlu0 %v4704, 33
        %v4735 = vpop.permute.xlu0 %4734
        %4736 = vrot.lane.b32.xlu0 %v4681, 33
        %v4737 = vpop.permute.xlu0 %4736
        %4738 = vrot.lane.b32.xlu0 %v4689, 33
        %v4739 = vpop.permute.xlu0 %4738
        %4740 = vrot.lane.b32.xlu0 %v4697, 33
        %v4741 = vpop.permute.xlu0 %4740
        %4742 = vrot.lane.b32.xlu0 %v4705, 33
        %v4743 = vpop.permute.xlu0 %4742
        %4744 = vrot.lane.b32.xlu0 %v4682, 33
        %v4745 = vpop.permute.xlu0 %4744
        %4746 = vrot.lane.b32.xlu0 %v4690, 33
        %v4747 = vpop.permute.xlu0 %4746
        %4748 = vrot.lane.b32.xlu0 %v4698, 33
        %v4749 = vpop.permute.xlu0 %4748
        %4750 = vrot.lane.b32.xlu0 %v4706, 33
        %v4751 = vpop.permute.xlu0 %4750
        %4752 = vrot.lane.b32.xlu0 %v4683, 33
        %v4753 = vpop.permute.xlu0 %4752
        %4754 = vrot.lane.b32.xlu0 %v4691, 33
        %v4755 = vpop.permute.xlu0 %4754
        %4756 = vrot.lane.b32.xlu0 %v4699, 33
        %v4757 = vpop.permute.xlu0 %4756
        %4758 = vrot.lane.b32.xlu0 %v4707, 33
        %v4759 = vpop.permute.xlu0 %4758
        %4760 = vrot.lane.b32.xlu0 %v4684, 33
        %v4761 = vpop.permute.xlu0 %4760
        %4762 = vrot.lane.b32.xlu0 %v4692, 33
        %v4763 = vpop.permute.xlu0 %4762
        %4764 = vrot.lane.b32.xlu0 %v4700, 33
        %v4765 = vpop.permute.xlu0 %4764
        %4766 = vrot.lane.b32.xlu0 %v4708, 33
        %v4767 = vpop.permute.xlu0 %4766
        %4768 = vrot.lane.b32.xlu0 %v4685, 33
        %v4769 = vpop.permute.xlu0 %4768
        %4770 = vrot.lane.b32.xlu0 %v4693, 33
        %v4771 = vpop.permute.xlu0 %4770
        %4772 = vrot.lane.b32.xlu0 %v4701, 33
        %v4773 = vpop.permute.xlu0 %4772
        %4774 = vrot.lane.b32.xlu0 %v4709, 33
        %v4775 = vpop.permute.xlu0 %4774
        %4776 = vrot.lane.b32.xlu0 %v4686, 33
        %v4777 = vpop.permute.xlu0 %4776
        %4778 = vrot.lane.b32.xlu0 %v4694, 33
        %v4779 = vpop.permute.xlu0 %4778
        %4780 = vrot.lane.b32.xlu0 %v4702, 33
        %v4781 = vpop.permute.xlu0 %4780
        %4782 = vrot.lane.b32.xlu0 %v4710, 33
        %v4783 = vpop.permute.xlu0 %4782
        %4784 = vrot.lane.b32.xlu0 %v4687, 33
        %v4785 = vpop.permute.xlu0 %4784
        %4786 = vrot.lane.b32.xlu0 %v4695, 33
        %v4787 = vpop.permute.xlu0 %4786
        %4788 = vrot.lane.b32.xlu0 %v4703, 33
        %v4789 = vpop.permute.xlu0 %4788
        %4790 = vrot.lane.b32.xlu0 %v4711, 33
        %v4791 = vpop.permute.xlu0 %4790
        %v4792 = vsel %vm2755, %v4777, %v4785
        %v4793 = vsel %vm2755, %v4779, %v4787
        %v4794 = vsel %vm2755, %v4781, %v4789
        %v4795 = vsel %vm2755, %v4783, %v4791
        %v4796 = vsel %vm2755, %v4769, %v4777
        %v4797 = vsel %vm2755, %v4771, %v4779
        %v4798 = vsel %vm2755, %v4773, %v4781
        %v4799 = vsel %vm2755, %v4775, %v4783
        %v4800 = vsel %vm2755, %v4761, %v4769
        %v4801 = vsel %vm2755, %v4763, %v4771
        %v4802 = vsel %vm2755, %v4765, %v4773
        %v4803 = vsel %vm2755, %v4767, %v4775
        %v4804 = vsel %vm2755, %v4753, %v4761
        %v4805 = vsel %vm2755, %v4755, %v4763
        %v4806 = vsel %vm2755, %v4757, %v4765
        %v4807 = vsel %vm2755, %v4759, %v4767
        %v4808 = vsel %vm2755, %v4745, %v4753
        %v4809 = vsel %vm2755, %v4747, %v4755
        %v4810 = vsel %vm2755, %v4749, %v4757
        %v4811 = vsel %vm2755, %v4751, %v4759
        %v4812 = vsel %vm2755, %v4737, %v4745
        %v4813 = vsel %vm2755, %v4739, %v4747
        %v4814 = vsel %vm2755, %v4741, %v4749
        %v4815 = vsel %vm2755, %v4743, %v4751
        %v4816 = vsel %vm2755, %v4729, %v4737
        %v4817 = vsel %vm2755, %v4731, %v4739
        %v4818 = vsel %vm2755, %v4733, %v4741
        %v4819 = vsel %vm2755, %v4735, %v4743
        %v4820 = vsel %vm2755, %v4785, %v4729
        %v4821 = vsel %vm2755, %v4787, %v4731
        %v4822 = vsel %vm2755, %v4789, %v4733
        %v4823 = vsel %vm2755, %v4791, %v4735
        %v4824 = vmul.f32 %v4820, %v2792
        %v4825 = vmul.f32 %v4816, %v2793
        %v4826 = vmul.f32 %v4812, %v2794
        %v4827 = vmul.f32 %v4808, %v2795
        %v4828 = vmul.f32 %v4804, %v2796
        %v4829 = vmul.f32 %v4800, %v2797
        %v4830 = vmul.f32 %v4796, %v2798
        %v4831 = vmul.f32 %v4792, %v2799
        %v4832 = vmul.f32 %v4821, %v2792
        %v4833 = vmul.f32 %v4817, %v2793
        %v4834 = vmul.f32 %v4813, %v2794
        %v4835 = vmul.f32 %v4809, %v2795
        %v4836 = vmul.f32 %v4805, %v2796
        %v4837 = vmul.f32 %v4801, %v2797
        %v4838 = vmul.f32 %v4797, %v2798
        %v4839 = vmul.f32 %v4793, %v2799
        %v4840 = vmul.f32 %v4822, %v2792
        %v4841 = vmul.f32 %v4818, %v2793
        %v4842 = vmul.f32 %v4814, %v2794
        %v4843 = vmul.f32 %v4810, %v2795
        %v4844 = vmul.f32 %v4806, %v2796
        %v4845 = vmul.f32 %v4802, %v2797
        %v4846 = vmul.f32 %v4798, %v2798
        %v4847 = vmul.f32 %v4794, %v2799
        %v4848 = vmul.f32 %v4823, %v2792
        %v4849 = vmul.f32 %v4819, %v2793
        %v4850 = vmul.f32 %v4815, %v2794
        %v4851 = vmul.f32 %v4811, %v2795
        %v4852 = vmul.f32 %v4807, %v2796
        %v4853 = vmul.f32 %v4803, %v2797
        %v4854 = vmul.f32 %v4799, %v2798
        %v4855 = vmul.f32 %v4795, %v2799
        %4856 = vrot.lane.b32.xlu0 %v4680, 32
        %v4857 = vpop.permute.xlu0 %4856
        %4858 = vrot.lane.b32.xlu0 %v4688, 32
        %v4859 = vpop.permute.xlu0 %4858
        %4860 = vrot.lane.b32.xlu0 %v4696, 32
        %v4861 = vpop.permute.xlu0 %4860
        %4862 = vrot.lane.b32.xlu0 %v4704, 32
        %v4863 = vpop.permute.xlu0 %4862
        %4864 = vrot.lane.b32.xlu0 %v4681, 32
        %v4865 = vpop.permute.xlu0 %4864
        %4866 = vrot.lane.b32.xlu0 %v4689, 32
        %v4867 = vpop.permute.xlu0 %4866
        %4868 = vrot.lane.b32.xlu0 %v4697, 32
        %v4869 = vpop.permute.xlu0 %4868
        %4870 = vrot.lane.b32.xlu0 %v4705, 32
        %v4871 = vpop.permute.xlu0 %4870
        %4872 = vrot.lane.b32.xlu0 %v4682, 32
        %v4873 = vpop.permute.xlu0 %4872
        %4874 = vrot.lane.b32.xlu0 %v4690, 32
        %v4875 = vpop.permute.xlu0 %4874
        %4876 = vrot.lane.b32.xlu0 %v4698, 32
        %v4877 = vpop.permute.xlu0 %4876
        %4878 = vrot.lane.b32.xlu0 %v4706, 32
        %v4879 = vpop.permute.xlu0 %4878
        %4880 = vrot.lane.b32.xlu0 %v4683, 32
        %v4881 = vpop.permute.xlu0 %4880
        %4882 = vrot.lane.b32.xlu0 %v4691, 32
        %v4883 = vpop.permute.xlu0 %4882
        %4884 = vrot.lane.b32.xlu0 %v4699, 32
        %v4885 = vpop.permute.xlu0 %4884
        %4886 = vrot.lane.b32.xlu0 %v4707, 32
        %v4887 = vpop.permute.xlu0 %4886
        %4888 = vrot.lane.b32.xlu0 %v4684, 32
        %v4889 = vpop.permute.xlu0 %4888
        %4890 = vrot.lane.b32.xlu0 %v4692, 32
        %v4891 = vpop.permute.xlu0 %4890
        %4892 = vrot.lane.b32.xlu0 %v4700, 32
        %v4893 = vpop.permute.xlu0 %4892
        %4894 = vrot.lane.b32.xlu0 %v4708, 32
        %v4895 = vpop.permute.xlu0 %4894
        %4896 = vrot.lane.b32.xlu0 %v4685, 32
        %v4897 = vpop.permute.xlu0 %4896
        %4898 = vrot.lane.b32.xlu0 %v4693, 32
        %v4899 = vpop.permute.xlu0 %4898
        %4900 = vrot.lane.b32.xlu0 %v4701, 32
        %v4901 = vpop.permute.xlu0 %4900
        %4902 = vrot.lane.b32.xlu0 %v4709, 32
        %v4903 = vpop.permute.xlu0 %4902
        %4904 = vrot.lane.b32.xlu0 %v4686, 32
        %v4905 = vpop.permute.xlu0 %4904
        %4906 = vrot.lane.b32.xlu0 %v4694, 32
        %v4907 = vpop.permute.xlu0 %4906
        %4908 = vrot.lane.b32.xlu0 %v4702, 32
        %v4909 = vpop.permute.xlu0 %4908
        %4910 = vrot.lane.b32.xlu0 %v4710, 32
        %v4911 = vpop.permute.xlu0 %4910
        %4912 = vrot.lane.b32.xlu0 %v4687, 32
        %v4913 = vpop.permute.xlu0 %4912
        %4914 = vrot.lane.b32.xlu0 %v4695, 32
        %v4915 = vpop.permute.xlu0 %4914
        %4916 = vrot.lane.b32.xlu0 %v4703, 32
        %v4917 = vpop.permute.xlu0 %4916
        %4918 = vrot.lane.b32.xlu0 %v4711, 32
        %v4919 = vpop.permute.xlu0 %4918
        %v4920 = vsel %vm2904, %v4905, %v4913
        %v4921 = vsel %vm2904, %v4907, %v4915
        %v4922 = vsel %vm2904, %v4909, %v4917
        %v4923 = vsel %vm2904, %v4911, %v4919
        %v4924 = vsel %vm2904, %v4897, %v4905
        %v4925 = vsel %vm2904, %v4899, %v4907
        %v4926 = vsel %vm2904, %v4901, %v4909
        %v4927 = vsel %vm2904, %v4903, %v4911
        %v4928 = vsel %vm2904, %v4889, %v4897
        %v4929 = vsel %vm2904, %v4891, %v4899
        %v4930 = vsel %vm2904, %v4893, %v4901
        %v4931 = vsel %vm2904, %v4895, %v4903
        %v4932 = vsel %vm2904, %v4881, %v4889
        %v4933 = vsel %vm2904, %v4883, %v4891
        %v4934 = vsel %vm2904, %v4885, %v4893
        %v4935 = vsel %vm2904, %v4887, %v4895
        %v4936 = vsel %vm2904, %v4873, %v4881
        %v4937 = vsel %vm2904, %v4875, %v4883
        %v4938 = vsel %vm2904, %v4877, %v4885
        %v4939 = vsel %vm2904, %v4879, %v4887
        %v4940 = vsel %vm2904, %v4865, %v4873
        %v4941 = vsel %vm2904, %v4867, %v4875
        %v4942 = vsel %vm2904, %v4869, %v4877
        %v4943 = vsel %vm2904, %v4871, %v4879
        %v4944 = vsel %vm2904, %v4857, %v4865
        %v4945 = vsel %vm2904, %v4859, %v4867
        %v4946 = vsel %vm2904, %v4861, %v4869
        %v4947 = vsel %vm2904, %v4863, %v4871
        %v4948 = vsel %vm2904, %v4913, %v4857
        %v4949 = vsel %vm2904, %v4915, %v4859
        %v4950 = vsel %vm2904, %v4917, %v4861
        %v4951 = vsel %vm2904, %v4919, %v4863
        %v4952 = vmul.f32 %v4948, %v2942
        %v4953 = vmul.f32 %v4944, %v2943
        %v4954 = vmul.f32 %v4940, %v2944
        %v4955 = vmul.f32 %v4936, %v2945
        %v4956 = vmul.f32 %v4932, %v2946
        %v4957 = vmul.f32 %v4928, %v2947
        %v4958 = vmul.f32 %v4924, %v2948
        %v4959 = vmul.f32 %v4920, %v2949
        %v4960 = vmul.f32 %v4949, %v2942
        %v4961 = vmul.f32 %v4945, %v2943
        %v4962 = vmul.f32 %v4941, %v2944
        %v4963 = vmul.f32 %v4937, %v2945
        %v4964 = vmul.f32 %v4933, %v2946
        %v4965 = vmul.f32 %v4929, %v2947
        %v4966 = vmul.f32 %v4925, %v2948
        %v4967 = vmul.f32 %v4921, %v2949
        %v4968 = vmul.f32 %v4950, %v2942
        %v4969 = vmul.f32 %v4946, %v2943
        %v4970 = vmul.f32 %v4942, %v2944
        %v4971 = vmul.f32 %v4938, %v2945
        %v4972 = vmul.f32 %v4934, %v2946
        %v4973 = vmul.f32 %v4930, %v2947
        %v4974 = vmul.f32 %v4926, %v2948
        %v4975 = vmul.f32 %v4922, %v2949
        %v4976 = vmul.f32 %v4951, %v2942
        %v4977 = vmul.f32 %v4947, %v2943
        %v4978 = vmul.f32 %v4943, %v2944
        %v4979 = vmul.f32 %v4939, %v2945
        %v4980 = vmul.f32 %v4935, %v2946
        %v4981 = vmul.f32 %v4931, %v2947
        %v4982 = vmul.f32 %v4927, %v2948
        %v4983 = vmul.f32 %v4923, %v2949
        %4984 = vrot.lane.b32.xlu0 %v4680, 31
        %v4985 = vpop.permute.xlu0 %4984
        %4986 = vrot.lane.b32.xlu0 %v4688, 31
        %v4987 = vpop.permute.xlu0 %4986
        %4988 = vrot.lane.b32.xlu0 %v4696, 31
        %v4989 = vpop.permute.xlu0 %4988
        %4990 = vrot.lane.b32.xlu0 %v4704, 31
        %v4991 = vpop.permute.xlu0 %4990
        %4992 = vrot.lane.b32.xlu0 %v4681, 31
        %v4993 = vpop.permute.xlu0 %4992
        %4994 = vrot.lane.b32.xlu0 %v4689, 31
        %v4995 = vpop.permute.xlu0 %4994
        %4996 = vrot.lane.b32.xlu0 %v4697, 31
        %v4997 = vpop.permute.xlu0 %4996
        %4998 = vrot.lane.b32.xlu0 %v4705, 31
        %v4999 = vpop.permute.xlu0 %4998
        %5000 = vrot.lane.b32.xlu0 %v4682, 31
        %v5001 = vpop.permute.xlu0 %5000
        %5002 = vrot.lane.b32.xlu0 %v4690, 31
        %v5003 = vpop.permute.xlu0 %5002
        %5004 = vrot.lane.b32.xlu0 %v4698, 31
        %v5005 = vpop.permute.xlu0 %5004
        %5006 = vrot.lane.b32.xlu0 %v4706, 31
        %v5007 = vpop.permute.xlu0 %5006
        %5008 = vrot.lane.b32.xlu0 %v4683, 31
        %v5009 = vpop.permute.xlu0 %5008
        %5010 = vrot.lane.b32.xlu0 %v4691, 31
        %v5011 = vpop.permute.xlu0 %5010
        %5012 = vrot.lane.b32.xlu0 %v4699, 31
        %v5013 = vpop.permute.xlu0 %5012
        %5014 = vrot.lane.b32.xlu0 %v4707, 31
        %v5015 = vpop.permute.xlu0 %5014
        %5016 = vrot.lane.b32.xlu0 %v4684, 31
        %v5017 = vpop.permute.xlu0 %5016
        %5018 = vrot.lane.b32.xlu0 %v4692, 31
        %v5019 = vpop.permute.xlu0 %5018
        %5020 = vrot.lane.b32.xlu0 %v4700, 31
        %v5021 = vpop.permute.xlu0 %5020
        %5022 = vrot.lane.b32.xlu0 %v4708, 31
        %v5023 = vpop.permute.xlu0 %5022
        %5024 = vrot.lane.b32.xlu0 %v4685, 31
        %v5025 = vpop.permute.xlu0 %5024
        %5026 = vrot.lane.b32.xlu0 %v4693, 31
        %v5027 = vpop.permute.xlu0 %5026
        %5028 = vrot.lane.b32.xlu0 %v4701, 31
        %v5029 = vpop.permute.xlu0 %5028
        %5030 = vrot.lane.b32.xlu0 %v4709, 31
        %v5031 = vpop.permute.xlu0 %5030
        %5032 = vrot.lane.b32.xlu0 %v4686, 31
        %v5033 = vpop.permute.xlu0 %5032
        %5034 = vrot.lane.b32.xlu0 %v4694, 31
        %v5035 = vpop.permute.xlu0 %5034
        %5036 = vrot.lane.b32.xlu0 %v4702, 31
        %v5037 = vpop.permute.xlu0 %5036
        %5038 = vrot.lane.b32.xlu0 %v4710, 31
        %v5039 = vpop.permute.xlu0 %5038
        %5040 = vrot.lane.b32.xlu0 %v4687, 31
        %v5041 = vpop.permute.xlu0 %5040
        %5042 = vrot.lane.b32.xlu0 %v4695, 31
        %v5043 = vpop.permute.xlu0 %5042
        %5044 = vrot.lane.b32.xlu0 %v4703, 31
        %v5045 = vpop.permute.xlu0 %5044
        %5046 = vrot.lane.b32.xlu0 %v4711, 31
        %v5047 = vpop.permute.xlu0 %5046
        %v5048 = vsel %vm3054, %v5033, %v5041
        %v5049 = vsel %vm3054, %v5035, %v5043
        %v5050 = vsel %vm3054, %v5037, %v5045
        %v5051 = vsel %vm3054, %v5039, %v5047
        %v5052 = vsel %vm3054, %v5025, %v5033
        %v5053 = vsel %vm3054, %v5027, %v5035
        %v5054 = vsel %vm3054, %v5029, %v5037
        %v5055 = vsel %vm3054, %v5031, %v5039
        %v5056 = vsel %vm3054, %v5017, %v5025
        %v5057 = vsel %vm3054, %v5019, %v5027
        %v5058 = vsel %vm3054, %v5021, %v5029
        %v5059 = vsel %vm3054, %v5023, %v5031
        %v5060 = vsel %vm3054, %v5009, %v5017
        %v5061 = vsel %vm3054, %v5011, %v5019
        %v5062 = vsel %vm3054, %v5013, %v5021
        %v5063 = vsel %vm3054, %v5015, %v5023
        %v5064 = vsel %vm3054, %v5001, %v5009
        %v5065 = vsel %vm3054, %v5003, %v5011
        %v5066 = vsel %vm3054, %v5005, %v5013
        %v5067 = vsel %vm3054, %v5007, %v5015
        %v5068 = vsel %vm3054, %v4993, %v5001
        %v5069 = vsel %vm3054, %v4995, %v5003
        %v5070 = vsel %vm3054, %v4997, %v5005
        %v5071 = vsel %vm3054, %v4999, %v5007
        %v5072 = vsel %vm3054, %v4985, %v4993
        %v5073 = vsel %vm3054, %v4987, %v4995
        %v5074 = vsel %vm3054, %v4989, %v4997
        %v5075 = vsel %vm3054, %v4991, %v4999
        %v5076 = vsel %vm3054, %v5041, %v4985
        %v5077 = vsel %vm3054, %v5043, %v4987
        %v5078 = vsel %vm3054, %v5045, %v4989
        %v5079 = vsel %vm3054, %v5047, %v4991
        %v5080 = vmul.f32 %v5076, %v3092
        %v5081 = vmul.f32 %v5072, %v3093
        %v5082 = vmul.f32 %v5068, %v3094
        %v5083 = vmul.f32 %v5064, %v3095
        %v5084 = vmul.f32 %v5060, %v3096
        %v5085 = vmul.f32 %v5056, %v3097
        %v5086 = vmul.f32 %v5052, %v3098
        %v5087 = vmul.f32 %v5048, %v3099
        %v5088 = vmul.f32 %v5077, %v3092
        %v5089 = vmul.f32 %v5073, %v3093
        %v5090 = vmul.f32 %v5069, %v3094
        %v5091 = vmul.f32 %v5065, %v3095
        %v5092 = vmul.f32 %v5061, %v3096
        %v5093 = vmul.f32 %v5057, %v3097
        %v5094 = vmul.f32 %v5053, %v3098
        %v5095 = vmul.f32 %v5049, %v3099
        %v5096 = vmul.f32 %v5078, %v3092
        %v5097 = vmul.f32 %v5074, %v3093
        %v5098 = vmul.f32 %v5070, %v3094
        %v5099 = vmul.f32 %v5066, %v3095
        %v5100 = vmul.f32 %v5062, %v3096
        %v5101 = vmul.f32 %v5058, %v3097
        %v5102 = vmul.f32 %v5054, %v3098
        %v5103 = vmul.f32 %v5050, %v3099
        %v5104 = vmul.f32 %v5079, %v3092
        %v5105 = vmul.f32 %v5075, %v3093
        %v5106 = vmul.f32 %v5071, %v3094
        %v5107 = vmul.f32 %v5067, %v3095
        %v5108 = vmul.f32 %v5063, %v3096
        %v5109 = vmul.f32 %v5059, %v3097
        %v5110 = vmul.f32 %v5055, %v3098
        %v5111 = vmul.f32 %v5051, %v3099
        %5112 = vrot.lane.b32.xlu0 %v4680, 1
        %v5113 = vpop.permute.xlu0 %5112
        %5114 = vrot.lane.b32.xlu0 %v4688, 1
        %v5115 = vpop.permute.xlu0 %5114
        %5116 = vrot.lane.b32.xlu0 %v4696, 1
        %v5117 = vpop.permute.xlu0 %5116
        %5118 = vrot.lane.b32.xlu0 %v4704, 1
        %v5119 = vpop.permute.xlu0 %5118
        %5120 = vrot.lane.b32.xlu0 %v4681, 1
        %v5121 = vpop.permute.xlu0 %5120
        %5122 = vrot.lane.b32.xlu0 %v4689, 1
        %v5123 = vpop.permute.xlu0 %5122
        %5124 = vrot.lane.b32.xlu0 %v4697, 1
        %v5125 = vpop.permute.xlu0 %5124
        %5126 = vrot.lane.b32.xlu0 %v4705, 1
        %v5127 = vpop.permute.xlu0 %5126
        %5128 = vrot.lane.b32.xlu0 %v4682, 1
        %v5129 = vpop.permute.xlu0 %5128
        %5130 = vrot.lane.b32.xlu0 %v4690, 1
        %v5131 = vpop.permute.xlu0 %5130
        %5132 = vrot.lane.b32.xlu0 %v4698, 1
        %v5133 = vpop.permute.xlu0 %5132
        %5134 = vrot.lane.b32.xlu0 %v4706, 1
        %v5135 = vpop.permute.xlu0 %5134
        %5136 = vrot.lane.b32.xlu0 %v4683, 1
        %v5137 = vpop.permute.xlu0 %5136
        %5138 = vrot.lane.b32.xlu0 %v4691, 1
        %v5139 = vpop.permute.xlu0 %5138
        %5140 = vrot.lane.b32.xlu0 %v4699, 1
        %v5141 = vpop.permute.xlu0 %5140
        %5142 = vrot.lane.b32.xlu0 %v4707, 1
        %v5143 = vpop.permute.xlu0 %5142
        %5144 = vrot.lane.b32.xlu0 %v4684, 1
        %v5145 = vpop.permute.xlu0 %5144
        %5146 = vrot.lane.b32.xlu0 %v4692, 1
        %v5147 = vpop.permute.xlu0 %5146
        %5148 = vrot.lane.b32.xlu0 %v4700, 1
        %v5149 = vpop.permute.xlu0 %5148
        %5150 = vrot.lane.b32.xlu0 %v4708, 1
        %v5151 = vpop.permute.xlu0 %5150
        %5152 = vrot.lane.b32.xlu0 %v4685, 1
        %v5153 = vpop.permute.xlu0 %5152
        %5154 = vrot.lane.b32.xlu0 %v4693, 1
        %v5155 = vpop.permute.xlu0 %5154
        %5156 = vrot.lane.b32.xlu0 %v4701, 1
        %v5157 = vpop.permute.xlu0 %5156
        %5158 = vrot.lane.b32.xlu0 %v4709, 1
        %v5159 = vpop.permute.xlu0 %5158
        %5160 = vrot.lane.b32.xlu0 %v4686, 1
        %v5161 = vpop.permute.xlu0 %5160
        %5162 = vrot.lane.b32.xlu0 %v4694, 1
        %v5163 = vpop.permute.xlu0 %5162
        %5164 = vrot.lane.b32.xlu0 %v4702, 1
        %v5165 = vpop.permute.xlu0 %5164
        %5166 = vrot.lane.b32.xlu0 %v4710, 1
        %v5167 = vpop.permute.xlu0 %5166
        %5168 = vrot.lane.b32.xlu0 %v4687, 1
        %v5169 = vpop.permute.xlu0 %5168
        %5170 = vrot.lane.b32.xlu0 %v4695, 1
        %v5171 = vpop.permute.xlu0 %5170
        %5172 = vrot.lane.b32.xlu0 %v4703, 1
        %v5173 = vpop.permute.xlu0 %5172
        %5174 = vrot.lane.b32.xlu0 %v4711, 1
        %v5175 = vpop.permute.xlu0 %5174
        %v5176 = vsel %vm1541, %v5161, %v5169
        %v5177 = vsel %vm1541, %v5163, %v5171
        %v5178 = vsel %vm1541, %v5165, %v5173
        %v5179 = vsel %vm1541, %v5167, %v5175
        %v5180 = vsel %vm1541, %v5153, %v5161
        %v5181 = vsel %vm1541, %v5155, %v5163
        %v5182 = vsel %vm1541, %v5157, %v5165
        %v5183 = vsel %vm1541, %v5159, %v5167
        %v5184 = vsel %vm1541, %v5145, %v5153
        %v5185 = vsel %vm1541, %v5147, %v5155
        %v5186 = vsel %vm1541, %v5149, %v5157
        %v5187 = vsel %vm1541, %v5151, %v5159
        %v5188 = vsel %vm1541, %v5137, %v5145
        %v5189 = vsel %vm1541, %v5139, %v5147
        %v5190 = vsel %vm1541, %v5141, %v5149
        %v5191 = vsel %vm1541, %v5143, %v5151
        %v5192 = vsel %vm1541, %v5129, %v5137
        %v5193 = vsel %vm1541, %v5131, %v5139
        %v5194 = vsel %vm1541, %v5133, %v5141
        %v5195 = vsel %vm1541, %v5135, %v5143
        %v5196 = vsel %vm1541, %v5121, %v5129
        %v5197 = vsel %vm1541, %v5123, %v5131
        %v5198 = vsel %vm1541, %v5125, %v5133
        %v5199 = vsel %vm1541, %v5127, %v5135
        %v5200 = vsel %vm1541, %v5113, %v5121
        %v5201 = vsel %vm1541, %v5115, %v5123
        %v5202 = vsel %vm1541, %v5117, %v5125
        %v5203 = vsel %vm1541, %v5119, %v5127
        %v5204 = vsel %vm1541, %v5169, %v5113
        %v5205 = vsel %vm1541, %v5171, %v5115
        %v5206 = vsel %vm1541, %v5173, %v5117
        %v5207 = vsel %vm1541, %v5175, %v5119
        %v5208 = vmul.f32 %v5204, %v3241
        %v5209 = vmul.f32 %v5200, %v3242
        %v5210 = vmul.f32 %v5196, %v3243
        %v5211 = vmul.f32 %v5192, %v3244
        %v5212 = vmul.f32 %v5188, %v3245
        %v5213 = vmul.f32 %v5184, %v3246
        %v5214 = vmul.f32 %v5180, %v3247
        %v5215 = vmul.f32 %v5176, %v3248
        %v5216 = vmul.f32 %v5205, %v3241
        %v5217 = vmul.f32 %v5201, %v3242
        %v5218 = vmul.f32 %v5197, %v3243
        %v5219 = vmul.f32 %v5193, %v3244
        %v5220 = vmul.f32 %v5189, %v3245
        %v5221 = vmul.f32 %v5185, %v3246
        %v5222 = vmul.f32 %v5181, %v3247
        %v5223 = vmul.f32 %v5177, %v3248
        %v5224 = vmul.f32 %v5206, %v3241
        %v5225 = vmul.f32 %v5202, %v3242
        %v5226 = vmul.f32 %v5198, %v3243
        %v5227 = vmul.f32 %v5194, %v3244
        %v5228 = vmul.f32 %v5190, %v3245
        %v5229 = vmul.f32 %v5186, %v3246
        %v5230 = vmul.f32 %v5182, %v3247
        %v5231 = vmul.f32 %v5178, %v3248
        %v5232 = vmul.f32 %v5207, %v3241
        %v5233 = vmul.f32 %v5203, %v3242
        %v5234 = vmul.f32 %v5199, %v3243
        %v5235 = vmul.f32 %v5195, %v3244
        %v5236 = vmul.f32 %v5191, %v3245
        %v5237 = vmul.f32 %v5187, %v3246
        %v5238 = vmul.f32 %v5183, %v3247
        %v5239 = vmul.f32 %v5179, %v3248
        %5240 = vrot.lane.b32.xlu0 %v4680, 127
        %v5241 = vpop.permute.xlu0 %5240
        %5242 = vrot.lane.b32.xlu0 %v4688, 127
        %v5243 = vpop.permute.xlu0 %5242
        %5244 = vrot.lane.b32.xlu0 %v4696, 127
        %v5245 = vpop.permute.xlu0 %5244
        %5246 = vrot.lane.b32.xlu0 %v4704, 127
        %v5247 = vpop.permute.xlu0 %5246
        %5248 = vrot.lane.b32.xlu0 %v4681, 127
        %v5249 = vpop.permute.xlu0 %5248
        %5250 = vrot.lane.b32.xlu0 %v4689, 127
        %v5251 = vpop.permute.xlu0 %5250
        %5252 = vrot.lane.b32.xlu0 %v4697, 127
        %v5253 = vpop.permute.xlu0 %5252
        %5254 = vrot.lane.b32.xlu0 %v4705, 127
        %v5255 = vpop.permute.xlu0 %5254
        %5256 = vrot.lane.b32.xlu0 %v4682, 127
        %v5257 = vpop.permute.xlu0 %5256
        %5258 = vrot.lane.b32.xlu0 %v4690, 127
        %v5259 = vpop.permute.xlu0 %5258
        %5260 = vrot.lane.b32.xlu0 %v4698, 127
        %v5261 = vpop.permute.xlu0 %5260
        %5262 = vrot.lane.b32.xlu0 %v4706, 127
        %v5263 = vpop.permute.xlu0 %5262
        %5264 = vrot.lane.b32.xlu0 %v4683, 127
        %v5265 = vpop.permute.xlu0 %5264
        %5266 = vrot.lane.b32.xlu0 %v4691, 127
        %v5267 = vpop.permute.xlu0 %5266
        %5268 = vrot.lane.b32.xlu0 %v4699, 127
        %v5269 = vpop.permute.xlu0 %5268
        %5270 = vrot.lane.b32.xlu0 %v4707, 127
        %v5271 = vpop.permute.xlu0 %5270
        %5272 = vrot.lane.b32.xlu0 %v4684, 127
        %v5273 = vpop.permute.xlu0 %5272
        %5274 = vrot.lane.b32.xlu0 %v4692, 127
        %v5275 = vpop.permute.xlu0 %5274
        %5276 = vrot.lane.b32.xlu0 %v4700, 127
        %v5277 = vpop.permute.xlu0 %5276
        %5278 = vrot.lane.b32.xlu0 %v4708, 127
        %v5279 = vpop.permute.xlu0 %5278
        %5280 = vrot.lane.b32.xlu0 %v4685, 127
        %v5281 = vpop.permute.xlu0 %5280
        %5282 = vrot.lane.b32.xlu0 %v4693, 127
        %v5283 = vpop.permute.xlu0 %5282
        %5284 = vrot.lane.b32.xlu0 %v4701, 127
        %v5285 = vpop.permute.xlu0 %5284
        %5286 = vrot.lane.b32.xlu0 %v4709, 127
        %v5287 = vpop.permute.xlu0 %5286
        %5288 = vrot.lane.b32.xlu0 %v4686, 127
        %v5289 = vpop.permute.xlu0 %5288
        %5290 = vrot.lane.b32.xlu0 %v4694, 127
        %v5291 = vpop.permute.xlu0 %5290
        %5292 = vrot.lane.b32.xlu0 %v4702, 127
        %v5293 = vpop.permute.xlu0 %5292
        %5294 = vrot.lane.b32.xlu0 %v4710, 127
        %v5295 = vpop.permute.xlu0 %5294
        %5296 = vrot.lane.b32.xlu0 %v4687, 127
        %v5297 = vpop.permute.xlu0 %5296
        %5298 = vrot.lane.b32.xlu0 %v4695, 127
        %v5299 = vpop.permute.xlu0 %5298
        %5300 = vrot.lane.b32.xlu0 %v4703, 127
        %v5301 = vpop.permute.xlu0 %5300
        %5302 = vrot.lane.b32.xlu0 %v4711, 127
        %v5303 = vpop.permute.xlu0 %5302
        %v5304 = vsel %vm1581, %v5289, %v5297
        %v5305 = vsel %vm1581, %v5291, %v5299
        %v5306 = vsel %vm1581, %v5293, %v5301
        %v5307 = vsel %vm1581, %v5295, %v5303
        %v5308 = vsel %vm1581, %v5281, %v5289
        %v5309 = vsel %vm1581, %v5283, %v5291
        %v5310 = vsel %vm1581, %v5285, %v5293
        %v5311 = vsel %vm1581, %v5287, %v5295
        %v5312 = vsel %vm1581, %v5273, %v5281
        %v5313 = vsel %vm1581, %v5275, %v5283
        %v5314 = vsel %vm1581, %v5277, %v5285
        %v5315 = vsel %vm1581, %v5279, %v5287
        %v5316 = vsel %vm1581, %v5265, %v5273
        %v5317 = vsel %vm1581, %v5267, %v5275
        %v5318 = vsel %vm1581, %v5269, %v5277
        %v5319 = vsel %vm1581, %v5271, %v5279
        %v5320 = vsel %vm1581, %v5257, %v5265
        %v5321 = vsel %vm1581, %v5259, %v5267
        %v5322 = vsel %vm1581, %v5261, %v5269
        %v5323 = vsel %vm1581, %v5263, %v5271
        %v5324 = vsel %vm1581, %v5249, %v5257
        %v5325 = vsel %vm1581, %v5251, %v5259
        %v5326 = vsel %vm1581, %v5253, %v5261
        %v5327 = vsel %vm1581, %v5255, %v5263
        %v5328 = vsel %vm1581, %v5241, %v5249
        %v5329 = vsel %vm1581, %v5243, %v5251
        %v5330 = vsel %vm1581, %v5245, %v5253
        %v5331 = vsel %vm1581, %v5247, %v5255
        %v5332 = vsel %vm1581, %v5297, %v5241
        %v5333 = vsel %vm1581, %v5299, %v5243
        %v5334 = vsel %vm1581, %v5301, %v5245
        %v5335 = vsel %vm1581, %v5303, %v5247
        %v5336 = vmul.f32 %v5328, %v3390
        %v5337 = vmul.f32 %v5324, %v3391
        %v5338 = vmul.f32 %v5320, %v3392
        %v5339 = vmul.f32 %v5316, %v3393
        %v5340 = vmul.f32 %v5312, %v3394
        %v5341 = vmul.f32 %v5308, %v3395
        %v5342 = vmul.f32 %v5304, %v3396
        %v5343 = vmul.f32 %v5332, %v3397
        %v5344 = vmul.f32 %v5329, %v3390
        %v5345 = vmul.f32 %v5325, %v3391
        %v5346 = vmul.f32 %v5321, %v3392
        %v5347 = vmul.f32 %v5317, %v3393
        %v5348 = vmul.f32 %v5313, %v3394
        %v5349 = vmul.f32 %v5309, %v3395
        %v5350 = vmul.f32 %v5305, %v3396
        %v5351 = vmul.f32 %v5333, %v3397
        %v5352 = vmul.f32 %v5330, %v3390
        %v5353 = vmul.f32 %v5326, %v3391
        %v5354 = vmul.f32 %v5322, %v3392
        %v5355 = vmul.f32 %v5318, %v3393
        %v5356 = vmul.f32 %v5314, %v3394
        %v5357 = vmul.f32 %v5310, %v3395
        %v5358 = vmul.f32 %v5306, %v3396
        %v5359 = vmul.f32 %v5334, %v3397
        %v5360 = vmul.f32 %v5331, %v3390
        %v5361 = vmul.f32 %v5327, %v3391
        %v5362 = vmul.f32 %v5323, %v3392
        %v5363 = vmul.f32 %v5319, %v3393
        %v5364 = vmul.f32 %v5315, %v3394
        %v5365 = vmul.f32 %v5311, %v3395
        %v5366 = vmul.f32 %v5307, %v3396
        %v5367 = vmul.f32 %v5335, %v3397
        %5368 = vrot.lane.b32.xlu0 %v4680, 97
        %v5369 = vpop.permute.xlu0 %5368
        %5370 = vrot.lane.b32.xlu0 %v4688, 97
        %v5371 = vpop.permute.xlu0 %5370
        %5372 = vrot.lane.b32.xlu0 %v4696, 97
        %v5373 = vpop.permute.xlu0 %5372
        %5374 = vrot.lane.b32.xlu0 %v4704, 97
        %v5375 = vpop.permute.xlu0 %5374
        %5376 = vrot.lane.b32.xlu0 %v4681, 97
        %v5377 = vpop.permute.xlu0 %5376
        %5378 = vrot.lane.b32.xlu0 %v4689, 97
        %v5379 = vpop.permute.xlu0 %5378
        %5380 = vrot.lane.b32.xlu0 %v4697, 97
        %v5381 = vpop.permute.xlu0 %5380
        %5382 = vrot.lane.b32.xlu0 %v4705, 97
        %v5383 = vpop.permute.xlu0 %5382
        %5384 = vrot.lane.b32.xlu0 %v4682, 97
        %v5385 = vpop.permute.xlu0 %5384
        %5386 = vrot.lane.b32.xlu0 %v4690, 97
        %v5387 = vpop.permute.xlu0 %5386
        %5388 = vrot.lane.b32.xlu0 %v4698, 97
        %v5389 = vpop.permute.xlu0 %5388
        %5390 = vrot.lane.b32.xlu0 %v4706, 97
        %v5391 = vpop.permute.xlu0 %5390
        %5392 = vrot.lane.b32.xlu0 %v4683, 97
        %v5393 = vpop.permute.xlu0 %5392
        %5394 = vrot.lane.b32.xlu0 %v4691, 97
        %v5395 = vpop.permute.xlu0 %5394
        %5396 = vrot.lane.b32.xlu0 %v4699, 97
        %v5397 = vpop.permute.xlu0 %5396
        %5398 = vrot.lane.b32.xlu0 %v4707, 97
        %v5399 = vpop.permute.xlu0 %5398
        %5400 = vrot.lane.b32.xlu0 %v4684, 97
        %v5401 = vpop.permute.xlu0 %5400
        %5402 = vrot.lane.b32.xlu0 %v4692, 97
        %v5403 = vpop.permute.xlu0 %5402
        %5404 = vrot.lane.b32.xlu0 %v4700, 97
        %v5405 = vpop.permute.xlu0 %5404
        %5406 = vrot.lane.b32.xlu0 %v4708, 97
        %v5407 = vpop.permute.xlu0 %5406
        %5408 = vrot.lane.b32.xlu0 %v4685, 97
        %v5409 = vpop.permute.xlu0 %5408
        %5410 = vrot.lane.b32.xlu0 %v4693, 97
        %v5411 = vpop.permute.xlu0 %5410
        %5412 = vrot.lane.b32.xlu0 %v4701, 97
        %v5413 = vpop.permute.xlu0 %5412
        %5414 = vrot.lane.b32.xlu0 %v4709, 97
        %v5415 = vpop.permute.xlu0 %5414
        %5416 = vrot.lane.b32.xlu0 %v4686, 97
        %v5417 = vpop.permute.xlu0 %5416
        %5418 = vrot.lane.b32.xlu0 %v4694, 97
        %v5419 = vpop.permute.xlu0 %5418
        %5420 = vrot.lane.b32.xlu0 %v4702, 97
        %v5421 = vpop.permute.xlu0 %5420
        %5422 = vrot.lane.b32.xlu0 %v4710, 97
        %v5423 = vpop.permute.xlu0 %5422
        %5424 = vrot.lane.b32.xlu0 %v4687, 97
        %v5425 = vpop.permute.xlu0 %5424
        %5426 = vrot.lane.b32.xlu0 %v4695, 97
        %v5427 = vpop.permute.xlu0 %5426
        %5428 = vrot.lane.b32.xlu0 %v4703, 97
        %v5429 = vpop.permute.xlu0 %5428
        %5430 = vrot.lane.b32.xlu0 %v4711, 97
        %v5431 = vpop.permute.xlu0 %5430
        %v5432 = vsel %vm3502, %v5417, %v5425
        %v5433 = vsel %vm3502, %v5419, %v5427
        %v5434 = vsel %vm3502, %v5421, %v5429
        %v5435 = vsel %vm3502, %v5423, %v5431
        %v5436 = vsel %vm3502, %v5409, %v5417
        %v5437 = vsel %vm3502, %v5411, %v5419
        %v5438 = vsel %vm3502, %v5413, %v5421
        %v5439 = vsel %vm3502, %v5415, %v5423
        %v5440 = vsel %vm3502, %v5401, %v5409
        %v5441 = vsel %vm3502, %v5403, %v5411
        %v5442 = vsel %vm3502, %v5405, %v5413
        %v5443 = vsel %vm3502, %v5407, %v5415
        %v5444 = vsel %vm3502, %v5393, %v5401
        %v5445 = vsel %vm3502, %v5395, %v5403
        %v5446 = vsel %vm3502, %v5397, %v5405
        %v5447 = vsel %vm3502, %v5399, %v5407
        %v5448 = vsel %vm3502, %v5385, %v5393
        %v5449 = vsel %vm3502, %v5387, %v5395
        %v5450 = vsel %vm3502, %v5389, %v5397
        %v5451 = vsel %vm3502, %v5391, %v5399
        %v5452 = vsel %vm3502, %v5377, %v5385
        %v5453 = vsel %vm3502, %v5379, %v5387
        %v5454 = vsel %vm3502, %v5381, %v5389
        %v5455 = vsel %vm3502, %v5383, %v5391
        %v5456 = vsel %vm3502, %v5369, %v5377
        %v5457 = vsel %vm3502, %v5371, %v5379
        %v5458 = vsel %vm3502, %v5373, %v5381
        %v5459 = vsel %vm3502, %v5375, %v5383
        %v5460 = vsel %vm3502, %v5425, %v5369
        %v5461 = vsel %vm3502, %v5427, %v5371
        %v5462 = vsel %vm3502, %v5429, %v5373
        %v5463 = vsel %vm3502, %v5431, %v5375
        %v5464 = vmul.f32 %v5456, %v3540
        %v5465 = vmul.f32 %v5452, %v3541
        %v5466 = vmul.f32 %v5448, %v3542
        %v5467 = vmul.f32 %v5444, %v3543
        %v5468 = vmul.f32 %v5440, %v3544
        %v5469 = vmul.f32 %v5436, %v3545
        %v5470 = vmul.f32 %v5432, %v3546
        %v5471 = vmul.f32 %v5460, %v3547
        %v5472 = vmul.f32 %v5457, %v3540
        %v5473 = vmul.f32 %v5453, %v3541
        %v5474 = vmul.f32 %v5449, %v3542
        %v5475 = vmul.f32 %v5445, %v3543
        %v5476 = vmul.f32 %v5441, %v3544
        %v5477 = vmul.f32 %v5437, %v3545
        %v5478 = vmul.f32 %v5433, %v3546
        %v5479 = vmul.f32 %v5461, %v3547
        %v5480 = vmul.f32 %v5458, %v3540
        %v5481 = vmul.f32 %v5454, %v3541
        %v5482 = vmul.f32 %v5450, %v3542
        %v5483 = vmul.f32 %v5446, %v3543
        %v5484 = vmul.f32 %v5442, %v3544
        %v5485 = vmul.f32 %v5438, %v3545
        %v5486 = vmul.f32 %v5434, %v3546
        %v5487 = vmul.f32 %v5462, %v3547
        %v5488 = vmul.f32 %v5459, %v3540
        %v5489 = vmul.f32 %v5455, %v3541
        %v5490 = vmul.f32 %v5451, %v3542
        %v5491 = vmul.f32 %v5447, %v3543
        %v5492 = vmul.f32 %v5443, %v3544
        %v5493 = vmul.f32 %v5439, %v3545
        %v5494 = vmul.f32 %v5435, %v3546
        %v5495 = vmul.f32 %v5463, %v3547
        %5496 = vrot.lane.b32.xlu0 %v4680, 96
        %v5497 = vpop.permute.xlu0 %5496
        %5498 = vrot.lane.b32.xlu0 %v4688, 96
        %v5499 = vpop.permute.xlu0 %5498
        %5500 = vrot.lane.b32.xlu0 %v4696, 96
        %v5501 = vpop.permute.xlu0 %5500
        %5502 = vrot.lane.b32.xlu0 %v4704, 96
        %v5503 = vpop.permute.xlu0 %5502
        %5504 = vrot.lane.b32.xlu0 %v4681, 96
        %v5505 = vpop.permute.xlu0 %5504
        %5506 = vrot.lane.b32.xlu0 %v4689, 96
        %v5507 = vpop.permute.xlu0 %5506
        %5508 = vrot.lane.b32.xlu0 %v4697, 96
        %v5509 = vpop.permute.xlu0 %5508
        %5510 = vrot.lane.b32.xlu0 %v4705, 96
        %v5511 = vpop.permute.xlu0 %5510
        %5512 = vrot.lane.b32.xlu0 %v4682, 96
        %v5513 = vpop.permute.xlu0 %5512
        %5514 = vrot.lane.b32.xlu0 %v4690, 96
        %v5515 = vpop.permute.xlu0 %5514
        %5516 = vrot.lane.b32.xlu0 %v4698, 96
        %v5517 = vpop.permute.xlu0 %5516
        %5518 = vrot.lane.b32.xlu0 %v4706, 96
        %v5519 = vpop.permute.xlu0 %5518
        %5520 = vrot.lane.b32.xlu0 %v4683, 96
        %v5521 = vpop.permute.xlu0 %5520
        %5522 = vrot.lane.b32.xlu0 %v4691, 96
        %v5523 = vpop.permute.xlu0 %5522
        %5524 = vrot.lane.b32.xlu0 %v4699, 96
        %v5525 = vpop.permute.xlu0 %5524
        %5526 = vrot.lane.b32.xlu0 %v4707, 96
        %v5527 = vpop.permute.xlu0 %5526
        %5528 = vrot.lane.b32.xlu0 %v4684, 96
        %v5529 = vpop.permute.xlu0 %5528
        %5530 = vrot.lane.b32.xlu0 %v4692, 96
        %v5531 = vpop.permute.xlu0 %5530
        %5532 = vrot.lane.b32.xlu0 %v4700, 96
        %v5533 = vpop.permute.xlu0 %5532
        %5534 = vrot.lane.b32.xlu0 %v4708, 96
        %v5535 = vpop.permute.xlu0 %5534
        %5536 = vrot.lane.b32.xlu0 %v4685, 96
        %v5537 = vpop.permute.xlu0 %5536
        %5538 = vrot.lane.b32.xlu0 %v4693, 96
        %v5539 = vpop.permute.xlu0 %5538
        %5540 = vrot.lane.b32.xlu0 %v4701, 96
        %v5541 = vpop.permute.xlu0 %5540
        %5542 = vrot.lane.b32.xlu0 %v4709, 96
        %v5543 = vpop.permute.xlu0 %5542
        %5544 = vrot.lane.b32.xlu0 %v4686, 96
        %v5545 = vpop.permute.xlu0 %5544
        %5546 = vrot.lane.b32.xlu0 %v4694, 96
        %v5547 = vpop.permute.xlu0 %5546
        %5548 = vrot.lane.b32.xlu0 %v4702, 96
        %v5549 = vpop.permute.xlu0 %5548
        %5550 = vrot.lane.b32.xlu0 %v4710, 96
        %v5551 = vpop.permute.xlu0 %5550
        %5552 = vrot.lane.b32.xlu0 %v4687, 96
        %v5553 = vpop.permute.xlu0 %5552
        %5554 = vrot.lane.b32.xlu0 %v4695, 96
        %v5555 = vpop.permute.xlu0 %5554
        %5556 = vrot.lane.b32.xlu0 %v4703, 96
        %v5557 = vpop.permute.xlu0 %5556
        %5558 = vrot.lane.b32.xlu0 %v4711, 96
        %v5559 = vpop.permute.xlu0 %5558
        %v5560 = vsel %vm3652, %v5545, %v5553
        %v5561 = vsel %vm3652, %v5547, %v5555
        %v5562 = vsel %vm3652, %v5549, %v5557
        %v5563 = vsel %vm3652, %v5551, %v5559
        %v5564 = vsel %vm3652, %v5537, %v5545
        %v5565 = vsel %vm3652, %v5539, %v5547
        %v5566 = vsel %vm3652, %v5541, %v5549
        %v5567 = vsel %vm3652, %v5543, %v5551
        %v5568 = vsel %vm3652, %v5529, %v5537
        %v5569 = vsel %vm3652, %v5531, %v5539
        %v5570 = vsel %vm3652, %v5533, %v5541
        %v5571 = vsel %vm3652, %v5535, %v5543
        %v5572 = vsel %vm3652, %v5521, %v5529
        %v5573 = vsel %vm3652, %v5523, %v5531
        %v5574 = vsel %vm3652, %v5525, %v5533
        %v5575 = vsel %vm3652, %v5527, %v5535
        %v5576 = vsel %vm3652, %v5513, %v5521
        %v5577 = vsel %vm3652, %v5515, %v5523
        %v5578 = vsel %vm3652, %v5517, %v5525
        %v5579 = vsel %vm3652, %v5519, %v5527
        %v5580 = vsel %vm3652, %v5505, %v5513
        %v5581 = vsel %vm3652, %v5507, %v5515
        %v5582 = vsel %vm3652, %v5509, %v5517
        %v5583 = vsel %vm3652, %v5511, %v5519
        %v5584 = vsel %vm3652, %v5497, %v5505
        %v5585 = vsel %vm3652, %v5499, %v5507
        %v5586 = vsel %vm3652, %v5501, %v5509
        %v5587 = vsel %vm3652, %v5503, %v5511
        %v5588 = vsel %vm3652, %v5553, %v5497
        %v5589 = vsel %vm3652, %v5555, %v5499
        %v5590 = vsel %vm3652, %v5557, %v5501
        %v5591 = vsel %vm3652, %v5559, %v5503
        %v5592 = vmul.f32 %v5584, %v3690
        %v5593 = vmul.f32 %v5580, %v3691
        %v5594 = vmul.f32 %v5576, %v3692
        %v5595 = vmul.f32 %v5572, %v3693
        %v5596 = vmul.f32 %v5568, %v3694
        %v5597 = vmul.f32 %v5564, %v3695
        %v5598 = vmul.f32 %v5560, %v3696
        %v5599 = vmul.f32 %v5588, %v3697
        %v5600 = vmul.f32 %v5585, %v3690
        %v5601 = vmul.f32 %v5581, %v3691
        %v5602 = vmul.f32 %v5577, %v3692
        %v5603 = vmul.f32 %v5573, %v3693
        %v5604 = vmul.f32 %v5569, %v3694
        %v5605 = vmul.f32 %v5565, %v3695
        %v5606 = vmul.f32 %v5561, %v3696
        %v5607 = vmul.f32 %v5589, %v3697
        %v5608 = vmul.f32 %v5586, %v3690
        %v5609 = vmul.f32 %v5582, %v3691
        %v5610 = vmul.f32 %v5578, %v3692
        %v5611 = vmul.f32 %v5574, %v3693
        %v5612 = vmul.f32 %v5570, %v3694
        %v5613 = vmul.f32 %v5566, %v3695
        %v5614 = vmul.f32 %v5562, %v3696
        %v5615 = vmul.f32 %v5590, %v3697
        %v5616 = vmul.f32 %v5587, %v3690
        %v5617 = vmul.f32 %v5583, %v3691
        %v5618 = vmul.f32 %v5579, %v3692
        %v5619 = vmul.f32 %v5575, %v3693
        %v5620 = vmul.f32 %v5571, %v3694
        %v5621 = vmul.f32 %v5567, %v3695
        %v5622 = vmul.f32 %v5563, %v3696
        %v5623 = vmul.f32 %v5591, %v3697
        %5624 = vrot.lane.b32.xlu0 %v4680, 95
        %v5625 = vpop.permute.xlu0 %5624
        %5626 = vrot.lane.b32.xlu0 %v4688, 95
        %v5627 = vpop.permute.xlu0 %5626
        %5628 = vrot.lane.b32.xlu0 %v4696, 95
        %v5629 = vpop.permute.xlu0 %5628
        %5630 = vrot.lane.b32.xlu0 %v4704, 95
        %v5631 = vpop.permute.xlu0 %5630
        %5632 = vrot.lane.b32.xlu0 %v4681, 95
        %v5633 = vpop.permute.xlu0 %5632
        %5634 = vrot.lane.b32.xlu0 %v4689, 95
        %v5635 = vpop.permute.xlu0 %5634
        %5636 = vrot.lane.b32.xlu0 %v4697, 95
        %v5637 = vpop.permute.xlu0 %5636
        %5638 = vrot.lane.b32.xlu0 %v4705, 95
        %v5639 = vpop.permute.xlu0 %5638
        %5640 = vrot.lane.b32.xlu0 %v4682, 95
        %v5641 = vpop.permute.xlu0 %5640
        %5642 = vrot.lane.b32.xlu0 %v4690, 95
        %v5643 = vpop.permute.xlu0 %5642
        %5644 = vrot.lane.b32.xlu0 %v4698, 95
        %v5645 = vpop.permute.xlu0 %5644
        %5646 = vrot.lane.b32.xlu0 %v4706, 95
        %v5647 = vpop.permute.xlu0 %5646
        %5648 = vrot.lane.b32.xlu0 %v4683, 95
        %v5649 = vpop.permute.xlu0 %5648
        %5650 = vrot.lane.b32.xlu0 %v4691, 95
        %v5651 = vpop.permute.xlu0 %5650
        %5652 = vrot.lane.b32.xlu0 %v4699, 95
        %v5653 = vpop.permute.xlu0 %5652
        %5654 = vrot.lane.b32.xlu0 %v4707, 95
        %v5655 = vpop.permute.xlu0 %5654
        %5656 = vrot.lane.b32.xlu0 %v4684, 95
        %v5657 = vpop.permute.xlu0 %5656
        %5658 = vrot.lane.b32.xlu0 %v4692, 95
        %v5659 = vpop.permute.xlu0 %5658
        %5660 = vrot.lane.b32.xlu0 %v4700, 95
        %v5661 = vpop.permute.xlu0 %5660
        %5662 = vrot.lane.b32.xlu0 %v4708, 95
        %v5663 = vpop.permute.xlu0 %5662
        %5664 = vrot.lane.b32.xlu0 %v4685, 95
        %v5665 = vpop.permute.xlu0 %5664
        %5666 = vrot.lane.b32.xlu0 %v4693, 95
        %v5667 = vpop.permute.xlu0 %5666
        %5668 = vrot.lane.b32.xlu0 %v4701, 95
        %v5669 = vpop.permute.xlu0 %5668
        %5670 = vrot.lane.b32.xlu0 %v4709, 95
        %v5671 = vpop.permute.xlu0 %5670
        %5672 = vrot.lane.b32.xlu0 %v4686, 95
        %v5673 = vpop.permute.xlu0 %5672
        %5674 = vrot.lane.b32.xlu0 %v4694, 95
        %v5675 = vpop.permute.xlu0 %5674
        %5676 = vrot.lane.b32.xlu0 %v4702, 95
        %v5677 = vpop.permute.xlu0 %5676
        %5678 = vrot.lane.b32.xlu0 %v4710, 95
        %v5679 = vpop.permute.xlu0 %5678
        %5680 = vrot.lane.b32.xlu0 %v4687, 95
        %v5681 = vpop.permute.xlu0 %5680
        %5682 = vrot.lane.b32.xlu0 %v4695, 95
        %v5683 = vpop.permute.xlu0 %5682
        %5684 = vrot.lane.b32.xlu0 %v4703, 95
        %v5685 = vpop.permute.xlu0 %5684
        %5686 = vrot.lane.b32.xlu0 %v4711, 95
        %v5687 = vpop.permute.xlu0 %5686
        %v5688 = vsel %vm3802, %v5673, %v5681
        %v5689 = vsel %vm3802, %v5675, %v5683
        %v5690 = vsel %vm3802, %v5677, %v5685
        %v5691 = vsel %vm3802, %v5679, %v5687
        %v5692 = vsel %vm3802, %v5665, %v5673
        %v5693 = vsel %vm3802, %v5667, %v5675
        %v5694 = vsel %vm3802, %v5669, %v5677
        %v5695 = vsel %vm3802, %v5671, %v5679
        %v5696 = vsel %vm3802, %v5657, %v5665
        %v5697 = vsel %vm3802, %v5659, %v5667
        %v5698 = vsel %vm3802, %v5661, %v5669
        %v5699 = vsel %vm3802, %v5663, %v5671
        %v5700 = vsel %vm3802, %v5649, %v5657
        %v5701 = vsel %vm3802, %v5651, %v5659
        %v5702 = vsel %vm3802, %v5653, %v5661
        %v5703 = vsel %vm3802, %v5655, %v5663
        %v5704 = vsel %vm3802, %v5641, %v5649
        %v5705 = vsel %vm3802, %v5643, %v5651
        %v5706 = vsel %vm3802, %v5645, %v5653
        %v5707 = vsel %vm3802, %v5647, %v5655
        %v5708 = vsel %vm3802, %v5633, %v5641
        %v5709 = vsel %vm3802, %v5635, %v5643
        %v5710 = vsel %vm3802, %v5637, %v5645
        %v5711 = vsel %vm3802, %v5639, %v5647
        %v5712 = vsel %vm3802, %v5625, %v5633
        %v5713 = vsel %vm3802, %v5627, %v5635
        %v5714 = vsel %vm3802, %v5629, %v5637
        %v5715 = vsel %vm3802, %v5631, %v5639
        %v5716 = vsel %vm3802, %v5681, %v5625
        %v5717 = vsel %vm3802, %v5683, %v5627
        %v5718 = vsel %vm3802, %v5685, %v5629
        %v5719 = vsel %vm3802, %v5687, %v5631
        %v5720 = vmul.f32 %v5712, %v3840
        %v5721 = vmul.f32 %v5708, %v3841
        %v5722 = vmul.f32 %v5704, %v3842
        %v5723 = vmul.f32 %v5700, %v3843
        %v5724 = vmul.f32 %v5696, %v3844
        %v5725 = vmul.f32 %v5692, %v3845
        %v5726 = vmul.f32 %v5688, %v3846
        %v5727 = vmul.f32 %v5716, %v3847
        %v5728 = vmul.f32 %v5713, %v3840
        %v5729 = vmul.f32 %v5709, %v3841
        %v5730 = vmul.f32 %v5705, %v3842
        %v5731 = vmul.f32 %v5701, %v3843
        %v5732 = vmul.f32 %v5697, %v3844
        %v5733 = vmul.f32 %v5693, %v3845
        %v5734 = vmul.f32 %v5689, %v3846
        %v5735 = vmul.f32 %v5717, %v3847
        %v5736 = vmul.f32 %v5714, %v3840
        %v5737 = vmul.f32 %v5710, %v3841
        %v5738 = vmul.f32 %v5706, %v3842
        %v5739 = vmul.f32 %v5702, %v3843
        %v5740 = vmul.f32 %v5698, %v3844
        %v5741 = vmul.f32 %v5694, %v3845
        %v5742 = vmul.f32 %v5690, %v3846
        %v5743 = vmul.f32 %v5718, %v3847
        %v5744 = vmul.f32 %v5715, %v3840
        %v5745 = vmul.f32 %v5711, %v3841
        %v5746 = vmul.f32 %v5707, %v3842
        %v5747 = vmul.f32 %v5703, %v3843
        %v5748 = vmul.f32 %v5699, %v3844
        %v5749 = vmul.f32 %v5695, %v3845
        %v5750 = vmul.f32 %v5691, %v3846
        %v5751 = vmul.f32 %v5719, %v3847
        %5753 = vset.pattern.permute.xlu0 0
        %5754 = vperm.xlu0 %5753, %v4724
        %v5755 = vpop.permute.xlu0 %5754
        %5758 = vset.pattern.permute.xlu0 0
        %5759 = vperm.xlu0 %5758, %v4725
        %v5760 = vpop.permute.xlu0 %5759
        %5763 = vset.pattern.permute.xlu0 0
        %5764 = vperm.xlu0 %5763, %v4726
        %v5765 = vpop.permute.xlu0 %5764
        %5768 = vset.pattern.permute.xlu0 0
        %5769 = vperm.xlu0 %5768, %v4727
        %v5770 = vpop.permute.xlu0 %5769
        %v5773 = vsel %vm1189, %v4714, 0
        %v5776 = vsel %vm1189, %v4717, 0
        %v5779 = vsel %vm1189, %v4720, 0
        %v5782 = vsel %vm1189, %v4723, 0
        %5784 = vmatpush.msra.mxu0 %v5232
        %5785 = vmatpush.msra.mxu0 %v5224
        %5786 = vmatpush.msra.mxu0 %v5216
        %5787 = vmatpush.msra.mxu0 %v5208
        %5788 = vmatpush.msra.mxu0 %v5104
        %5789 = vmatpush.msra.mxu0 %v5096
        %5790 = vmatpush.msra.mxu0 %v5088
        %5791 = vmatpush.msra.mxu0 %v5080
        %5792 = vmatpush.msra.mxu0 %v4976
        %5793 = vmatpush.msra.mxu0 %v4968
        %5794 = vmatpush.msra.mxu0 %v4960
        %5795 = vmatpush.msra.mxu0 %v4952
        %5796 = vmatpush.msra.mxu0 %v4848
        %5797 = vmatpush.msra.mxu0 %v4840
        %5798 = vmatpush.msra.mxu0 %v4832
        %5799 = vmatpush.msra.mxu0 %v4824
        %5800 = vmatmul.f32.gmra.mxu0 %v4712
        %v5801 = vpop.f32.mrf.mxu0
        %v5802 = vadd.f32 %v5755, %v5801
        %5803 = vmatmul.f32.gmra.mxu0 %v4715
        %v5804 = vpop.f32.mrf.mxu0
        %v5805 = vadd.f32 %v5760, %v5804
        %5806 = vmatmul.f32.gmra.mxu0 %v4718
        %v5807 = vpop.f32.mrf.mxu0
        %v5808 = vadd.f32 %v5765, %v5807
        %5809 = vmatmul.f32.gmra.mxu0 %v4721
        %v5810 = vpop.f32.mrf.mxu0
        %v5811 = vadd.f32 %v5770, %v5810
        %5812 = vdwg.mxu0
        %5813 = vmatpush.msra.mxu0 %v5616
        %5814 = vmatpush.msra.mxu0 %v5608
        %5815 = vmatpush.msra.mxu0 %v5600
        %5816 = vmatpush.msra.mxu0 %v5592
        %5817 = vmatpush.msra.mxu0 %v5488
        %5818 = vmatpush.msra.mxu0 %v5480
        %5819 = vmatpush.msra.mxu0 %v5472
        %5820 = vmatpush.msra.mxu0 %v5464
        %5821 = vmatpush.msra.mxu0 %v5360
        %5822 = vmatpush.msra.mxu0 %v5352
        %5823 = vmatpush.msra.mxu0 %v5344
        %5824 = vmatpush.msra.mxu0 %v5336
        %5825 = vmatpush.msra.mxu0 %v4704
        %5826 = vmatpush.msra.mxu0 %v4696
        %5827 = vmatpush.msra.mxu0 %v4688
        %5828 = vmatpush.msra.mxu0 %v4680
        %5829 = vmatmul.f32.gmra.mxu0 %v4713
        %v5830 = vpop.f32.mrf.mxu0
        %v5831 = vadd.f32 %v5802, %v5830
        %5832 = vmatmul.f32.gmra.mxu0 %v4716
        %v5833 = vpop.f32.mrf.mxu0
        %v5834 = vadd.f32 %v5805, %v5833
        %5835 = vmatmul.f32.gmra.mxu0 %v4719
        %v5836 = vpop.f32.mrf.mxu0
        %v5837 = vadd.f32 %v5808, %v5836
        %5838 = vmatmul.f32.gmra.mxu0 %v4722
        %v5839 = vpop.f32.mrf.mxu0
        %v5840 = vadd.f32 %v5811, %v5839
        %5841 = vdwg.mxu0
        %5842 = vmatpush.msra.mxu0 0.0
        %5843 = vmatpush.msra.mxu0 0.0
        %5844 = vmatpush.msra.mxu0 0.0
        %5845 = vmatpush.msra.mxu0 0.0
        %5846 = vmatpush.msra.mxu0 0.0
        %5847 = vmatpush.msra.mxu0 0.0
        %5848 = vmatpush.msra.mxu0 0.0
        %5849 = vmatpush.msra.mxu0 0.0
        %5850 = vmatpush.msra.mxu0 0.0
        %5851 = vmatpush.msra.mxu0 0.0
        %5852 = vmatpush.msra.mxu0 0.0
        %5853 = vmatpush.msra.mxu0 0.0
        %5854 = vmatpush.msra.mxu0 %v5744
        %5855 = vmatpush.msra.mxu0 %v5736
        %5856 = vmatpush.msra.mxu0 %v5728
        %5857 = vmatpush.msra.mxu0 %v5720
        %5858 = vmatmul.f32.gmra.mxu0 %v5773
        %v5859 = vpop.f32.mrf.mxu0
        %v5860 = vadd.f32 %v5831, %v5859
        %5861 = vmatmul.f32.gmra.mxu0 %v5776
        %v5862 = vpop.f32.mrf.mxu0
        %v5863 = vadd.f32 %v5834, %v5862
        %5864 = vmatmul.f32.gmra.mxu0 %v5779
        %v5865 = vpop.f32.mrf.mxu0
        %v5866 = vadd.f32 %v5837, %v5865
        %5867 = vmatmul.f32.gmra.mxu0 %v5782
        %v5868 = vpop.f32.mrf.mxu0
        %v5869 = vadd.f32 %v5840, %v5868
        %5870 = vdwg.mxu0
        %5871 = vmatpush.msra.mxu0 %v5233
        %5872 = vmatpush.msra.mxu0 %v5225
        %5873 = vmatpush.msra.mxu0 %v5217
        %5874 = vmatpush.msra.mxu0 %v5209
        %5875 = vmatpush.msra.mxu0 %v5105
        %5876 = vmatpush.msra.mxu0 %v5097
        %5877 = vmatpush.msra.mxu0 %v5089
        %5878 = vmatpush.msra.mxu0 %v5081
        %5879 = vmatpush.msra.mxu0 %v4977
        %5880 = vmatpush.msra.mxu0 %v4969
        %5881 = vmatpush.msra.mxu0 %v4961
        %5882 = vmatpush.msra.mxu0 %v4953
        %5883 = vmatpush.msra.mxu0 %v4849
        %5884 = vmatpush.msra.mxu0 %v4841
        %5885 = vmatpush.msra.mxu0 %v4833
        %5886 = vmatpush.msra.mxu0 %v4825
        %5887 = vmatmul.f32.gmra.mxu0 %v4712
        %v5888 = vpop.f32.mrf.mxu0
        %v5889 = vadd.f32 %v5755, %v5888
        %5890 = vmatmul.f32.gmra.mxu0 %v4715
        %v5891 = vpop.f32.mrf.mxu0
        %v5892 = vadd.f32 %v5760, %v5891
        %5893 = vmatmul.f32.gmra.mxu0 %v4718
        %v5894 = vpop.f32.mrf.mxu0
        %v5895 = vadd.f32 %v5765, %v5894
        %5896 = vmatmul.f32.gmra.mxu0 %v4721
        %v5897 = vpop.f32.mrf.mxu0
        %v5898 = vadd.f32 %v5770, %v5897
        %5899 = vdwg.mxu0
        %5900 = vmatpush.msra.mxu0 %v5617
        %5901 = vmatpush.msra.mxu0 %v5609
        %5902 = vmatpush.msra.mxu0 %v5601
        %5903 = vmatpush.msra.mxu0 %v5593
        %5904 = vmatpush.msra.mxu0 %v5489
        %5905 = vmatpush.msra.mxu0 %v5481
        %5906 = vmatpush.msra.mxu0 %v5473
        %5907 = vmatpush.msra.mxu0 %v5465
        %5908 = vmatpush.msra.mxu0 %v5361
        %5909 = vmatpush.msra.mxu0 %v5353
        %5910 = vmatpush.msra.mxu0 %v5345
        %5911 = vmatpush.msra.mxu0 %v5337
        %5912 = vmatpush.msra.mxu0 %v4705
        %5913 = vmatpush.msra.mxu0 %v4697
        %5914 = vmatpush.msra.mxu0 %v4689
        %5915 = vmatpush.msra.mxu0 %v4681
        %5916 = vmatmul.f32.gmra.mxu0 %v4713
        %v5917 = vpop.f32.mrf.mxu0
        %v5918 = vadd.f32 %v5889, %v5917
        %5919 = vmatmul.f32.gmra.mxu0 %v4716
        %v5920 = vpop.f32.mrf.mxu0
        %v5921 = vadd.f32 %v5892, %v5920
        %5922 = vmatmul.f32.gmra.mxu0 %v4719
        %v5923 = vpop.f32.mrf.mxu0
        %v5924 = vadd.f32 %v5895, %v5923
        %5925 = vmatmul.f32.gmra.mxu0 %v4722
        %v5926 = vpop.f32.mrf.mxu0
        %v5927 = vadd.f32 %v5898, %v5926
        %5928 = vdwg.mxu0
        %5929 = vmatpush.msra.mxu0 0.0
        %5930 = vmatpush.msra.mxu0 0.0
        %5931 = vmatpush.msra.mxu0 0.0
        %5932 = vmatpush.msra.mxu0 0.0
        %5933 = vmatpush.msra.mxu0 0.0
        %5934 = vmatpush.msra.mxu0 0.0
        %5935 = vmatpush.msra.mxu0 0.0
        %5936 = vmatpush.msra.mxu0 0.0
        %5937 = vmatpush.msra.mxu0 0.0
        %5938 = vmatpush.msra.mxu0 0.0
        %5939 = vmatpush.msra.mxu0 0.0
        %5940 = vmatpush.msra.mxu0 0.0
        %5941 = vmatpush.msra.mxu0 %v5745
        %5942 = vmatpush.msra.mxu0 %v5737
        %5943 = vmatpush.msra.mxu0 %v5729
        %5944 = vmatpush.msra.mxu0 %v5721
        %5945 = vmatmul.f32.gmra.mxu0 %v5773
        %v5946 = vpop.f32.mrf.mxu0
        %v5947 = vadd.f32 %v5918, %v5946
        %5948 = vmatmul.f32.gmra.mxu0 %v5776
        %v5949 = vpop.f32.mrf.mxu0
        %v5950 = vadd.f32 %v5921, %v5949
        %5951 = vmatmul.f32.gmra.mxu0 %v5779
        %v5952 = vpop.f32.mrf.mxu0
        %v5953 = vadd.f32 %v5924, %v5952
        %5954 = vmatmul.f32.gmra.mxu0 %v5782
        %v5955 = vpop.f32.mrf.mxu0
        %v5956 = vadd.f32 %v5927, %v5955
        %5957 = vdwg.mxu0
        %5958 = vmatpush.msra.mxu0 %v5234
        %5959 = vmatpush.msra.mxu0 %v5226
        %5960 = vmatpush.msra.mxu0 %v5218
        %5961 = vmatpush.msra.mxu0 %v5210
        %5962 = vmatpush.msra.mxu0 %v5106
        %5963 = vmatpush.msra.mxu0 %v5098
        %5964 = vmatpush.msra.mxu0 %v5090
        %5965 = vmatpush.msra.mxu0 %v5082
        %5966 = vmatpush.msra.mxu0 %v4978
        %5967 = vmatpush.msra.mxu0 %v4970
        %5968 = vmatpush.msra.mxu0 %v4962
        %5969 = vmatpush.msra.mxu0 %v4954
        %5970 = vmatpush.msra.mxu0 %v4850
        %5971 = vmatpush.msra.mxu0 %v4842
        %5972 = vmatpush.msra.mxu0 %v4834
        %5973 = vmatpush.msra.mxu0 %v4826
        %5974 = vmatmul.f32.gmra.mxu0 %v4712
        %v5975 = vpop.f32.mrf.mxu0
        %v5976 = vadd.f32 %v5755, %v5975
        %5977 = vmatmul.f32.gmra.mxu0 %v4715
        %v5978 = vpop.f32.mrf.mxu0
        %v5979 = vadd.f32 %v5760, %v5978
        %5980 = vmatmul.f32.gmra.mxu0 %v4718
        %v5981 = vpop.f32.mrf.mxu0
        %v5982 = vadd.f32 %v5765, %v5981
        %5983 = vmatmul.f32.gmra.mxu0 %v4721
        %v5984 = vpop.f32.mrf.mxu0
        %v5985 = vadd.f32 %v5770, %v5984
        %5986 = vdwg.mxu0
        %5987 = vmatpush.msra.mxu0 %v5618
        %5988 = vmatpush.msra.mxu0 %v5610
        %5989 = vmatpush.msra.mxu0 %v5602
        %5990 = vmatpush.msra.mxu0 %v5594
        %5991 = vmatpush.msra.mxu0 %v5490
        %5992 = vmatpush.msra.mxu0 %v5482
        %5993 = vmatpush.msra.mxu0 %v5474
        %5994 = vmatpush.msra.mxu0 %v5466
        %5995 = vmatpush.msra.mxu0 %v5362
        %5996 = vmatpush.msra.mxu0 %v5354
        %5997 = vmatpush.msra.mxu0 %v5346
        %5998 = vmatpush.msra.mxu0 %v5338
        %5999 = vmatpush.msra.mxu0 %v4706
        %6000 = vmatpush.msra.mxu0 %v4698
        %6001 = vmatpush.msra.mxu0 %v4690
        %6002 = vmatpush.msra.mxu0 %v4682
        %6003 = vmatmul.f32.gmra.mxu0 %v4713
        %v6004 = vpop.f32.mrf.mxu0
        %v6005 = vadd.f32 %v5976, %v6004
        %6006 = vmatmul.f32.gmra.mxu0 %v4716
        %v6007 = vpop.f32.mrf.mxu0
        %v6008 = vadd.f32 %v5979, %v6007
        %6009 = vmatmul.f32.gmra.mxu0 %v4719
        %v6010 = vpop.f32.mrf.mxu0
        %v6011 = vadd.f32 %v5982, %v6010
        %6012 = vmatmul.f32.gmra.mxu0 %v4722
        %v6013 = vpop.f32.mrf.mxu0
        %v6014 = vadd.f32 %v5985, %v6013
        %6015 = vdwg.mxu0
        %6016 = vmatpush.msra.mxu0 0.0
        %6017 = vmatpush.msra.mxu0 0.0
        %6018 = vmatpush.msra.mxu0 0.0
        %6019 = vmatpush.msra.mxu0 0.0
        %6020 = vmatpush.msra.mxu0 0.0
        %6021 = vmatpush.msra.mxu0 0.0
        %6022 = vmatpush.msra.mxu0 0.0
        %6023 = vmatpush.msra.mxu0 0.0
        %6024 = vmatpush.msra.mxu0 0.0
        %6025 = vmatpush.msra.mxu0 0.0
        %6026 = vmatpush.msra.mxu0 0.0
        %6027 = vmatpush.msra.mxu0 0.0
        %6028 = vmatpush.msra.mxu0 %v5746
        %6029 = vmatpush.msra.mxu0 %v5738
        %6030 = vmatpush.msra.mxu0 %v5730
        %6031 = vmatpush.msra.mxu0 %v5722
        %6032 = vmatmul.f32.gmra.mxu0 %v5773
        %v6033 = vpop.f32.mrf.mxu0
        %v6034 = vadd.f32 %v6005, %v6033
        %6035 = vmatmul.f32.gmra.mxu0 %v5776
        %v6036 = vpop.f32.mrf.mxu0
        %v6037 = vadd.f32 %v6008, %v6036
        %6038 = vmatmul.f32.gmra.mxu0 %v5779
        %v6039 = vpop.f32.mrf.mxu0
        %v6040 = vadd.f32 %v6011, %v6039
        %6041 = vmatmul.f32.gmra.mxu0 %v5782
        %v6042 = vpop.f32.mrf.mxu0
        %v6043 = vadd.f32 %v6014, %v6042
        %6044 = vdwg.mxu0
        %6045 = vmatpush.msra.mxu0 %v5235
        %6046 = vmatpush.msra.mxu0 %v5227
        %6047 = vmatpush.msra.mxu0 %v5219
        %6048 = vmatpush.msra.mxu0 %v5211
        %6049 = vmatpush.msra.mxu0 %v5107
        %6050 = vmatpush.msra.mxu0 %v5099
        %6051 = vmatpush.msra.mxu0 %v5091
        %6052 = vmatpush.msra.mxu0 %v5083
        %6053 = vmatpush.msra.mxu0 %v4979
        %6054 = vmatpush.msra.mxu0 %v4971
        %6055 = vmatpush.msra.mxu0 %v4963
        %6056 = vmatpush.msra.mxu0 %v4955
        %6057 = vmatpush.msra.mxu0 %v4851
        %6058 = vmatpush.msra.mxu0 %v4843
        %6059 = vmatpush.msra.mxu0 %v4835
        %6060 = vmatpush.msra.mxu0 %v4827
        %6061 = vmatmul.f32.gmra.mxu0 %v4712
        %v6062 = vpop.f32.mrf.mxu0
        %v6063 = vadd.f32 %v5755, %v6062
        %6064 = vmatmul.f32.gmra.mxu0 %v4715
        %v6065 = vpop.f32.mrf.mxu0
        %v6066 = vadd.f32 %v5760, %v6065
        %6067 = vmatmul.f32.gmra.mxu0 %v4718
        %v6068 = vpop.f32.mrf.mxu0
        %v6069 = vadd.f32 %v5765, %v6068
        %6070 = vmatmul.f32.gmra.mxu0 %v4721
        %v6071 = vpop.f32.mrf.mxu0
        %v6072 = vadd.f32 %v5770, %v6071
        %6073 = vdwg.mxu0
        %6074 = vmatpush.msra.mxu0 %v5619
        %6075 = vmatpush.msra.mxu0 %v5611
        %6076 = vmatpush.msra.mxu0 %v5603
        %6077 = vmatpush.msra.mxu0 %v5595
        %6078 = vmatpush.msra.mxu0 %v5491
        %6079 = vmatpush.msra.mxu0 %v5483
        %6080 = vmatpush.msra.mxu0 %v5475
        %6081 = vmatpush.msra.mxu0 %v5467
        %6082 = vmatpush.msra.mxu0 %v5363
        %6083 = vmatpush.msra.mxu0 %v5355
        %6084 = vmatpush.msra.mxu0 %v5347
        %6085 = vmatpush.msra.mxu0 %v5339
        %6086 = vmatpush.msra.mxu0 %v4707
        %6087 = vmatpush.msra.mxu0 %v4699
        %6088 = vmatpush.msra.mxu0 %v4691
        %6089 = vmatpush.msra.mxu0 %v4683
        %6090 = vmatmul.f32.gmra.mxu0 %v4713
        %v6091 = vpop.f32.mrf.mxu0
        %v6092 = vadd.f32 %v6063, %v6091
        %6093 = vmatmul.f32.gmra.mxu0 %v4716
        %v6094 = vpop.f32.mrf.mxu0
        %v6095 = vadd.f32 %v6066, %v6094
        %6096 = vmatmul.f32.gmra.mxu0 %v4719
        %v6097 = vpop.f32.mrf.mxu0
        %v6098 = vadd.f32 %v6069, %v6097
        %6099 = vmatmul.f32.gmra.mxu0 %v4722
        %v6100 = vpop.f32.mrf.mxu0
        %v6101 = vadd.f32 %v6072, %v6100
        %6102 = vdwg.mxu0
        %6103 = vmatpush.msra.mxu0 0.0
        %6104 = vmatpush.msra.mxu0 0.0
        %6105 = vmatpush.msra.mxu0 0.0
        %6106 = vmatpush.msra.mxu0 0.0
        %6107 = vmatpush.msra.mxu0 0.0
        %6108 = vmatpush.msra.mxu0 0.0
        %6109 = vmatpush.msra.mxu0 0.0
        %6110 = vmatpush.msra.mxu0 0.0
        %6111 = vmatpush.msra.mxu0 0.0
        %6112 = vmatpush.msra.mxu0 0.0
        %6113 = vmatpush.msra.mxu0 0.0
        %6114 = vmatpush.msra.mxu0 0.0
        %6115 = vmatpush.msra.mxu0 %v5747
        %6116 = vmatpush.msra.mxu0 %v5739
        %6117 = vmatpush.msra.mxu0 %v5731
        %6118 = vmatpush.msra.mxu0 %v5723
        %6119 = vmatmul.f32.gmra.mxu0 %v5773
        %v6120 = vpop.f32.mrf.mxu0
        %v6121 = vadd.f32 %v6092, %v6120
        %6122 = vmatmul.f32.gmra.mxu0 %v5776
        %v6123 = vpop.f32.mrf.mxu0
        %v6124 = vadd.f32 %v6095, %v6123
        %6125 = vmatmul.f32.gmra.mxu0 %v5779
        %v6126 = vpop.f32.mrf.mxu0
        %v6127 = vadd.f32 %v6098, %v6126
        %6128 = vmatmul.f32.gmra.mxu0 %v5782
        %v6129 = vpop.f32.mrf.mxu0
        %v6130 = vadd.f32 %v6101, %v6129
        %6131 = vdwg.mxu0
        %6132 = vmatpush.msra.mxu0 %v5236
        %6133 = vmatpush.msra.mxu0 %v5228
        %6134 = vmatpush.msra.mxu0 %v5220
        %6135 = vmatpush.msra.mxu0 %v5212
        %6136 = vmatpush.msra.mxu0 %v5108
        %6137 = vmatpush.msra.mxu0 %v5100
        %6138 = vmatpush.msra.mxu0 %v5092
        %6139 = vmatpush.msra.mxu0 %v5084
        %6140 = vmatpush.msra.mxu0 %v4980
        %6141 = vmatpush.msra.mxu0 %v4972
        %6142 = vmatpush.msra.mxu0 %v4964
        %6143 = vmatpush.msra.mxu0 %v4956
        %6144 = vmatpush.msra.mxu0 %v4852
        %6145 = vmatpush.msra.mxu0 %v4844
        %6146 = vmatpush.msra.mxu0 %v4836
        %6147 = vmatpush.msra.mxu0 %v4828
        %6148 = vmatmul.f32.gmra.mxu0 %v4712
        %v6149 = vpop.f32.mrf.mxu0
        %v6150 = vadd.f32 %v5755, %v6149
        %6151 = vmatmul.f32.gmra.mxu0 %v4715
        %v6152 = vpop.f32.mrf.mxu0
        %v6153 = vadd.f32 %v5760, %v6152
        %6154 = vmatmul.f32.gmra.mxu0 %v4718
        %v6155 = vpop.f32.mrf.mxu0
        %v6156 = vadd.f32 %v5765, %v6155
        %6157 = vmatmul.f32.gmra.mxu0 %v4721
        %v6158 = vpop.f32.mrf.mxu0
        %v6159 = vadd.f32 %v5770, %v6158
        %6160 = vdwg.mxu0
        %6161 = vmatpush.msra.mxu0 %v5620
        %6162 = vmatpush.msra.mxu0 %v5612
        %6163 = vmatpush.msra.mxu0 %v5604
        %6164 = vmatpush.msra.mxu0 %v5596
        %6165 = vmatpush.msra.mxu0 %v5492
        %6166 = vmatpush.msra.mxu0 %v5484
        %6167 = vmatpush.msra.mxu0 %v5476
        %6168 = vmatpush.msra.mxu0 %v5468
        %6169 = vmatpush.msra.mxu0 %v5364
        %6170 = vmatpush.msra.mxu0 %v5356
        %6171 = vmatpush.msra.mxu0 %v5348
        %6172 = vmatpush.msra.mxu0 %v5340
        %6173 = vmatpush.msra.mxu0 %v4708
        %6174 = vmatpush.msra.mxu0 %v4700
        %6175 = vmatpush.msra.mxu0 %v4692
        %6176 = vmatpush.msra.mxu0 %v4684
        %6177 = vmatmul.f32.gmra.mxu0 %v4713
        %v6178 = vpop.f32.mrf.mxu0
        %v6179 = vadd.f32 %v6150, %v6178
        %6180 = vmatmul.f32.gmra.mxu0 %v4716
        %v6181 = vpop.f32.mrf.mxu0
        %v6182 = vadd.f32 %v6153, %v6181
        %6183 = vmatmul.f32.gmra.mxu0 %v4719
        %v6184 = vpop.f32.mrf.mxu0
        %v6185 = vadd.f32 %v6156, %v6184
        %6186 = vmatmul.f32.gmra.mxu0 %v4722
        %v6187 = vpop.f32.mrf.mxu0
        %v6188 = vadd.f32 %v6159, %v6187
        %6189 = vdwg.mxu0
        %6190 = vmatpush.msra.mxu0 0.0
        %6191 = vmatpush.msra.mxu0 0.0
        %6192 = vmatpush.msra.mxu0 0.0
        %6193 = vmatpush.msra.mxu0 0.0
        %6194 = vmatpush.msra.mxu0 0.0
        %6195 = vmatpush.msra.mxu0 0.0
        %6196 = vmatpush.msra.mxu0 0.0
        %6197 = vmatpush.msra.mxu0 0.0
        %6198 = vmatpush.msra.mxu0 0.0
        %6199 = vmatpush.msra.mxu0 0.0
        %6200 = vmatpush.msra.mxu0 0.0
        %6201 = vmatpush.msra.mxu0 0.0
        %6202 = vmatpush.msra.mxu0 %v5748
        %6203 = vmatpush.msra.mxu0 %v5740
        %6204 = vmatpush.msra.mxu0 %v5732
        %6205 = vmatpush.msra.mxu0 %v5724
        %6206 = vmatmul.f32.gmra.mxu0 %v5773
        %v6207 = vpop.f32.mrf.mxu0
        %v6208 = vadd.f32 %v6179, %v6207
        %6209 = vmatmul.f32.gmra.mxu0 %v5776
        %v6210 = vpop.f32.mrf.mxu0
        %v6211 = vadd.f32 %v6182, %v6210
        %6212 = vmatmul.f32.gmra.mxu0 %v5779
        %v6213 = vpop.f32.mrf.mxu0
        %v6214 = vadd.f32 %v6185, %v6213
        %6215 = vmatmul.f32.gmra.mxu0 %v5782
        %v6216 = vpop.f32.mrf.mxu0
        %v6217 = vadd.f32 %v6188, %v6216
        %6218 = vdwg.mxu0
        %6219 = vmatpush.msra.mxu0 %v5237
        %6220 = vmatpush.msra.mxu0 %v5229
        %6221 = vmatpush.msra.mxu0 %v5221
        %6222 = vmatpush.msra.mxu0 %v5213
        %6223 = vmatpush.msra.mxu0 %v5109
        %6224 = vmatpush.msra.mxu0 %v5101
        %6225 = vmatpush.msra.mxu0 %v5093
        %6226 = vmatpush.msra.mxu0 %v5085
        %6227 = vmatpush.msra.mxu0 %v4981
        %6228 = vmatpush.msra.mxu0 %v4973
        %6229 = vmatpush.msra.mxu0 %v4965
        %6230 = vmatpush.msra.mxu0 %v4957
        %6231 = vmatpush.msra.mxu0 %v4853
        %6232 = vmatpush.msra.mxu0 %v4845
        %6233 = vmatpush.msra.mxu0 %v4837
        %6234 = vmatpush.msra.mxu0 %v4829
        %6235 = vmatmul.f32.gmra.mxu0 %v4712
        %v6236 = vpop.f32.mrf.mxu0
        %v6237 = vadd.f32 %v5755, %v6236
        %6238 = vmatmul.f32.gmra.mxu0 %v4715
        %v6239 = vpop.f32.mrf.mxu0
        %v6240 = vadd.f32 %v5760, %v6239
        %6241 = vmatmul.f32.gmra.mxu0 %v4718
        %v6242 = vpop.f32.mrf.mxu0
        %v6243 = vadd.f32 %v5765, %v6242
        %6244 = vmatmul.f32.gmra.mxu0 %v4721
        %v6245 = vpop.f32.mrf.mxu0
        %v6246 = vadd.f32 %v5770, %v6245
        %6247 = vdwg.mxu0
        %6248 = vmatpush.msra.mxu0 %v5621
        %6249 = vmatpush.msra.mxu0 %v5613
        %6250 = vmatpush.msra.mxu0 %v5605
        %6251 = vmatpush.msra.mxu0 %v5597
        %6252 = vmatpush.msra.mxu0 %v5493
        %6253 = vmatpush.msra.mxu0 %v5485
        %6254 = vmatpush.msra.mxu0 %v5477
        %6255 = vmatpush.msra.mxu0 %v5469
        %6256 = vmatpush.msra.mxu0 %v5365
        %6257 = vmatpush.msra.mxu0 %v5357
        %6258 = vmatpush.msra.mxu0 %v5349
        %6259 = vmatpush.msra.mxu0 %v5341
        %6260 = vmatpush.msra.mxu0 %v4709
        %6261 = vmatpush.msra.mxu0 %v4701
        %6262 = vmatpush.msra.mxu0 %v4693
        %6263 = vmatpush.msra.mxu0 %v4685
        %6264 = vmatmul.f32.gmra.mxu0 %v4713
        %v6265 = vpop.f32.mrf.mxu0
        %v6266 = vadd.f32 %v6237, %v6265
        %6267 = vmatmul.f32.gmra.mxu0 %v4716
        %v6268 = vpop.f32.mrf.mxu0
        %v6269 = vadd.f32 %v6240, %v6268
        %6270 = vmatmul.f32.gmra.mxu0 %v4719
        %v6271 = vpop.f32.mrf.mxu0
        %v6272 = vadd.f32 %v6243, %v6271
        %6273 = vmatmul.f32.gmra.mxu0 %v4722
        %v6274 = vpop.f32.mrf.mxu0
        %v6275 = vadd.f32 %v6246, %v6274
        %6276 = vdwg.mxu0
        %6277 = vmatpush.msra.mxu0 0.0
        %6278 = vmatpush.msra.mxu0 0.0
        %6279 = vmatpush.msra.mxu0 0.0
        %6280 = vmatpush.msra.mxu0 0.0
        %6281 = vmatpush.msra.mxu0 0.0
        %6282 = vmatpush.msra.mxu0 0.0
        %6283 = vmatpush.msra.mxu0 0.0
        %6284 = vmatpush.msra.mxu0 0.0
        %6285 = vmatpush.msra.mxu0 0.0
        %6286 = vmatpush.msra.mxu0 0.0
        %6287 = vmatpush.msra.mxu0 0.0
        %6288 = vmatpush.msra.mxu0 0.0
        %6289 = vmatpush.msra.mxu0 %v5749
        %6290 = vmatpush.msra.mxu0 %v5741
        %6291 = vmatpush.msra.mxu0 %v5733
        %6292 = vmatpush.msra.mxu0 %v5725
        %6293 = vmatmul.f32.gmra.mxu0 %v5773
        %v6294 = vpop.f32.mrf.mxu0
        %v6295 = vadd.f32 %v6266, %v6294
        %6296 = vmatmul.f32.gmra.mxu0 %v5776
        %v6297 = vpop.f32.mrf.mxu0
        %v6298 = vadd.f32 %v6269, %v6297
        %6299 = vmatmul.f32.gmra.mxu0 %v5779
        %v6300 = vpop.f32.mrf.mxu0
        %v6301 = vadd.f32 %v6272, %v6300
        %6302 = vmatmul.f32.gmra.mxu0 %v5782
        %v6303 = vpop.f32.mrf.mxu0
        %v6304 = vadd.f32 %v6275, %v6303
        %6305 = vdwg.mxu0
        %6306 = vmatpush.msra.mxu0 %v5238
        %6307 = vmatpush.msra.mxu0 %v5230
        %6308 = vmatpush.msra.mxu0 %v5222
        %6309 = vmatpush.msra.mxu0 %v5214
        %6310 = vmatpush.msra.mxu0 %v5110
        %6311 = vmatpush.msra.mxu0 %v5102
        %6312 = vmatpush.msra.mxu0 %v5094
        %6313 = vmatpush.msra.mxu0 %v5086
        %6314 = vmatpush.msra.mxu0 %v4982
        %6315 = vmatpush.msra.mxu0 %v4974
        %6316 = vmatpush.msra.mxu0 %v4966
        %6317 = vmatpush.msra.mxu0 %v4958
        %6318 = vmatpush.msra.mxu0 %v4854
        %6319 = vmatpush.msra.mxu0 %v4846
        %6320 = vmatpush.msra.mxu0 %v4838
        %6321 = vmatpush.msra.mxu0 %v4830
        %6322 = vmatmul.f32.gmra.mxu0 %v4712
        %v6323 = vpop.f32.mrf.mxu0
        %v6324 = vadd.f32 %v5755, %v6323
        %6325 = vmatmul.f32.gmra.mxu0 %v4715
        %v6326 = vpop.f32.mrf.mxu0
        %v6327 = vadd.f32 %v5760, %v6326
        %6328 = vmatmul.f32.gmra.mxu0 %v4718
        %v6329 = vpop.f32.mrf.mxu0
        %v6330 = vadd.f32 %v5765, %v6329
        %6331 = vmatmul.f32.gmra.mxu0 %v4721
        %v6332 = vpop.f32.mrf.mxu0
        %v6333 = vadd.f32 %v5770, %v6332
        %6334 = vdwg.mxu0
        %6335 = vmatpush.msra.mxu0 %v5622
        %6336 = vmatpush.msra.mxu0 %v5614
        %6337 = vmatpush.msra.mxu0 %v5606
        %6338 = vmatpush.msra.mxu0 %v5598
        %6339 = vmatpush.msra.mxu0 %v5494
        %6340 = vmatpush.msra.mxu0 %v5486
        %6341 = vmatpush.msra.mxu0 %v5478
        %6342 = vmatpush.msra.mxu0 %v5470
        %6343 = vmatpush.msra.mxu0 %v5366
        %6344 = vmatpush.msra.mxu0 %v5358
        %6345 = vmatpush.msra.mxu0 %v5350
        %6346 = vmatpush.msra.mxu0 %v5342
        %6347 = vmatpush.msra.mxu0 %v4710
        %6348 = vmatpush.msra.mxu0 %v4702
        %6349 = vmatpush.msra.mxu0 %v4694
        %6350 = vmatpush.msra.mxu0 %v4686
        %6351 = vmatmul.f32.gmra.mxu0 %v4713
        %v6352 = vpop.f32.mrf.mxu0
        %v6353 = vadd.f32 %v6324, %v6352
        %6354 = vmatmul.f32.gmra.mxu0 %v4716
        %v6355 = vpop.f32.mrf.mxu0
        %v6356 = vadd.f32 %v6327, %v6355
        %6357 = vmatmul.f32.gmra.mxu0 %v4719
        %v6358 = vpop.f32.mrf.mxu0
        %v6359 = vadd.f32 %v6330, %v6358
        %6360 = vmatmul.f32.gmra.mxu0 %v4722
        %v6361 = vpop.f32.mrf.mxu0
        %v6362 = vadd.f32 %v6333, %v6361
        %6363 = vdwg.mxu0
        %6364 = vmatpush.msra.mxu0 0.0
        %6365 = vmatpush.msra.mxu0 0.0
        %6366 = vmatpush.msra.mxu0 0.0
        %6367 = vmatpush.msra.mxu0 0.0
        %6368 = vmatpush.msra.mxu0 0.0
        %6369 = vmatpush.msra.mxu0 0.0
        %6370 = vmatpush.msra.mxu0 0.0
        %6371 = vmatpush.msra.mxu0 0.0
        %6372 = vmatpush.msra.mxu0 0.0
        %6373 = vmatpush.msra.mxu0 0.0
        %6374 = vmatpush.msra.mxu0 0.0
        %6375 = vmatpush.msra.mxu0 0.0
        %6376 = vmatpush.msra.mxu0 %v5750
        %6377 = vmatpush.msra.mxu0 %v5742
        %6378 = vmatpush.msra.mxu0 %v5734
        %6379 = vmatpush.msra.mxu0 %v5726
        %6380 = vmatmul.f32.gmra.mxu0 %v5773
        %v6381 = vpop.f32.mrf.mxu0
        %v6382 = vadd.f32 %v6353, %v6381
        %6383 = vmatmul.f32.gmra.mxu0 %v5776
        %v6384 = vpop.f32.mrf.mxu0
        %v6385 = vadd.f32 %v6356, %v6384
        %6386 = vmatmul.f32.gmra.mxu0 %v5779
        %v6387 = vpop.f32.mrf.mxu0
        %v6388 = vadd.f32 %v6359, %v6387
        %6389 = vmatmul.f32.gmra.mxu0 %v5782
        %v6390 = vpop.f32.mrf.mxu0
        %v6391 = vadd.f32 %v6362, %v6390
        %6392 = vdwg.mxu0
        %6393 = vmatpush.msra.mxu0 %v5239
        %6394 = vmatpush.msra.mxu0 %v5231
        %6395 = vmatpush.msra.mxu0 %v5223
        %6396 = vmatpush.msra.mxu0 %v5215
        %6397 = vmatpush.msra.mxu0 %v5111
        %6398 = vmatpush.msra.mxu0 %v5103
        %6399 = vmatpush.msra.mxu0 %v5095
        %6400 = vmatpush.msra.mxu0 %v5087
        %6401 = vmatpush.msra.mxu0 %v4983
        %6402 = vmatpush.msra.mxu0 %v4975
        %6403 = vmatpush.msra.mxu0 %v4967
        %6404 = vmatpush.msra.mxu0 %v4959
        %6405 = vmatpush.msra.mxu0 %v4855
        %6406 = vmatpush.msra.mxu0 %v4847
        %6407 = vmatpush.msra.mxu0 %v4839
        %6408 = vmatpush.msra.mxu0 %v4831
        %6409 = vmatmul.f32.gmra.mxu0 %v4712
        %v6410 = vpop.f32.mrf.mxu0
        %v6411 = vadd.f32 %v5755, %v6410
        %6412 = vmatmul.f32.gmra.mxu0 %v4715
        %v6413 = vpop.f32.mrf.mxu0
        %v6414 = vadd.f32 %v5760, %v6413
        %6415 = vmatmul.f32.gmra.mxu0 %v4718
        %v6416 = vpop.f32.mrf.mxu0
        %v6417 = vadd.f32 %v5765, %v6416
        %6418 = vmatmul.f32.gmra.mxu0 %v4721
        %v6419 = vpop.f32.mrf.mxu0
        %v6420 = vadd.f32 %v5770, %v6419
        %6421 = vdwg.mxu0
        %6422 = vmatpush.msra.mxu0 %v5623
        %6423 = vmatpush.msra.mxu0 %v5615
        %6424 = vmatpush.msra.mxu0 %v5607
        %6425 = vmatpush.msra.mxu0 %v5599
        %6426 = vmatpush.msra.mxu0 %v5495
        %6427 = vmatpush.msra.mxu0 %v5487
        %6428 = vmatpush.msra.mxu0 %v5479
        %6429 = vmatpush.msra.mxu0 %v5471
        %6430 = vmatpush.msra.mxu0 %v5367
        %6431 = vmatpush.msra.mxu0 %v5359
        %6432 = vmatpush.msra.mxu0 %v5351
        %6433 = vmatpush.msra.mxu0 %v5343
        %6434 = vmatpush.msra.mxu0 %v4711
        %6435 = vmatpush.msra.mxu0 %v4703
        %6436 = vmatpush.msra.mxu0 %v4695
        %6437 = vmatpush.msra.mxu0 %v4687
        %6438 = vmatmul.f32.gmra.mxu0 %v4713
        %v6439 = vpop.f32.mrf.mxu0
        %v6440 = vadd.f32 %v6411, %v6439
        %6441 = vmatmul.f32.gmra.mxu0 %v4716
        %v6442 = vpop.f32.mrf.mxu0
        %v6443 = vadd.f32 %v6414, %v6442
        %6444 = vmatmul.f32.gmra.mxu0 %v4719
        %v6445 = vpop.f32.mrf.mxu0
        %v6446 = vadd.f32 %v6417, %v6445
        %6447 = vmatmul.f32.gmra.mxu0 %v4722
        %v6448 = vpop.f32.mrf.mxu0
        %v6449 = vadd.f32 %v6420, %v6448
        %6450 = vdwg.mxu0
        %6451 = vmatpush.msra.mxu0 0.0
        %6452 = vmatpush.msra.mxu0 0.0
        %6453 = vmatpush.msra.mxu0 0.0
        %6454 = vmatpush.msra.mxu0 0.0
        %6455 = vmatpush.msra.mxu0 0.0
        %6456 = vmatpush.msra.mxu0 0.0
        %6457 = vmatpush.msra.mxu0 0.0
        %6458 = vmatpush.msra.mxu0 0.0
        %6459 = vmatpush.msra.mxu0 0.0
        %6460 = vmatpush.msra.mxu0 0.0
        %6461 = vmatpush.msra.mxu0 0.0
        %6462 = vmatpush.msra.mxu0 0.0
        %6463 = vmatpush.msra.mxu0 %v5751
        %6464 = vmatpush.msra.mxu0 %v5743
        %6465 = vmatpush.msra.mxu0 %v5735
        %6466 = vmatpush.msra.mxu0 %v5727
        %6467 = vmatmul.f32.gmra.mxu0 %v5773
        %v6468 = vpop.f32.mrf.mxu0
        %v6469 = vadd.f32 %v6440, %v6468
        %6470 = vmatmul.f32.gmra.mxu0 %v5776
        %v6471 = vpop.f32.mrf.mxu0
        %v6472 = vadd.f32 %v6443, %v6471
        %6473 = vmatmul.f32.gmra.mxu0 %v5779
        %v6474 = vpop.f32.mrf.mxu0
        %v6475 = vadd.f32 %v6446, %v6474
        %6476 = vmatmul.f32.gmra.mxu0 %v5782
        %v6477 = vpop.f32.mrf.mxu0
        %v6478 = vadd.f32 %v6449, %v6477
        %6479 = vdwg.mxu0
        %v6480 = vmax.f32 %v5860, 0.0
        %v6481 = vmax.f32 %v5947, 0.0
        %v6482 = vmax.f32 %v6034, 0.0
        %v6483 = vmax.f32 %v6121, 0.0
        %v6484 = vmax.f32 %v6208, 0.0
        %v6485 = vmax.f32 %v6295, 0.0
        %v6486 = vmax.f32 %v6382, 0.0
        %v6487 = vmax.f32 %v6469, 0.0
        %v6488 = vmax.f32 %v5863, 0.0
        %v6489 = vmax.f32 %v5950, 0.0
        %v6490 = vmax.f32 %v6037, 0.0
        %v6491 = vmax.f32 %v6124, 0.0
        %v6492 = vmax.f32 %v6211, 0.0
        %v6493 = vmax.f32 %v6298, 0.0
        %v6494 = vmax.f32 %v6385, 0.0
        %v6495 = vmax.f32 %v6472, 0.0
        %v6496 = vmax.f32 %v5866, 0.0
        %v6497 = vmax.f32 %v5953, 0.0
        %v6498 = vmax.f32 %v6040, 0.0
        %v6499 = vmax.f32 %v6127, 0.0
        %v6500 = vmax.f32 %v6214, 0.0
        %v6501 = vmax.f32 %v6301, 0.0
        %v6502 = vmax.f32 %v6388, 0.0
        %v6503 = vmax.f32 %v6475, 0.0
        %v6504 = vmax.f32 %v5869, 0.0
        %v6505 = vmax.f32 %v5956, 0.0
        %v6506 = vmax.f32 %v6043, 0.0
        %v6507 = vmax.f32 %v6130, 0.0
        %v6508 = vmax.f32 %v6217, 0.0
        %v6509 = vmax.f32 %v6304, 0.0
        %v6510 = vmax.f32 %v6391, 0.0
        %v6511 = vmax.f32 %v6478, 0.0
        %6512 = vst [vmem:[%s805] sm:$0xff] %v6480
        %6513 = vst [vmem:[%s805 + $0x8] sm:$0xff] %v6481
        %6514 = vst [vmem:[%s805 + $0x10] sm:$0xff] %v6482
        %6515 = vst [vmem:[%s805 + $0x18] sm:$0xff] %v6483
        %6516 = vst [vmem:[%s805 + $0x20] sm:$0xff] %v6484
        %6517 = vst [vmem:[%s805 + $0x28] sm:$0xff] %v6485
        %6518 = vst [vmem:[%s805 + $0x30] sm:$0xff] %v6486
        %6519 = vst [vmem:[%s805 + $0x38] sm:$0xff] %v6487
        %6520 = vst [vmem:[%s805 + $0x40] sm:$0xff] %v6488
        %6521 = vst [vmem:[%s805 + $0x48] sm:$0xff] %v6489
        %6522 = vst [vmem:[%s805 + $0x50] sm:$0xff] %v6490
        %6523 = vst [vmem:[%s805 + $0x58] sm:$0xff] %v6491
        %6524 = vst [vmem:[%s805 + $0x60] sm:$0xff] %v6492
        %6525 = vst [vmem:[%s805 + $0x68] sm:$0xff] %v6493
        %6526 = vst [vmem:[%s805 + $0x70] sm:$0xff] %v6494
        %6527 = vst [vmem:[%s805 + $0x78] sm:$0xff] %v6495
        %6528 = vst [vmem:[%s805 + $0x80] sm:$0xff] %v6496
        %6529 = vst [vmem:[%s805 + $0x88] sm:$0xff] %v6497
        %6530 = vst [vmem:[%s805 + $0x90] sm:$0xff] %v6498
        %6531 = vst [vmem:[%s805 + $0x98] sm:$0xff] %v6499
        %6532 = vst [vmem:[%s805 + $0xa0] sm:$0xff] %v6500
        %6533 = vst [vmem:[%s805 + $0xa8] sm:$0xff] %v6501
        %6534 = vst [vmem:[%s805 + $0xb0] sm:$0xff] %v6502
        %6535 = vst [vmem:[%s805 + $0xb8] sm:$0xff] %v6503
        %6536 = vst [vmem:[%s805 + $0xc0] sm:$0xff] %v6504
        %6537 = vst [vmem:[%s805 + $0xc8] sm:$0xff] %v6505
        %6538 = vst [vmem:[%s805 + $0xd0] sm:$0xff] %v6506
        %6539 = vst [vmem:[%s805 + $0xd8] sm:$0xff] %v6507
        %6540 = vst [vmem:[%s805 + $0xe0] sm:$0xff] %v6508
        %6541 = vst [vmem:[%s805 + $0xe8] sm:$0xff] %v6509
        %6542 = vst [vmem:[%s805 + $0xf0] sm:$0xff] %v6510
        %6543 = vst [vmem:[%s805 + $0xf8] sm:$0xff] %v6511
        %s6544 = sand.u32 %s446, 1
        %s6545 = scalar_lea.sflag [#allocation4], %s6544
        %s6546 = sand.u32 %s446, 1
        %s6547 = smul.addr %s6546, 256
        %s6548 = scalar_lea.vmem [#allocation20], %s6547
        // Predicated region
        $region137: #{tpu_custom_call.1} parent=91 // pred_check
          %p6549 = pneg %p456
        $region138: #{tpu_custom_call.1} parent=91 // pred_check_branch
          %6551 = sbr.rel (%p6549) target = $region140
        $region139: #{tpu_custom_call.1} parent=91 // pred_region
          %6553 = vsyncadd %s6545, 0
          %s6554 = smul.addr %s40, 32
          %s6555 = smul.addr %s6554, 8
          %s6556 = scalar_lea.hbm %s18, %s6555
          %s6557 = sshll.u32 %s6548, 4
          %s6558 = int_to_ptr.vmem [resolvable:$true] %s6557
          %s6559 = sshll.u32 %s6556, 4
          %s6560 = int_to_ptr.hbm [resolvable:$true] %s6559
          %6565 = dma.vmem_to_hbm [thread:$0]  %s6558, 4096, %s6560, %s6545, 1024, 1024, 64
        $region140: #{tpu_custom_call.1} parent=91 // pred_fallthru
          _
      $region92: #{tpu_custom_call.1} parent=5 // pred_fallthru
        _
      %p6566 = scmp.le.s32.totalorder 2, %s35
      // Predicated region
      $region141: #{tpu_custom_call.1} parent=5 // pred_check
        %p6567 = pneg %p6566
      $region142: #{tpu_custom_call.1} parent=5 // pred_check_branch
        %6569 = sbr.rel (%p6567) target = $region144
      $region143: #{tpu_custom_call.1} parent=5 // pred_region
        %s6570 = ssub.s32 %s35, 2
        // Predicated region
        $region145: #{tpu_custom_call.1} parent=143 // pred_check
          %p6571 = pneg %p462
        $region146: #{tpu_custom_call.1} parent=143 // pred_check_branch
          %6573 = sbr.rel (%p6571) target = $region148
        $region147: #{tpu_custom_call.1} parent=143 // pred_region
          %s6574 = sand.u32 %s447, 1
          %s6575 = scalar_lea.sflag [#allocation4], %s6574
          %s6576 = sand.u32 %s447, 1
          %s6577 = smul.addr %s6576, 256
          %s6578 = scalar_lea.vmem [#allocation20], %s6577
          %6580 = dma.done %s6575, 4096
        $region148: #{tpu_custom_call.1} parent=143 // pred_fallthru
          _
      $region144: #{tpu_custom_call.1} parent=5 // pred_fallthru
        _
    $region6: #{tpu_custom_call.1} parent=1 // loop_footer
      %s39 = sadd.s32 1, %s35
    $region7: #{tpu_custom_call.1} parent=1 // loop_footer_branch
      %34 = sbr.rel target = $region3
    $region8: #{tpu_custom_call.1} parent=1 // loop_exit
      _
    %6581 = vsyncpa [#allocation3], 1
    %s6582 = scalar_lea.sflag [#allocation3], 1
    %6583 = vsyncpa %s6582, 1
    %6584 = vsyncpa [#allocation6], 1
    %6585 = vsyncpa [#allocation9], 1
    %6586 = vsyncpa [#allocation12], 1
    %6587 = vsyncpa [#allocation15], 1
    %6588 = vsyncpa [#allocation18], 1
    %6589 = vsyncpa [#allocation4], 1
    %s6590 = scalar_lea.sflag [#allocation4], 1
    %6591 = vsyncpa %s6590, 1

</llo_original>
